<compile_context>
chip_gen: v6e
topology: v6e:2x2x1
jax: 0.10.0
libtpu: 0.0.40
codegen_flags: <defaults>
</compile_context>

<pallas_src>
import jax
import jax.numpy as jnp
from jax import lax
from jax.experimental import pallas as pl
from jax.experimental.pallas import tpu as pltpu

LANES = 128  # every conv channel dim is padded to full 128-lane width


# ---------------------------------------------------------------------------
# Fused conv kernel: (conv+BN+ReLU+pool) x 3, one grid step per batch element
# ---------------------------------------------------------------------------
def _conv_pool_block(src, dst, w_ref, s_ref, t_ref, pool_ref, Ws, cin, Ho, Wo):
    """3x3 conv (pad=1) + folded BN + ReLU + 2x2/2 max-pool.

    src  : ref (Hs+2, Ws+2, cin)    spatially zero-padded input (bf16)
    dst  : ref (Ho+2, Wo+2, LANES)  spatially padded output buffer (bf16)
    w_ref: ref (9, LANES) if cin == 1 else (3, 3*cin, LANES)   (bf16)
    s_ref, t_ref : ref (1, LANES) f32  folded BN scale / shift (conv bias folded)
    pool_ref : ref (>=Ws, LANES) f32   scratch for the stride-2 column pool
    """
    scale = s_ref[...]
    shift = t_ref[...]
    zcol = jnp.zeros((1, LANES), jnp.float32)

    def conv_row(y):
        rows = [src[y + d] for d in range(3)]            # each (Ws+2, cin)
        if cin == 1:
            # conv1: one MXU matmul against the 9-tap weight (K = 9)
            im = jnp.concatenate(
                [rows[dy][dx:dx + Ws, :] for dy in range(3) for dx in range(3)],
                axis=1)                                   # (Ws, 9)
            acc = jnp.dot(im, w_ref[...], preferred_element_type=jnp.float32)
        else:
            acc = jnp.zeros((Ws, LANES), jnp.float32)
            for dy in range(3):
                # row-wise im2col: concat the 3 dx-shifts -> K = 3*cin
                im = jnp.concatenate(
                    [rows[dy][dx:dx + Ws, :] for dx in range(3)], axis=1)
                acc = acc + jnp.dot(im, w_ref[dy],
                                    preferred_element_type=jnp.float32)
        acc = acc * scale + shift                         # folded BN (f32)
        return jnp.maximum(acc, 0.0)                      # ReLU (f32)

    def body(po, carry):
        # pool over the two conv rows, then over column pairs
        m = jnp.maximum(conv_row(2 * po), conv_row(2 * po + 1))   # (Ws, LANES)
        pool_ref[0:Ws, :] = m
        pooled = jnp.maximum(pool_ref[pl.ds(0, Wo, stride=2), :],
                             pool_ref[pl.ds(1, Wo, stride=2), :])  # (Wo, LANES)
        full = jnp.concatenate([zcol, pooled, zcol], axis=0)       # width-pad
        dst[po + 1] = full.astype(dst.dtype)
        return carry

    lax.fori_loop(0, Ho, body, 0)


def fused_conv_kernel(x_ref, w1_ref, s1_ref, t1_ref, w2_ref, s2_ref, t2_ref,
                      w3_ref, s3_ref, t3_ref, o_ref,
                      buf1, buf2, buf3, pool_ref):
    H = x_ref.shape[0] - 2
    W = x_ref.shape[1] - 2

    # zero padded scratch buffers (spatial borders must be zero)
    buf1[...] = jnp.zeros_like(buf1)
    buf2[...] = jnp.zeros_like(buf2)
    buf3[...] = jnp.zeros_like(buf3)

    _conv_pool_block(x_ref, buf1, w1_ref, s1_ref, t1_ref, pool_ref,
                     Ws=W, cin=1, Ho=H // 2, Wo=W // 2)
    # TODO(synk): dropout_conv (p=0.1) after block 1 is identity in eval mode
    _conv_pool_block(buf1, buf2, w2_ref, s2_ref, t2_ref, pool_ref,
                     Ws=W // 2, cin=LANES, Ho=H // 4, Wo=W // 4)
    _conv_pool_block(buf2, buf3, w3_ref, s3_ref, t3_ref, pool_ref,
                     Ws=W // 4, cin=LANES, Ho=H // 8, Wo=W // 8)

    o_ref[...] = buf3[1:1 + H // 8, 1:1 + W // 8, :]


def fused_conv_blocks(x_padded, kp):
    """x_padded: (B, H+2, W+2, 1) bf16 -> (B, H//8, W//8, 128) bf16."""
    B, Hp, Wp, _ = x_padded.shape
    H, W = Hp - 2, Wp - 2
    Hf, Wf = H // 8, W // 8
    const2 = lambda n: (0, 0)
    const3 = lambda n: (0, 0, 0)
    return pl.pallas_call(
        fused_conv_kernel,
        out_shape=jax.ShapeDtypeStruct((B, Hf, Wf, LANES), jnp.bfloat16),
        grid=(B,),
        in_specs=[
            pl.BlockSpec((None, Hp, Wp, 1), lambda n: (n, 0, 0, 0)),
            pl.BlockSpec((9, LANES), const2),            # w1 (9-tap)
            pl.BlockSpec((1, LANES), const2),            # s1
            pl.BlockSpec((1, LANES), const2),            # t1
            pl.BlockSpec((3, 3 * LANES, LANES), const3), # w2
            pl.BlockSpec((1, LANES), const2),            # s2
            pl.BlockSpec((1, LANES), const2),            # t2
            pl.BlockSpec((3, 3 * LANES, LANES), const3), # w3
            pl.BlockSpec((1, LANES), const2),            # s3
            pl.BlockSpec((1, LANES), const2),            # t3
        ],
        out_specs=pl.BlockSpec((None, Hf, Wf, LANES), lambda n: (n, 0, 0, 0)),
        scratch_shapes=[
            pltpu.VMEM((H // 2 + 2, W // 2 + 2, LANES), jnp.bfloat16),
            pltpu.VMEM((H // 4 + 2, W // 4 + 2, LANES), jnp.bfloat16),
            pltpu.VMEM((H // 8 + 2, W // 8 + 2, LANES), jnp.bfloat16),
            pltpu.VMEM((W, LANES), jnp.float32),
        ],
        compiler_params=pltpu.CompilerParams(
            dimension_semantics=("parallel",)),
    )(x_padded, kp["w1"], kp["s1"], kp["t1"], kp["w2"], kp["s2"], kp["t2"],
      kp["w3"], kp["s3"], kp["t3"])


# ---------------------------------------------------------------------------
# MLP kernel: lin_1 + ReLU + lin_2  (dropout_lin is identity in eval mode)
# ---------------------------------------------------------------------------
def mlp_kernel(x_ref, w1_ref, b1_ref, w2_ref, b2_ref, o_ref):
    h = jnp.dot(x_ref[...], w1_ref[...], preferred_element_type=jnp.float32)
    h = jnp.maximum(h + b1_ref[...], 0.0)
    # TODO(synk): dropout_lin (p=0.2) is identity in eval mode
    o_ref[...] = jnp.dot(h.astype(jnp.bfloat16), w2_ref[...],
                         preferred_element_type=jnp.float32) + b2_ref[...]


def mlp(feat, kp):
    # Toy size: lin1 weight (4096x256 bf16) fits VMEM whole.  At the original
    # 128*128*5 in_features it must be K-tiled with a grid + VMEM accumulator.
    B = feat.shape[0]
    nc = kp["lin2_w"].shape[1]
    return pl.pallas_call(
        mlp_kernel,
        out_shape=jax.ShapeDtypeStruct((B, nc), jnp.float32),
    )(feat, kp["lin1_w"], kp["lin1_b"], kp["lin2_w"], kp["lin2_b"])


@jax.jit
def conv_model_forward(x_nchw, kernel_params):
    x = jnp.transpose(x_nchw, (0, 2, 3, 1)).astype(jnp.bfloat16)  # NCHW -> NHWC
    xp = jnp.pad(x, ((0, 0), (1, 1), (1, 1), (0, 0)))             # conv pad=1
    fm = fused_conv_blocks(xp, kernel_params)                     # (B,Hf,Wf,128)
    feat = fm.reshape(fm.shape[0], -1)   # NHWC flatten; lin1 rows pre-permuted
    return mlp(feat, kernel_params)


# ---------------------------------------------------------------------------
# Synthetic "torch-like" parameters and kernel-ready packing
# ---------------------------------------------------------------------------
def init_raw_params(key, H, W, num_classes=12):
    eps = 1e-5
    ks = iter(jax.random.split(key, 32))

    def conv_block(cin, cout):
        w = jax.random.normal(next(ks), (3, 3, cin, cout), jnp.float32)  # HWIO
        w = w * (2.0 / (9 * cin)) ** 0.5 * 0.5
        b = 0.05 * jax.random.normal(next(ks), (cout,), jnp.float32)
        gamma = 1.0 + 0.1 * jax.random.normal(next(ks), (cout,), jnp.float32)
        beta = 0.1 * jax.random.normal(next(ks), (cout,), jnp.float32)
        mean = 0.1 * jax.random.normal(next(ks), (cout,), jnp.float32)
        var = jax.random.uniform(next(ks), (cout,), jnp.float32, 0.5, 1.5)
        return dict(w=w, b=b, gamma=gamma, beta=beta, mean=mean, var=var, eps=eps)

    def linear(fin, fout):
        w_t = jax.random.normal(next(ks), (fin, fout), jnp.float32) / fin ** 0.5
        b = 0.05 * jax.random.normal(next(ks), (fout,), jnp.float32)
        return dict(w_t=w_t, b=b)

    feat_dim = 128 * (H // 8) * (W // 8)
    return dict(conv1=conv_block(1, 32), conv2=conv_block(32, 64),
                conv3=conv_block(64, 128),
                lin1=linear(feat_dim, 256), lin2=linear(256, num_classes))


def prepare_kernel_params(raw, H, W):
    Hf, Wf, C3 = H // 8, W // 8, 128

    def fold(p, cout_pad):
        scale = p["gamma"] / jnp.sqrt(p["var"] + p["eps"])
        shift = p["beta"] + (p["b"] - p["mean"]) * scale   # conv bias folded in
        pad = cout_pad - scale.shape[0]
        scale = jnp.pad(scale, (0, pad)).reshape(1, cout_pad).astype(jnp.float32)
        shift = jnp.pad(shift, (0, pad)).reshape(1, cout_pad).astype(jnp.float32)
        return scale, shift

    s1, t1 = fold(raw["conv1"], LANES)
    s2, t2 = fold(raw["conv2"], LANES)
    s3, t3 = fold(raw["conv3"], LANES)

    # conv1 (Cin=1): (3,3,1,32) -> 9-tap matrix, Cout padded to 128
    w1 = raw["conv1"]["w"].reshape(9, 32)
    w1 = jnp.pad(w1, ((0, 0), (0, LANES - 32))).astype(jnp.bfloat16)

    def pack_w(w, cin, cout):          # (3,3,cin,cout) -> (3, 3*128, 128)
        w = jnp.pad(w, ((0, 0), (0, 0), (0, LANES - cin), (0, LANES - cout)))
        return w.reshape(3, 3 * LANES, LANES).astype(jnp.bfloat16)

    w2 = pack_w(raw["conv2"]["w"], 32, 64)
    w3 = pack_w(raw["conv3"]["w"], 64, 128)

    # lin1: permute rows from torch NCHW-flatten order to NHWC-flatten order,
    # so the runtime transpose before the flatten is not needed.
    w_t = raw["lin1"]["w_t"]                                   # (C3*Hf*Wf, 256)
    lin1_w = (w_t.reshape(C3, Hf, Wf, -1).transpose(1, 2, 0, 3)
              .reshape(Hf * Wf * C3, -1)).astype(jnp.bfloat16)
    lin1_b = raw["lin1"]["b"].reshape(1, -1).astype(jnp.float32)
    lin2_w = raw["lin2"]["w_t"].astype(jnp.bfloat16)
    lin2_b = raw["lin2"]["b"].reshape(1, -1).astype(jnp.float32)

    return dict(w1=w1, s1=s1, t1=t1, w2=w2, s2=s2, t2=t2, w3=w3, s3=s3, t3=t3,
                lin1_w=lin1_w, lin1_b=lin1_b, lin2_w=lin2_w, lin2_b=lin2_b)


# ---------------------------------------------------------------------------
# Pure-JAX reference (mirrors the kernel's bf16 matmul / f32 epilogue rounding)
# ---------------------------------------------------------------------------
def reference_forward(x_nchw, raw):
    x = jnp.transpose(x_nchw, (0, 2, 3, 1)).astype(jnp.bfloat16)
    for name in ("conv1", "conv2", "conv3"):
        p = raw[name]
        y = lax.conv_general_dilated(
            x, p["w"].astype(jnp.bfloat16), (1, 1), "SAME",
            dimension_numbers=("NHWC", "HWIO", "NHWC"),
            preferred_element_type=jnp.float32)
        y = y + p["b"]
        y = (y - p["mean"]) * (p["gamma"] / jnp.sqrt(p["var"] + p["eps"])) + p["beta"]
        y = jnp.maximum(y, 0.0)
        y = lax.reduce_window(y, -jnp.inf, lax.max,
                              (1, 2, 2, 1), (1, 2, 2, 1), "VALID")
        x = y.astype(jnp.bfloat16)
    B = x.shape[0]
    feat = jnp.transpose(x, (0, 3, 1, 2)).reshape(B, -1)        # torch view order
    h = jnp.dot(feat, raw["lin1"]["w_t"].astype(jnp.bfloat16),
                preferred_element_type=jnp.float32) + raw["lin1"]["b"]
    h = jnp.maximum(h, 0.0).astype(jnp.bfloat16)
    return jnp.dot(h, raw["lin2"]["w_t"].astype(jnp.bfloat16),
                   preferred_element_type=jnp.float32) + raw["lin2"]["b"]


if __name__ == "__main__":
    key = jax.random.PRNGKey(0)
    kx, kp = jax.random.split(key)

    B, H, W = 2, 32, 64                   # input NCHW: (2, 1, 32, 64)
    num_classes = 12
    assert H % 8 == 0 and W % 8 == 0      # three 2x2 max-pool stages

    x = jax.random.normal(kx, (B, 1, H, W), jnp.float32)
    raw = init_raw_params(kp, H, W, num_classes)
    kparams = prepare_kernel_params(raw, H, W)

    out = conv_model_forward(x, kparams)
    out = jax.block_until_ready(out)

    assert out.shape == (B, num_classes)
    assert bool(jnp.all(jnp.isfinite(out)))
    ref = reference_forward(x, raw)
    max_err = float(jnp.max(jnp.abs(out - ref)))
    assert max_err < 1e-2, f"mismatch vs reference: {max_err}"

    print("KERNEL_OK")
</pallas_src>

<mosaic_0001>
module attributes {stable_mosaic.version = 11 : i64} {
  func.func @fused_conv_kernel(%arg0: i32, %arg1: memref<1x34x66x1xbf16, #tpu.memory_space<vmem>>, %arg2: memref<9x128xbf16, #tpu.memory_space<vmem>>, %arg3: memref<1x128xf32, #tpu.memory_space<vmem>>, %arg4: memref<1x128xf32, #tpu.memory_space<vmem>>, %arg5: memref<3x384x128xbf16, #tpu.memory_space<vmem>>, %arg6: memref<1x128xf32, #tpu.memory_space<vmem>>, %arg7: memref<1x128xf32, #tpu.memory_space<vmem>>, %arg8: memref<3x384x128xbf16, #tpu.memory_space<vmem>>, %arg9: memref<1x128xf32, #tpu.memory_space<vmem>>, %arg10: memref<1x128xf32, #tpu.memory_space<vmem>>, %arg11: memref<1x4x8x128xbf16, #tpu.memory_space<vmem>>, %arg12: memref<18x34x128xbf16, #tpu.memory_space<vmem>>, %arg13: memref<10x18x128xbf16, #tpu.memory_space<vmem>>, %arg14: memref<6x10x128xbf16, #tpu.memory_space<vmem>>, %arg15: memref<64x128xf32, #tpu.memory_space<vmem>>) attributes {dimension_semantics = [#tpu.dimension_semantics<parallel>], iteration_bounds = array<i64: 2>, scalar_prefetch = 0 : i64, scratch_operands = 4 : i64, tpu.core_type = #tpu.core_type<tc>, window_params = [{transform_indices = @transform_0, window_bounds = array<i64: 1, 34, 66, 1>}, {pipeline_mode = #tpu.pipeline_mode<synchronous>, transform_indices = @transform_1, window_bounds = array<i64: 9, 128>}, {pipeline_mode = #tpu.pipeline_mode<synchronous>, transform_indices = @transform_2, window_bounds = array<i64: 1, 128>}, {pipeline_mode = #tpu.pipeline_mode<synchronous>, transform_indices = @transform_3, window_bounds = array<i64: 1, 128>}, {pipeline_mode = #tpu.pipeline_mode<synchronous>, transform_indices = @transform_4, window_bounds = array<i64: 3, 384, 128>}, {pipeline_mode = #tpu.pipeline_mode<synchronous>, transform_indices = @transform_5, window_bounds = array<i64: 1, 128>}, {pipeline_mode = #tpu.pipeline_mode<synchronous>, transform_indices = @transform_6, window_bounds = array<i64: 1, 128>}, {pipeline_mode = #tpu.pipeline_mode<synchronous>, transform_indices = @transform_7, window_bounds = array<i64: 3, 384, 128>}, {pipeline_mode = #tpu.pipeline_mode<synchronous>, transform_indices = @transform_8, window_bounds = array<i64: 1, 128>}, {pipeline_mode = #tpu.pipeline_mode<synchronous>, transform_indices = @transform_9, window_bounds = array<i64: 1, 128>}, {transform_indices = @transform_10, window_bounds = array<i64: 1, 4, 8, 128>}]} {
    %cst = arith.constant 0.000000e+00 : bf16
    %0 = vector.broadcast %cst : bf16 to vector<18x34x128xbf16>
    %c0 = arith.constant 0 : index
    %c0_0 = arith.constant 0 : index
    %c0_1 = arith.constant 0 : index
    %1 = vector.load %arg12[%c0, %c0_0, %c0_1] : memref<18x34x128xbf16, #tpu.memory_space<vmem>>, vector<18x34x128xbf16>
    tpu.vector_store %arg12[%c0, %c0_0, %c0_1], %0 {strides = array<i32>} : memref<18x34x128xbf16, #tpu.memory_space<vmem>>, vector<18x34x128xbf16>,
    %cst_2 = arith.constant 0.000000e+00 : bf16
    %2 = vector.broadcast %cst_2 : bf16 to vector<10x18x128xbf16>
    %c0_3 = arith.constant 0 : index
    %c0_4 = arith.constant 0 : index
    %c0_5 = arith.constant 0 : index
    %3 = vector.load %arg13[%c0_3, %c0_4, %c0_5] : memref<10x18x128xbf16, #tpu.memory_space<vmem>>, vector<10x18x128xbf16>
    tpu.vector_store %arg13[%c0_3, %c0_4, %c0_5], %2 {strides = array<i32>} : memref<10x18x128xbf16, #tpu.memory_space<vmem>>, vector<10x18x128xbf16>,
    %cst_6 = arith.constant 0.000000e+00 : bf16
    %4 = vector.broadcast %cst_6 : bf16 to vector<6x10x128xbf16>
    %c0_7 = arith.constant 0 : index
    %c0_8 = arith.constant 0 : index
    %c0_9 = arith.constant 0 : index
    %5 = vector.load %arg14[%c0_7, %c0_8, %c0_9] : memref<6x10x128xbf16, #tpu.memory_space<vmem>>, vector<6x10x128xbf16>
    tpu.vector_store %arg14[%c0_7, %c0_8, %c0_9], %4 {strides = array<i32>} : memref<6x10x128xbf16, #tpu.memory_space<vmem>>, vector<6x10x128xbf16>,
    %c0_10 = arith.constant 0 : index
    %c0_11 = arith.constant 0 : index
    %6 = vector.load %arg3[%c0_10, %c0_11] : memref<1x128xf32, #tpu.memory_space<vmem>>, vector<1x128xf32>
    %c0_12 = arith.constant 0 : index
    %c0_13 = arith.constant 0 : index
    %7 = vector.load %arg4[%c0_12, %c0_13] : memref<1x128xf32, #tpu.memory_space<vmem>>, vector<1x128xf32>
    %cst_14 = arith.constant 0.000000e+00 : f32
    %8 = vector.broadcast %cst_14 : f32 to vector<1x128xf32>
    %c0_i32 = arith.constant 0 : i32
    %c16_i32 = arith.constant 16 : i32
    %9 = arith.addi %c0_i32, %c16_i32 : i32
    %c1_i32 = arith.constant 1 : i32
    scf.for %arg16 = %c0_i32 to %9 step %c1_i32  : i32 {
      %c2_i32 = arith.constant 2 : i32
      %22 = arith.muli %c2_i32, %arg16 : i32
      %c0_i32_38 = arith.constant 0 : i32
      %23 = arith.addi %22, %c0_i32_38 : i32
      %c0_39 = arith.constant 0 : index
      %24 = arith.index_cast %23 : i32 to index
      %c0_40 = arith.constant 0 : index
      %c0_41 = arith.constant 0 : index
      %25 = vector.load %arg1[%c0_39, %24, %c0_40, %c0_41] : memref<1x34x66x1xbf16, #tpu.memory_space<vmem>>, vector<1x1x66x1xbf16>
      %26 = vector.shape_cast %25 : vector<1x1x66x1xbf16> to vector<66x1xbf16>
      %c1_i32_42 = arith.constant 1 : i32
      %27 = arith.addi %22, %c1_i32_42 : i32
      %c0_43 = arith.constant 0 : index
      %28 = arith.index_cast %27 : i32 to index
      %c0_44 = arith.constant 0 : index
      %c0_45 = arith.constant 0 : index
      %29 = vector.load %arg1[%c0_43, %28, %c0_44, %c0_45] : memref<1x34x66x1xbf16, #tpu.memory_space<vmem>>, vector<1x1x66x1xbf16>
      %30 = vector.shape_cast %29 : vector<1x1x66x1xbf16> to vector<66x1xbf16>
      %c2_i32_46 = arith.constant 2 : i32
      %31 = arith.addi %22, %c2_i32_46 : i32
      %c0_47 = arith.constant 0 : index
      %32 = arith.index_cast %31 : i32 to index
      %c0_48 = arith.constant 0 : index
      %c0_49 = arith.constant 0 : index
      %33 = vector.load %arg1[%c0_47, %32, %c0_48, %c0_49] : memref<1x34x66x1xbf16, #tpu.memory_space<vmem>>, vector<1x1x66x1xbf16>
      %34 = vector.shape_cast %33 : vector<1x1x66x1xbf16> to vector<66x1xbf16>
      %35 = vector.extract_strided_slice %26 {offsets = [0, 0], sizes = [64, 1], strides = [1, 1]} : vector<66x1xbf16> to vector<64x1xbf16>
      %36 = vector.extract_strided_slice %26 {offsets = [1, 0], sizes = [64, 1], strides = [1, 1]} : vector<66x1xbf16> to vector<64x1xbf16>
      %37 = vector.extract_strided_slice %26 {offsets = [2, 0], sizes = [64, 1], strides = [1, 1]} : vector<66x1xbf16> to vector<64x1xbf16>
      %38 = vector.extract_strided_slice %30 {offsets = [0, 0], sizes = [64, 1], strides = [1, 1]} : vector<66x1xbf16> to vector<64x1xbf16>
      %39 = vector.extract_strided_slice %30 {offsets = [1, 0], sizes = [64, 1], strides = [1, 1]} : vector<66x1xbf16> to vector<64x1xbf16>
      %40 = vector.extract_strided_slice %30 {offsets = [2, 0], sizes = [64, 1], strides = [1, 1]} : vector<66x1xbf16> to vector<64x1xbf16>
      %41 = vector.extract_strided_slice %34 {offsets = [0, 0], sizes = [64, 1], strides = [1, 1]} : vector<66x1xbf16> to vector<64x1xbf16>
      %42 = vector.extract_strided_slice %34 {offsets = [1, 0], sizes = [64, 1], strides = [1, 1]} : vector<66x1xbf16> to vector<64x1xbf16>
      %43 = vector.extract_strided_slice %34 {offsets = [2, 0], sizes = [64, 1], strides = [1, 1]} : vector<66x1xbf16> to vector<64x1xbf16>
      %44 = tpu.concatenate %35, %36, %37, %38, %39, %40, %41, %42, %43 in 1 : vector<64x1xbf16>, vector<64x1xbf16>, vector<64x1xbf16>, vector<64x1xbf16>, vector<64x1xbf16>, vector<64x1xbf16>, vector<64x1xbf16>, vector<64x1xbf16>, vector<64x1xbf16> -> vector<64x9xbf16>
      %c0_50 = arith.constant 0 : index
      %c0_51 = arith.constant 0 : index
      %45 = vector.load %arg2[%c0_50, %c0_51] : memref<9x128xbf16, #tpu.memory_space<vmem>>, vector<9x128xbf16>
      %cst_52 = arith.constant dense<0.000000e+00> : vector<64x128xf32>
      %46 = tpu.matmul %44, %45, %cst_52 {dimension_numbers = #tpu.dot_dimension_numbers<[1], [0], [0], [1], [0, 0, 1, 1], [], []>} : vector<64x9xbf16>, vector<9x128xbf16>, vector<64x128xf32> -> vector<64x128xf32>
      %47 = vector.broadcast %6 : vector<1x128xf32> to vector<64x128xf32>
      %48 = arith.mulf %46, %47 : vector<64x128xf32>
      %49 = vector.broadcast %7 : vector<1x128xf32> to vector<64x128xf32>
      %50 = arith.addf %48, %49 : vector<64x128xf32>
      %cst_53 = arith.constant 0.000000e+00 : f32
      %51 = vector.broadcast %cst_53 : f32 to vector<64x128xf32>
      %52 = arith.maximumf %50, %51 : vector<64x128xf32>
      %c2_i32_54 = arith.constant 2 : i32
      %53 = arith.muli %c2_i32_54, %arg16 : i32
      %c1_i32_55 = arith.constant 1 : i32
      %54 = arith.addi %53, %c1_i32_55 : i32
      %c0_i32_56 = arith.constant 0 : i32
      %55 = arith.addi %54, %c0_i32_56 : i32
      %c0_57 = arith.constant 0 : index
      %56 = arith.index_cast %55 : i32 to index
      %c0_58 = arith.constant 0 : index
      %c0_59 = arith.constant 0 : index
      %57 = vector.load %arg1[%c0_57, %56, %c0_58, %c0_59] : memref<1x34x66x1xbf16, #tpu.memory_space<vmem>>, vector<1x1x66x1xbf16>
      %58 = vector.shape_cast %57 : vector<1x1x66x1xbf16> to vector<66x1xbf16>
      %c1_i32_60 = arith.constant 1 : i32
      %59 = arith.addi %54, %c1_i32_60 : i32
      %c0_61 = arith.constant 0 : index
      %60 = arith.index_cast %59 : i32 to index
      %c0_62 = arith.constant 0 : index
      %c0_63 = arith.constant 0 : index
      %61 = vector.load %arg1[%c0_61, %60, %c0_62, %c0_63] : memref<1x34x66x1xbf16, #tpu.memory_space<vmem>>, vector<1x1x66x1xbf16>
      %62 = vector.shape_cast %61 : vector<1x1x66x1xbf16> to vector<66x1xbf16>
      %c2_i32_64 = arith.constant 2 : i32
      %63 = arith.addi %54, %c2_i32_64 : i32
      %c0_65 = arith.constant 0 : index
      %64 = arith.index_cast %63 : i32 to index
      %c0_66 = arith.constant 0 : index
      %c0_67 = arith.constant 0 : index
      %65 = vector.load %arg1[%c0_65, %64, %c0_66, %c0_67] : memref<1x34x66x1xbf16, #tpu.memory_space<vmem>>, vector<1x1x66x1xbf16>
      %66 = vector.shape_cast %65 : vector<1x1x66x1xbf16> to vector<66x1xbf16>
      %67 = vector.extract_strided_slice %58 {offsets = [0, 0], sizes = [64, 1], strides = [1, 1]} : vector<66x1xbf16> to vector<64x1xbf16>
      %68 = vector.extract_strided_slice %58 {offsets = [1, 0], sizes = [64, 1], strides = [1, 1]} : vector<66x1xbf16> to vector<64x1xbf16>
      %69 = vector.extract_strided_slice %58 {offsets = [2, 0], sizes = [64, 1], strides = [1, 1]} : vector<66x1xbf16> to vector<64x1xbf16>
      %70 = vector.extract_strided_slice %62 {offsets = [0, 0], sizes = [64, 1], strides = [1, 1]} : vector<66x1xbf16> to vector<64x1xbf16>
      %71 = vector.extract_strided_slice %62 {offsets = [1, 0], sizes = [64, 1], strides = [1, 1]} : vector<66x1xbf16> to vector<64x1xbf16>
      %72 = vector.extract_strided_slice %62 {offsets = [2, 0], sizes = [64, 1], strides = [1, 1]} : vector<66x1xbf16> to vector<64x1xbf16>
      %73 = vector.extract_strided_slice %66 {offsets = [0, 0], sizes = [64, 1], strides = [1, 1]} : vector<66x1xbf16> to vector<64x1xbf16>
      %74 = vector.extract_strided_slice %66 {offsets = [1, 0], sizes = [64, 1], strides = [1, 1]} : vector<66x1xbf16> to vector<64x1xbf16>
      %75 = vector.extract_strided_slice %66 {offsets = [2, 0], sizes = [64, 1], strides = [1, 1]} : vector<66x1xbf16> to vector<64x1xbf16>
      %76 = tpu.concatenate %67, %68, %69, %70, %71, %72, %73, %74, %75 in 1 : vector<64x1xbf16>, vector<64x1xbf16>, vector<64x1xbf16>, vector<64x1xbf16>, vector<64x1xbf16>, vector<64x1xbf16>, vector<64x1xbf16>, vector<64x1xbf16>, vector<64x1xbf16> -> vector<64x9xbf16>
      %c0_68 = arith.constant 0 : index
      %c0_69 = arith.constant 0 : index
      %77 = vector.load %arg2[%c0_68, %c0_69] : memref<9x128xbf16, #tpu.memory_space<vmem>>, vector<9x128xbf16>
      %cst_70 = arith.constant dense<0.000000e+00> : vector<64x128xf32>
      %78 = tpu.matmul %76, %77, %cst_70 {dimension_numbers = #tpu.dot_dimension_numbers<[1], [0], [0], [1], [0, 0, 1, 1], [], []>} : vector<64x9xbf16>, vector<9x128xbf16>, vector<64x128xf32> -> vector<64x128xf32>
      %79 = vector.broadcast %6 : vector<1x128xf32> to vector<64x128xf32>
      %80 = arith.mulf %78, %79 : vector<64x128xf32>
      %81 = vector.broadcast %7 : vector<1x128xf32> to vector<64x128xf32>
      %82 = arith.addf %80, %81 : vector<64x128xf32>
      %cst_71 = arith.constant 0.000000e+00 : f32
      %83 = vector.broadcast %cst_71 : f32 to vector<64x128xf32>
      %84 = arith.maximumf %82, %83 : vector<64x128xf32>
      %85 = arith.maximumf %52, %84 : vector<64x128xf32>
      %c0_72 = arith.constant 0 : index
      %c0_73 = arith.constant 0 : index
      %86 = vector.load %arg15[%c0_72, %c0_73] : memref<64x128xf32, #tpu.memory_space<vmem>>, vector<64x128xf32>
      tpu.vector_store %arg15[%c0_72, %c0_73], %85 {strides = array<i32>} : memref<64x128xf32, #tpu.memory_space<vmem>>, vector<64x128xf32>,
      %c0_74 = arith.constant 0 : index
      %c0_75 = arith.constant 0 : index
      %87 = tpu.strided_load %arg15[%c0_74, %c0_75] {strides = array<i32: 2, 1>} : memref<64x128xf32, #tpu.memory_space<vmem>>, vector<32x128xf32>
      %c1_76 = arith.constant 1 : index
      %c0_77 = arith.constant 0 : index
      %88 = tpu.strided_load %arg15[%c1_76, %c0_77] {strides = array<i32: 2, 1>} : memref<64x128xf32, #tpu.memory_space<vmem>>, vector<32x128xf32>
      %89 = arith.maximumf %87, %88 : vector<32x128xf32>
      %90 = tpu.concatenate %8, %89, %8 in 0 : vector<1x128xf32>, vector<32x128xf32>, vector<1x128xf32> -> vector<34x128xf32>
      %91 = arith.truncf %90 : vector<34x128xf32> to vector<34x128xbf16>
      %c1_i32_78 = arith.constant 1 : i32
      %92 = arith.addi %arg16, %c1_i32_78 : i32
      %93 = arith.index_cast %92 : i32 to index
      %c0_79 = arith.constant 0 : index
      %c0_80 = arith.constant 0 : index
      %94 = vector.load %arg12[%93, %c0_79, %c0_80] : memref<18x34x128xbf16, #tpu.memory_space<vmem>>, vector<1x34x128xbf16>
      %95 = vector.shape_cast %94 : vector<1x34x128xbf16> to vector<34x128xbf16>
      %96 = vector.shape_cast %91 : vector<34x128xbf16> to vector<1x34x128xbf16>
      tpu.vector_store %arg12[%93, %c0_79, %c0_80], %96 {strides = array<i32>} : memref<18x34x128xbf16, #tpu.memory_space<vmem>>, vector<1x34x128xbf16>,
    }
    %c16_i32_15 = arith.constant 16 : i32
    %c0_16 = arith.constant 0 : index
    %c0_17 = arith.constant 0 : index
    %10 = vector.load %arg6[%c0_16, %c0_17] : memref<1x128xf32, #tpu.memory_space<vmem>>, vector<1x128xf32>
    %c0_18 = arith.constant 0 : index
    %c0_19 = arith.constant 0 : index
    %11 = vector.load %arg7[%c0_18, %c0_19] : memref<1x128xf32, #tpu.memory_space<vmem>>, vector<1x128xf32>
    %cst_20 = arith.constant 0.000000e+00 : f32
    %12 = vector.broadcast %cst_20 : f32 to vector<1x128xf32>
    %c0_i32_21 = arith.constant 0 : i32
    %c8_i32 = arith.constant 8 : i32
    %13 = arith.addi %c0_i32_21, %c8_i32 : i32
    %c1_i32_22 = arith.constant 1 : i32
    scf.for %arg16 = %c0_i32_21 to %13 step %c1_i32_22  : i32 {
      %c2_i32 = arith.constant 2 : i32
      %22 = arith.muli %c2_i32, %arg16 : i32
      %c0_i32_38 = arith.constant 0 : i32
      %23 = arith.addi %22, %c0_i32_38 : i32
      %24 = arith.index_cast %23 : i32 to index
      %c0_39 = arith.constant 0 : index
      %c0_40 = arith.constant 0 : index
      %25 = vector.load %arg12[%24, %c0_39, %c0_40] : memref<18x34x128xbf16, #tpu.memory_space<vmem>>, vector<1x34x128xbf16>
      %26 = vector.shape_cast %25 : vector<1x34x128xbf16> to vector<34x128xbf16>
      %c1_i32_41 = arith.constant 1 : i32
      %27 = arith.addi %22, %c1_i32_41 : i32
      %28 = arith.index_cast %27 : i32 to index
      %c0_42 = arith.constant 0 : index
      %c0_43 = arith.constant 0 : index
      %29 = vector.load %arg12[%28, %c0_42, %c0_43] : memref<18x34x128xbf16, #tpu.memory_space<vmem>>, vector<1x34x128xbf16>
      %30 = vector.shape_cast %29 : vector<1x34x128xbf16> to vector<34x128xbf16>
      %c2_i32_44 = arith.constant 2 : i32
      %31 = arith.addi %22, %c2_i32_44 : i32
      %32 = arith.index_cast %31 : i32 to index
      %c0_45 = arith.constant 0 : index
      %c0_46 = arith.constant 0 : index
      %33 = vector.load %arg12[%32, %c0_45, %c0_46] : memref<18x34x128xbf16, #tpu.memory_space<vmem>>, vector<1x34x128xbf16>
      %34 = vector.shape_cast %33 : vector<1x34x128xbf16> to vector<34x128xbf16>
      %cst_47 = arith.constant 0.000000e+00 : f32
      %35 = vector.broadcast %cst_47 : f32 to vector<32x128xf32>
      %36 = vector.extract_strided_slice %26 {offsets = [0, 0], sizes = [32, 128], strides = [1, 1]} : vector<34x128xbf16> to vector<32x128xbf16>
      %37 = vector.extract_strided_slice %26 {offsets = [1, 0], sizes = [32, 128], strides = [1, 1]} : vector<34x128xbf16> to vector<32x128xbf16>
      %38 = vector.extract_strided_slice %26 {offsets = [2, 0], sizes = [32, 128], strides = [1, 1]} : vector<34x128xbf16> to vector<32x128xbf16>
      %39 = tpu.concatenate %36, %37, %38 in 1 : vector<32x128xbf16>, vector<32x128xbf16>, vector<32x128xbf16> -> vector<32x384xbf16>
      %c0_48 = arith.constant 0 : index
      %c0_49 = arith.constant 0 : index
      %c0_50 = arith.constant 0 : index
      %40 = vector.load %arg5[%c0_48, %c0_49, %c0_50] : memref<3x384x128xbf16, #tpu.memory_space<vmem>>, vector<1x384x128xbf16>
      %41 = vector.shape_cast %40 : vector<1x384x128xbf16> to vector<384x128xbf16>
      %cst_51 = arith.constant dense<0.000000e+00> : vector<32x128xf32>
      %42 = tpu.matmul %39, %41, %cst_51 {dimension_numbers = #tpu.dot_dimension_numbers<[1], [0], [0], [1], [0, 0, 1, 1], [], []>} : vector<32x384xbf16>, vector<384x128xbf16>, vector<32x128xf32> -> vector<32x128xf32>
      %43 = arith.addf %35, %42 : vector<32x128xf32>
      %44 = vector.extract_strided_slice %30 {offsets = [0, 0], sizes = [32, 128], strides = [1, 1]} : vector<34x128xbf16> to vector<32x128xbf16>
      %45 = vector.extract_strided_slice %30 {offsets = [1, 0], sizes = [32, 128], strides = [1, 1]} : vector<34x128xbf16> to vector<32x128xbf16>
      %46 = vector.extract_strided_slice %30 {offsets = [2, 0], sizes = [32, 128], strides = [1, 1]} : vector<34x128xbf16> to vector<32x128xbf16>
      %47 = tpu.concatenate %44, %45, %46 in 1 : vector<32x128xbf16>, vector<32x128xbf16>, vector<32x128xbf16> -> vector<32x384xbf16>
      %c1_52 = arith.constant 1 : index
      %c0_53 = arith.constant 0 : index
      %c0_54 = arith.constant 0 : index
      %48 = vector.load %arg5[%c1_52, %c0_53, %c0_54] : memref<3x384x128xbf16, #tpu.memory_space<vmem>>, vector<1x384x128xbf16>
      %49 = vector.shape_cast %48 : vector<1x384x128xbf16> to vector<384x128xbf16>
      %cst_55 = arith.constant dense<0.000000e+00> : vector<32x128xf32>
      %50 = tpu.matmul %47, %49, %cst_55 {dimension_numbers = #tpu.dot_dimension_numbers<[1], [0], [0], [1], [0, 0, 1, 1], [], []>} : vector<32x384xbf16>, vector<384x128xbf16>, vector<32x128xf32> -> vector<32x128xf32>
      %51 = arith.addf %43, %50 : vector<32x128xf32>
      %52 = vector.extract_strided_slice %34 {offsets = [0, 0], sizes = [32, 128], strides = [1, 1]} : vector<34x128xbf16> to vector<32x128xbf16>
      %53 = vector.extract_strided_slice %34 {offsets = [1, 0], sizes = [32, 128], strides = [1, 1]} : vector<34x128xbf16> to vector<32x128xbf16>
      %54 = vector.extract_strided_slice %34 {offsets = [2, 0], sizes = [32, 128], strides = [1, 1]} : vector<34x128xbf16> to vector<32x128xbf16>
      %55 = tpu.concatenate %52, %53, %54 in 1 : vector<32x128xbf16>, vector<32x128xbf16>, vector<32x128xbf16> -> vector<32x384xbf16>
      %c2 = arith.constant 2 : index
      %c0_56 = arith.constant 0 : index
      %c0_57 = arith.constant 0 : index
      %56 = vector.load %arg5[%c2, %c0_56, %c0_57] : memref<3x384x128xbf16, #tpu.memory_space<vmem>>, vector<1x384x128xbf16>
      %57 = vector.shape_cast %56 : vector<1x384x128xbf16> to vector<384x128xbf16>
      %cst_58 = arith.constant dense<0.000000e+00> : vector<32x128xf32>
      %58 = tpu.matmul %55, %57, %cst_58 {dimension_numbers = #tpu.dot_dimension_numbers<[1], [0], [0], [1], [0, 0, 1, 1], [], []>} : vector<32x384xbf16>, vector<384x128xbf16>, vector<32x128xf32> -> vector<32x128xf32>
      %59 = arith.addf %51, %58 : vector<32x128xf32>
      %60 = vector.broadcast %10 : vector<1x128xf32> to vector<32x128xf32>
      %61 = arith.mulf %59, %60 : vector<32x128xf32>
      %62 = vector.broadcast %11 : vector<1x128xf32> to vector<32x128xf32>
      %63 = arith.addf %61, %62 : vector<32x128xf32>
      %cst_59 = arith.constant 0.000000e+00 : f32
      %64 = vector.broadcast %cst_59 : f32 to vector<32x128xf32>
      %65 = arith.maximumf %63, %64 : vector<32x128xf32>
      %c2_i32_60 = arith.constant 2 : i32
      %66 = arith.muli %c2_i32_60, %arg16 : i32
      %c1_i32_61 = arith.constant 1 : i32
      %67 = arith.addi %66, %c1_i32_61 : i32
      %c0_i32_62 = arith.constant 0 : i32
      %68 = arith.addi %67, %c0_i32_62 : i32
      %69 = arith.index_cast %68 : i32 to index
      %c0_63 = arith.constant 0 : index
      %c0_64 = arith.constant 0 : index
      %70 = vector.load %arg12[%69, %c0_63, %c0_64] : memref<18x34x128xbf16, #tpu.memory_space<vmem>>, vector<1x34x128xbf16>
      %71 = vector.shape_cast %70 : vector<1x34x128xbf16> to vector<34x128xbf16>
      %c1_i32_65 = arith.constant 1 : i32
      %72 = arith.addi %67, %c1_i32_65 : i32
      %73 = arith.index_cast %72 : i32 to index
      %c0_66 = arith.constant 0 : index
      %c0_67 = arith.constant 0 : index
      %74 = vector.load %arg12[%73, %c0_66, %c0_67] : memref<18x34x128xbf16, #tpu.memory_space<vmem>>, vector<1x34x128xbf16>
      %75 = vector.shape_cast %74 : vector<1x34x128xbf16> to vector<34x128xbf16>
      %c2_i32_68 = arith.constant 2 : i32
      %76 = arith.addi %67, %c2_i32_68 : i32
      %77 = arith.index_cast %76 : i32 to index
      %c0_69 = arith.constant 0 : index
      %c0_70 = arith.constant 0 : index
      %78 = vector.load %arg12[%77, %c0_69, %c0_70] : memref<18x34x128xbf16, #tpu.memory_space<vmem>>, vector<1x34x128xbf16>
      %79 = vector.shape_cast %78 : vector<1x34x128xbf16> to vector<34x128xbf16>
      %cst_71 = arith.constant 0.000000e+00 : f32
      %80 = vector.broadcast %cst_71 : f32 to vector<32x128xf32>
      %81 = vector.extract_strided_slice %71 {offsets = [0, 0], sizes = [32, 128], strides = [1, 1]} : vector<34x128xbf16> to vector<32x128xbf16>
      %82 = vector.extract_strided_slice %71 {offsets = [1, 0], sizes = [32, 128], strides = [1, 1]} : vector<34x128xbf16> to vector<32x128xbf16>
      %83 = vector.extract_strided_slice %71 {offsets = [2, 0], sizes = [32, 128], strides = [1, 1]} : vector<34x128xbf16> to vector<32x128xbf16>
      %84 = tpu.concatenate %81, %82, %83 in 1 : vector<32x128xbf16>, vector<32x128xbf16>, vector<32x128xbf16> -> vector<32x384xbf16>
      %c0_72 = arith.constant 0 : index
      %c0_73 = arith.constant 0 : index
      %c0_74 = arith.constant 0 : index
      %85 = vector.load %arg5[%c0_72, %c0_73, %c0_74] : memref<3x384x128xbf16, #tpu.memory_space<vmem>>, vector<1x384x128xbf16>
      %86 = vector.shape_cast %85 : vector<1x384x128xbf16> to vector<384x128xbf16>
      %cst_75 = arith.constant dense<0.000000e+00> : vector<32x128xf32>
      %87 = tpu.matmul %84, %86, %cst_75 {dimension_numbers = #tpu.dot_dimension_numbers<[1], [0], [0], [1], [0, 0, 1, 1], [], []>} : vector<32x384xbf16>, vector<384x128xbf16>, vector<32x128xf32> -> vector<32x128xf32>
      %88 = arith.addf %80, %87 : vector<32x128xf32>
      %89 = vector.extract_strided_slice %75 {offsets = [0, 0], sizes = [32, 128], strides = [1, 1]} : vector<34x128xbf16> to vector<32x128xbf16>
      %90 = vector.extract_strided_slice %75 {offsets = [1, 0], sizes = [32, 128], strides = [1, 1]} : vector<34x128xbf16> to vector<32x128xbf16>
      %91 = vector.extract_strided_slice %75 {offsets = [2, 0], sizes = [32, 128], strides = [1, 1]} : vector<34x128xbf16> to vector<32x128xbf16>
      %92 = tpu.concatenate %89, %90, %91 in 1 : vector<32x128xbf16>, vector<32x128xbf16>, vector<32x128xbf16> -> vector<32x384xbf16>
      %c1_76 = arith.constant 1 : index
      %c0_77 = arith.constant 0 : index
      %c0_78 = arith.constant 0 : index
      %93 = vector.load %arg5[%c1_76, %c0_77, %c0_78] : memref<3x384x128xbf16, #tpu.memory_space<vmem>>, vector<1x384x128xbf16>
      %94 = vector.shape_cast %93 : vector<1x384x128xbf16> to vector<384x128xbf16>
      %cst_79 = arith.constant dense<0.000000e+00> : vector<32x128xf32>
      %95 = tpu.matmul %92, %94, %cst_79 {dimension_numbers = #tpu.dot_dimension_numbers<[1], [0], [0], [1], [0, 0, 1, 1], [], []>} : vector<32x384xbf16>, vector<384x128xbf16>, vector<32x128xf32> -> vector<32x128xf32>
      %96 = arith.addf %88, %95 : vector<32x128xf32>
      %97 = vector.extract_strided_slice %79 {offsets = [0, 0], sizes = [32, 128], strides = [1, 1]} : vector<34x128xbf16> to vector<32x128xbf16>
      %98 = vector.extract_strided_slice %79 {offsets = [1, 0], sizes = [32, 128], strides = [1, 1]} : vector<34x128xbf16> to vector<32x128xbf16>
      %99 = vector.extract_strided_slice %79 {offsets = [2, 0], sizes = [32, 128], strides = [1, 1]} : vector<34x128xbf16> to vector<32x128xbf16>
      %100 = tpu.concatenate %97, %98, %99 in 1 : vector<32x128xbf16>, vector<32x128xbf16>, vector<32x128xbf16> -> vector<32x384xbf16>
      %c2_80 = arith.constant 2 : index
      %c0_81 = arith.constant 0 : index
      %c0_82 = arith.constant 0 : index
      %101 = vector.load %arg5[%c2_80, %c0_81, %c0_82] : memref<3x384x128xbf16, #tpu.memory_space<vmem>>, vector<1x384x128xbf16>
      %102 = vector.shape_cast %101 : vector<1x384x128xbf16> to vector<384x128xbf16>
      %cst_83 = arith.constant dense<0.000000e+00> : vector<32x128xf32>
      %103 = tpu.matmul %100, %102, %cst_83 {dimension_numbers = #tpu.dot_dimension_numbers<[1], [0], [0], [1], [0, 0, 1, 1], [], []>} : vector<32x384xbf16>, vector<384x128xbf16>, vector<32x128xf32> -> vector<32x128xf32>
      %104 = arith.addf %96, %103 : vector<32x128xf32>
      %105 = vector.broadcast %10 : vector<1x128xf32> to vector<32x128xf32>
      %106 = arith.mulf %104, %105 : vector<32x128xf32>
      %107 = vector.broadcast %11 : vector<1x128xf32> to vector<32x128xf32>
      %108 = arith.addf %106, %107 : vector<32x128xf32>
      %cst_84 = arith.constant 0.000000e+00 : f32
      %109 = vector.broadcast %cst_84 : f32 to vector<32x128xf32>
      %110 = arith.maximumf %108, %109 : vector<32x128xf32>
      %111 = arith.maximumf %65, %110 : vector<32x128xf32>
      %c0_85 = arith.constant 0 : index
      %c0_86 = arith.constant 0 : index
      %112 = vector.load %arg15[%c0_85, %c0_86] : memref<64x128xf32, #tpu.memory_space<vmem>>, vector<32x128xf32>
      tpu.vector_store %arg15[%c0_85, %c0_86], %111 {strides = array<i32>} : memref<64x128xf32, #tpu.memory_space<vmem>>, vector<32x128xf32>,
      %c0_87 = arith.constant 0 : index
      %c0_88 = arith.constant 0 : index
      %113 = tpu.strided_load %arg15[%c0_87, %c0_88] {strides = array<i32: 2, 1>} : memref<64x128xf32, #tpu.memory_space<vmem>>, vector<16x128xf32>
      %c1_89 = arith.constant 1 : index
      %c0_90 = arith.constant 0 : index
      %114 = tpu.strided_load %arg15[%c1_89, %c0_90] {strides = array<i32: 2, 1>} : memref<64x128xf32, #tpu.memory_space<vmem>>, vector<16x128xf32>
      %115 = arith.maximumf %113, %114 : vector<16x128xf32>
      %116 = tpu.concatenate %12, %115, %12 in 0 : vector<1x128xf32>, vector<16x128xf32>, vector<1x128xf32> -> vector<18x128xf32>
      %117 = arith.truncf %116 : vector<18x128xf32> to vector<18x128xbf16>
      %c1_i32_91 = arith.constant 1 : i32
      %118 = arith.addi %arg16, %c1_i32_91 : i32
      %119 = arith.index_cast %118 : i32 to index
      %c0_92 = arith.constant 0 : index
      %c0_93 = arith.constant 0 : index
      %120 = vector.load %arg13[%119, %c0_92, %c0_93] : memref<10x18x128xbf16, #tpu.memory_space<vmem>>, vector<1x18x128xbf16>
      %121 = vector.shape_cast %120 : vector<1x18x128xbf16> to vector<18x128xbf16>
      %122 = vector.shape_cast %117 : vector<18x128xbf16> to vector<1x18x128xbf16>
      tpu.vector_store %arg13[%119, %c0_92, %c0_93], %122 {strides = array<i32>} : memref<10x18x128xbf16, #tpu.memory_space<vmem>>, vector<1x18x128xbf16>,
    }
    %c8_i32_23 = arith.constant 8 : i32
    %c0_24 = arith.constant 0 : index
    %c0_25 = arith.constant 0 : index
    %14 = vector.load %arg9[%c0_24, %c0_25] : memref<1x128xf32, #tpu.memory_space<vmem>>, vector<1x128xf32>
    %c0_26 = arith.constant 0 : index
    %c0_27 = arith.constant 0 : index
    %15 = vector.load %arg10[%c0_26, %c0_27] : memref<1x128xf32, #tpu.memory_space<vmem>>, vector<1x128xf32>
    %cst_28 = arith.constant 0.000000e+00 : f32
    %16 = vector.broadcast %cst_28 : f32 to vector<1x128xf32>
    %c0_i32_29 = arith.constant 0 : i32
    %c4_i32 = arith.constant 4 : i32
    %17 = arith.addi %c0_i32_29, %c4_i32 : i32
    %c1_i32_30 = arith.constant 1 : i32
    scf.for %arg16 = %c0_i32_29 to %17 step %c1_i32_30  : i32 {
      %c2_i32 = arith.constant 2 : i32
      %22 = arith.muli %c2_i32, %arg16 : i32
      %c0_i32_38 = arith.constant 0 : i32
      %23 = arith.addi %22, %c0_i32_38 : i32
      %24 = arith.index_cast %23 : i32 to index
      %c0_39 = arith.constant 0 : index
      %c0_40 = arith.constant 0 : index
      %25 = vector.load %arg13[%24, %c0_39, %c0_40] : memref<10x18x128xbf16, #tpu.memory_space<vmem>>, vector<1x18x128xbf16>
      %26 = vector.shape_cast %25 : vector<1x18x128xbf16> to vector<18x128xbf16>
      %c1_i32_41 = arith.constant 1 : i32
      %27 = arith.addi %22, %c1_i32_41 : i32
      %28 = arith.index_cast %27 : i32 to index
      %c0_42 = arith.constant 0 : index
      %c0_43 = arith.constant 0 : index
      %29 = vector.load %arg13[%28, %c0_42, %c0_43] : memref<10x18x128xbf16, #tpu.memory_space<vmem>>, vector<1x18x128xbf16>
      %30 = vector.shape_cast %29 : vector<1x18x128xbf16> to vector<18x128xbf16>
      %c2_i32_44 = arith.constant 2 : i32
      %31 = arith.addi %22, %c2_i32_44 : i32
      %32 = arith.index_cast %31 : i32 to index
      %c0_45 = arith.constant 0 : index
      %c0_46 = arith.constant 0 : index
      %33 = vector.load %arg13[%32, %c0_45, %c0_46] : memref<10x18x128xbf16, #tpu.memory_space<vmem>>, vector<1x18x128xbf16>
      %34 = vector.shape_cast %33 : vector<1x18x128xbf16> to vector<18x128xbf16>
      %cst_47 = arith.constant 0.000000e+00 : f32
      %35 = vector.broadcast %cst_47 : f32 to vector<16x128xf32>
      %36 = vector.extract_strided_slice %26 {offsets = [0, 0], sizes = [16, 128], strides = [1, 1]} : vector<18x128xbf16> to vector<16x128xbf16>
      %37 = vector.extract_strided_slice %26 {offsets = [1, 0], sizes = [16, 128], strides = [1, 1]} : vector<18x128xbf16> to vector<16x128xbf16>
      %38 = vector.extract_strided_slice %26 {offsets = [2, 0], sizes = [16, 128], strides = [1, 1]} : vector<18x128xbf16> to vector<16x128xbf16>
      %39 = tpu.concatenate %36, %37, %38 in 1 : vector<16x128xbf16>, vector<16x128xbf16>, vector<16x128xbf16> -> vector<16x384xbf16>
      %c0_48 = arith.constant 0 : index
      %c0_49 = arith.constant 0 : index
      %c0_50 = arith.constant 0 : index
      %40 = vector.load %arg8[%c0_48, %c0_49, %c0_50] : memref<3x384x128xbf16, #tpu.memory_space<vmem>>, vector<1x384x128xbf16>
      %41 = vector.shape_cast %40 : vector<1x384x128xbf16> to vector<384x128xbf16>
      %cst_51 = arith.constant dense<0.000000e+00> : vector<16x128xf32>
      %42 = tpu.matmul %39, %41, %cst_51 {dimension_numbers = #tpu.dot_dimension_numbers<[1], [0], [0], [1], [0, 0, 1, 1], [], []>} : vector<16x384xbf16>, vector<384x128xbf16>, vector<16x128xf32> -> vector<16x128xf32>
      %43 = arith.addf %35, %42 : vector<16x128xf32>
      %44 = vector.extract_strided_slice %30 {offsets = [0, 0], sizes = [16, 128], strides = [1, 1]} : vector<18x128xbf16> to vector<16x128xbf16>
      %45 = vector.extract_strided_slice %30 {offsets = [1, 0], sizes = [16, 128], strides = [1, 1]} : vector<18x128xbf16> to vector<16x128xbf16>
      %46 = vector.extract_strided_slice %30 {offsets = [2, 0], sizes = [16, 128], strides = [1, 1]} : vector<18x128xbf16> to vector<16x128xbf16>
      %47 = tpu.concatenate %44, %45, %46 in 1 : vector<16x128xbf16>, vector<16x128xbf16>, vector<16x128xbf16> -> vector<16x384xbf16>
      %c1_52 = arith.constant 1 : index
      %c0_53 = arith.constant 0 : index
      %c0_54 = arith.constant 0 : index
      %48 = vector.load %arg8[%c1_52, %c0_53, %c0_54] : memref<3x384x128xbf16, #tpu.memory_space<vmem>>, vector<1x384x128xbf16>
      %49 = vector.shape_cast %48 : vector<1x384x128xbf16> to vector<384x128xbf16>
      %cst_55 = arith.constant dense<0.000000e+00> : vector<16x128xf32>
      %50 = tpu.matmul %47, %49, %cst_55 {dimension_numbers = #tpu.dot_dimension_numbers<[1], [0], [0], [1], [0, 0, 1, 1], [], []>} : vector<16x384xbf16>, vector<384x128xbf16>, vector<16x128xf32> -> vector<16x128xf32>
      %51 = arith.addf %43, %50 : vector<16x128xf32>
      %52 = vector.extract_strided_slice %34 {offsets = [0, 0], sizes = [16, 128], strides = [1, 1]} : vector<18x128xbf16> to vector<16x128xbf16>
      %53 = vector.extract_strided_slice %34 {offsets = [1, 0], sizes = [16, 128], strides = [1, 1]} : vector<18x128xbf16> to vector<16x128xbf16>
      %54 = vector.extract_strided_slice %34 {offsets = [2, 0], sizes = [16, 128], strides = [1, 1]} : vector<18x128xbf16> to vector<16x128xbf16>
      %55 = tpu.concatenate %52, %53, %54 in 1 : vector<16x128xbf16>, vector<16x128xbf16>, vector<16x128xbf16> -> vector<16x384xbf16>
      %c2 = arith.constant 2 : index
      %c0_56 = arith.constant 0 : index
      %c0_57 = arith.constant 0 : index
      %56 = vector.load %arg8[%c2, %c0_56, %c0_57] : memref<3x384x128xbf16, #tpu.memory_space<vmem>>, vector<1x384x128xbf16>
      %57 = vector.shape_cast %56 : vector<1x384x128xbf16> to vector<384x128xbf16>
      %cst_58 = arith.constant dense<0.000000e+00> : vector<16x128xf32>
      %58 = tpu.matmul %55, %57, %cst_58 {dimension_numbers = #tpu.dot_dimension_numbers<[1], [0], [0], [1], [0, 0, 1, 1], [], []>} : vector<16x384xbf16>, vector<384x128xbf16>, vector<16x128xf32> -> vector<16x128xf32>
      %59 = arith.addf %51, %58 : vector<16x128xf32>
      %60 = vector.broadcast %14 : vector<1x128xf32> to vector<16x128xf32>
      %61 = arith.mulf %59, %60 : vector<16x128xf32>
      %62 = vector.broadcast %15 : vector<1x128xf32> to vector<16x128xf32>
      %63 = arith.addf %61, %62 : vector<16x128xf32>
      %cst_59 = arith.constant 0.000000e+00 : f32
      %64 = vector.broadcast %cst_59 : f32 to vector<16x128xf32>
      %65 = arith.maximumf %63, %64 : vector<16x128xf32>
      %c2_i32_60 = arith.constant 2 : i32
      %66 = arith.muli %c2_i32_60, %arg16 : i32
      %c1_i32_61 = arith.constant 1 : i32
      %67 = arith.addi %66, %c1_i32_61 : i32
      %c0_i32_62 = arith.constant 0 : i32
      %68 = arith.addi %67, %c0_i32_62 : i32
      %69 = arith.index_cast %68 : i32 to index
      %c0_63 = arith.constant 0 : index
      %c0_64 = arith.constant 0 : index
      %70 = vector.load %arg13[%69, %c0_63, %c0_64] : memref<10x18x128xbf16, #tpu.memory_space<vmem>>, vector<1x18x128xbf16>
      %71 = vector.shape_cast %70 : vector<1x18x128xbf16> to vector<18x128xbf16>
      %c1_i32_65 = arith.constant 1 : i32
      %72 = arith.addi %67, %c1_i32_65 : i32
      %73 = arith.index_cast %72 : i32 to index
      %c0_66 = arith.constant 0 : index
      %c0_67 = arith.constant 0 : index
      %74 = vector.load %arg13[%73, %c0_66, %c0_67] : memref<10x18x128xbf16, #tpu.memory_space<vmem>>, vector<1x18x128xbf16>
      %75 = vector.shape_cast %74 : vector<1x18x128xbf16> to vector<18x128xbf16>
      %c2_i32_68 = arith.constant 2 : i32
      %76 = arith.addi %67, %c2_i32_68 : i32
      %77 = arith.index_cast %76 : i32 to index
      %c0_69 = arith.constant 0 : index
      %c0_70 = arith.constant 0 : index
      %78 = vector.load %arg13[%77, %c0_69, %c0_70] : memref<10x18x128xbf16, #tpu.memory_space<vmem>>, vector<1x18x128xbf16>
      %79 = vector.shape_cast %78 : vector<1x18x128xbf16> to vector<18x128xbf16>
      %cst_71 = arith.constant 0.000000e+00 : f32
      %80 = vector.broadcast %cst_71 : f32 to vector<16x128xf32>
      %81 = vector.extract_strided_slice %71 {offsets = [0, 0], sizes = [16, 128], strides = [1, 1]} : vector<18x128xbf16> to vector<16x128xbf16>
      %82 = vector.extract_strided_slice %71 {offsets = [1, 0], sizes = [16, 128], strides = [1, 1]} : vector<18x128xbf16> to vector<16x128xbf16>
      %83 = vector.extract_strided_slice %71 {offsets = [2, 0], sizes = [16, 128], strides = [1, 1]} : vector<18x128xbf16> to vector<16x128xbf16>
      %84 = tpu.concatenate %81, %82, %83 in 1 : vector<16x128xbf16>, vector<16x128xbf16>, vector<16x128xbf16> -> vector<16x384xbf16>
      %c0_72 = arith.constant 0 : index
      %c0_73 = arith.constant 0 : index
      %c0_74 = arith.constant 0 : index
      %85 = vector.load %arg8[%c0_72, %c0_73, %c0_74] : memref<3x384x128xbf16, #tpu.memory_space<vmem>>, vector<1x384x128xbf16>
      %86 = vector.shape_cast %85 : vector<1x384x128xbf16> to vector<384x128xbf16>
      %cst_75 = arith.constant dense<0.000000e+00> : vector<16x128xf32>
      %87 = tpu.matmul %84, %86, %cst_75 {dimension_numbers = #tpu.dot_dimension_numbers<[1], [0], [0], [1], [0, 0, 1, 1], [], []>} : vector<16x384xbf16>, vector<384x128xbf16>, vector<16x128xf32> -> vector<16x128xf32>
      %88 = arith.addf %80, %87 : vector<16x128xf32>
      %89 = vector.extract_strided_slice %75 {offsets = [0, 0], sizes = [16, 128], strides = [1, 1]} : vector<18x128xbf16> to vector<16x128xbf16>
      %90 = vector.extract_strided_slice %75 {offsets = [1, 0], sizes = [16, 128], strides = [1, 1]} : vector<18x128xbf16> to vector<16x128xbf16>
      %91 = vector.extract_strided_slice %75 {offsets = [2, 0], sizes = [16, 128], strides = [1, 1]} : vector<18x128xbf16> to vector<16x128xbf16>
      %92 = tpu.concatenate %89, %90, %91 in 1 : vector<16x128xbf16>, vector<16x128xbf16>, vector<16x128xbf16> -> vector<16x384xbf16>
      %c1_76 = arith.constant 1 : index
      %c0_77 = arith.constant 0 : index
      %c0_78 = arith.constant 0 : index
      %93 = vector.load %arg8[%c1_76, %c0_77, %c0_78] : memref<3x384x128xbf16, #tpu.memory_space<vmem>>, vector<1x384x128xbf16>
      %94 = vector.shape_cast %93 : vector<1x384x128xbf16> to vector<384x128xbf16>
      %cst_79 = arith.constant dense<0.000000e+00> : vector<16x128xf32>
      %95 = tpu.matmul %92, %94, %cst_79 {dimension_numbers = #tpu.dot_dimension_numbers<[1], [0], [0], [1], [0, 0, 1, 1], [], []>} : vector<16x384xbf16>, vector<384x128xbf16>, vector<16x128xf32> -> vector<16x128xf32>
      %96 = arith.addf %88, %95 : vector<16x128xf32>
      %97 = vector.extract_strided_slice %79 {offsets = [0, 0], sizes = [16, 128], strides = [1, 1]} : vector<18x128xbf16> to vector<16x128xbf16>
      %98 = vector.extract_strided_slice %79 {offsets = [1, 0], sizes = [16, 128], strides = [1, 1]} : vector<18x128xbf16> to vector<16x128xbf16>
      %99 = vector.extract_strided_slice %79 {offsets = [2, 0], sizes = [16, 128], strides = [1, 1]} : vector<18x128xbf16> to vector<16x128xbf16>
      %100 = tpu.concatenate %97, %98, %99 in 1 : vector<16x128xbf16>, vector<16x128xbf16>, vector<16x128xbf16> -> vector<16x384xbf16>
      %c2_80 = arith.constant 2 : index
      %c0_81 = arith.constant 0 : index
      %c0_82 = arith.constant 0 : index
      %101 = vector.load %arg8[%c2_80, %c0_81, %c0_82] : memref<3x384x128xbf16, #tpu.memory_space<vmem>>, vector<1x384x128xbf16>
      %102 = vector.shape_cast %101 : vector<1x384x128xbf16> to vector<384x128xbf16>
      %cst_83 = arith.constant dense<0.000000e+00> : vector<16x128xf32>
      %103 = tpu.matmul %100, %102, %cst_83 {dimension_numbers = #tpu.dot_dimension_numbers<[1], [0], [0], [1], [0, 0, 1, 1], [], []>} : vector<16x384xbf16>, vector<384x128xbf16>, vector<16x128xf32> -> vector<16x128xf32>
      %104 = arith.addf %96, %103 : vector<16x128xf32>
      %105 = vector.broadcast %14 : vector<1x128xf32> to vector<16x128xf32>
      %106 = arith.mulf %104, %105 : vector<16x128xf32>
      %107 = vector.broadcast %15 : vector<1x128xf32> to vector<16x128xf32>
      %108 = arith.addf %106, %107 : vector<16x128xf32>
      %cst_84 = arith.constant 0.000000e+00 : f32
      %109 = vector.broadcast %cst_84 : f32 to vector<16x128xf32>
      %110 = arith.maximumf %108, %109 : vector<16x128xf32>
      %111 = arith.maximumf %65, %110 : vector<16x128xf32>
      %c0_85 = arith.constant 0 : index
      %c0_86 = arith.constant 0 : index
      %112 = vector.load %arg15[%c0_85, %c0_86] : memref<64x128xf32, #tpu.memory_space<vmem>>, vector<16x128xf32>
      tpu.vector_store %arg15[%c0_85, %c0_86], %111 {strides = array<i32>} : memref<64x128xf32, #tpu.memory_space<vmem>>, vector<16x128xf32>,
      %c0_87 = arith.constant 0 : index
      %c0_88 = arith.constant 0 : index
      %113 = tpu.strided_load %arg15[%c0_87, %c0_88] {strides = array<i32: 2, 1>} : memref<64x128xf32, #tpu.memory_space<vmem>>, vector<8x128xf32>
      %c1_89 = arith.constant 1 : index
      %c0_90 = arith.constant 0 : index
      %114 = tpu.strided_load %arg15[%c1_89, %c0_90] {strides = array<i32: 2, 1>} : memref<64x128xf32, #tpu.memory_space<vmem>>, vector<8x128xf32>
      %115 = arith.maximumf %113, %114 : vector<8x128xf32>
      %116 = tpu.concatenate %16, %115, %16 in 0 : vector<1x128xf32>, vector<8x128xf32>, vector<1x128xf32> -> vector<10x128xf32>
      %117 = arith.truncf %116 : vector<10x128xf32> to vector<10x128xbf16>
      %c1_i32_91 = arith.constant 1 : i32
      %118 = arith.addi %arg16, %c1_i32_91 : i32
      %119 = arith.index_cast %118 : i32 to index
      %c0_92 = arith.constant 0 : index
      %c0_93 = arith.constant 0 : index
      %120 = vector.load %arg14[%119, %c0_92, %c0_93] : memref<6x10x128xbf16, #tpu.memory_space<vmem>>, vector<1x10x128xbf16>
      %121 = vector.shape_cast %120 : vector<1x10x128xbf16> to vector<10x128xbf16>
      %122 = vector.shape_cast %117 : vector<10x128xbf16> to vector<1x10x128xbf16>
      tpu.vector_store %arg14[%119, %c0_92, %c0_93], %122 {strides = array<i32>} : memref<6x10x128xbf16, #tpu.memory_space<vmem>>, vector<1x10x128xbf16>,
    }
    %c4_i32_31 = arith.constant 4 : i32
    %c1 = arith.constant 1 : index
    %c1_32 = arith.constant 1 : index
    %c0_33 = arith.constant 0 : index
    %18 = vector.load %arg14[%c1, %c1_32, %c0_33] : memref<6x10x128xbf16, #tpu.memory_space<vmem>>, vector<4x8x128xbf16>
    %c0_34 = arith.constant 0 : index
    %c0_35 = arith.constant 0 : index
    %c0_36 = arith.constant 0 : index
    %c0_37 = arith.constant 0 : index
    %19 = vector.load %arg11[%c0_34, %c0_35, %c0_36, %c0_37] : memref<1x4x8x128xbf16, #tpu.memory_space<vmem>>, vector<1x4x8x128xbf16>
    %20 = vector.shape_cast %19 : vector<1x4x8x128xbf16> to vector<4x8x128xbf16>
    %21 = vector.shape_cast %18 : vector<4x8x128xbf16> to vector<1x4x8x128xbf16>
    tpu.vector_store %arg11[%c0_34, %c0_35, %c0_36, %c0_37], %21 {strides = array<i32>} : memref<1x4x8x128xbf16, #tpu.memory_space<vmem>>, vector<1x4x8x128xbf16>,
    return
  }
  func.func @transform_0(%arg0: i32) -> (i32, i32, i32, i32) {
    %c0_i32 = arith.constant 0 : i32
    %c0_i32_0 = arith.constant 0 : i32
    %c0_i32_1 = arith.constant 0 : i32
    %c0_i32_2 = arith.constant 0 : i32
    return %arg0, %c0_i32, %c0_i32_0, %c0_i32_1 : i32, i32, i32, i32
  }
  func.func @transform_1(%arg0: i32) -> (i32, i32) {
    %c0_i32 = arith.constant 0 : i32
    %c0_i32_0 = arith.constant 0 : i32
    %c0_i32_1 = arith.constant 0 : i32
    return %c0_i32, %c0_i32_0 : i32, i32
  }
  func.func @transform_2(%arg0: i32) -> (i32, i32) {
    %c0_i32 = arith.constant 0 : i32
    %c0_i32_0 = arith.constant 0 : i32
    %c0_i32_1 = arith.constant 0 : i32
    return %c0_i32, %c0_i32_0 : i32, i32
  }
  func.func @transform_3(%arg0: i32) -> (i32, i32) {
    %c0_i32 = arith.constant 0 : i32
    %c0_i32_0 = arith.constant 0 : i32
    %c0_i32_1 = arith.constant 0 : i32
    return %c0_i32, %c0_i32_0 : i32, i32
  }
  func.func @transform_4(%arg0: i32) -> (i32, i32, i32) {
    %c0_i32 = arith.constant 0 : i32
    %c0_i32_0 = arith.constant 0 : i32
    %c0_i32_1 = arith.constant 0 : i32
    %c0_i32_2 = arith.constant 0 : i32
    return %c0_i32, %c0_i32_0, %c0_i32_1 : i32, i32, i32
  }
  func.func @transform_5(%arg0: i32) -> (i32, i32) {
    %c0_i32 = arith.constant 0 : i32
    %c0_i32_0 = arith.constant 0 : i32
    %c0_i32_1 = arith.constant 0 : i32
    return %c0_i32, %c0_i32_0 : i32, i32
  }
  func.func @transform_6(%arg0: i32) -> (i32, i32) {
    %c0_i32 = arith.constant 0 : i32
    %c0_i32_0 = arith.constant 0 : i32
    %c0_i32_1 = arith.constant 0 : i32
    return %c0_i32, %c0_i32_0 : i32, i32
  }
  func.func @transform_7(%arg0: i32) -> (i32, i32, i32) {
    %c0_i32 = arith.constant 0 : i32
    %c0_i32_0 = arith.constant 0 : i32
    %c0_i32_1 = arith.constant 0 : i32
    %c0_i32_2 = arith.constant 0 : i32
    return %c0_i32, %c0_i32_0, %c0_i32_1 : i32, i32, i32
  }
  func.func @transform_8(%arg0: i32) -> (i32, i32) {
    %c0_i32 = arith.constant 0 : i32
    %c0_i32_0 = arith.constant 0 : i32
    %c0_i32_1 = arith.constant 0 : i32
    return %c0_i32, %c0_i32_0 : i32, i32
  }
  func.func @transform_9(%arg0: i32) -> (i32, i32) {
    %c0_i32 = arith.constant 0 : i32
    %c0_i32_0 = arith.constant 0 : i32
    %c0_i32_1 = arith.constant 0 : i32
    return %c0_i32, %c0_i32_0 : i32, i32
  }
  func.func @transform_10(%arg0: i32) -> (i32, i32, i32, i32) {
    %c0_i32 = arith.constant 0 : i32
    %c0_i32_0 = arith.constant 0 : i32
    %c0_i32_1 = arith.constant 0 : i32
    %c0_i32_2 = arith.constant 0 : i32
    return %arg0, %c0_i32, %c0_i32_0, %c0_i32_1 : i32, i32, i32, i32
  }
}

module attributes {stable_mosaic.version = 11 : i64} {
  func.func @mlp_kernel(%arg0: memref<2x4096xbf16, #tpu.memory_space<vmem>>, %arg1: memref<4096x256xbf16, #tpu.memory_space<vmem>>, %arg2: memref<1x256xf32, #tpu.memory_space<vmem>>, %arg3: memref<256x12xbf16, #tpu.memory_space<vmem>>, %arg4: memref<1x12xf32, #tpu.memory_space<vmem>>, %arg5: memref<2x12xf32, #tpu.memory_space<vmem>>) attributes {dimension_semantics = [], scalar_prefetch = 0 : i64, scratch_operands = 0 : i64, tpu.core_type = #tpu.core_type<tc>} {
    %c0 = arith.constant 0 : index
    %c0_0 = arith.constant 0 : index
    %0 = vector.load %arg0[%c0, %c0_0] : memref<2x4096xbf16, #tpu.memory_space<vmem>>, vector<2x4096xbf16>
    %c0_1 = arith.constant 0 : index
    %c0_2 = arith.constant 0 : index
    %1 = vector.load %arg1[%c0_1, %c0_2] : memref<4096x256xbf16, #tpu.memory_space<vmem>>, vector<4096x256xbf16>
    %cst = arith.constant dense<0.000000e+00> : vector<2x256xf32>
    %2 = tpu.matmul %0, %1, %cst {dimension_numbers = #tpu.dot_dimension_numbers<[1], [0], [0], [1], [0, 0, 1, 1], [], []>} : vector<2x4096xbf16>, vector<4096x256xbf16>, vector<2x256xf32> -> vector<2x256xf32>
    %c0_3 = arith.constant 0 : index
    %c0_4 = arith.constant 0 : index
    %3 = vector.load %arg2[%c0_3, %c0_4] : memref<1x256xf32, #tpu.memory_space<vmem>>, vector<1x256xf32>
    %4 = vector.broadcast %3 : vector<1x256xf32> to vector<2x256xf32>
    %5 = arith.addf %2, %4 : vector<2x256xf32>
    %cst_5 = arith.constant 0.000000e+00 : f32
    %6 = vector.broadcast %cst_5 : f32 to vector<2x256xf32>
    %7 = arith.maximumf %5, %6 : vector<2x256xf32>
    %8 = arith.truncf %7 : vector<2x256xf32> to vector<2x256xbf16>
    %c0_6 = arith.constant 0 : index
    %c0_7 = arith.constant 0 : index
    %9 = vector.load %arg3[%c0_6, %c0_7] : memref<256x12xbf16, #tpu.memory_space<vmem>>, vector<256x12xbf16>
    %cst_8 = arith.constant dense<0.000000e+00> : vector<2x12xf32>
    %10 = tpu.matmul %8, %9, %cst_8 {dimension_numbers = #tpu.dot_dimension_numbers<[1], [0], [0], [1], [0, 0, 1, 1], [], []>} : vector<2x256xbf16>, vector<256x12xbf16>, vector<2x12xf32> -> vector<2x12xf32>
    %c0_9 = arith.constant 0 : index
    %c0_10 = arith.constant 0 : index
    %11 = vector.load %arg4[%c0_9, %c0_10] : memref<1x12xf32, #tpu.memory_space<vmem>>, vector<1x12xf32>
    %12 = vector.broadcast %11 : vector<1x12xf32> to vector<2x12xf32>
    %13 = arith.addf %10, %12 : vector<2x12xf32>
    %c0_11 = arith.constant 0 : index
    %c0_12 = arith.constant 0 : index
    %14 = vector.load %arg5[%c0_11, %c0_12] : memref<2x12xf32, #tpu.memory_space<vmem>>, vector<2x12xf32>
    tpu.vector_store %arg5[%c0_11, %c0_12], %13 {strides = array<i32>} : memref<2x12xf32, #tpu.memory_space<vmem>>, vector<2x12xf32>,
    return
  }
}

</mosaic_0001>

<llo_original>
// kernel: conv_model_forward.2
$region0: #{conv_model_forward.2}
  #allocation0 [shape = 'u32[]', space=smem, size = 0x4, offset = 0x4, fixed_abs, tag = 'smem constant byte address 0x4 - core index']
  #allocation1 [shape = 'u32[144,128]{1,0:T(1,128)}', space=vmem, size = 0x12000, scoped, tag = 'internal scratch']
  #allocation2 [shape = 'bf16[18,34,128]{2,1,0:T(8,128)(2,1)}', space=vmem, size = 0x2d000, scoped, tag = 'scratch operand']
  #allocation3 [shape = 'bf16[10,18,128]{2,1,0:T(8,128)(2,1)}', space=vmem, size = 0xf000, scoped, tag = 'scratch operand']
  #allocation4 [shape = 'bf16[6,10,128]{2,1,0:T(8,128)(2,1)}', space=vmem, size = 0x6000, scoped, tag = 'scratch operand']
  #allocation5 [shape = 'f32[64,128]{1,0:T(8,128)}', space=vmem, size = 0x8000, scoped, tag = 'scratch operand']
  %s0 = inlined_call_operand.vmem [shape: bf16[2,34,66,1], index: 0, kind: input, shape index: {}]
  %s1 = inlined_call_operand.vmem [shape: bf16[9,128], index: 1, kind: input, shape index: {}]
  %s2 = inlined_call_operand.vmem [shape: f32[1,128], index: 2, kind: input, shape index: {}]
  %s3 = inlined_call_operand.vmem [shape: f32[1,128], index: 3, kind: input, shape index: {}]
  %s4 = inlined_call_operand.vmem [shape: bf16[3,384,128], index: 4, kind: input, shape index: {}]
  %s5 = inlined_call_operand.vmem [shape: f32[1,128], index: 5, kind: input, shape index: {}]
  %s6 = inlined_call_operand.vmem [shape: f32[1,128], index: 6, kind: input, shape index: {}]
  %s7 = inlined_call_operand.vmem [shape: bf16[3,384,128], index: 7, kind: input, shape index: {}]
  %s8 = inlined_call_operand.vmem [shape: f32[1,128], index: 8, kind: input, shape index: {}]
  %s9 = inlined_call_operand.vmem [shape: f32[1,128], index: 9, kind: input, shape index: {}]
  %s10 = inlined_call_operand.vmem [shape: bf16[2,4,8,128], index: 10, kind: output, shape index: {}]
  %s11 = sld [smem:[#allocation0]]
  $region94: #{conv_model_forward.2} parent=0
    _
  %s13 = ssub.s32 1, %s11
  %s14 = scalar_select 0, %s13, %s11
  loop: start=0, step=1, limit=4
  $region2: #{conv_model_forward.2} parent=0 // loop_pre_header
    _
  $region3: #{conv_model_forward.2} parent=0 // loop_header
    %s16 = sphi 0, %s20
    %p17 = scmp.ge.s32.totalorder %s16, 4
    %s26 = sphi 0, %s28
    %s29 = sphi 0, %s26
    %s30 = sphi 0, %s29
    %s46 = sphi 0, %s30
    %s50 = sphi 0, %s50
    %s52 = sphi 0, %s50
    %s53 = sphi 0, %s52
    %s67 = sphi 0, %s53
    %s71 = sphi 0, %s71
    %s73 = sphi 0, %s71
    %s74 = sphi 0, %s73
    %s88 = sphi 0, %s74
    %s92 = sphi 0, %s92
    %s94 = sphi 0, %s92
    %s95 = sphi 0, %s94
    %s109 = sphi 0, %s95
    %s113 = sphi 0, %s113
    %s115 = sphi 0, %s113
    %s116 = sphi 0, %s115
    %s130 = sphi 0, %s116
    %s134 = sphi 0, %s134
    %s136 = sphi 0, %s134
    %s137 = sphi 0, %s136
    %s151 = sphi 0, %s137
    %s155 = sphi 0, %s155
    %s157 = sphi 0, %s155
    %s158 = sphi 0, %s157
    %s172 = sphi 0, %s158
    %s176 = sphi 0, %s176
    %s178 = sphi 0, %s176
    %s179 = sphi 0, %s178
    %s193 = sphi 0, %s179
    %s197 = sphi 0, %s197
    %s199 = sphi 0, %s197
    %s200 = sphi 0, %s199
    %s214 = sphi 0, %s200
    %s218 = sphi 0, %s218
    %s220 = sphi 0, %s218
    %s221 = sphi 0, %s220
    %s235 = sphi 0, %s221
    %s241 = sphi 0, %s243
    %s244 = sphi 0, %s241
    %s245 = sphi 0, %s244
    %s261 = sphi 0, %s245
  $region4: #{conv_model_forward.2} parent=0 // loop_header_branch
    %19 = sbr.rel (%p17) target = $region8
  $region5: #{conv_model_forward.2} parent=0 // loop_body
    %s21 = ssub.s32 %s16, 1
    %s22 = ssub.s32 %s16, 2
    %s23 = sadd.s32 %s16, 1
    %s24 = ssub.s32 %s16, %s23
    %p25 = scmp.eq.s32.totalorder %s24, 0
    %s27 = sadd.s32 %s26, 1
    %s28 = scalar_select %p25, %s26, %s27
    %p31 = pneg %p25
    %p32 = scmp.eq.s32.totalorder %s16, 1
    %p33 = por %p31, %p32
    %p34 = scmp.ne.s32.totalorder %s26, %s29
    %p35 = scmp.eq.s32.totalorder %s16, 0
    %p36 = por %p34, %p35
    %p37 = scmp.ne.s32.totalorder %s26, %s29
    %p38 = scmp.eq.s32.totalorder %s21, 1
    %p39 = por %p37, %p38
    %p40 = scmp.ne.s32.totalorder %s29, %s30
    %p41 = scmp.eq.s32.totalorder %s21, 0
    %p42 = por %p40, %p41
    %p43 = scmp.ne.s32.totalorder %s29, %s30
    %p44 = scmp.eq.s32.totalorder %s22, 1
    %p45 = por %p43, %p44
    %p47 = scmp.ne.s32.totalorder %s30, %s46
    %p48 = scmp.eq.s32.totalorder %s22, 0
    %p49 = por %p47, %p48
    %s51 = sadd.s32 %s50, 1
    %p54 = scmp.eq.s32.totalorder %s16, 1
    %p55 = scmp.ne.s32.totalorder %s50, %s52
    %p56 = scmp.eq.s32.totalorder %s16, 0
    %p57 = por %p55, %p56
    %p58 = scmp.ne.s32.totalorder %s50, %s52
    %p59 = scmp.eq.s32.totalorder %s21, 1
    %p60 = por %p58, %p59
    %p61 = scmp.ne.s32.totalorder %s52, %s53
    %p62 = scmp.eq.s32.totalorder %s21, 0
    %p63 = por %p61, %p62
    %p64 = scmp.ne.s32.totalorder %s52, %s53
    %p65 = scmp.eq.s32.totalorder %s22, 1
    %p66 = por %p64, %p65
    %p68 = scmp.ne.s32.totalorder %s53, %s67
    %p69 = scmp.eq.s32.totalorder %s22, 0
    %p70 = por %p68, %p69
    %s72 = sadd.s32 %s71, 1
    %p75 = scmp.eq.s32.totalorder %s16, 1
    %p76 = scmp.ne.s32.totalorder %s71, %s73
    %p77 = scmp.eq.s32.totalorder %s16, 0
    %p78 = por %p76, %p77
    %p79 = scmp.ne.s32.totalorder %s71, %s73
    %p80 = scmp.eq.s32.totalorder %s21, 1
    %p81 = por %p79, %p80
    %p82 = scmp.ne.s32.totalorder %s73, %s74
    %p83 = scmp.eq.s32.totalorder %s21, 0
    %p84 = por %p82, %p83
    %p85 = scmp.ne.s32.totalorder %s73, %s74
    %p86 = scmp.eq.s32.totalorder %s22, 1
    %p87 = por %p85, %p86
    %p89 = scmp.ne.s32.totalorder %s74, %s88
    %p90 = scmp.eq.s32.totalorder %s22, 0
    %p91 = por %p89, %p90
    %s93 = sadd.s32 %s92, 1
    %p96 = scmp.eq.s32.totalorder %s16, 1
    %p97 = scmp.ne.s32.totalorder %s92, %s94
    %p98 = scmp.eq.s32.totalorder %s16, 0
    %p99 = por %p97, %p98
    %p100 = scmp.ne.s32.totalorder %s92, %s94
    %p101 = scmp.eq.s32.totalorder %s21, 1
    %p102 = por %p100, %p101
    %p103 = scmp.ne.s32.totalorder %s94, %s95
    %p104 = scmp.eq.s32.totalorder %s21, 0
    %p105 = por %p103, %p104
    %p106 = scmp.ne.s32.totalorder %s94, %s95
    %p107 = scmp.eq.s32.totalorder %s22, 1
    %p108 = por %p106, %p107
    %p110 = scmp.ne.s32.totalorder %s95, %s109
    %p111 = scmp.eq.s32.totalorder %s22, 0
    %p112 = por %p110, %p111
    %s114 = sadd.s32 %s113, 1
    %p117 = scmp.eq.s32.totalorder %s16, 1
    %p118 = scmp.ne.s32.totalorder %s113, %s115
    %p119 = scmp.eq.s32.totalorder %s16, 0
    %p120 = por %p118, %p119
    %p121 = scmp.ne.s32.totalorder %s113, %s115
    %p122 = scmp.eq.s32.totalorder %s21, 1
    %p123 = por %p121, %p122
    %p124 = scmp.ne.s32.totalorder %s115, %s116
    %p125 = scmp.eq.s32.totalorder %s21, 0
    %p126 = por %p124, %p125
    %p127 = scmp.ne.s32.totalorder %s115, %s116
    %p128 = scmp.eq.s32.totalorder %s22, 1
    %p129 = por %p127, %p128
    %p131 = scmp.ne.s32.totalorder %s116, %s130
    %p132 = scmp.eq.s32.totalorder %s22, 0
    %p133 = por %p131, %p132
    %s135 = sadd.s32 %s134, 1
    %p138 = scmp.eq.s32.totalorder %s16, 1
    %p139 = scmp.ne.s32.totalorder %s134, %s136
    %p140 = scmp.eq.s32.totalorder %s16, 0
    %p141 = por %p139, %p140
    %p142 = scmp.ne.s32.totalorder %s134, %s136
    %p143 = scmp.eq.s32.totalorder %s21, 1
    %p144 = por %p142, %p143
    %p145 = scmp.ne.s32.totalorder %s136, %s137
    %p146 = scmp.eq.s32.totalorder %s21, 0
    %p147 = por %p145, %p146
    %p148 = scmp.ne.s32.totalorder %s136, %s137
    %p149 = scmp.eq.s32.totalorder %s22, 1
    %p150 = por %p148, %p149
    %p152 = scmp.ne.s32.totalorder %s137, %s151
    %p153 = scmp.eq.s32.totalorder %s22, 0
    %p154 = por %p152, %p153
    %s156 = sadd.s32 %s155, 1
    %p159 = scmp.eq.s32.totalorder %s16, 1
    %p160 = scmp.ne.s32.totalorder %s155, %s157
    %p161 = scmp.eq.s32.totalorder %s16, 0
    %p162 = por %p160, %p161
    %p163 = scmp.ne.s32.totalorder %s155, %s157
    %p164 = scmp.eq.s32.totalorder %s21, 1
    %p165 = por %p163, %p164
    %p166 = scmp.ne.s32.totalorder %s157, %s158
    %p167 = scmp.eq.s32.totalorder %s21, 0
    %p168 = por %p166, %p167
    %p169 = scmp.ne.s32.totalorder %s157, %s158
    %p170 = scmp.eq.s32.totalorder %s22, 1
    %p171 = por %p169, %p170
    %p173 = scmp.ne.s32.totalorder %s158, %s172
    %p174 = scmp.eq.s32.totalorder %s22, 0
    %p175 = por %p173, %p174
    %s177 = sadd.s32 %s176, 1
    %p180 = scmp.eq.s32.totalorder %s16, 1
    %p181 = scmp.ne.s32.totalorder %s176, %s178
    %p182 = scmp.eq.s32.totalorder %s16, 0
    %p183 = por %p181, %p182
    %p184 = scmp.ne.s32.totalorder %s176, %s178
    %p185 = scmp.eq.s32.totalorder %s21, 1
    %p186 = por %p184, %p185
    %p187 = scmp.ne.s32.totalorder %s178, %s179
    %p188 = scmp.eq.s32.totalorder %s21, 0
    %p189 = por %p187, %p188
    %p190 = scmp.ne.s32.totalorder %s178, %s179
    %p191 = scmp.eq.s32.totalorder %s22, 1
    %p192 = por %p190, %p191
    %p194 = scmp.ne.s32.totalorder %s179, %s193
    %p195 = scmp.eq.s32.totalorder %s22, 0
    %p196 = por %p194, %p195
    %s198 = sadd.s32 %s197, 1
    %p201 = scmp.eq.s32.totalorder %s16, 1
    %p202 = scmp.ne.s32.totalorder %s197, %s199
    %p203 = scmp.eq.s32.totalorder %s16, 0
    %p204 = por %p202, %p203
    %p205 = scmp.ne.s32.totalorder %s197, %s199
    %p206 = scmp.eq.s32.totalorder %s21, 1
    %p207 = por %p205, %p206
    %p208 = scmp.ne.s32.totalorder %s199, %s200
    %p209 = scmp.eq.s32.totalorder %s21, 0
    %p210 = por %p208, %p209
    %p211 = scmp.ne.s32.totalorder %s199, %s200
    %p212 = scmp.eq.s32.totalorder %s22, 1
    %p213 = por %p211, %p212
    %p215 = scmp.ne.s32.totalorder %s200, %s214
    %p216 = scmp.eq.s32.totalorder %s22, 0
    %p217 = por %p215, %p216
    %s219 = sadd.s32 %s218, 1
    %p222 = scmp.eq.s32.totalorder %s16, 1
    %p223 = scmp.ne.s32.totalorder %s218, %s220
    %p224 = scmp.eq.s32.totalorder %s16, 0
    %p225 = por %p223, %p224
    %p226 = scmp.ne.s32.totalorder %s218, %s220
    %p227 = scmp.eq.s32.totalorder %s21, 1
    %p228 = por %p226, %p227
    %p229 = scmp.ne.s32.totalorder %s220, %s221
    %p230 = scmp.eq.s32.totalorder %s21, 0
    %p231 = por %p229, %p230
    %p232 = scmp.ne.s32.totalorder %s220, %s221
    %p233 = scmp.eq.s32.totalorder %s22, 1
    %p234 = por %p232, %p233
    %p236 = scmp.ne.s32.totalorder %s221, %s235
    %p237 = scmp.eq.s32.totalorder %s22, 0
    %p238 = por %p236, %p237
    %s239 = ssub.s32 %s16, %s23
    %p240 = scmp.eq.s32.totalorder %s239, 0
    %s242 = sadd.s32 %s241, 1
    %s243 = scalar_select %p240, %s241, %s242
    %p246 = pneg %p240
    %p247 = scmp.eq.s32.totalorder %s16, 1
    %p248 = por %p246, %p247
    %p249 = scmp.ne.s32.totalorder %s241, %s244
    %p250 = scmp.eq.s32.totalorder %s16, 0
    %p251 = por %p249, %p250
    %p252 = scmp.ne.s32.totalorder %s241, %s244
    %p253 = scmp.eq.s32.totalorder %s21, 1
    %p254 = por %p252, %p253
    %p255 = scmp.ne.s32.totalorder %s244, %s245
    %p256 = scmp.eq.s32.totalorder %s21, 0
    %p257 = por %p255, %p256
    %p258 = scmp.ne.s32.totalorder %s244, %s245
    %p259 = scmp.eq.s32.totalorder %s22, 1
    %p260 = por %p258, %p259
    %p262 = scmp.ne.s32.totalorder %s245, %s261
    %p263 = scmp.eq.s32.totalorder %s22, 0
    %p264 = por %p262, %p263
    %p265 = scmp.le.s32.totalorder 1, %s16
    %p266 = scmp.lt.s32.totalorder %s16, 3
    %p267 = pnand %p265, %p266
    %p268 = pneg %p267
    // Predicated region
    $region9: #{conv_model_forward.2} parent=5 // pred_check
      _
    $region10: #{conv_model_forward.2} parent=5 // pred_check_branch
      %270 = sbr.rel (%p267) target = $region12
    $region11: #{conv_model_forward.2} parent=5 // pred_region
      %s271 = ssub.s32 %s16, 1
      // Predicated region
      $region13: #{conv_model_forward.2} parent=11 // pred_check
        %p272 = pneg %p63
      $region14: #{conv_model_forward.2} parent=11 // pred_check_branch
        %274 = sbr.rel (%p272) target = $region16
      $region15: #{conv_model_forward.2} parent=11 // pred_region
        _
      $region16: #{conv_model_forward.2} parent=11 // pred_fallthru
        _
      // Predicated region
      $region17: #{conv_model_forward.2} parent=11 // pred_check
        %p275 = pneg %p84
      $region18: #{conv_model_forward.2} parent=11 // pred_check_branch
        %277 = sbr.rel (%p275) target = $region20
      $region19: #{conv_model_forward.2} parent=11 // pred_region
        _
      $region20: #{conv_model_forward.2} parent=11 // pred_fallthru
        _
      // Predicated region
      $region21: #{conv_model_forward.2} parent=11 // pred_check
        %p278 = pneg %p105
      $region22: #{conv_model_forward.2} parent=11 // pred_check_branch
        %280 = sbr.rel (%p278) target = $region24
      $region23: #{conv_model_forward.2} parent=11 // pred_region
        _
      $region24: #{conv_model_forward.2} parent=11 // pred_fallthru
        _
      // Predicated region
      $region25: #{conv_model_forward.2} parent=11 // pred_check
        %p281 = pneg %p126
      $region26: #{conv_model_forward.2} parent=11 // pred_check_branch
        %283 = sbr.rel (%p281) target = $region28
      $region27: #{conv_model_forward.2} parent=11 // pred_region
        _
      $region28: #{conv_model_forward.2} parent=11 // pred_fallthru
        _
      // Predicated region
      $region29: #{conv_model_forward.2} parent=11 // pred_check
        %p284 = pneg %p147
      $region30: #{conv_model_forward.2} parent=11 // pred_check_branch
        %286 = sbr.rel (%p284) target = $region32
      $region31: #{conv_model_forward.2} parent=11 // pred_region
        _
      $region32: #{conv_model_forward.2} parent=11 // pred_fallthru
        _
      // Predicated region
      $region33: #{conv_model_forward.2} parent=11 // pred_check
        %p287 = pneg %p168
      $region34: #{conv_model_forward.2} parent=11 // pred_check_branch
        %289 = sbr.rel (%p287) target = $region36
      $region35: #{conv_model_forward.2} parent=11 // pred_region
        _
      $region36: #{conv_model_forward.2} parent=11 // pred_fallthru
        _
      // Predicated region
      $region37: #{conv_model_forward.2} parent=11 // pred_check
        %p290 = pneg %p189
      $region38: #{conv_model_forward.2} parent=11 // pred_check_branch
        %292 = sbr.rel (%p290) target = $region40
      $region39: #{conv_model_forward.2} parent=11 // pred_region
        _
      $region40: #{conv_model_forward.2} parent=11 // pred_fallthru
        _
      // Predicated region
      $region41: #{conv_model_forward.2} parent=11 // pred_check
        %p293 = pneg %p210
      $region42: #{conv_model_forward.2} parent=11 // pred_check_branch
        %295 = sbr.rel (%p293) target = $region44
      $region43: #{conv_model_forward.2} parent=11 // pred_region
        _
      $region44: #{conv_model_forward.2} parent=11 // pred_fallthru
        _
      // Predicated region
      $region45: #{conv_model_forward.2} parent=11 // pred_check
        %p296 = pneg %p231
      $region46: #{conv_model_forward.2} parent=11 // pred_check_branch
        %298 = sbr.rel (%p296) target = $region48
      $region47: #{conv_model_forward.2} parent=11 // pred_region
        _
      $region48: #{conv_model_forward.2} parent=11 // pred_fallthru
        _
    $region12: #{conv_model_forward.2} parent=5 // pred_fallthru
      _
    %p299 = scmp.lt.s32.totalorder %s16, 2
    // Predicated region
    $region49: #{conv_model_forward.2} parent=5 // pred_check
      %p300 = pneg %p299
    $region50: #{conv_model_forward.2} parent=5 // pred_check_branch
      %302 = sbr.rel (%p300) target = $region52
    $region51: #{conv_model_forward.2} parent=5 // pred_region
      // Predicated region
      $region53: #{conv_model_forward.2} parent=51 // pred_check
        %p303 = pneg %p36
      $region54: #{conv_model_forward.2} parent=51 // pred_check_branch
        %305 = sbr.rel (%p303) target = $region56
      $region55: #{conv_model_forward.2} parent=51 // pred_region
        %p306 = scmp.lt.s32.totalorder %s16, 1
        %s307 = scalar_select %p306, %s16, 1
        %s308 = smul.addr %s307, 306
        %s309 = smul.addr %s308, 4
        %s310 = scalar_lea.vmem %s0, %s309
      $region56: #{conv_model_forward.2} parent=51 // pred_fallthru
        _
    $region52: #{conv_model_forward.2} parent=5 // pred_fallthru
      _
    %p311 = scmp.le.s32.totalorder 1, %s16
    %p312 = scmp.lt.s32.totalorder %s16, 3
    %p313 = pnand %p311, %p312
    %p314 = pneg %p313
    // Predicated region
    $region57: #{conv_model_forward.2} parent=5 // pred_check
      _
    $region58: #{conv_model_forward.2} parent=5 // pred_check_branch
      %316 = sbr.rel (%p313) target = $region60
    $region59: #{conv_model_forward.2} parent=5 // pred_region
      %s317 = ssub.s32 %s16, 1
      %p318 = scmp.lt.s32.totalorder %s21, 1
      %s319 = scalar_select %p318, %s21, 1
      %s320 = smul.addr %s319, 306
      %s321 = smul.addr %s320, 4
      %s322 = scalar_lea.vmem %s0, %s321
      %p323 = pneg %p42
      %p324 = pneg %p39
      %p325 = pneg %p63
      %p326 = pneg %p60
      %p327 = pneg %p84
      %p328 = pneg %p81
      %p329 = pneg %p105
      %p330 = pneg %p102
      %p331 = pneg %p126
      %p332 = pneg %p123
      %p333 = pneg %p147
      %p334 = pneg %p144
      %p335 = pneg %p168
      %p336 = pneg %p165
      %p337 = pneg %p189
      %p338 = pneg %p186
      %p339 = pneg %p210
      %p340 = pneg %p207
      %p341 = pneg %p231
      %p342 = pneg %p228
      %p343 = pneg %p257
      %p344 = pneg %p254
      %p345 = scmp.lt.s32.totalorder %s21, 1
      %s346 = scalar_select %p345, %s21, 1
      %s347 = smul.addr %s346, 4
      %s348 = smul.addr %s347, 4
      %s349 = scalar_lea.vmem %s10, %s348
      %p350 = scmp.lt.s32.totalorder %s21, 1
      %s351 = scalar_select %p350, %s21, 1
      %s352 = smul.addr %s351, 306
      %s353 = smul.addr %s352, 4
      %s354 = scalar_lea.vmem %s0, %s353
      %p355 = scmp.lt.s32.totalorder %s21, 1
      %s356 = scalar_select %p355, %s21, 1
      %s357 = smul.addr %s356, 4
      %s358 = smul.addr %s357, 4
      %s359 = scalar_lea.vmem %s10, %s358
      %361 = vst [vmem:[#allocation2] sm:$0xf] 0
      %362 = vst [vmem:[#allocation2 + $0x4] sm:$0xf] 0
      %363 = vst [vmem:[#allocation2 + $0x8] sm:$0xf] 0
      %364 = vst [vmem:[#allocation2 + $0xc] sm:$0xf] 0
      %365 = vst [vmem:[#allocation2 + $0x10] sm:$0x1] 0
      %366 = vst [vmem:[#allocation2 + $0x14] sm:$0xf] 0
      %367 = vst [vmem:[#allocation2 + $0x18] sm:$0xf] 0
      %368 = vst [vmem:[#allocation2 + $0x1c] sm:$0xf] 0
      %369 = vst [vmem:[#allocation2 + $0x20] sm:$0xf] 0
      %370 = vst [vmem:[#allocation2 + $0x24] sm:$0x1] 0
      %371 = vst [vmem:[#allocation2 + $0x28] sm:$0xf] 0
      %372 = vst [vmem:[#allocation2 + $0x2c] sm:$0xf] 0
      %373 = vst [vmem:[#allocation2 + $0x30] sm:$0xf] 0
      %374 = vst [vmem:[#allocation2 + $0x34] sm:$0xf] 0
      %375 = vst [vmem:[#allocation2 + $0x38] sm:$0x1] 0
      %376 = vst [vmem:[#allocation2 + $0x3c] sm:$0xf] 0
      %377 = vst [vmem:[#allocation2 + $0x40] sm:$0xf] 0
      %378 = vst [vmem:[#allocation2 + $0x44] sm:$0xf] 0
      %379 = vst [vmem:[#allocation2 + $0x48] sm:$0xf] 0
      %380 = vst [vmem:[#allocation2 + $0x4c] sm:$0x1] 0
      %381 = vst [vmem:[#allocation2 + $0x50] sm:$0xf] 0
      %382 = vst [vmem:[#allocation2 + $0x54] sm:$0xf] 0
      %383 = vst [vmem:[#allocation2 + $0x58] sm:$0xf] 0
      %384 = vst [vmem:[#allocation2 + $0x5c] sm:$0xf] 0
      %385 = vst [vmem:[#allocation2 + $0x60] sm:$0x1] 0
      %386 = vst [vmem:[#allocation2 + $0x64] sm:$0xf] 0
      %387 = vst [vmem:[#allocation2 + $0x68] sm:$0xf] 0
      %388 = vst [vmem:[#allocation2 + $0x6c] sm:$0xf] 0
      %389 = vst [vmem:[#allocation2 + $0x70] sm:$0xf] 0
      %390 = vst [vmem:[#allocation2 + $0x74] sm:$0x1] 0
      %391 = vst [vmem:[#allocation2 + $0x78] sm:$0xf] 0
      %392 = vst [vmem:[#allocation2 + $0x7c] sm:$0xf] 0
      %393 = vst [vmem:[#allocation2 + $0x80] sm:$0xf] 0
      %394 = vst [vmem:[#allocation2 + $0x84] sm:$0xf] 0
      %395 = vst [vmem:[#allocation2 + $0x88] sm:$0x1] 0
      %396 = vst [vmem:[#allocation2 + $0x8c] sm:$0xf] 0
      %397 = vst [vmem:[#allocation2 + $0x90] sm:$0xf] 0
      %398 = vst [vmem:[#allocation2 + $0x94] sm:$0xf] 0
      %399 = vst [vmem:[#allocation2 + $0x98] sm:$0xf] 0
      %400 = vst [vmem:[#allocation2 + $0x9c] sm:$0x1] 0
      %401 = vst [vmem:[#allocation2 + $0xa0] sm:$0xf] 0
      %402 = vst [vmem:[#allocation2 + $0xa4] sm:$0xf] 0
      %403 = vst [vmem:[#allocation2 + $0xa8] sm:$0xf] 0
      %404 = vst [vmem:[#allocation2 + $0xac] sm:$0xf] 0
      %405 = vst [vmem:[#allocation2 + $0xb0] sm:$0x1] 0
      %406 = vst [vmem:[#allocation2 + $0xb4] sm:$0xf] 0
      %407 = vst [vmem:[#allocation2 + $0xb8] sm:$0xf] 0
      %408 = vst [vmem:[#allocation2 + $0xbc] sm:$0xf] 0
      %409 = vst [vmem:[#allocation2 + $0xc0] sm:$0xf] 0
      %410 = vst [vmem:[#allocation2 + $0xc4] sm:$0x1] 0
      %411 = vst [vmem:[#allocation2 + $0xc8] sm:$0xf] 0
      %412 = vst [vmem:[#allocation2 + $0xcc] sm:$0xf] 0
      %413 = vst [vmem:[#allocation2 + $0xd0] sm:$0xf] 0
      %414 = vst [vmem:[#allocation2 + $0xd4] sm:$0xf] 0
      %415 = vst [vmem:[#allocation2 + $0xd8] sm:$0x1] 0
      %416 = vst [vmem:[#allocation2 + $0xdc] sm:$0xf] 0
      %417 = vst [vmem:[#allocation2 + $0xe0] sm:$0xf] 0
      %418 = vst [vmem:[#allocation2 + $0xe4] sm:$0xf] 0
      %419 = vst [vmem:[#allocation2 + $0xe8] sm:$0xf] 0
      %420 = vst [vmem:[#allocation2 + $0xec] sm:$0x1] 0
      %421 = vst [vmem:[#allocation2 + $0xf0] sm:$0xf] 0
      %422 = vst [vmem:[#allocation2 + $0xf4] sm:$0xf] 0
      %423 = vst [vmem:[#allocation2 + $0xf8] sm:$0xf] 0
      %424 = vst [vmem:[#allocation2 + $0xfc] sm:$0xf] 0
      %425 = vst [vmem:[#allocation2 + $0x100] sm:$0x1] 0
      %426 = vst [vmem:[#allocation2 + $0x104] sm:$0xf] 0
      %427 = vst [vmem:[#allocation2 + $0x108] sm:$0xf] 0
      %428 = vst [vmem:[#allocation2 + $0x10c] sm:$0xf] 0
      %429 = vst [vmem:[#allocation2 + $0x110] sm:$0xf] 0
      %430 = vst [vmem:[#allocation2 + $0x114] sm:$0x1] 0
      %431 = vst [vmem:[#allocation2 + $0x118] sm:$0xf] 0
      %432 = vst [vmem:[#allocation2 + $0x11c] sm:$0xf] 0
      %433 = vst [vmem:[#allocation2 + $0x120] sm:$0xf] 0
      %434 = vst [vmem:[#allocation2 + $0x124] sm:$0xf] 0
      %435 = vst [vmem:[#allocation2 + $0x128] sm:$0x1] 0
      %436 = vst [vmem:[#allocation2 + $0x12c] sm:$0xf] 0
      %437 = vst [vmem:[#allocation2 + $0x130] sm:$0xf] 0
      %438 = vst [vmem:[#allocation2 + $0x134] sm:$0xf] 0
      %439 = vst [vmem:[#allocation2 + $0x138] sm:$0xf] 0
      %440 = vst [vmem:[#allocation2 + $0x13c] sm:$0x1] 0
      %441 = vst [vmem:[#allocation2 + $0x140] sm:$0xf] 0
      %442 = vst [vmem:[#allocation2 + $0x144] sm:$0xf] 0
      %443 = vst [vmem:[#allocation2 + $0x148] sm:$0xf] 0
      %444 = vst [vmem:[#allocation2 + $0x14c] sm:$0xf] 0
      %445 = vst [vmem:[#allocation2 + $0x150] sm:$0x1] 0
      %446 = vst [vmem:[#allocation2 + $0x154] sm:$0xf] 0
      %447 = vst [vmem:[#allocation2 + $0x158] sm:$0xf] 0
      %448 = vst [vmem:[#allocation2 + $0x15c] sm:$0xf] 0
      %449 = vst [vmem:[#allocation2 + $0x160] sm:$0xf] 0
      %450 = vst [vmem:[#allocation2 + $0x164] sm:$0x1] 0
      %451 = vst [vmem:[#allocation3] sm:$0xf] 0
      %452 = vst [vmem:[#allocation3 + $0x4] sm:$0xf] 0
      %453 = vst [vmem:[#allocation3 + $0x8] sm:$0x1] 0
      %454 = vst [vmem:[#allocation3 + $0xc] sm:$0xf] 0
      %455 = vst [vmem:[#allocation3 + $0x10] sm:$0xf] 0
      %456 = vst [vmem:[#allocation3 + $0x14] sm:$0x1] 0
      %457 = vst [vmem:[#allocation3 + $0x18] sm:$0xf] 0
      %458 = vst [vmem:[#allocation3 + $0x1c] sm:$0xf] 0
      %459 = vst [vmem:[#allocation3 + $0x20] sm:$0x1] 0
      %460 = vst [vmem:[#allocation3 + $0x24] sm:$0xf] 0
      %461 = vst [vmem:[#allocation3 + $0x28] sm:$0xf] 0
      %462 = vst [vmem:[#allocation3 + $0x2c] sm:$0x1] 0
      %463 = vst [vmem:[#allocation3 + $0x30] sm:$0xf] 0
      %464 = vst [vmem:[#allocation3 + $0x34] sm:$0xf] 0
      %465 = vst [vmem:[#allocation3 + $0x38] sm:$0x1] 0
      %466 = vst [vmem:[#allocation3 + $0x3c] sm:$0xf] 0
      %467 = vst [vmem:[#allocation3 + $0x40] sm:$0xf] 0
      %468 = vst [vmem:[#allocation3 + $0x44] sm:$0x1] 0
      %469 = vst [vmem:[#allocation3 + $0x48] sm:$0xf] 0
      %470 = vst [vmem:[#allocation3 + $0x4c] sm:$0xf] 0
      %471 = vst [vmem:[#allocation3 + $0x50] sm:$0x1] 0
      %472 = vst [vmem:[#allocation3 + $0x54] sm:$0xf] 0
      %473 = vst [vmem:[#allocation3 + $0x58] sm:$0xf] 0
      %474 = vst [vmem:[#allocation3 + $0x5c] sm:$0x1] 0
      %475 = vst [vmem:[#allocation3 + $0x60] sm:$0xf] 0
      %476 = vst [vmem:[#allocation3 + $0x64] sm:$0xf] 0
      %477 = vst [vmem:[#allocation3 + $0x68] sm:$0x1] 0
      %478 = vst [vmem:[#allocation3 + $0x6c] sm:$0xf] 0
      %479 = vst [vmem:[#allocation3 + $0x70] sm:$0xf] 0
      %480 = vst [vmem:[#allocation3 + $0x74] sm:$0x1] 0
      %481 = vst [vmem:[#allocation4] sm:$0xf] 0
      %482 = vst [vmem:[#allocation4 + $0x4] sm:$0x1] 0
      %483 = vst [vmem:[#allocation4 + $0x8] sm:$0xf] 0
      %484 = vst [vmem:[#allocation4 + $0xc] sm:$0x1] 0
      %485 = vst [vmem:[#allocation4 + $0x10] sm:$0xf] 0
      %486 = vst [vmem:[#allocation4 + $0x14] sm:$0x1] 0
      %487 = vst [vmem:[#allocation4 + $0x18] sm:$0xf] 0
      %488 = vst [vmem:[#allocation4 + $0x1c] sm:$0x1] 0
      %489 = vst [vmem:[#allocation4 + $0x20] sm:$0xf] 0
      %490 = vst [vmem:[#allocation4 + $0x24] sm:$0x1] 0
      %491 = vst [vmem:[#allocation4 + $0x28] sm:$0xf] 0
      %492 = vst [vmem:[#allocation4 + $0x2c] sm:$0x1] 0
      %v493 = vld [vmem:[%s2] sm:$0x1]
      %v494 = vld [vmem:[%s3] sm:$0x1]
      loop: start=0, step=1, limit=16
      $region61: #{conv_model_forward.2} parent=59 // loop_pre_header
        _
      $region62: #{conv_model_forward.2} parent=59 // loop_header
        %s496 = sphi 0, %s500
        %p497 = scmp.ge.s32.totalorder %s496, 16
      $region63: #{conv_model_forward.2} parent=59 // loop_header_branch
        %499 = sbr.rel (%p497) target = $region67
      $region64: #{conv_model_forward.2} parent=59 // loop_body
        %s501 = smul.u32 %s496, 2
        %s502 = smul.u32 %s501, 9
        %s503 = smul.addr %s502, 4
        %s504 = scalar_lea.vmem %s354, %s503
        %v505 = vld [vmem:[%s504] sm:$0xf]
        %v506 = vld [vmem:[%s504 + $0x4] sm:$0xf]
        %v507 = vld [vmem:[%s504 + $0x8] sm:$0xf]
        %v508 = vld [vmem:[%s504 + $0xc] sm:$0xf]
        %v509 = vld [vmem:[%s504 + $0x10] sm:$0xf]
        %v510 = vld [vmem:[%s504 + $0x14] sm:$0xf]
        %v511 = vld [vmem:[%s504 + $0x18] sm:$0xf]
        %v512 = vld [vmem:[%s504 + $0x1c] sm:$0xf]
        %v513 = vld [vmem:[%s504 + $0x20] sm:$0x1]
        %s514 = sadd.s32 %s501, 1
        %s515 = smul.u32 %s514, 9
        %s516 = smul.addr %s515, 4
        %s517 = scalar_lea.vmem %s354, %s516
        %v518 = vld [vmem:[%s517] sm:$0xf]
        %v519 = vld [vmem:[%s517 + $0x4] sm:$0xf]
        %v520 = vld [vmem:[%s517 + $0x8] sm:$0xf]
        %v521 = vld [vmem:[%s517 + $0xc] sm:$0xf]
        %v522 = vld [vmem:[%s517 + $0x10] sm:$0xf]
        %v523 = vld [vmem:[%s517 + $0x14] sm:$0xf]
        %v524 = vld [vmem:[%s517 + $0x18] sm:$0xf]
        %v525 = vld [vmem:[%s517 + $0x1c] sm:$0xf]
        %v526 = vld [vmem:[%s517 + $0x20] sm:$0x1]
        %s527 = sadd.s32 %s501, 2
        %s528 = smul.u32 %s527, 9
        %s529 = smul.addr %s528, 4
        %s530 = scalar_lea.vmem %s354, %s529
        %v531 = vld [vmem:[%s530] sm:$0xf]
        %v532 = vld [vmem:[%s530 + $0x4] sm:$0xf]
        %v533 = vld [vmem:[%s530 + $0x8] sm:$0xf]
        %v534 = vld [vmem:[%s530 + $0xc] sm:$0xf]
        %v535 = vld [vmem:[%s530 + $0x10] sm:$0xf]
        %v536 = vld [vmem:[%s530 + $0x14] sm:$0xf]
        %v537 = vld [vmem:[%s530 + $0x18] sm:$0xf]
        %v538 = vld [vmem:[%s530 + $0x1c] sm:$0xf]
        %v539 = vld [vmem:[%s530 + $0x20] sm:$0x1]
        %v548 = vunpack.c.l.b16 %v505
        %v549 = vunpack.c.l.b16 %v506
        %v550 = vunpack.c.l.b16 %v507
        %v551 = vunpack.c.l.b16 %v508
        %v552 = vunpack.c.l.b16 %v509
        %v553 = vunpack.c.l.b16 %v510
        %v554 = vunpack.c.l.b16 %v511
        %v555 = vunpack.c.l.b16 %v512
        %v556 = vpack.c.b16 %v549, %v548
        %v557 = vpack.c.b16 %v551, %v550
        %v558 = vpack.c.b16 %v553, %v552
        %v559 = vpack.c.b16 %v555, %v554
        %v561 = vunpack.c.l.b16 %v513
        %v562 = vpack.c.b16 %v561, %v561
        %vm563 = vsmask.f32 7424
        %v565 = vshrl.u32 %v556, 16
        %v567 = vshll.u32 %v556, 16
        %v569 = vrot.slane %v567, 1
        %v570 = vor.u32 %v565, %v569
        %v572 = vshll.u32 %v557, 16
        %v574 = vrot.slane %v572, 1
        %v575 = vsel %vm563, %v570, %v574
        %v576 = vshrl.u32 %v557, 16
        %v578 = vor.u32 %v576, %v574
        %v580 = vshll.u32 %v558, 16
        %v582 = vrot.slane %v580, 1
        %v583 = vsel %vm563, %v578, %v582
        %v584 = vshrl.u32 %v558, 16
        %v586 = vor.u32 %v584, %v582
        %v588 = vshll.u32 %v559, 16
        %v590 = vrot.slane %v588, 1
        %v591 = vsel %vm563, %v586, %v590
        %v592 = vshrl.u32 %v559, 16
        %v594 = vor.u32 %v592, %v590
        %v596 = vshll.u32 %v562, 16
        %v598 = vrot.slane %v596, 1
        %v599 = vsel %vm563, %v594, %v598
        %600 = vrot.lane.b32.xlu0 %v575, 1
        %v601 = vpop.permute.xlu0 %600
        %602 = vrot.lane.b32.xlu0 %v583, 1
        %v603 = vpop.permute.xlu0 %602
        %604 = vrot.lane.b32.xlu0 %v591, 1
        %v605 = vpop.permute.xlu0 %604
        %606 = vrot.lane.b32.xlu0 %v599, 1
        %v607 = vpop.permute.xlu0 %606
        %vm608 = vcmask 1046528
        %v609 = vrot.slane %v556, 1
        %v610 = vrot.slane %v557, 1
        %v611 = vsel %vm608, %v609, %v610
        %v612 = vrot.slane %v558, 1
        %v613 = vsel %vm608, %v610, %v612
        %v614 = vrot.slane %v559, 1
        %v615 = vsel %vm608, %v612, %v614
        %v616 = vrot.slane %v562, 1
        %v617 = vsel %vm608, %v614, %v616
        %618 = vrot.lane.b32.xlu0 %v611, 2
        %v619 = vpop.permute.xlu0 %618
        %620 = vrot.lane.b32.xlu0 %v613, 2
        %v621 = vpop.permute.xlu0 %620
        %622 = vrot.lane.b32.xlu0 %v615, 2
        %v623 = vpop.permute.xlu0 %622
        %624 = vrot.lane.b32.xlu0 %v617, 2
        %v625 = vpop.permute.xlu0 %624
        %v634 = vunpack.c.l.b16 %v518
        %v635 = vunpack.c.l.b16 %v519
        %v636 = vunpack.c.l.b16 %v520
        %v637 = vunpack.c.l.b16 %v521
        %v638 = vunpack.c.l.b16 %v522
        %v639 = vunpack.c.l.b16 %v523
        %v640 = vunpack.c.l.b16 %v524
        %v641 = vunpack.c.l.b16 %v525
        %v642 = vpack.c.b16 %v635, %v634
        %v643 = vpack.c.b16 %v637, %v636
        %v644 = vpack.c.b16 %v639, %v638
        %v645 = vpack.c.b16 %v641, %v640
        %646 = vrot.lane.b32.xlu0 %v642, 3
        %v647 = vpop.permute.xlu0 %646
        %648 = vrot.lane.b32.xlu0 %v643, 3
        %v649 = vpop.permute.xlu0 %648
        %650 = vrot.lane.b32.xlu0 %v644, 3
        %v651 = vpop.permute.xlu0 %650
        %652 = vrot.lane.b32.xlu0 %v645, 3
        %v653 = vpop.permute.xlu0 %652
        %v655 = vunpack.c.l.b16 %v526
        %v656 = vpack.c.b16 %v655, %v655
        %v658 = vshrl.u32 %v642, 16
        %v660 = vshll.u32 %v642, 16
        %v662 = vrot.slane %v660, 1
        %v663 = vor.u32 %v658, %v662
        %v665 = vshll.u32 %v643, 16
        %v667 = vrot.slane %v665, 1
        %v668 = vsel %vm563, %v663, %v667
        %v669 = vshrl.u32 %v643, 16
        %v671 = vor.u32 %v669, %v667
        %v673 = vshll.u32 %v644, 16
        %v675 = vrot.slane %v673, 1
        %v676 = vsel %vm563, %v671, %v675
        %v677 = vshrl.u32 %v644, 16
        %v679 = vor.u32 %v677, %v675
        %v681 = vshll.u32 %v645, 16
        %v683 = vrot.slane %v681, 1
        %v684 = vsel %vm563, %v679, %v683
        %v685 = vshrl.u32 %v645, 16
        %v687 = vor.u32 %v685, %v683
        %v689 = vshll.u32 %v656, 16
        %v691 = vrot.slane %v689, 1
        %v692 = vsel %vm563, %v687, %v691
        %693 = vrot.lane.b32.xlu0 %v668, 4
        %v694 = vpop.permute.xlu0 %693
        %695 = vrot.lane.b32.xlu0 %v676, 4
        %v696 = vpop.permute.xlu0 %695
        %697 = vrot.lane.b32.xlu0 %v684, 4
        %v698 = vpop.permute.xlu0 %697
        %699 = vrot.lane.b32.xlu0 %v692, 4
        %v700 = vpop.permute.xlu0 %699
        %v701 = vrot.slane %v642, 1
        %v702 = vrot.slane %v643, 1
        %v703 = vsel %vm608, %v701, %v702
        %v704 = vrot.slane %v644, 1
        %v705 = vsel %vm608, %v702, %v704
        %v706 = vrot.slane %v645, 1
        %v707 = vsel %vm608, %v704, %v706
        %v708 = vrot.slane %v656, 1
        %v709 = vsel %vm608, %v706, %v708
        %710 = vrot.lane.b32.xlu0 %v703, 5
        %v711 = vpop.permute.xlu0 %710
        %712 = vrot.lane.b32.xlu0 %v705, 5
        %v713 = vpop.permute.xlu0 %712
        %714 = vrot.lane.b32.xlu0 %v707, 5
        %v715 = vpop.permute.xlu0 %714
        %716 = vrot.lane.b32.xlu0 %v709, 5
        %v717 = vpop.permute.xlu0 %716
        %v726 = vunpack.c.l.b16 %v531
        %v727 = vunpack.c.l.b16 %v532
        %v728 = vunpack.c.l.b16 %v533
        %v729 = vunpack.c.l.b16 %v534
        %v730 = vunpack.c.l.b16 %v535
        %v731 = vunpack.c.l.b16 %v536
        %v732 = vunpack.c.l.b16 %v537
        %v733 = vunpack.c.l.b16 %v538
        %v734 = vpack.c.b16 %v727, %v726
        %v735 = vpack.c.b16 %v729, %v728
        %v736 = vpack.c.b16 %v731, %v730
        %v737 = vpack.c.b16 %v733, %v732
        %738 = vrot.lane.b32.xlu0 %v734, 6
        %v739 = vpop.permute.xlu0 %738
        %740 = vrot.lane.b32.xlu0 %v735, 6
        %v741 = vpop.permute.xlu0 %740
        %742 = vrot.lane.b32.xlu0 %v736, 6
        %v743 = vpop.permute.xlu0 %742
        %744 = vrot.lane.b32.xlu0 %v737, 6
        %v745 = vpop.permute.xlu0 %744
        %v747 = vunpack.c.l.b16 %v539
        %v748 = vpack.c.b16 %v747, %v747
        %v750 = vshrl.u32 %v734, 16
        %v752 = vshll.u32 %v734, 16
        %v754 = vrot.slane %v752, 1
        %v755 = vor.u32 %v750, %v754
        %v757 = vshll.u32 %v735, 16
        %v759 = vrot.slane %v757, 1
        %v760 = vsel %vm563, %v755, %v759
        %v761 = vshrl.u32 %v735, 16
        %v763 = vor.u32 %v761, %v759
        %v765 = vshll.u32 %v736, 16
        %v767 = vrot.slane %v765, 1
        %v768 = vsel %vm563, %v763, %v767
        %v769 = vshrl.u32 %v736, 16
        %v771 = vor.u32 %v769, %v767
        %v773 = vshll.u32 %v737, 16
        %v775 = vrot.slane %v773, 1
        %v776 = vsel %vm563, %v771, %v775
        %v777 = vshrl.u32 %v737, 16
        %v779 = vor.u32 %v777, %v775
        %v781 = vshll.u32 %v748, 16
        %v783 = vrot.slane %v781, 1
        %v784 = vsel %vm563, %v779, %v783
        %785 = vrot.lane.b32.xlu0 %v760, 7
        %v786 = vpop.permute.xlu0 %785
        %787 = vrot.lane.b32.xlu0 %v768, 7
        %v788 = vpop.permute.xlu0 %787
        %789 = vrot.lane.b32.xlu0 %v776, 7
        %v790 = vpop.permute.xlu0 %789
        %791 = vrot.lane.b32.xlu0 %v784, 7
        %v792 = vpop.permute.xlu0 %791
        %v793 = vrot.slane %v734, 1
        %v794 = vrot.slane %v735, 1
        %v795 = vsel %vm608, %v793, %v794
        %v796 = vrot.slane %v736, 1
        %v797 = vsel %vm608, %v794, %v796
        %v798 = vrot.slane %v737, 1
        %v799 = vsel %vm608, %v796, %v798
        %v800 = vrot.slane %v748, 1
        %v801 = vsel %vm608, %v798, %v800
        %802 = vrot.lane.b32.xlu0 %v795, 8
        %v803 = vpop.permute.xlu0 %802
        %804 = vrot.lane.b32.xlu0 %v797, 8
        %v805 = vpop.permute.xlu0 %804
        %806 = vrot.lane.b32.xlu0 %v799, 8
        %v807 = vpop.permute.xlu0 %806
        %808 = vrot.lane.b32.xlu0 %v801, 8
        %v809 = vpop.permute.xlu0 %808
        %vm810 = vcmask 7168
        %v812 = vsel %vm810, %v556, %v601
        %v814 = vsel %vm810, %v557, %v603
        %v816 = vsel %vm810, %v558, %v605
        %v818 = vsel %vm810, %v559, %v607
        %vm819 = vcmask 15360
        %v821 = vsel %vm819, %v812, %v619
        %v823 = vsel %vm819, %v814, %v621
        %v825 = vsel %vm819, %v816, %v623
        %v827 = vsel %vm819, %v818, %v625
        %vm828 = vcmask 23552
        %v830 = vsel %vm828, %v821, %v647
        %v832 = vsel %vm828, %v823, %v649
        %v834 = vsel %vm828, %v825, %v651
        %v836 = vsel %vm828, %v827, %v653
        %vm837 = vcmask 31744
        %v839 = vsel %vm837, %v830, %v694
        %v841 = vsel %vm837, %v832, %v696
        %v843 = vsel %vm837, %v834, %v698
        %v845 = vsel %vm837, %v836, %v700
        %vm846 = vcmask 39936
        %v848 = vsel %vm846, %v839, %v711
        %v850 = vsel %vm846, %v841, %v713
        %v852 = vsel %vm846, %v843, %v715
        %v854 = vsel %vm846, %v845, %v717
        %vm855 = vcmask 48128
        %v857 = vsel %vm855, %v848, %v739
        %v859 = vsel %vm855, %v850, %v741
        %v861 = vsel %vm855, %v852, %v743
        %v863 = vsel %vm855, %v854, %v745
        %vm864 = vcmask 56320
        %v866 = vsel %vm864, %v857, %v786
        %v868 = vsel %vm864, %v859, %v788
        %v870 = vsel %vm864, %v861, %v790
        %v872 = vsel %vm864, %v863, %v792
        %vm873 = vcmask 64512
        %v875 = vsel %vm873, %v866, %v803
        %v877 = vsel %vm873, %v868, %v805
        %v879 = vsel %vm873, %v870, %v807
        %v881 = vsel %vm873, %v872, %v809
        %v882 = vld [vmem:[%s1] sm:$0xf]
        %v883 = vld [vmem:[%s1 + $0x4] sm:$0x1]
        %v886 = vunpack.c.l.b16 %v882
        %v887 = vunpack.c.l.b16 %v883
        %v888 = vpack.c.b16 %v887, %v886
        %vm889 = vcmask 72704
        %v890 = vsel %vm889, %v875, 0
        %v892 = vsel %vm889, %v877, 0
        %v894 = vsel %vm889, %v879, 0
        %v896 = vsel %vm889, %v881, 0
        %vm898 = vcmask 1043456
        %vm899 = vcmask 1044480
        %v900 = vsel %vm898, 4294967295, 65535
        %v901 = vsel %vm899, %v900, 0
        %v903 = vand.u32 %v888, %v901
        %905 = vmatprep.subr.bf16.mxu0 0
        %906 = vmatpush1.bf16.msra.mxu0 0
        %907 = vmatprep.subr.bf16.mxu0 0
        %908 = vmatpush1.bf16.msra.mxu0 0
        %909 = vmatprep.subr.bf16.mxu0 0
        %910 = vmatpush1.bf16.msra.mxu0 0
        %911 = vmatprep.subr.bf16.mxu0 0
        %912 = vmatpush1.bf16.msra.mxu0 0
        %913 = vmatprep.subr.bf16.mxu0 0
        %914 = vmatpush1.bf16.msra.mxu0 0
        %915 = vmatprep.subr.bf16.mxu0 0
        %916 = vmatpush1.bf16.msra.mxu0 0
        %917 = vmatprep.subr.bf16.mxu0 0
        %918 = vmatpush1.bf16.msra.mxu0 0
        %919 = vmatprep.subr.bf16.mxu0 0
        %920 = vmatpush1.bf16.msra.mxu0 %v903
        %921 = vmatprep.subr.bf16.mxu0 0
        %922 = vmatpush2.bf16.msra.mxu0 0
        %923 = vmatprep.subr.bf16.mxu0 0
        %924 = vmatpush2.bf16.msra.mxu0 0
        %925 = vmatprep.subr.bf16.mxu0 0
        %926 = vmatpush2.bf16.msra.mxu0 0
        %927 = vmatprep.subr.bf16.mxu0 0
        %928 = vmatpush2.bf16.msra.mxu0 0
        %929 = vmatprep.subr.bf16.mxu0 0
        %930 = vmatpush2.bf16.msra.mxu0 0
        %931 = vmatprep.subr.bf16.mxu0 0
        %932 = vmatpush2.bf16.msra.mxu0 0
        %933 = vmatprep.subr.bf16.mxu0 0
        %934 = vmatpush2.bf16.msra.mxu0 0
        %935 = vmatprep.subr.bf16.mxu0 0
        %936 = vmatpush2.bf16.msra.mxu0 0
        %937 = vmatprep.mubr.bf16.mxu0 0
        %938 = vmatmul.mubr.bf16.gmra.mxu0 %v890
        %v939 = vpop.f32.mrf.mxu0
        %v940 = vadd.f32 0.0, %v939
        %v941 = vpop.f32.mrf.mxu0
        %v942 = vpop.f32.mrf.mxu0
        %v943 = vadd.f32 0.0, %v942
        %v944 = vpop.f32.mrf.mxu0
        %945 = vmatprep.mubr.bf16.mxu0 0
        %946 = vmatmul.mubr.bf16.gmra.mxu0 %v892
        %v947 = vpop.f32.mrf.mxu0
        %v948 = vadd.f32 0.0, %v947
        %v949 = vpop.f32.mrf.mxu0
        %v950 = vpop.f32.mrf.mxu0
        %v951 = vadd.f32 0.0, %v950
        %v952 = vpop.f32.mrf.mxu0
        %953 = vmatprep.mubr.bf16.mxu0 0
        %954 = vmatmul.mubr.bf16.gmra.mxu0 %v894
        %v955 = vpop.f32.mrf.mxu0
        %v956 = vadd.f32 0.0, %v955
        %v957 = vpop.f32.mrf.mxu0
        %v958 = vpop.f32.mrf.mxu0
        %v959 = vadd.f32 0.0, %v958
        %v960 = vpop.f32.mrf.mxu0
        %961 = vmatprep.mubr.bf16.mxu0 0
        %962 = vmatmul.mubr.bf16.gmra.mxu0 %v896
        %v963 = vpop.f32.mrf.mxu0
        %v964 = vadd.f32 0.0, %v963
        %v965 = vpop.f32.mrf.mxu0
        %v966 = vpop.f32.mrf.mxu0
        %v967 = vadd.f32 0.0, %v966
        %v968 = vpop.f32.mrf.mxu0
        %969 = vdwg.mxu0
        %v971 = vlaneseq
        %v972 = vshrl.u32 %v971, 7
        %v973 = vsub.s32 0, %v972
        %v974 = vrot.slane %v493, %v973
        %v976 = vmul.f32 %v940, %v974
        %v977 = vmul.f32 %v943, %v974
        %v978 = vmul.f32 %v948, %v974
        %v979 = vmul.f32 %v951, %v974
        %v980 = vmul.f32 %v956, %v974
        %v981 = vmul.f32 %v959, %v974
        %v982 = vmul.f32 %v964, %v974
        %v983 = vmul.f32 %v967, %v974
        %v985 = vlaneseq
        %v986 = vshrl.u32 %v985, 7
        %v987 = vsub.s32 0, %v986
        %v988 = vrot.slane %v494, %v987
        %v990 = vadd.f32 %v976, %v988
        %v991 = vadd.f32 %v977, %v988
        %v992 = vadd.f32 %v978, %v988
        %v993 = vadd.f32 %v979, %v988
        %v994 = vadd.f32 %v980, %v988
        %v995 = vadd.f32 %v981, %v988
        %v996 = vadd.f32 %v982, %v988
        %v997 = vadd.f32 %v983, %v988
        %v998 = vmax.f32 %v990, 0.0
        %v999 = vmax.f32 %v991, 0.0
        %v1000 = vmax.f32 %v992, 0.0
        %v1001 = vmax.f32 %v993, 0.0
        %v1002 = vmax.f32 %v994, 0.0
        %v1003 = vmax.f32 %v995, 0.0
        %v1004 = vmax.f32 %v996, 0.0
        %v1005 = vmax.f32 %v997, 0.0
        %s1006 = sadd.s32 %s501, 3
        %s1007 = smul.u32 %s1006, 9
        %s1008 = smul.addr %s1007, 4
        %s1009 = scalar_lea.vmem %s354, %s1008
        %v1010 = vld [vmem:[%s1009] sm:$0xf]
        %v1011 = vld [vmem:[%s1009 + $0x4] sm:$0xf]
        %v1012 = vld [vmem:[%s1009 + $0x8] sm:$0xf]
        %v1013 = vld [vmem:[%s1009 + $0xc] sm:$0xf]
        %v1014 = vld [vmem:[%s1009 + $0x10] sm:$0xf]
        %v1015 = vld [vmem:[%s1009 + $0x14] sm:$0xf]
        %v1016 = vld [vmem:[%s1009 + $0x18] sm:$0xf]
        %v1017 = vld [vmem:[%s1009 + $0x1c] sm:$0xf]
        %v1018 = vld [vmem:[%s1009 + $0x20] sm:$0x1]
        %1019 = vrot.lane.b32.xlu0 %v668, 1
        %v1020 = vpop.permute.xlu0 %1019
        %1021 = vrot.lane.b32.xlu0 %v676, 1
        %v1022 = vpop.permute.xlu0 %1021
        %1023 = vrot.lane.b32.xlu0 %v684, 1
        %v1024 = vpop.permute.xlu0 %1023
        %1025 = vrot.lane.b32.xlu0 %v692, 1
        %v1026 = vpop.permute.xlu0 %1025
        %1027 = vrot.lane.b32.xlu0 %v703, 2
        %v1028 = vpop.permute.xlu0 %1027
        %1029 = vrot.lane.b32.xlu0 %v705, 2
        %v1030 = vpop.permute.xlu0 %1029
        %1031 = vrot.lane.b32.xlu0 %v707, 2
        %v1032 = vpop.permute.xlu0 %1031
        %1033 = vrot.lane.b32.xlu0 %v709, 2
        %v1034 = vpop.permute.xlu0 %1033
        %1035 = vrot.lane.b32.xlu0 %v734, 3
        %v1036 = vpop.permute.xlu0 %1035
        %1037 = vrot.lane.b32.xlu0 %v735, 3
        %v1038 = vpop.permute.xlu0 %1037
        %1039 = vrot.lane.b32.xlu0 %v736, 3
        %v1040 = vpop.permute.xlu0 %1039
        %1041 = vrot.lane.b32.xlu0 %v737, 3
        %v1042 = vpop.permute.xlu0 %1041
        %1043 = vrot.lane.b32.xlu0 %v760, 4
        %v1044 = vpop.permute.xlu0 %1043
        %1045 = vrot.lane.b32.xlu0 %v768, 4
        %v1046 = vpop.permute.xlu0 %1045
        %1047 = vrot.lane.b32.xlu0 %v776, 4
        %v1048 = vpop.permute.xlu0 %1047
        %1049 = vrot.lane.b32.xlu0 %v784, 4
        %v1050 = vpop.permute.xlu0 %1049
        %1051 = vrot.lane.b32.xlu0 %v795, 5
        %v1052 = vpop.permute.xlu0 %1051
        %1053 = vrot.lane.b32.xlu0 %v797, 5
        %v1054 = vpop.permute.xlu0 %1053
        %1055 = vrot.lane.b32.xlu0 %v799, 5
        %v1056 = vpop.permute.xlu0 %1055
        %1057 = vrot.lane.b32.xlu0 %v801, 5
        %v1058 = vpop.permute.xlu0 %1057
        %v1067 = vunpack.c.l.b16 %v1010
        %v1068 = vunpack.c.l.b16 %v1011
        %v1069 = vunpack.c.l.b16 %v1012
        %v1070 = vunpack.c.l.b16 %v1013
        %v1071 = vunpack.c.l.b16 %v1014
        %v1072 = vunpack.c.l.b16 %v1015
        %v1073 = vunpack.c.l.b16 %v1016
        %v1074 = vunpack.c.l.b16 %v1017
        %v1075 = vpack.c.b16 %v1068, %v1067
        %v1076 = vpack.c.b16 %v1070, %v1069
        %v1077 = vpack.c.b16 %v1072, %v1071
        %v1078 = vpack.c.b16 %v1074, %v1073
        %1079 = vrot.lane.b32.xlu0 %v1075, 6
        %v1080 = vpop.permute.xlu0 %1079
        %1081 = vrot.lane.b32.xlu0 %v1076, 6
        %v1082 = vpop.permute.xlu0 %1081
        %1083 = vrot.lane.b32.xlu0 %v1077, 6
        %v1084 = vpop.permute.xlu0 %1083
        %1085 = vrot.lane.b32.xlu0 %v1078, 6
        %v1086 = vpop.permute.xlu0 %1085
        %v1088 = vunpack.c.l.b16 %v1018
        %v1089 = vpack.c.b16 %v1088, %v1088
        %v1091 = vshrl.u32 %v1075, 16
        %v1093 = vshll.u32 %v1075, 16
        %v1095 = vrot.slane %v1093, 1
        %v1096 = vor.u32 %v1091, %v1095
        %v1098 = vshll.u32 %v1076, 16
        %v1100 = vrot.slane %v1098, 1
        %v1101 = vsel %vm563, %v1096, %v1100
        %v1102 = vshrl.u32 %v1076, 16
        %v1104 = vor.u32 %v1102, %v1100
        %v1106 = vshll.u32 %v1077, 16
        %v1108 = vrot.slane %v1106, 1
        %v1109 = vsel %vm563, %v1104, %v1108
        %v1110 = vshrl.u32 %v1077, 16
        %v1112 = vor.u32 %v1110, %v1108
        %v1114 = vshll.u32 %v1078, 16
        %v1116 = vrot.slane %v1114, 1
        %v1117 = vsel %vm563, %v1112, %v1116
        %v1118 = vshrl.u32 %v1078, 16
        %v1120 = vor.u32 %v1118, %v1116
        %v1122 = vshll.u32 %v1089, 16
        %v1124 = vrot.slane %v1122, 1
        %v1125 = vsel %vm563, %v1120, %v1124
        %1126 = vrot.lane.b32.xlu0 %v1101, 7
        %v1127 = vpop.permute.xlu0 %1126
        %1128 = vrot.lane.b32.xlu0 %v1109, 7
        %v1129 = vpop.permute.xlu0 %1128
        %1130 = vrot.lane.b32.xlu0 %v1117, 7
        %v1131 = vpop.permute.xlu0 %1130
        %1132 = vrot.lane.b32.xlu0 %v1125, 7
        %v1133 = vpop.permute.xlu0 %1132
        %v1134 = vrot.slane %v1075, 1
        %v1135 = vrot.slane %v1076, 1
        %v1136 = vsel %vm608, %v1134, %v1135
        %v1137 = vrot.slane %v1077, 1
        %v1138 = vsel %vm608, %v1135, %v1137
        %v1139 = vrot.slane %v1078, 1
        %v1140 = vsel %vm608, %v1137, %v1139
        %v1141 = vrot.slane %v1089, 1
        %v1142 = vsel %vm608, %v1139, %v1141
        %1143 = vrot.lane.b32.xlu0 %v1136, 8
        %v1144 = vpop.permute.xlu0 %1143
        %1145 = vrot.lane.b32.xlu0 %v1138, 8
        %v1146 = vpop.permute.xlu0 %1145
        %1147 = vrot.lane.b32.xlu0 %v1140, 8
        %v1148 = vpop.permute.xlu0 %1147
        %1149 = vrot.lane.b32.xlu0 %v1142, 8
        %v1150 = vpop.permute.xlu0 %1149
        %v1152 = vsel %vm810, %v642, %v1020
        %v1154 = vsel %vm810, %v643, %v1022
        %v1156 = vsel %vm810, %v644, %v1024
        %v1158 = vsel %vm810, %v645, %v1026
        %v1160 = vsel %vm819, %v1152, %v1028
        %v1162 = vsel %vm819, %v1154, %v1030
        %v1164 = vsel %vm819, %v1156, %v1032
        %v1166 = vsel %vm819, %v1158, %v1034
        %v1168 = vsel %vm828, %v1160, %v1036
        %v1170 = vsel %vm828, %v1162, %v1038
        %v1172 = vsel %vm828, %v1164, %v1040
        %v1174 = vsel %vm828, %v1166, %v1042
        %v1176 = vsel %vm837, %v1168, %v1044
        %v1178 = vsel %vm837, %v1170, %v1046
        %v1180 = vsel %vm837, %v1172, %v1048
        %v1182 = vsel %vm837, %v1174, %v1050
        %v1184 = vsel %vm846, %v1176, %v1052
        %v1186 = vsel %vm846, %v1178, %v1054
        %v1188 = vsel %vm846, %v1180, %v1056
        %v1190 = vsel %vm846, %v1182, %v1058
        %v1192 = vsel %vm855, %v1184, %v1080
        %v1194 = vsel %vm855, %v1186, %v1082
        %v1196 = vsel %vm855, %v1188, %v1084
        %v1198 = vsel %vm855, %v1190, %v1086
        %v1200 = vsel %vm864, %v1192, %v1127
        %v1202 = vsel %vm864, %v1194, %v1129
        %v1204 = vsel %vm864, %v1196, %v1131
        %v1206 = vsel %vm864, %v1198, %v1133
        %v1208 = vsel %vm873, %v1200, %v1144
        %v1210 = vsel %vm873, %v1202, %v1146
        %v1212 = vsel %vm873, %v1204, %v1148
        %v1214 = vsel %vm873, %v1206, %v1150
        %v1215 = vsel %vm889, %v1208, 0
        %v1217 = vsel %vm889, %v1210, 0
        %v1219 = vsel %vm889, %v1212, 0
        %v1221 = vsel %vm889, %v1214, 0
        %1223 = vmatprep.subr.bf16.mxu0 0
        %1224 = vmatpush1.bf16.msra.mxu0 0
        %1225 = vmatprep.subr.bf16.mxu0 0
        %1226 = vmatpush1.bf16.msra.mxu0 0
        %1227 = vmatprep.subr.bf16.mxu0 0
        %1228 = vmatpush1.bf16.msra.mxu0 0
        %1229 = vmatprep.subr.bf16.mxu0 0
        %1230 = vmatpush1.bf16.msra.mxu0 0
        %1231 = vmatprep.subr.bf16.mxu0 0
        %1232 = vmatpush1.bf16.msra.mxu0 0
        %1233 = vmatprep.subr.bf16.mxu0 0
        %1234 = vmatpush1.bf16.msra.mxu0 0
        %1235 = vmatprep.subr.bf16.mxu0 0
        %1236 = vmatpush1.bf16.msra.mxu0 0
        %1237 = vmatprep.subr.bf16.mxu0 0
        %1238 = vmatpush1.bf16.msra.mxu0 %v903
        %1239 = vmatprep.subr.bf16.mxu0 0
        %1240 = vmatpush2.bf16.msra.mxu0 0
        %1241 = vmatprep.subr.bf16.mxu0 0
        %1242 = vmatpush2.bf16.msra.mxu0 0
        %1243 = vmatprep.subr.bf16.mxu0 0
        %1244 = vmatpush2.bf16.msra.mxu0 0
        %1245 = vmatprep.subr.bf16.mxu0 0
        %1246 = vmatpush2.bf16.msra.mxu0 0
        %1247 = vmatprep.subr.bf16.mxu0 0
        %1248 = vmatpush2.bf16.msra.mxu0 0
        %1249 = vmatprep.subr.bf16.mxu0 0
        %1250 = vmatpush2.bf16.msra.mxu0 0
        %1251 = vmatprep.subr.bf16.mxu0 0
        %1252 = vmatpush2.bf16.msra.mxu0 0
        %1253 = vmatprep.subr.bf16.mxu0 0
        %1254 = vmatpush2.bf16.msra.mxu0 0
        %1255 = vmatprep.mubr.bf16.mxu0 0
        %1256 = vmatmul.mubr.bf16.gmra.mxu0 %v1215
        %v1257 = vpop.f32.mrf.mxu0
        %v1258 = vadd.f32 0.0, %v1257
        %v1259 = vpop.f32.mrf.mxu0
        %v1260 = vpop.f32.mrf.mxu0
        %v1261 = vadd.f32 0.0, %v1260
        %v1262 = vpop.f32.mrf.mxu0
        %1263 = vmatprep.mubr.bf16.mxu0 0
        %1264 = vmatmul.mubr.bf16.gmra.mxu0 %v1217
        %v1265 = vpop.f32.mrf.mxu0
        %v1266 = vadd.f32 0.0, %v1265
        %v1267 = vpop.f32.mrf.mxu0
        %v1268 = vpop.f32.mrf.mxu0
        %v1269 = vadd.f32 0.0, %v1268
        %v1270 = vpop.f32.mrf.mxu0
        %1271 = vmatprep.mubr.bf16.mxu0 0
        %1272 = vmatmul.mubr.bf16.gmra.mxu0 %v1219
        %v1273 = vpop.f32.mrf.mxu0
        %v1274 = vadd.f32 0.0, %v1273
        %v1275 = vpop.f32.mrf.mxu0
        %v1276 = vpop.f32.mrf.mxu0
        %v1277 = vadd.f32 0.0, %v1276
        %v1278 = vpop.f32.mrf.mxu0
        %1279 = vmatprep.mubr.bf16.mxu0 0
        %1280 = vmatmul.mubr.bf16.gmra.mxu0 %v1221
        %v1281 = vpop.f32.mrf.mxu0
        %v1282 = vadd.f32 0.0, %v1281
        %v1283 = vpop.f32.mrf.mxu0
        %v1284 = vpop.f32.mrf.mxu0
        %v1285 = vadd.f32 0.0, %v1284
        %v1286 = vpop.f32.mrf.mxu0
        %1287 = vdwg.mxu0
        %v1288 = vmul.f32 %v1258, %v974
        %v1289 = vmul.f32 %v1261, %v974
        %v1290 = vmul.f32 %v1266, %v974
        %v1291 = vmul.f32 %v1269, %v974
        %v1292 = vmul.f32 %v1274, %v974
        %v1293 = vmul.f32 %v1277, %v974
        %v1294 = vmul.f32 %v1282, %v974
        %v1295 = vmul.f32 %v1285, %v974
        %v1296 = vadd.f32 %v1288, %v988
        %v1297 = vadd.f32 %v1289, %v988
        %v1298 = vadd.f32 %v1290, %v988
        %v1299 = vadd.f32 %v1291, %v988
        %v1300 = vadd.f32 %v1292, %v988
        %v1301 = vadd.f32 %v1293, %v988
        %v1302 = vadd.f32 %v1294, %v988
        %v1303 = vadd.f32 %v1295, %v988
        %v1304 = vmax.f32 %v1296, 0.0
        %v1305 = vmax.f32 %v1297, 0.0
        %v1306 = vmax.f32 %v1298, 0.0
        %v1307 = vmax.f32 %v1299, 0.0
        %v1308 = vmax.f32 %v1300, 0.0
        %v1309 = vmax.f32 %v1301, 0.0
        %v1310 = vmax.f32 %v1302, 0.0
        %v1311 = vmax.f32 %v1303, 0.0
        %v1312 = vmax.f32 %v998, %v1304
        %v1313 = vmax.f32 %v999, %v1305
        %v1314 = vmax.f32 %v1000, %v1306
        %v1315 = vmax.f32 %v1001, %v1307
        %v1316 = vmax.f32 %v1002, %v1308
        %v1317 = vmax.f32 %v1003, %v1309
        %v1318 = vmax.f32 %v1004, %v1310
        %v1319 = vmax.f32 %v1005, %v1311
        %1320 = vst [vmem:[#allocation5] sm:$0xff] %v1312
        %1321 = vst [vmem:[#allocation5 + $0x8] sm:$0xff] %v1313
        %1322 = vst [vmem:[#allocation5 + $0x10] sm:$0xff] %v1314
        %1323 = vst [vmem:[#allocation5 + $0x18] sm:$0xff] %v1315
        %1324 = vst [vmem:[#allocation5 + $0x20] sm:$0xff] %v1316
        %1325 = vst [vmem:[#allocation5 + $0x28] sm:$0xff] %v1317
        %1326 = vst [vmem:[#allocation5 + $0x30] sm:$0xff] %v1318
        %1327 = vst [vmem:[#allocation5 + $0x38] sm:$0xff] %v1319
        %v1328 = vld [vmem:[#allocation5] ss:$2 sm:$0xff]
        %s1329 = scalar_lea.vmem [#allocation5], 16
        %v1330 = vld [vmem:[%s1329] ss:$2 sm:$0xff]
        %s1331 = scalar_lea.vmem [#allocation5], 32
        %v1332 = vld [vmem:[%s1331] ss:$2 sm:$0xff]
        %s1333 = scalar_lea.vmem [#allocation5], 48
        %v1334 = vld [vmem:[%s1333] ss:$2 sm:$0xff]
        %s1335 = scalar_lea.vmem [#allocation5], 1
        %v1336 = vld [vmem:[%s1335] ss:$2 sm:$0xff]
        %s1337 = scalar_lea.vmem [#allocation5], 17
        %v1338 = vld [vmem:[%s1337] ss:$2 sm:$0xff]
        %s1339 = scalar_lea.vmem [#allocation5], 33
        %v1340 = vld [vmem:[%s1339] ss:$2 sm:$0xff]
        %s1341 = scalar_lea.vmem [#allocation5], 49
        %v1342 = vld [vmem:[%s1341] ss:$2 sm:$0xff]
        %v1343 = vmax.f32 %v1328, %v1336
        %v1344 = vmax.f32 %v1330, %v1338
        %v1345 = vmax.f32 %v1332, %v1340
        %v1346 = vmax.f32 %v1334, %v1342
        %vm1351 = vcmask 1040384
        %v1352 = vrot.slane %v1343, 7
        %v1353 = vrot.slane %v1344, 7
        %v1354 = vsel %vm1351, %v1352, %v1353
        %v1355 = vrot.slane %v1345, 7
        %v1356 = vsel %vm1351, %v1353, %v1355
        %v1357 = vrot.slane %v1346, 7
        %v1358 = vsel %vm1351, %v1355, %v1357
        %v1364 = vsel %vm1351, 0.0, %v1352
        %v1365 = vsel %vm1351, %v1357, 0.0
        %v1366 = vpack.c.bf16 %v1354, %v1364
        %v1367 = vpack.c.bf16 %v1358, %v1356
        %v1368 = vpack.c.bf16 %v1365, %v1365
        %s1369 = sadd.s32 %s496, 1
        %v1373 = vunpack.c.l.b16 %v1366
        %v1374 = vunpack.c.h.b16 %v1366
        %v1375 = vunpack.c.l.b16 %v1367
        %v1376 = vunpack.c.h.b16 %v1367
        %v1377 = vunpack.c.l.b16 %v1368
        %v1378 = vpack.c.b16 %v1373, %v1373
        %v1379 = vpack.c.b16 %v1374, %v1374
        %v1380 = vpack.c.b16 %v1375, %v1375
        %v1381 = vpack.c.b16 %v1376, %v1376
        %v1382 = vpack.c.b16 %v1377, %v1377
        %s1388 = smul.u32 %s1369, 5
        %s1389 = smul.addr %s1388, 4
        %s1390 = scalar_lea.vmem [#allocation2], %s1389
        %1391 = vst [vmem:[%s1390] sm:$0xf] %v1378
        %1392 = vst [vmem:[%s1390 + $0x4] sm:$0xf] %v1379
        %1393 = vst [vmem:[%s1390 + $0x8] sm:$0xf] %v1380
        %1394 = vst [vmem:[%s1390 + $0xc] sm:$0xf] %v1381
        %1395 = vst [vmem:[%s1390 + $0x10] sm:$0x1] %v1382
      $region65: #{conv_model_forward.2} parent=59 // loop_footer
        %s500 = sadd.s32 1, %s496
      $region66: #{conv_model_forward.2} parent=59 // loop_footer_branch
        %495 = sbr.rel target = $region62
      $region67: #{conv_model_forward.2} parent=59 // loop_exit
        _
      %v1396 = vld [vmem:[%s5] sm:$0x1]
      %v1397 = vld [vmem:[%s6] sm:$0x1]
      loop: start=0, step=1, limit=8
      $region68: #{conv_model_forward.2} parent=59 // loop_pre_header
        _
      $region69: #{conv_model_forward.2} parent=59 // loop_header
        %s1399 = sphi 0, %s1403
        %p1400 = scmp.ge.s32.totalorder %s1399, 8
      $region70: #{conv_model_forward.2} parent=59 // loop_header_branch
        %1402 = sbr.rel (%p1400) target = $region74
      $region71: #{conv_model_forward.2} parent=59 // loop_body
        %s1404 = smul.u32 %s1399, 2
        %s1405 = smul.u32 %s1404, 5
        %s1406 = smul.addr %s1405, 4
        %s1407 = scalar_lea.vmem [#allocation2], %s1406
        %v1408 = vld [vmem:[%s1407] sm:$0xf]
        %v1409 = vld [vmem:[%s1407 + $0x4] sm:$0xf]
        %v1410 = vld [vmem:[%s1407 + $0x8] sm:$0xf]
        %v1411 = vld [vmem:[%s1407 + $0xc] sm:$0xf]
        %v1412 = vld [vmem:[%s1407 + $0x10] sm:$0x1]
        %s1413 = sadd.s32 %s1404, 1
        %s1414 = smul.u32 %s1413, 5
        %s1415 = smul.addr %s1414, 4
        %s1416 = scalar_lea.vmem [#allocation2], %s1415
        %v1417 = vld [vmem:[%s1416] sm:$0xf]
        %v1418 = vld [vmem:[%s1416 + $0x4] sm:$0xf]
        %v1419 = vld [vmem:[%s1416 + $0x8] sm:$0xf]
        %v1420 = vld [vmem:[%s1416 + $0xc] sm:$0xf]
        %v1421 = vld [vmem:[%s1416 + $0x10] sm:$0x1]
        %s1422 = sadd.s32 %s1404, 2
        %s1423 = smul.u32 %s1422, 5
        %s1424 = smul.addr %s1423, 4
        %s1425 = scalar_lea.vmem [#allocation2], %s1424
        %v1426 = vld [vmem:[%s1425] sm:$0xf]
        %v1427 = vld [vmem:[%s1425 + $0x4] sm:$0xf]
        %v1428 = vld [vmem:[%s1425 + $0x8] sm:$0xf]
        %v1429 = vld [vmem:[%s1425 + $0xc] sm:$0xf]
        %v1430 = vld [vmem:[%s1425 + $0x10] sm:$0x1]
        %v1435 = vunpack.c.l.b16 %v1408
        %v1436 = vunpack.c.l.b16 %v1409
        %v1437 = vunpack.c.l.b16 %v1410
        %v1438 = vunpack.c.l.b16 %v1411
        %v1439 = vpack.c.b16 %v1436, %v1435
        %v1440 = vpack.c.b16 %v1438, %v1437
        %v1444 = vunpack.c.l.b16 %v1412
        %v1445 = vpack.c.b16 %v1444, %v1444
        %vm1446 = vsmask.f32 7424
        %v1448 = vshrl.u32 %v1439, 16
        %v1450 = vshll.u32 %v1439, 16
        %v1452 = vrot.slane %v1450, 1
        %v1453 = vor.u32 %v1448, %v1452
        %v1455 = vshll.u32 %v1440, 16
        %v1457 = vrot.slane %v1455, 1
        %v1458 = vsel %vm1446, %v1453, %v1457
        %v1459 = vshrl.u32 %v1440, 16
        %v1461 = vor.u32 %v1459, %v1457
        %v1463 = vshll.u32 %v1445, 16
        %v1465 = vrot.slane %v1463, 1
        %v1466 = vsel %vm1446, %v1461, %v1465
        %vm1469 = vcmask 1046528
        %v1470 = vrot.slane %v1439, 1
        %v1471 = vrot.slane %v1440, 1
        %v1472 = vsel %vm1469, %v1470, %v1471
        %v1473 = vrot.slane %v1445, 1
        %v1474 = vsel %vm1469, %v1471, %v1473
        %v1477 = vld [vmem:[%s4] sm:$0xf]
        %v1478 = vld [vmem:[%s4 + $0x4] sm:$0xf]
        %v1479 = vld [vmem:[%s4 + $0x8] sm:$0xf]
        %v1480 = vld [vmem:[%s4 + $0xc] sm:$0xf]
        %v1481 = vld [vmem:[%s4 + $0x10] sm:$0xf]
        %v1482 = vld [vmem:[%s4 + $0x14] sm:$0xf]
        %v1483 = vld [vmem:[%s4 + $0x18] sm:$0xf]
        %v1484 = vld [vmem:[%s4 + $0x1c] sm:$0xf]
        %v1485 = vld [vmem:[%s4 + $0x20] sm:$0xf]
        %v1486 = vld [vmem:[%s4 + $0x24] sm:$0xf]
        %v1487 = vld [vmem:[%s4 + $0x28] sm:$0xf]
        %v1488 = vld [vmem:[%s4 + $0x2c] sm:$0xf]
        %v1489 = vld [vmem:[%s4 + $0x30] sm:$0xf]
        %v1490 = vld [vmem:[%s4 + $0x34] sm:$0xf]
        %v1491 = vld [vmem:[%s4 + $0x38] sm:$0xf]
        %v1492 = vld [vmem:[%s4 + $0x3c] sm:$0xf]
        %v1493 = vld [vmem:[%s4 + $0x40] sm:$0xf]
        %v1494 = vld [vmem:[%s4 + $0x44] sm:$0xf]
        %v1495 = vld [vmem:[%s4 + $0x48] sm:$0xf]
        %v1496 = vld [vmem:[%s4 + $0x4c] sm:$0xf]
        %v1497 = vld [vmem:[%s4 + $0x50] sm:$0xf]
        %v1498 = vld [vmem:[%s4 + $0x54] sm:$0xf]
        %v1499 = vld [vmem:[%s4 + $0x58] sm:$0xf]
        %v1500 = vld [vmem:[%s4 + $0x5c] sm:$0xf]
        %v1501 = vld [vmem:[%s4 + $0x60] sm:$0xf]
        %v1502 = vld [vmem:[%s4 + $0x64] sm:$0xf]
        %v1503 = vld [vmem:[%s4 + $0x68] sm:$0xf]
        %v1504 = vld [vmem:[%s4 + $0x6c] sm:$0xf]
        %v1505 = vld [vmem:[%s4 + $0x70] sm:$0xf]
        %v1506 = vld [vmem:[%s4 + $0x74] sm:$0xf]
        %v1507 = vld [vmem:[%s4 + $0x78] sm:$0xf]
        %v1508 = vld [vmem:[%s4 + $0x7c] sm:$0xf]
        %v1509 = vld [vmem:[%s4 + $0x80] sm:$0xf]
        %v1510 = vld [vmem:[%s4 + $0x84] sm:$0xf]
        %v1511 = vld [vmem:[%s4 + $0x88] sm:$0xf]
        %v1512 = vld [vmem:[%s4 + $0x8c] sm:$0xf]
        %v1513 = vld [vmem:[%s4 + $0x90] sm:$0xf]
        %v1514 = vld [vmem:[%s4 + $0x94] sm:$0xf]
        %v1515 = vld [vmem:[%s4 + $0x98] sm:$0xf]
        %v1516 = vld [vmem:[%s4 + $0x9c] sm:$0xf]
        %v1517 = vld [vmem:[%s4 + $0xa0] sm:$0xf]
        %v1518 = vld [vmem:[%s4 + $0xa4] sm:$0xf]
        %v1519 = vld [vmem:[%s4 + $0xa8] sm:$0xf]
        %v1520 = vld [vmem:[%s4 + $0xac] sm:$0xf]
        %v1521 = vld [vmem:[%s4 + $0xb0] sm:$0xf]
        %v1522 = vld [vmem:[%s4 + $0xb4] sm:$0xf]
        %v1523 = vld [vmem:[%s4 + $0xb8] sm:$0xf]
        %v1524 = vld [vmem:[%s4 + $0xbc] sm:$0xf]
        %v1529 = vunpack.c.l.b16 %v1417
        %v1530 = vunpack.c.l.b16 %v1418
        %v1531 = vunpack.c.l.b16 %v1419
        %v1532 = vunpack.c.l.b16 %v1420
        %v1533 = vpack.c.b16 %v1530, %v1529
        %v1534 = vpack.c.b16 %v1532, %v1531
        %v1538 = vunpack.c.l.b16 %v1421
        %v1539 = vpack.c.b16 %v1538, %v1538
        %v1541 = vshrl.u32 %v1533, 16
        %v1543 = vshll.u32 %v1533, 16
        %v1545 = vrot.slane %v1543, 1
        %v1546 = vor.u32 %v1541, %v1545
        %v1548 = vshll.u32 %v1534, 16
        %v1550 = vrot.slane %v1548, 1
        %v1551 = vsel %vm1446, %v1546, %v1550
        %v1552 = vshrl.u32 %v1534, 16
        %v1554 = vor.u32 %v1552, %v1550
        %v1556 = vshll.u32 %v1539, 16
        %v1558 = vrot.slane %v1556, 1
        %v1559 = vsel %vm1446, %v1554, %v1558
        %v1562 = vrot.slane %v1533, 1
        %v1563 = vrot.slane %v1534, 1
        %v1564 = vsel %vm1469, %v1562, %v1563
        %v1565 = vrot.slane %v1539, 1
        %v1566 = vsel %vm1469, %v1563, %v1565
        %s1569 = scalar_lea.vmem %s4, 192
        %v1570 = vld [vmem:[%s1569] sm:$0xf]
        %v1571 = vld [vmem:[%s1569 + $0x4] sm:$0xf]
        %v1572 = vld [vmem:[%s1569 + $0x8] sm:$0xf]
        %v1573 = vld [vmem:[%s1569 + $0xc] sm:$0xf]
        %v1574 = vld [vmem:[%s1569 + $0x10] sm:$0xf]
        %v1575 = vld [vmem:[%s1569 + $0x14] sm:$0xf]
        %v1576 = vld [vmem:[%s1569 + $0x18] sm:$0xf]
        %v1577 = vld [vmem:[%s1569 + $0x1c] sm:$0xf]
        %v1578 = vld [vmem:[%s1569 + $0x20] sm:$0xf]
        %v1579 = vld [vmem:[%s1569 + $0x24] sm:$0xf]
        %v1580 = vld [vmem:[%s1569 + $0x28] sm:$0xf]
        %v1581 = vld [vmem:[%s1569 + $0x2c] sm:$0xf]
        %v1582 = vld [vmem:[%s1569 + $0x30] sm:$0xf]
        %v1583 = vld [vmem:[%s1569 + $0x34] sm:$0xf]
        %v1584 = vld [vmem:[%s1569 + $0x38] sm:$0xf]
        %v1585 = vld [vmem:[%s1569 + $0x3c] sm:$0xf]
        %v1586 = vld [vmem:[%s1569 + $0x40] sm:$0xf]
        %v1587 = vld [vmem:[%s1569 + $0x44] sm:$0xf]
        %v1588 = vld [vmem:[%s1569 + $0x48] sm:$0xf]
        %v1589 = vld [vmem:[%s1569 + $0x4c] sm:$0xf]
        %v1590 = vld [vmem:[%s1569 + $0x50] sm:$0xf]
        %v1591 = vld [vmem:[%s1569 + $0x54] sm:$0xf]
        %v1592 = vld [vmem:[%s1569 + $0x58] sm:$0xf]
        %v1593 = vld [vmem:[%s1569 + $0x5c] sm:$0xf]
        %v1594 = vld [vmem:[%s1569 + $0x60] sm:$0xf]
        %v1595 = vld [vmem:[%s1569 + $0x64] sm:$0xf]
        %v1596 = vld [vmem:[%s1569 + $0x68] sm:$0xf]
        %v1597 = vld [vmem:[%s1569 + $0x6c] sm:$0xf]
        %v1598 = vld [vmem:[%s1569 + $0x70] sm:$0xf]
        %v1599 = vld [vmem:[%s1569 + $0x74] sm:$0xf]
        %v1600 = vld [vmem:[%s1569 + $0x78] sm:$0xf]
        %v1601 = vld [vmem:[%s1569 + $0x7c] sm:$0xf]
        %v1602 = vld [vmem:[%s1569 + $0x80] sm:$0xf]
        %v1603 = vld [vmem:[%s1569 + $0x84] sm:$0xf]
        %v1604 = vld [vmem:[%s1569 + $0x88] sm:$0xf]
        %v1605 = vld [vmem:[%s1569 + $0x8c] sm:$0xf]
        %v1606 = vld [vmem:[%s1569 + $0x90] sm:$0xf]
        %v1607 = vld [vmem:[%s1569 + $0x94] sm:$0xf]
        %v1608 = vld [vmem:[%s1569 + $0x98] sm:$0xf]
        %v1609 = vld [vmem:[%s1569 + $0x9c] sm:$0xf]
        %v1610 = vld [vmem:[%s1569 + $0xa0] sm:$0xf]
        %v1611 = vld [vmem:[%s1569 + $0xa4] sm:$0xf]
        %v1612 = vld [vmem:[%s1569 + $0xa8] sm:$0xf]
        %v1613 = vld [vmem:[%s1569 + $0xac] sm:$0xf]
        %v1614 = vld [vmem:[%s1569 + $0xb0] sm:$0xf]
        %v1615 = vld [vmem:[%s1569 + $0xb4] sm:$0xf]
        %v1616 = vld [vmem:[%s1569 + $0xb8] sm:$0xf]
        %v1617 = vld [vmem:[%s1569 + $0xbc] sm:$0xf]
        %v1666 = vunpack.c.l.b16 %v1570
        %v1667 = vunpack.c.l.b16 %v1571
        %v1668 = vunpack.c.l.b16 %v1572
        %v1669 = vunpack.c.l.b16 %v1573
        %v1670 = vunpack.c.l.b16 %v1574
        %v1671 = vunpack.c.l.b16 %v1575
        %v1672 = vunpack.c.l.b16 %v1576
        %v1673 = vunpack.c.l.b16 %v1577
        %v1674 = vunpack.c.l.b16 %v1578
        %v1675 = vunpack.c.l.b16 %v1579
        %v1676 = vunpack.c.l.b16 %v1580
        %v1677 = vunpack.c.l.b16 %v1581
        %v1678 = vunpack.c.l.b16 %v1582
        %v1679 = vunpack.c.l.b16 %v1583
        %v1680 = vunpack.c.l.b16 %v1584
        %v1681 = vunpack.c.l.b16 %v1585
        %v1682 = vunpack.c.l.b16 %v1586
        %v1683 = vunpack.c.l.b16 %v1587
        %v1684 = vunpack.c.l.b16 %v1588
        %v1685 = vunpack.c.l.b16 %v1589
        %v1686 = vunpack.c.l.b16 %v1590
        %v1687 = vunpack.c.l.b16 %v1591
        %v1688 = vunpack.c.l.b16 %v1592
        %v1689 = vunpack.c.l.b16 %v1593
        %v1690 = vunpack.c.l.b16 %v1594
        %v1691 = vunpack.c.l.b16 %v1595
        %v1692 = vunpack.c.l.b16 %v1596
        %v1693 = vunpack.c.l.b16 %v1597
        %v1694 = vunpack.c.l.b16 %v1598
        %v1695 = vunpack.c.l.b16 %v1599
        %v1696 = vunpack.c.l.b16 %v1600
        %v1697 = vunpack.c.l.b16 %v1601
        %v1698 = vunpack.c.l.b16 %v1602
        %v1699 = vunpack.c.l.b16 %v1603
        %v1700 = vunpack.c.l.b16 %v1604
        %v1701 = vunpack.c.l.b16 %v1605
        %v1702 = vunpack.c.l.b16 %v1606
        %v1703 = vunpack.c.l.b16 %v1607
        %v1704 = vunpack.c.l.b16 %v1608
        %v1705 = vunpack.c.l.b16 %v1609
        %v1706 = vunpack.c.l.b16 %v1610
        %v1707 = vunpack.c.l.b16 %v1611
        %v1708 = vunpack.c.l.b16 %v1612
        %v1709 = vunpack.c.l.b16 %v1613
        %v1710 = vunpack.c.l.b16 %v1614
        %v1711 = vunpack.c.l.b16 %v1615
        %v1712 = vunpack.c.l.b16 %v1616
        %v1713 = vunpack.c.l.b16 %v1617
        %v1714 = vpack.c.b16 %v1667, %v1666
        %v1715 = vpack.c.b16 %v1669, %v1668
        %v1716 = vpack.c.b16 %v1671, %v1670
        %v1717 = vpack.c.b16 %v1673, %v1672
        %v1718 = vpack.c.b16 %v1675, %v1674
        %v1719 = vpack.c.b16 %v1677, %v1676
        %v1720 = vpack.c.b16 %v1679, %v1678
        %v1721 = vpack.c.b16 %v1681, %v1680
        %v1722 = vpack.c.b16 %v1683, %v1682
        %v1723 = vpack.c.b16 %v1685, %v1684
        %v1724 = vpack.c.b16 %v1687, %v1686
        %v1725 = vpack.c.b16 %v1689, %v1688
        %v1726 = vpack.c.b16 %v1691, %v1690
        %v1727 = vpack.c.b16 %v1693, %v1692
        %v1728 = vpack.c.b16 %v1695, %v1694
        %v1729 = vpack.c.b16 %v1697, %v1696
        %v1730 = vpack.c.b16 %v1699, %v1698
        %v1731 = vpack.c.b16 %v1701, %v1700
        %v1732 = vpack.c.b16 %v1703, %v1702
        %v1733 = vpack.c.b16 %v1705, %v1704
        %v1734 = vpack.c.b16 %v1707, %v1706
        %v1735 = vpack.c.b16 %v1709, %v1708
        %v1736 = vpack.c.b16 %v1711, %v1710
        %v1737 = vpack.c.b16 %v1713, %v1712
        %1762 = vmatprep.subr.bf16.mxu0 0
        %1763 = vmatpush1.bf16.msra.mxu0 %v1721
        %1764 = vmatprep.subr.bf16.mxu0 0
        %1765 = vmatpush1.bf16.msra.mxu0 %v1720
        %1766 = vmatprep.subr.bf16.mxu0 0
        %1767 = vmatpush1.bf16.msra.mxu0 %v1719
        %1768 = vmatprep.subr.bf16.mxu0 0
        %1769 = vmatpush1.bf16.msra.mxu0 %v1718
        %1770 = vmatprep.subr.bf16.mxu0 0
        %1771 = vmatpush1.bf16.msra.mxu0 %v1717
        %1772 = vmatprep.subr.bf16.mxu0 0
        %1773 = vmatpush1.bf16.msra.mxu0 %v1716
        %1774 = vmatprep.subr.bf16.mxu0 0
        %1775 = vmatpush1.bf16.msra.mxu0 %v1715
        %1776 = vmatprep.subr.bf16.mxu0 0
        %1777 = vmatpush1.bf16.msra.mxu0 %v1714
        %1778 = vmatprep.subr.bf16.mxu0 0
        %1779 = vmatpush2.bf16.msra.mxu0 %v1729
        %1780 = vmatprep.subr.bf16.mxu0 0
        %1781 = vmatpush2.bf16.msra.mxu0 %v1728
        %1782 = vmatprep.subr.bf16.mxu0 0
        %1783 = vmatpush2.bf16.msra.mxu0 %v1727
        %1784 = vmatprep.subr.bf16.mxu0 0
        %1785 = vmatpush2.bf16.msra.mxu0 %v1726
        %1786 = vmatprep.subr.bf16.mxu0 0
        %1787 = vmatpush2.bf16.msra.mxu0 %v1725
        %1788 = vmatprep.subr.bf16.mxu0 0
        %1789 = vmatpush2.bf16.msra.mxu0 %v1724
        %1790 = vmatprep.subr.bf16.mxu0 0
        %1791 = vmatpush2.bf16.msra.mxu0 %v1723
        %1792 = vmatprep.subr.bf16.mxu0 0
        %1793 = vmatpush2.bf16.msra.mxu0 %v1722
        %1794 = vmatprep.mubr.bf16.mxu0 %v1551
        %1795 = vmatmul.mubr.bf16.gmra.mxu0 %v1533
        %v1796 = vpop.f32.mrf.mxu0
        %v1797 = vadd.f32 0.0, %v1796
        %v1798 = vpop.f32.mrf.mxu0
        %v1799 = vpop.f32.mrf.mxu0
        %v1800 = vadd.f32 0.0, %v1799
        %v1801 = vpop.f32.mrf.mxu0
        %1802 = vmatprep.mubr.bf16.mxu0 %v1559
        %1803 = vmatmul.mubr.bf16.gmra.mxu0 %v1534
        %v1804 = vpop.f32.mrf.mxu0
        %v1805 = vadd.f32 0.0, %v1804
        %v1806 = vpop.f32.mrf.mxu0
        %v1807 = vpop.f32.mrf.mxu0
        %v1808 = vadd.f32 0.0, %v1807
        %v1809 = vpop.f32.mrf.mxu0
        %1810 = vdwg.mxu0
        %1811 = vmatprep.subr.bf16.mxu0 0
        %1812 = vmatpush1.bf16.msra.mxu0 %v1737
        %1813 = vmatprep.subr.bf16.mxu0 0
        %1814 = vmatpush1.bf16.msra.mxu0 %v1736
        %1815 = vmatprep.subr.bf16.mxu0 0
        %1816 = vmatpush1.bf16.msra.mxu0 %v1735
        %1817 = vmatprep.subr.bf16.mxu0 0
        %1818 = vmatpush1.bf16.msra.mxu0 %v1734
        %1819 = vmatprep.subr.bf16.mxu0 0
        %1820 = vmatpush1.bf16.msra.mxu0 %v1733
        %1821 = vmatprep.subr.bf16.mxu0 0
        %1822 = vmatpush1.bf16.msra.mxu0 %v1732
        %1823 = vmatprep.subr.bf16.mxu0 0
        %1824 = vmatpush1.bf16.msra.mxu0 %v1731
        %1825 = vmatprep.subr.bf16.mxu0 0
        %1826 = vmatpush1.bf16.msra.mxu0 %v1730
        %1827 = vmatprep.subr.bf16.mxu0 0
        %1828 = vmatpush2.bf16.msra.mxu0 0
        %1829 = vmatprep.subr.bf16.mxu0 0
        %1830 = vmatpush2.bf16.msra.mxu0 0
        %1831 = vmatprep.subr.bf16.mxu0 0
        %1832 = vmatpush2.bf16.msra.mxu0 0
        %1833 = vmatprep.subr.bf16.mxu0 0
        %1834 = vmatpush2.bf16.msra.mxu0 0
        %1835 = vmatprep.subr.bf16.mxu0 0
        %1836 = vmatpush2.bf16.msra.mxu0 0
        %1837 = vmatprep.subr.bf16.mxu0 0
        %1838 = vmatpush2.bf16.msra.mxu0 0
        %1839 = vmatprep.subr.bf16.mxu0 0
        %1840 = vmatpush2.bf16.msra.mxu0 0
        %1841 = vmatprep.subr.bf16.mxu0 0
        %1842 = vmatpush2.bf16.msra.mxu0 0
        %1843 = vmatprep.mubr.bf16.mxu0 0
        %1844 = vmatmul.mubr.bf16.gmra.mxu0 %v1564
        %v1845 = vpop.f32.mrf.mxu0
        %v1846 = vadd.f32 %v1797, %v1845
        %v1847 = vpop.f32.mrf.mxu0
        %v1848 = vpop.f32.mrf.mxu0
        %v1849 = vadd.f32 %v1800, %v1848
        %v1850 = vpop.f32.mrf.mxu0
        %1851 = vmatprep.mubr.bf16.mxu0 0
        %1852 = vmatmul.mubr.bf16.gmra.mxu0 %v1566
        %v1853 = vpop.f32.mrf.mxu0
        %v1854 = vadd.f32 %v1805, %v1853
        %v1855 = vpop.f32.mrf.mxu0
        %v1856 = vpop.f32.mrf.mxu0
        %v1857 = vadd.f32 %v1808, %v1856
        %v1858 = vpop.f32.mrf.mxu0
        %1859 = vdwg.mxu0
        %v1908 = vunpack.c.l.b16 %v1477
        %v1909 = vunpack.c.l.b16 %v1478
        %v1910 = vunpack.c.l.b16 %v1479
        %v1911 = vunpack.c.l.b16 %v1480
        %v1912 = vunpack.c.l.b16 %v1481
        %v1913 = vunpack.c.l.b16 %v1482
        %v1914 = vunpack.c.l.b16 %v1483
        %v1915 = vunpack.c.l.b16 %v1484
        %v1916 = vunpack.c.l.b16 %v1485
        %v1917 = vunpack.c.l.b16 %v1486
        %v1918 = vunpack.c.l.b16 %v1487
        %v1919 = vunpack.c.l.b16 %v1488
        %v1920 = vunpack.c.l.b16 %v1489
        %v1921 = vunpack.c.l.b16 %v1490
        %v1922 = vunpack.c.l.b16 %v1491
        %v1923 = vunpack.c.l.b16 %v1492
        %v1924 = vunpack.c.l.b16 %v1493
        %v1925 = vunpack.c.l.b16 %v1494
        %v1926 = vunpack.c.l.b16 %v1495
        %v1927 = vunpack.c.l.b16 %v1496
        %v1928 = vunpack.c.l.b16 %v1497
        %v1929 = vunpack.c.l.b16 %v1498
        %v1930 = vunpack.c.l.b16 %v1499
        %v1931 = vunpack.c.l.b16 %v1500
        %v1932 = vunpack.c.l.b16 %v1501
        %v1933 = vunpack.c.l.b16 %v1502
        %v1934 = vunpack.c.l.b16 %v1503
        %v1935 = vunpack.c.l.b16 %v1504
        %v1936 = vunpack.c.l.b16 %v1505
        %v1937 = vunpack.c.l.b16 %v1506
        %v1938 = vunpack.c.l.b16 %v1507
        %v1939 = vunpack.c.l.b16 %v1508
        %v1940 = vunpack.c.l.b16 %v1509
        %v1941 = vunpack.c.l.b16 %v1510
        %v1942 = vunpack.c.l.b16 %v1511
        %v1943 = vunpack.c.l.b16 %v1512
        %v1944 = vunpack.c.l.b16 %v1513
        %v1945 = vunpack.c.l.b16 %v1514
        %v1946 = vunpack.c.l.b16 %v1515
        %v1947 = vunpack.c.l.b16 %v1516
        %v1948 = vunpack.c.l.b16 %v1517
        %v1949 = vunpack.c.l.b16 %v1518
        %v1950 = vunpack.c.l.b16 %v1519
        %v1951 = vunpack.c.l.b16 %v1520
        %v1952 = vunpack.c.l.b16 %v1521
        %v1953 = vunpack.c.l.b16 %v1522
        %v1954 = vunpack.c.l.b16 %v1523
        %v1955 = vunpack.c.l.b16 %v1524
        %v1956 = vpack.c.b16 %v1909, %v1908
        %v1957 = vpack.c.b16 %v1911, %v1910
        %v1958 = vpack.c.b16 %v1913, %v1912
        %v1959 = vpack.c.b16 %v1915, %v1914
        %v1960 = vpack.c.b16 %v1917, %v1916
        %v1961 = vpack.c.b16 %v1919, %v1918
        %v1962 = vpack.c.b16 %v1921, %v1920
        %v1963 = vpack.c.b16 %v1923, %v1922
        %v1964 = vpack.c.b16 %v1925, %v1924
        %v1965 = vpack.c.b16 %v1927, %v1926
        %v1966 = vpack.c.b16 %v1929, %v1928
        %v1967 = vpack.c.b16 %v1931, %v1930
        %v1968 = vpack.c.b16 %v1933, %v1932
        %v1969 = vpack.c.b16 %v1935, %v1934
        %v1970 = vpack.c.b16 %v1937, %v1936
        %v1971 = vpack.c.b16 %v1939, %v1938
        %v1972 = vpack.c.b16 %v1941, %v1940
        %v1973 = vpack.c.b16 %v1943, %v1942
        %v1974 = vpack.c.b16 %v1945, %v1944
        %v1975 = vpack.c.b16 %v1947, %v1946
        %v1976 = vpack.c.b16 %v1949, %v1948
        %v1977 = vpack.c.b16 %v1951, %v1950
        %v1978 = vpack.c.b16 %v1953, %v1952
        %v1979 = vpack.c.b16 %v1955, %v1954
        %2004 = vmatprep.subr.bf16.mxu0 0
        %2005 = vmatpush1.bf16.msra.mxu0 %v1963
        %2006 = vmatprep.subr.bf16.mxu0 0
        %2007 = vmatpush1.bf16.msra.mxu0 %v1962
        %2008 = vmatprep.subr.bf16.mxu0 0
        %2009 = vmatpush1.bf16.msra.mxu0 %v1961
        %2010 = vmatprep.subr.bf16.mxu0 0
        %2011 = vmatpush1.bf16.msra.mxu0 %v1960
        %2012 = vmatprep.subr.bf16.mxu0 0
        %2013 = vmatpush1.bf16.msra.mxu0 %v1959
        %2014 = vmatprep.subr.bf16.mxu0 0
        %2015 = vmatpush1.bf16.msra.mxu0 %v1958
        %2016 = vmatprep.subr.bf16.mxu0 0
        %2017 = vmatpush1.bf16.msra.mxu0 %v1957
        %2018 = vmatprep.subr.bf16.mxu0 0
        %2019 = vmatpush1.bf16.msra.mxu0 %v1956
        %2020 = vmatprep.subr.bf16.mxu0 0
        %2021 = vmatpush2.bf16.msra.mxu0 %v1971
        %2022 = vmatprep.subr.bf16.mxu0 0
        %2023 = vmatpush2.bf16.msra.mxu0 %v1970
        %2024 = vmatprep.subr.bf16.mxu0 0
        %2025 = vmatpush2.bf16.msra.mxu0 %v1969
        %2026 = vmatprep.subr.bf16.mxu0 0
        %2027 = vmatpush2.bf16.msra.mxu0 %v1968
        %2028 = vmatprep.subr.bf16.mxu0 0
        %2029 = vmatpush2.bf16.msra.mxu0 %v1967
        %2030 = vmatprep.subr.bf16.mxu0 0
        %2031 = vmatpush2.bf16.msra.mxu0 %v1966
        %2032 = vmatprep.subr.bf16.mxu0 0
        %2033 = vmatpush2.bf16.msra.mxu0 %v1965
        %2034 = vmatprep.subr.bf16.mxu0 0
        %2035 = vmatpush2.bf16.msra.mxu0 %v1964
        %2036 = vmatprep.mubr.bf16.mxu0 %v1458
        %2037 = vmatmul.mubr.bf16.gmra.mxu0 %v1439
        %v2038 = vpop.f32.mrf.mxu0
        %v2039 = vadd.f32 %v1846, %v2038
        %v2040 = vpop.f32.mrf.mxu0
        %v2041 = vpop.f32.mrf.mxu0
        %v2042 = vadd.f32 %v1849, %v2041
        %v2043 = vpop.f32.mrf.mxu0
        %2044 = vmatprep.mubr.bf16.mxu0 %v1466
        %2045 = vmatmul.mubr.bf16.gmra.mxu0 %v1440
        %v2046 = vpop.f32.mrf.mxu0
        %v2047 = vadd.f32 %v1854, %v2046
        %v2048 = vpop.f32.mrf.mxu0
        %v2049 = vpop.f32.mrf.mxu0
        %v2050 = vadd.f32 %v1857, %v2049
        %v2051 = vpop.f32.mrf.mxu0
        %2052 = vdwg.mxu0
        %2053 = vmatprep.subr.bf16.mxu0 0
        %2054 = vmatpush1.bf16.msra.mxu0 %v1979
        %2055 = vmatprep.subr.bf16.mxu0 0
        %2056 = vmatpush1.bf16.msra.mxu0 %v1978
        %2057 = vmatprep.subr.bf16.mxu0 0
        %2058 = vmatpush1.bf16.msra.mxu0 %v1977
        %2059 = vmatprep.subr.bf16.mxu0 0
        %2060 = vmatpush1.bf16.msra.mxu0 %v1976
        %2061 = vmatprep.subr.bf16.mxu0 0
        %2062 = vmatpush1.bf16.msra.mxu0 %v1975
        %2063 = vmatprep.subr.bf16.mxu0 0
        %2064 = vmatpush1.bf16.msra.mxu0 %v1974
        %2065 = vmatprep.subr.bf16.mxu0 0
        %2066 = vmatpush1.bf16.msra.mxu0 %v1973
        %2067 = vmatprep.subr.bf16.mxu0 0
        %2068 = vmatpush1.bf16.msra.mxu0 %v1972
        %2069 = vmatprep.subr.bf16.mxu0 0
        %2070 = vmatpush2.bf16.msra.mxu0 0
        %2071 = vmatprep.subr.bf16.mxu0 0
        %2072 = vmatpush2.bf16.msra.mxu0 0
        %2073 = vmatprep.subr.bf16.mxu0 0
        %2074 = vmatpush2.bf16.msra.mxu0 0
        %2075 = vmatprep.subr.bf16.mxu0 0
        %2076 = vmatpush2.bf16.msra.mxu0 0
        %2077 = vmatprep.subr.bf16.mxu0 0
        %2078 = vmatpush2.bf16.msra.mxu0 0
        %2079 = vmatprep.subr.bf16.mxu0 0
        %2080 = vmatpush2.bf16.msra.mxu0 0
        %2081 = vmatprep.subr.bf16.mxu0 0
        %2082 = vmatpush2.bf16.msra.mxu0 0
        %2083 = vmatprep.subr.bf16.mxu0 0
        %2084 = vmatpush2.bf16.msra.mxu0 0
        %2085 = vmatprep.mubr.bf16.mxu0 0
        %2086 = vmatmul.mubr.bf16.gmra.mxu0 %v1472
        %v2087 = vpop.f32.mrf.mxu0
        %v2088 = vadd.f32 %v2039, %v2087
        %v2089 = vpop.f32.mrf.mxu0
        %v2090 = vpop.f32.mrf.mxu0
        %v2091 = vadd.f32 %v2042, %v2090
        %v2092 = vpop.f32.mrf.mxu0
        %2093 = vmatprep.mubr.bf16.mxu0 0
        %2094 = vmatmul.mubr.bf16.gmra.mxu0 %v1474
        %v2095 = vpop.f32.mrf.mxu0
        %v2096 = vadd.f32 %v2047, %v2095
        %v2097 = vpop.f32.mrf.mxu0
        %v2098 = vpop.f32.mrf.mxu0
        %v2099 = vadd.f32 %v2050, %v2098
        %v2100 = vpop.f32.mrf.mxu0
        %2101 = vdwg.mxu0
        %v2106 = vunpack.c.l.b16 %v1426
        %v2107 = vunpack.c.l.b16 %v1427
        %v2108 = vunpack.c.l.b16 %v1428
        %v2109 = vunpack.c.l.b16 %v1429
        %v2110 = vpack.c.b16 %v2107, %v2106
        %v2111 = vpack.c.b16 %v2109, %v2108
        %v2115 = vunpack.c.l.b16 %v1430
        %v2116 = vpack.c.b16 %v2115, %v2115
        %v2118 = vshrl.u32 %v2110, 16
        %v2120 = vshll.u32 %v2110, 16
        %v2122 = vrot.slane %v2120, 1
        %v2123 = vor.u32 %v2118, %v2122
        %v2125 = vshll.u32 %v2111, 16
        %v2127 = vrot.slane %v2125, 1
        %v2128 = vsel %vm1446, %v2123, %v2127
        %v2129 = vshrl.u32 %v2111, 16
        %v2131 = vor.u32 %v2129, %v2127
        %v2133 = vshll.u32 %v2116, 16
        %v2135 = vrot.slane %v2133, 1
        %v2136 = vsel %vm1446, %v2131, %v2135
        %v2139 = vrot.slane %v2110, 1
        %v2140 = vrot.slane %v2111, 1
        %v2141 = vsel %vm1469, %v2139, %v2140
        %v2142 = vrot.slane %v2116, 1
        %v2143 = vsel %vm1469, %v2140, %v2142
        %s2146 = scalar_lea.vmem %s4, 384
        %v2147 = vld [vmem:[%s2146] sm:$0xf]
        %v2148 = vld [vmem:[%s2146 + $0x4] sm:$0xf]
        %v2149 = vld [vmem:[%s2146 + $0x8] sm:$0xf]
        %v2150 = vld [vmem:[%s2146 + $0xc] sm:$0xf]
        %v2151 = vld [vmem:[%s2146 + $0x10] sm:$0xf]
        %v2152 = vld [vmem:[%s2146 + $0x14] sm:$0xf]
        %v2153 = vld [vmem:[%s2146 + $0x18] sm:$0xf]
        %v2154 = vld [vmem:[%s2146 + $0x1c] sm:$0xf]
        %v2155 = vld [vmem:[%s2146 + $0x20] sm:$0xf]
        %v2156 = vld [vmem:[%s2146 + $0x24] sm:$0xf]
        %v2157 = vld [vmem:[%s2146 + $0x28] sm:$0xf]
        %v2158 = vld [vmem:[%s2146 + $0x2c] sm:$0xf]
        %v2159 = vld [vmem:[%s2146 + $0x30] sm:$0xf]
        %v2160 = vld [vmem:[%s2146 + $0x34] sm:$0xf]
        %v2161 = vld [vmem:[%s2146 + $0x38] sm:$0xf]
        %v2162 = vld [vmem:[%s2146 + $0x3c] sm:$0xf]
        %v2163 = vld [vmem:[%s2146 + $0x40] sm:$0xf]
        %v2164 = vld [vmem:[%s2146 + $0x44] sm:$0xf]
        %v2165 = vld [vmem:[%s2146 + $0x48] sm:$0xf]
        %v2166 = vld [vmem:[%s2146 + $0x4c] sm:$0xf]
        %v2167 = vld [vmem:[%s2146 + $0x50] sm:$0xf]
        %v2168 = vld [vmem:[%s2146 + $0x54] sm:$0xf]
        %v2169 = vld [vmem:[%s2146 + $0x58] sm:$0xf]
        %v2170 = vld [vmem:[%s2146 + $0x5c] sm:$0xf]
        %v2171 = vld [vmem:[%s2146 + $0x60] sm:$0xf]
        %v2172 = vld [vmem:[%s2146 + $0x64] sm:$0xf]
        %v2173 = vld [vmem:[%s2146 + $0x68] sm:$0xf]
        %v2174 = vld [vmem:[%s2146 + $0x6c] sm:$0xf]
        %v2175 = vld [vmem:[%s2146 + $0x70] sm:$0xf]
        %v2176 = vld [vmem:[%s2146 + $0x74] sm:$0xf]
        %v2177 = vld [vmem:[%s2146 + $0x78] sm:$0xf]
        %v2178 = vld [vmem:[%s2146 + $0x7c] sm:$0xf]
        %v2179 = vld [vmem:[%s2146 + $0x80] sm:$0xf]
        %v2180 = vld [vmem:[%s2146 + $0x84] sm:$0xf]
        %v2181 = vld [vmem:[%s2146 + $0x88] sm:$0xf]
        %v2182 = vld [vmem:[%s2146 + $0x8c] sm:$0xf]
        %v2183 = vld [vmem:[%s2146 + $0x90] sm:$0xf]
        %v2184 = vld [vmem:[%s2146 + $0x94] sm:$0xf]
        %v2185 = vld [vmem:[%s2146 + $0x98] sm:$0xf]
        %v2186 = vld [vmem:[%s2146 + $0x9c] sm:$0xf]
        %v2187 = vld [vmem:[%s2146 + $0xa0] sm:$0xf]
        %v2188 = vld [vmem:[%s2146 + $0xa4] sm:$0xf]
        %v2189 = vld [vmem:[%s2146 + $0xa8] sm:$0xf]
        %v2190 = vld [vmem:[%s2146 + $0xac] sm:$0xf]
        %v2191 = vld [vmem:[%s2146 + $0xb0] sm:$0xf]
        %v2192 = vld [vmem:[%s2146 + $0xb4] sm:$0xf]
        %v2193 = vld [vmem:[%s2146 + $0xb8] sm:$0xf]
        %v2194 = vld [vmem:[%s2146 + $0xbc] sm:$0xf]
        %v2243 = vunpack.c.l.b16 %v2147
        %v2244 = vunpack.c.l.b16 %v2148
        %v2245 = vunpack.c.l.b16 %v2149
        %v2246 = vunpack.c.l.b16 %v2150
        %v2247 = vunpack.c.l.b16 %v2151
        %v2248 = vunpack.c.l.b16 %v2152
        %v2249 = vunpack.c.l.b16 %v2153
        %v2250 = vunpack.c.l.b16 %v2154
        %v2251 = vunpack.c.l.b16 %v2155
        %v2252 = vunpack.c.l.b16 %v2156
        %v2253 = vunpack.c.l.b16 %v2157
        %v2254 = vunpack.c.l.b16 %v2158
        %v2255 = vunpack.c.l.b16 %v2159
        %v2256 = vunpack.c.l.b16 %v2160
        %v2257 = vunpack.c.l.b16 %v2161
        %v2258 = vunpack.c.l.b16 %v2162
        %v2259 = vunpack.c.l.b16 %v2163
        %v2260 = vunpack.c.l.b16 %v2164
        %v2261 = vunpack.c.l.b16 %v2165
        %v2262 = vunpack.c.l.b16 %v2166
        %v2263 = vunpack.c.l.b16 %v2167
        %v2264 = vunpack.c.l.b16 %v2168
        %v2265 = vunpack.c.l.b16 %v2169
        %v2266 = vunpack.c.l.b16 %v2170
        %v2267 = vunpack.c.l.b16 %v2171
        %v2268 = vunpack.c.l.b16 %v2172
        %v2269 = vunpack.c.l.b16 %v2173
        %v2270 = vunpack.c.l.b16 %v2174
        %v2271 = vunpack.c.l.b16 %v2175
        %v2272 = vunpack.c.l.b16 %v2176
        %v2273 = vunpack.c.l.b16 %v2177
        %v2274 = vunpack.c.l.b16 %v2178
        %v2275 = vunpack.c.l.b16 %v2179
        %v2276 = vunpack.c.l.b16 %v2180
        %v2277 = vunpack.c.l.b16 %v2181
        %v2278 = vunpack.c.l.b16 %v2182
        %v2279 = vunpack.c.l.b16 %v2183
        %v2280 = vunpack.c.l.b16 %v2184
        %v2281 = vunpack.c.l.b16 %v2185
        %v2282 = vunpack.c.l.b16 %v2186
        %v2283 = vunpack.c.l.b16 %v2187
        %v2284 = vunpack.c.l.b16 %v2188
        %v2285 = vunpack.c.l.b16 %v2189
        %v2286 = vunpack.c.l.b16 %v2190
        %v2287 = vunpack.c.l.b16 %v2191
        %v2288 = vunpack.c.l.b16 %v2192
        %v2289 = vunpack.c.l.b16 %v2193
        %v2290 = vunpack.c.l.b16 %v2194
        %v2291 = vpack.c.b16 %v2244, %v2243
        %v2292 = vpack.c.b16 %v2246, %v2245
        %v2293 = vpack.c.b16 %v2248, %v2247
        %v2294 = vpack.c.b16 %v2250, %v2249
        %v2295 = vpack.c.b16 %v2252, %v2251
        %v2296 = vpack.c.b16 %v2254, %v2253
        %v2297 = vpack.c.b16 %v2256, %v2255
        %v2298 = vpack.c.b16 %v2258, %v2257
        %v2299 = vpack.c.b16 %v2260, %v2259
        %v2300 = vpack.c.b16 %v2262, %v2261
        %v2301 = vpack.c.b16 %v2264, %v2263
        %v2302 = vpack.c.b16 %v2266, %v2265
        %v2303 = vpack.c.b16 %v2268, %v2267
        %v2304 = vpack.c.b16 %v2270, %v2269
        %v2305 = vpack.c.b16 %v2272, %v2271
        %v2306 = vpack.c.b16 %v2274, %v2273
        %v2307 = vpack.c.b16 %v2276, %v2275
        %v2308 = vpack.c.b16 %v2278, %v2277
        %v2309 = vpack.c.b16 %v2280, %v2279
        %v2310 = vpack.c.b16 %v2282, %v2281
        %v2311 = vpack.c.b16 %v2284, %v2283
        %v2312 = vpack.c.b16 %v2286, %v2285
        %v2313 = vpack.c.b16 %v2288, %v2287
        %v2314 = vpack.c.b16 %v2290, %v2289
        %2339 = vmatprep.subr.bf16.mxu0 0
        %2340 = vmatpush1.bf16.msra.mxu0 %v2298
        %2341 = vmatprep.subr.bf16.mxu0 0
        %2342 = vmatpush1.bf16.msra.mxu0 %v2297
        %2343 = vmatprep.subr.bf16.mxu0 0
        %2344 = vmatpush1.bf16.msra.mxu0 %v2296
        %2345 = vmatprep.subr.bf16.mxu0 0
        %2346 = vmatpush1.bf16.msra.mxu0 %v2295
        %2347 = vmatprep.subr.bf16.mxu0 0
        %2348 = vmatpush1.bf16.msra.mxu0 %v2294
        %2349 = vmatprep.subr.bf16.mxu0 0
        %2350 = vmatpush1.bf16.msra.mxu0 %v2293
        %2351 = vmatprep.subr.bf16.mxu0 0
        %2352 = vmatpush1.bf16.msra.mxu0 %v2292
        %2353 = vmatprep.subr.bf16.mxu0 0
        %2354 = vmatpush1.bf16.msra.mxu0 %v2291
        %2355 = vmatprep.subr.bf16.mxu0 0
        %2356 = vmatpush2.bf16.msra.mxu0 %v2306
        %2357 = vmatprep.subr.bf16.mxu0 0
        %2358 = vmatpush2.bf16.msra.mxu0 %v2305
        %2359 = vmatprep.subr.bf16.mxu0 0
        %2360 = vmatpush2.bf16.msra.mxu0 %v2304
        %2361 = vmatprep.subr.bf16.mxu0 0
        %2362 = vmatpush2.bf16.msra.mxu0 %v2303
        %2363 = vmatprep.subr.bf16.mxu0 0
        %2364 = vmatpush2.bf16.msra.mxu0 %v2302
        %2365 = vmatprep.subr.bf16.mxu0 0
        %2366 = vmatpush2.bf16.msra.mxu0 %v2301
        %2367 = vmatprep.subr.bf16.mxu0 0
        %2368 = vmatpush2.bf16.msra.mxu0 %v2300
        %2369 = vmatprep.subr.bf16.mxu0 0
        %2370 = vmatpush2.bf16.msra.mxu0 %v2299
        %2371 = vmatprep.mubr.bf16.mxu0 %v2128
        %2372 = vmatmul.mubr.bf16.gmra.mxu0 %v2110
        %v2373 = vpop.f32.mrf.mxu0
        %v2374 = vadd.f32 0.0, %v2373
        %v2375 = vpop.f32.mrf.mxu0
        %v2376 = vpop.f32.mrf.mxu0
        %v2377 = vadd.f32 0.0, %v2376
        %v2378 = vpop.f32.mrf.mxu0
        %2379 = vmatprep.mubr.bf16.mxu0 %v2136
        %2380 = vmatmul.mubr.bf16.gmra.mxu0 %v2111
        %v2381 = vpop.f32.mrf.mxu0
        %v2382 = vadd.f32 0.0, %v2381
        %v2383 = vpop.f32.mrf.mxu0
        %v2384 = vpop.f32.mrf.mxu0
        %v2385 = vadd.f32 0.0, %v2384
        %v2386 = vpop.f32.mrf.mxu0
        %2387 = vdwg.mxu0
        %2388 = vmatprep.subr.bf16.mxu0 0
        %2389 = vmatpush1.bf16.msra.mxu0 %v2314
        %2390 = vmatprep.subr.bf16.mxu0 0
        %2391 = vmatpush1.bf16.msra.mxu0 %v2313
        %2392 = vmatprep.subr.bf16.mxu0 0
        %2393 = vmatpush1.bf16.msra.mxu0 %v2312
        %2394 = vmatprep.subr.bf16.mxu0 0
        %2395 = vmatpush1.bf16.msra.mxu0 %v2311
        %2396 = vmatprep.subr.bf16.mxu0 0
        %2397 = vmatpush1.bf16.msra.mxu0 %v2310
        %2398 = vmatprep.subr.bf16.mxu0 0
        %2399 = vmatpush1.bf16.msra.mxu0 %v2309
        %2400 = vmatprep.subr.bf16.mxu0 0
        %2401 = vmatpush1.bf16.msra.mxu0 %v2308
        %2402 = vmatprep.subr.bf16.mxu0 0
        %2403 = vmatpush1.bf16.msra.mxu0 %v2307
        %2404 = vmatprep.subr.bf16.mxu0 0
        %2405 = vmatpush2.bf16.msra.mxu0 0
        %2406 = vmatprep.subr.bf16.mxu0 0
        %2407 = vmatpush2.bf16.msra.mxu0 0
        %2408 = vmatprep.subr.bf16.mxu0 0
        %2409 = vmatpush2.bf16.msra.mxu0 0
        %2410 = vmatprep.subr.bf16.mxu0 0
        %2411 = vmatpush2.bf16.msra.mxu0 0
        %2412 = vmatprep.subr.bf16.mxu0 0
        %2413 = vmatpush2.bf16.msra.mxu0 0
        %2414 = vmatprep.subr.bf16.mxu0 0
        %2415 = vmatpush2.bf16.msra.mxu0 0
        %2416 = vmatprep.subr.bf16.mxu0 0
        %2417 = vmatpush2.bf16.msra.mxu0 0
        %2418 = vmatprep.subr.bf16.mxu0 0
        %2419 = vmatpush2.bf16.msra.mxu0 0
        %2420 = vmatprep.mubr.bf16.mxu0 0
        %2421 = vmatmul.mubr.bf16.gmra.mxu0 %v2141
        %v2422 = vpop.f32.mrf.mxu0
        %v2423 = vadd.f32 %v2374, %v2422
        %v2424 = vpop.f32.mrf.mxu0
        %v2425 = vpop.f32.mrf.mxu0
        %v2426 = vadd.f32 %v2377, %v2425
        %v2427 = vpop.f32.mrf.mxu0
        %2428 = vmatprep.mubr.bf16.mxu0 0
        %2429 = vmatmul.mubr.bf16.gmra.mxu0 %v2143
        %v2430 = vpop.f32.mrf.mxu0
        %v2431 = vadd.f32 %v2382, %v2430
        %v2432 = vpop.f32.mrf.mxu0
        %v2433 = vpop.f32.mrf.mxu0
        %v2434 = vadd.f32 %v2385, %v2433
        %v2435 = vpop.f32.mrf.mxu0
        %2436 = vdwg.mxu0
        %v2437 = vadd.f32 %v2088, %v2423
        %v2438 = vadd.f32 %v2091, %v2426
        %v2439 = vadd.f32 %v2096, %v2431
        %v2440 = vadd.f32 %v2099, %v2434
        %v2442 = vlaneseq
        %v2443 = vshrl.u32 %v2442, 7
        %v2444 = vsub.s32 0, %v2443
        %v2445 = vrot.slane %v1396, %v2444
        %v2447 = vmul.f32 %v2437, %v2445
        %v2448 = vmul.f32 %v2438, %v2445
        %v2449 = vmul.f32 %v2439, %v2445
        %v2450 = vmul.f32 %v2440, %v2445
        %v2452 = vlaneseq
        %v2453 = vshrl.u32 %v2452, 7
        %v2454 = vsub.s32 0, %v2453
        %v2455 = vrot.slane %v1397, %v2454
        %v2457 = vadd.f32 %v2447, %v2455
        %v2458 = vadd.f32 %v2448, %v2455
        %v2459 = vadd.f32 %v2449, %v2455
        %v2460 = vadd.f32 %v2450, %v2455
        %v2461 = vmax.f32 %v2457, 0.0
        %v2462 = vmax.f32 %v2458, 0.0
        %v2463 = vmax.f32 %v2459, 0.0
        %v2464 = vmax.f32 %v2460, 0.0
        %s2465 = sadd.s32 %s1404, 3
        %s2466 = smul.u32 %s2465, 5
        %s2467 = smul.addr %s2466, 4
        %s2468 = scalar_lea.vmem [#allocation2], %s2467
        %v2469 = vld [vmem:[%s2468] sm:$0xf]
        %v2470 = vld [vmem:[%s2468 + $0x4] sm:$0xf]
        %v2471 = vld [vmem:[%s2468 + $0x8] sm:$0xf]
        %v2472 = vld [vmem:[%s2468 + $0xc] sm:$0xf]
        %v2473 = vld [vmem:[%s2468 + $0x10] sm:$0x1]
        %2474 = vmatprep.subr.bf16.mxu0 0
        %2475 = vmatpush1.bf16.msra.mxu0 %v1721
        %2476 = vmatprep.subr.bf16.mxu0 0
        %2477 = vmatpush1.bf16.msra.mxu0 %v1720
        %2478 = vmatprep.subr.bf16.mxu0 0
        %2479 = vmatpush1.bf16.msra.mxu0 %v1719
        %2480 = vmatprep.subr.bf16.mxu0 0
        %2481 = vmatpush1.bf16.msra.mxu0 %v1718
        %2482 = vmatprep.subr.bf16.mxu0 0
        %2483 = vmatpush1.bf16.msra.mxu0 %v1717
        %2484 = vmatprep.subr.bf16.mxu0 0
        %2485 = vmatpush1.bf16.msra.mxu0 %v1716
        %2486 = vmatprep.subr.bf16.mxu0 0
        %2487 = vmatpush1.bf16.msra.mxu0 %v1715
        %2488 = vmatprep.subr.bf16.mxu0 0
        %2489 = vmatpush1.bf16.msra.mxu0 %v1714
        %2490 = vmatprep.subr.bf16.mxu0 0
        %2491 = vmatpush2.bf16.msra.mxu0 %v1729
        %2492 = vmatprep.subr.bf16.mxu0 0
        %2493 = vmatpush2.bf16.msra.mxu0 %v1728
        %2494 = vmatprep.subr.bf16.mxu0 0
        %2495 = vmatpush2.bf16.msra.mxu0 %v1727
        %2496 = vmatprep.subr.bf16.mxu0 0
        %2497 = vmatpush2.bf16.msra.mxu0 %v1726
        %2498 = vmatprep.subr.bf16.mxu0 0
        %2499 = vmatpush2.bf16.msra.mxu0 %v1725
        %2500 = vmatprep.subr.bf16.mxu0 0
        %2501 = vmatpush2.bf16.msra.mxu0 %v1724
        %2502 = vmatprep.subr.bf16.mxu0 0
        %2503 = vmatpush2.bf16.msra.mxu0 %v1723
        %2504 = vmatprep.subr.bf16.mxu0 0
        %2505 = vmatpush2.bf16.msra.mxu0 %v1722
        %2506 = vmatprep.mubr.bf16.mxu0 %v2128
        %2507 = vmatmul.mubr.bf16.gmra.mxu0 %v2110
        %v2508 = vpop.f32.mrf.mxu0
        %v2509 = vadd.f32 0.0, %v2508
        %v2510 = vpop.f32.mrf.mxu0
        %v2511 = vpop.f32.mrf.mxu0
        %v2512 = vadd.f32 0.0, %v2511
        %v2513 = vpop.f32.mrf.mxu0
        %2514 = vmatprep.mubr.bf16.mxu0 %v2136
        %2515 = vmatmul.mubr.bf16.gmra.mxu0 %v2111
        %v2516 = vpop.f32.mrf.mxu0
        %v2517 = vadd.f32 0.0, %v2516
        %v2518 = vpop.f32.mrf.mxu0
        %v2519 = vpop.f32.mrf.mxu0
        %v2520 = vadd.f32 0.0, %v2519
        %v2521 = vpop.f32.mrf.mxu0
        %2522 = vdwg.mxu0
        %2523 = vmatprep.subr.bf16.mxu0 0
        %2524 = vmatpush1.bf16.msra.mxu0 %v1737
        %2525 = vmatprep.subr.bf16.mxu0 0
        %2526 = vmatpush1.bf16.msra.mxu0 %v1736
        %2527 = vmatprep.subr.bf16.mxu0 0
        %2528 = vmatpush1.bf16.msra.mxu0 %v1735
        %2529 = vmatprep.subr.bf16.mxu0 0
        %2530 = vmatpush1.bf16.msra.mxu0 %v1734
        %2531 = vmatprep.subr.bf16.mxu0 0
        %2532 = vmatpush1.bf16.msra.mxu0 %v1733
        %2533 = vmatprep.subr.bf16.mxu0 0
        %2534 = vmatpush1.bf16.msra.mxu0 %v1732
        %2535 = vmatprep.subr.bf16.mxu0 0
        %2536 = vmatpush1.bf16.msra.mxu0 %v1731
        %2537 = vmatprep.subr.bf16.mxu0 0
        %2538 = vmatpush1.bf16.msra.mxu0 %v1730
        %2539 = vmatprep.subr.bf16.mxu0 0
        %2540 = vmatpush2.bf16.msra.mxu0 0
        %2541 = vmatprep.subr.bf16.mxu0 0
        %2542 = vmatpush2.bf16.msra.mxu0 0
        %2543 = vmatprep.subr.bf16.mxu0 0
        %2544 = vmatpush2.bf16.msra.mxu0 0
        %2545 = vmatprep.subr.bf16.mxu0 0
        %2546 = vmatpush2.bf16.msra.mxu0 0
        %2547 = vmatprep.subr.bf16.mxu0 0
        %2548 = vmatpush2.bf16.msra.mxu0 0
        %2549 = vmatprep.subr.bf16.mxu0 0
        %2550 = vmatpush2.bf16.msra.mxu0 0
        %2551 = vmatprep.subr.bf16.mxu0 0
        %2552 = vmatpush2.bf16.msra.mxu0 0
        %2553 = vmatprep.subr.bf16.mxu0 0
        %2554 = vmatpush2.bf16.msra.mxu0 0
        %2555 = vmatprep.mubr.bf16.mxu0 0
        %2556 = vmatmul.mubr.bf16.gmra.mxu0 %v2141
        %v2557 = vpop.f32.mrf.mxu0
        %v2558 = vadd.f32 %v2509, %v2557
        %v2559 = vpop.f32.mrf.mxu0
        %v2560 = vpop.f32.mrf.mxu0
        %v2561 = vadd.f32 %v2512, %v2560
        %v2562 = vpop.f32.mrf.mxu0
        %2563 = vmatprep.mubr.bf16.mxu0 0
        %2564 = vmatmul.mubr.bf16.gmra.mxu0 %v2143
        %v2565 = vpop.f32.mrf.mxu0
        %v2566 = vadd.f32 %v2517, %v2565
        %v2567 = vpop.f32.mrf.mxu0
        %v2568 = vpop.f32.mrf.mxu0
        %v2569 = vadd.f32 %v2520, %v2568
        %v2570 = vpop.f32.mrf.mxu0
        %2571 = vdwg.mxu0
        %2572 = vmatprep.subr.bf16.mxu0 0
        %2573 = vmatpush1.bf16.msra.mxu0 %v1963
        %2574 = vmatprep.subr.bf16.mxu0 0
        %2575 = vmatpush1.bf16.msra.mxu0 %v1962
        %2576 = vmatprep.subr.bf16.mxu0 0
        %2577 = vmatpush1.bf16.msra.mxu0 %v1961
        %2578 = vmatprep.subr.bf16.mxu0 0
        %2579 = vmatpush1.bf16.msra.mxu0 %v1960
        %2580 = vmatprep.subr.bf16.mxu0 0
        %2581 = vmatpush1.bf16.msra.mxu0 %v1959
        %2582 = vmatprep.subr.bf16.mxu0 0
        %2583 = vmatpush1.bf16.msra.mxu0 %v1958
        %2584 = vmatprep.subr.bf16.mxu0 0
        %2585 = vmatpush1.bf16.msra.mxu0 %v1957
        %2586 = vmatprep.subr.bf16.mxu0 0
        %2587 = vmatpush1.bf16.msra.mxu0 %v1956
        %2588 = vmatprep.subr.bf16.mxu0 0
        %2589 = vmatpush2.bf16.msra.mxu0 %v1971
        %2590 = vmatprep.subr.bf16.mxu0 0
        %2591 = vmatpush2.bf16.msra.mxu0 %v1970
        %2592 = vmatprep.subr.bf16.mxu0 0
        %2593 = vmatpush2.bf16.msra.mxu0 %v1969
        %2594 = vmatprep.subr.bf16.mxu0 0
        %2595 = vmatpush2.bf16.msra.mxu0 %v1968
        %2596 = vmatprep.subr.bf16.mxu0 0
        %2597 = vmatpush2.bf16.msra.mxu0 %v1967
        %2598 = vmatprep.subr.bf16.mxu0 0
        %2599 = vmatpush2.bf16.msra.mxu0 %v1966
        %2600 = vmatprep.subr.bf16.mxu0 0
        %2601 = vmatpush2.bf16.msra.mxu0 %v1965
        %2602 = vmatprep.subr.bf16.mxu0 0
        %2603 = vmatpush2.bf16.msra.mxu0 %v1964
        %2604 = vmatprep.mubr.bf16.mxu0 %v1551
        %2605 = vmatmul.mubr.bf16.gmra.mxu0 %v1533
        %v2606 = vpop.f32.mrf.mxu0
        %v2607 = vadd.f32 %v2558, %v2606
        %v2608 = vpop.f32.mrf.mxu0
        %v2609 = vpop.f32.mrf.mxu0
        %v2610 = vadd.f32 %v2561, %v2609
        %v2611 = vpop.f32.mrf.mxu0
        %2612 = vmatprep.mubr.bf16.mxu0 %v1559
        %2613 = vmatmul.mubr.bf16.gmra.mxu0 %v1534
        %v2614 = vpop.f32.mrf.mxu0
        %v2615 = vadd.f32 %v2566, %v2614
        %v2616 = vpop.f32.mrf.mxu0
        %v2617 = vpop.f32.mrf.mxu0
        %v2618 = vadd.f32 %v2569, %v2617
        %v2619 = vpop.f32.mrf.mxu0
        %2620 = vdwg.mxu0
        %2621 = vmatprep.subr.bf16.mxu0 0
        %2622 = vmatpush1.bf16.msra.mxu0 %v1979
        %2623 = vmatprep.subr.bf16.mxu0 0
        %2624 = vmatpush1.bf16.msra.mxu0 %v1978
        %2625 = vmatprep.subr.bf16.mxu0 0
        %2626 = vmatpush1.bf16.msra.mxu0 %v1977
        %2627 = vmatprep.subr.bf16.mxu0 0
        %2628 = vmatpush1.bf16.msra.mxu0 %v1976
        %2629 = vmatprep.subr.bf16.mxu0 0
        %2630 = vmatpush1.bf16.msra.mxu0 %v1975
        %2631 = vmatprep.subr.bf16.mxu0 0
        %2632 = vmatpush1.bf16.msra.mxu0 %v1974
        %2633 = vmatprep.subr.bf16.mxu0 0
        %2634 = vmatpush1.bf16.msra.mxu0 %v1973
        %2635 = vmatprep.subr.bf16.mxu0 0
        %2636 = vmatpush1.bf16.msra.mxu0 %v1972
        %2637 = vmatprep.subr.bf16.mxu0 0
        %2638 = vmatpush2.bf16.msra.mxu0 0
        %2639 = vmatprep.subr.bf16.mxu0 0
        %2640 = vmatpush2.bf16.msra.mxu0 0
        %2641 = vmatprep.subr.bf16.mxu0 0
        %2642 = vmatpush2.bf16.msra.mxu0 0
        %2643 = vmatprep.subr.bf16.mxu0 0
        %2644 = vmatpush2.bf16.msra.mxu0 0
        %2645 = vmatprep.subr.bf16.mxu0 0
        %2646 = vmatpush2.bf16.msra.mxu0 0
        %2647 = vmatprep.subr.bf16.mxu0 0
        %2648 = vmatpush2.bf16.msra.mxu0 0
        %2649 = vmatprep.subr.bf16.mxu0 0
        %2650 = vmatpush2.bf16.msra.mxu0 0
        %2651 = vmatprep.subr.bf16.mxu0 0
        %2652 = vmatpush2.bf16.msra.mxu0 0
        %2653 = vmatprep.mubr.bf16.mxu0 0
        %2654 = vmatmul.mubr.bf16.gmra.mxu0 %v1564
        %v2655 = vpop.f32.mrf.mxu0
        %v2656 = vadd.f32 %v2607, %v2655
        %v2657 = vpop.f32.mrf.mxu0
        %v2658 = vpop.f32.mrf.mxu0
        %v2659 = vadd.f32 %v2610, %v2658
        %v2660 = vpop.f32.mrf.mxu0
        %2661 = vmatprep.mubr.bf16.mxu0 0
        %2662 = vmatmul.mubr.bf16.gmra.mxu0 %v1566
        %v2663 = vpop.f32.mrf.mxu0
        %v2664 = vadd.f32 %v2615, %v2663
        %v2665 = vpop.f32.mrf.mxu0
        %v2666 = vpop.f32.mrf.mxu0
        %v2667 = vadd.f32 %v2618, %v2666
        %v2668 = vpop.f32.mrf.mxu0
        %2669 = vdwg.mxu0
        %v2674 = vunpack.c.l.b16 %v2469
        %v2675 = vunpack.c.l.b16 %v2470
        %v2676 = vunpack.c.l.b16 %v2471
        %v2677 = vunpack.c.l.b16 %v2472
        %v2678 = vpack.c.b16 %v2675, %v2674
        %v2679 = vpack.c.b16 %v2677, %v2676
        %v2683 = vunpack.c.l.b16 %v2473
        %v2684 = vpack.c.b16 %v2683, %v2683
        %v2686 = vshrl.u32 %v2678, 16
        %v2688 = vshll.u32 %v2678, 16
        %v2690 = vrot.slane %v2688, 1
        %v2691 = vor.u32 %v2686, %v2690
        %v2693 = vshll.u32 %v2679, 16
        %v2695 = vrot.slane %v2693, 1
        %v2696 = vsel %vm1446, %v2691, %v2695
        %v2697 = vshrl.u32 %v2679, 16
        %v2699 = vor.u32 %v2697, %v2695
        %v2701 = vshll.u32 %v2684, 16
        %v2703 = vrot.slane %v2701, 1
        %v2704 = vsel %vm1446, %v2699, %v2703
        %v2707 = vrot.slane %v2678, 1
        %v2708 = vrot.slane %v2679, 1
        %v2709 = vsel %vm1469, %v2707, %v2708
        %v2710 = vrot.slane %v2684, 1
        %v2711 = vsel %vm1469, %v2708, %v2710
        %2714 = vmatprep.subr.bf16.mxu0 0
        %2715 = vmatpush1.bf16.msra.mxu0 %v2298
        %2716 = vmatprep.subr.bf16.mxu0 0
        %2717 = vmatpush1.bf16.msra.mxu0 %v2297
        %2718 = vmatprep.subr.bf16.mxu0 0
        %2719 = vmatpush1.bf16.msra.mxu0 %v2296
        %2720 = vmatprep.subr.bf16.mxu0 0
        %2721 = vmatpush1.bf16.msra.mxu0 %v2295
        %2722 = vmatprep.subr.bf16.mxu0 0
        %2723 = vmatpush1.bf16.msra.mxu0 %v2294
        %2724 = vmatprep.subr.bf16.mxu0 0
        %2725 = vmatpush1.bf16.msra.mxu0 %v2293
        %2726 = vmatprep.subr.bf16.mxu0 0
        %2727 = vmatpush1.bf16.msra.mxu0 %v2292
        %2728 = vmatprep.subr.bf16.mxu0 0
        %2729 = vmatpush1.bf16.msra.mxu0 %v2291
        %2730 = vmatprep.subr.bf16.mxu0 0
        %2731 = vmatpush2.bf16.msra.mxu0 %v2306
        %2732 = vmatprep.subr.bf16.mxu0 0
        %2733 = vmatpush2.bf16.msra.mxu0 %v2305
        %2734 = vmatprep.subr.bf16.mxu0 0
        %2735 = vmatpush2.bf16.msra.mxu0 %v2304
        %2736 = vmatprep.subr.bf16.mxu0 0
        %2737 = vmatpush2.bf16.msra.mxu0 %v2303
        %2738 = vmatprep.subr.bf16.mxu0 0
        %2739 = vmatpush2.bf16.msra.mxu0 %v2302
        %2740 = vmatprep.subr.bf16.mxu0 0
        %2741 = vmatpush2.bf16.msra.mxu0 %v2301
        %2742 = vmatprep.subr.bf16.mxu0 0
        %2743 = vmatpush2.bf16.msra.mxu0 %v2300
        %2744 = vmatprep.subr.bf16.mxu0 0
        %2745 = vmatpush2.bf16.msra.mxu0 %v2299
        %2746 = vmatprep.mubr.bf16.mxu0 %v2696
        %2747 = vmatmul.mubr.bf16.gmra.mxu0 %v2678
        %v2748 = vpop.f32.mrf.mxu0
        %v2749 = vadd.f32 0.0, %v2748
        %v2750 = vpop.f32.mrf.mxu0
        %v2751 = vpop.f32.mrf.mxu0
        %v2752 = vadd.f32 0.0, %v2751
        %v2753 = vpop.f32.mrf.mxu0
        %2754 = vmatprep.mubr.bf16.mxu0 %v2704
        %2755 = vmatmul.mubr.bf16.gmra.mxu0 %v2679
        %v2756 = vpop.f32.mrf.mxu0
        %v2757 = vadd.f32 0.0, %v2756
        %v2758 = vpop.f32.mrf.mxu0
        %v2759 = vpop.f32.mrf.mxu0
        %v2760 = vadd.f32 0.0, %v2759
        %v2761 = vpop.f32.mrf.mxu0
        %2762 = vdwg.mxu0
        %2763 = vmatprep.subr.bf16.mxu0 0
        %2764 = vmatpush1.bf16.msra.mxu0 %v2314
        %2765 = vmatprep.subr.bf16.mxu0 0
        %2766 = vmatpush1.bf16.msra.mxu0 %v2313
        %2767 = vmatprep.subr.bf16.mxu0 0
        %2768 = vmatpush1.bf16.msra.mxu0 %v2312
        %2769 = vmatprep.subr.bf16.mxu0 0
        %2770 = vmatpush1.bf16.msra.mxu0 %v2311
        %2771 = vmatprep.subr.bf16.mxu0 0
        %2772 = vmatpush1.bf16.msra.mxu0 %v2310
        %2773 = vmatprep.subr.bf16.mxu0 0
        %2774 = vmatpush1.bf16.msra.mxu0 %v2309
        %2775 = vmatprep.subr.bf16.mxu0 0
        %2776 = vmatpush1.bf16.msra.mxu0 %v2308
        %2777 = vmatprep.subr.bf16.mxu0 0
        %2778 = vmatpush1.bf16.msra.mxu0 %v2307
        %2779 = vmatprep.subr.bf16.mxu0 0
        %2780 = vmatpush2.bf16.msra.mxu0 0
        %2781 = vmatprep.subr.bf16.mxu0 0
        %2782 = vmatpush2.bf16.msra.mxu0 0
        %2783 = vmatprep.subr.bf16.mxu0 0
        %2784 = vmatpush2.bf16.msra.mxu0 0
        %2785 = vmatprep.subr.bf16.mxu0 0
        %2786 = vmatpush2.bf16.msra.mxu0 0
        %2787 = vmatprep.subr.bf16.mxu0 0
        %2788 = vmatpush2.bf16.msra.mxu0 0
        %2789 = vmatprep.subr.bf16.mxu0 0
        %2790 = vmatpush2.bf16.msra.mxu0 0
        %2791 = vmatprep.subr.bf16.mxu0 0
        %2792 = vmatpush2.bf16.msra.mxu0 0
        %2793 = vmatprep.subr.bf16.mxu0 0
        %2794 = vmatpush2.bf16.msra.mxu0 0
        %2795 = vmatprep.mubr.bf16.mxu0 0
        %2796 = vmatmul.mubr.bf16.gmra.mxu0 %v2709
        %v2797 = vpop.f32.mrf.mxu0
        %v2798 = vadd.f32 %v2749, %v2797
        %v2799 = vpop.f32.mrf.mxu0
        %v2800 = vpop.f32.mrf.mxu0
        %v2801 = vadd.f32 %v2752, %v2800
        %v2802 = vpop.f32.mrf.mxu0
        %2803 = vmatprep.mubr.bf16.mxu0 0
        %2804 = vmatmul.mubr.bf16.gmra.mxu0 %v2711
        %v2805 = vpop.f32.mrf.mxu0
        %v2806 = vadd.f32 %v2757, %v2805
        %v2807 = vpop.f32.mrf.mxu0
        %v2808 = vpop.f32.mrf.mxu0
        %v2809 = vadd.f32 %v2760, %v2808
        %v2810 = vpop.f32.mrf.mxu0
        %2811 = vdwg.mxu0
        %v2812 = vadd.f32 %v2656, %v2798
        %v2813 = vadd.f32 %v2659, %v2801
        %v2814 = vadd.f32 %v2664, %v2806
        %v2815 = vadd.f32 %v2667, %v2809
        %v2816 = vmul.f32 %v2812, %v2445
        %v2817 = vmul.f32 %v2813, %v2445
        %v2818 = vmul.f32 %v2814, %v2445
        %v2819 = vmul.f32 %v2815, %v2445
        %v2820 = vadd.f32 %v2816, %v2455
        %v2821 = vadd.f32 %v2817, %v2455
        %v2822 = vadd.f32 %v2818, %v2455
        %v2823 = vadd.f32 %v2819, %v2455
        %v2824 = vmax.f32 %v2820, 0.0
        %v2825 = vmax.f32 %v2821, 0.0
        %v2826 = vmax.f32 %v2822, 0.0
        %v2827 = vmax.f32 %v2823, 0.0
        %v2828 = vmax.f32 %v2461, %v2824
        %v2829 = vmax.f32 %v2462, %v2825
        %v2830 = vmax.f32 %v2463, %v2826
        %v2831 = vmax.f32 %v2464, %v2827
        %2832 = vst [vmem:[#allocation5] sm:$0xff] %v2828
        %2833 = vst [vmem:[#allocation5 + $0x8] sm:$0xff] %v2829
        %2834 = vst [vmem:[#allocation5 + $0x10] sm:$0xff] %v2830
        %2835 = vst [vmem:[#allocation5 + $0x18] sm:$0xff] %v2831
        %v2836 = vld [vmem:[#allocation5] ss:$2 sm:$0xff]
        %s2837 = scalar_lea.vmem [#allocation5], 16
        %v2838 = vld [vmem:[%s2837] ss:$2 sm:$0xff]
        %s2839 = scalar_lea.vmem [#allocation5], 1
        %v2840 = vld [vmem:[%s2839] ss:$2 sm:$0xff]
        %s2841 = scalar_lea.vmem [#allocation5], 17
        %v2842 = vld [vmem:[%s2841] ss:$2 sm:$0xff]
        %v2843 = vmax.f32 %v2836, %v2840
        %v2844 = vmax.f32 %v2838, %v2842
        %vm2847 = vcmask 1040384
        %v2848 = vrot.slane %v2843, 7
        %v2849 = vrot.slane %v2844, 7
        %v2850 = vsel %vm2847, %v2848, %v2849
        %v2854 = vsel %vm2847, 0.0, %v2848
        %v2855 = vsel %vm2847, %v2849, 0.0
        %v2856 = vpack.c.bf16 %v2850, %v2854
        %v2857 = vpack.c.bf16 %v2855, %v2855
        %s2858 = sadd.s32 %s1399, 1
        %v2861 = vunpack.c.l.b16 %v2856
        %v2862 = vunpack.c.h.b16 %v2856
        %v2863 = vunpack.c.l.b16 %v2857
        %v2864 = vpack.c.b16 %v2861, %v2861
        %v2865 = vpack.c.b16 %v2862, %v2862
        %v2866 = vpack.c.b16 %v2863, %v2863
        %s2870 = smul.u32 %s2858, 3
        %s2871 = smul.addr %s2870, 4
        %s2872 = scalar_lea.vmem [#allocation3], %s2871
        %2873 = vst [vmem:[%s2872] sm:$0xf] %v2864
        %2874 = vst [vmem:[%s2872 + $0x4] sm:$0xf] %v2865
        %2875 = vst [vmem:[%s2872 + $0x8] sm:$0x1] %v2866
      $region72: #{conv_model_forward.2} parent=59 // loop_footer
        %s1403 = sadd.s32 1, %s1399
      $region73: #{conv_model_forward.2} parent=59 // loop_footer_branch
        %1398 = sbr.rel target = $region69
      $region74: #{conv_model_forward.2} parent=59 // loop_exit
        _
      %v2876 = vld [vmem:[%s8] sm:$0x1]
      %v2877 = vld [vmem:[%s9] sm:$0x1]
      loop: start=0, step=1, limit=4
      $region75: #{conv_model_forward.2} parent=59 // loop_pre_header
        _
      $region76: #{conv_model_forward.2} parent=59 // loop_header
        %s2879 = sphi 0, %s2883
        %p2880 = scmp.ge.s32.totalorder %s2879, 4
      $region77: #{conv_model_forward.2} parent=59 // loop_header_branch
        %2882 = sbr.rel (%p2880) target = $region81
      $region78: #{conv_model_forward.2} parent=59 // loop_body
        %s2884 = smul.u32 %s2879, 2
        %s2885 = smul.u32 %s2884, 3
        %s2886 = smul.addr %s2885, 4
        %s2887 = scalar_lea.vmem [#allocation3], %s2886
        %v2888 = vld [vmem:[%s2887] sm:$0xf]
        %v2889 = vld [vmem:[%s2887 + $0x4] sm:$0xf]
        %v2890 = vld [vmem:[%s2887 + $0x8] sm:$0x1]
        %s2891 = sadd.s32 %s2884, 1
        %s2892 = smul.u32 %s2891, 3
        %s2893 = smul.addr %s2892, 4
        %s2894 = scalar_lea.vmem [#allocation3], %s2893
        %v2895 = vld [vmem:[%s2894] sm:$0xf]
        %v2896 = vld [vmem:[%s2894 + $0x4] sm:$0xf]
        %v2897 = vld [vmem:[%s2894 + $0x8] sm:$0x1]
        %s2898 = sadd.s32 %s2884, 2
        %s2899 = smul.u32 %s2898, 3
        %s2900 = smul.addr %s2899, 4
        %s2901 = scalar_lea.vmem [#allocation3], %s2900
        %v2902 = vld [vmem:[%s2901] sm:$0xf]
        %v2903 = vld [vmem:[%s2901 + $0x4] sm:$0xf]
        %v2904 = vld [vmem:[%s2901 + $0x8] sm:$0x1]
        %v2907 = vunpack.c.l.b16 %v2888
        %v2908 = vunpack.c.l.b16 %v2889
        %v2909 = vpack.c.b16 %v2908, %v2907
        %v2912 = vunpack.c.l.b16 %v2890
        %v2913 = vpack.c.b16 %v2912, %v2912
        %vm2914 = vsmask.f32 7424
        %v2916 = vshrl.u32 %v2909, 16
        %v2918 = vshll.u32 %v2909, 16
        %v2920 = vrot.slane %v2918, 1
        %v2921 = vor.u32 %v2916, %v2920
        %v2923 = vshll.u32 %v2913, 16
        %v2925 = vrot.slane %v2923, 1
        %v2926 = vsel %vm2914, %v2921, %v2925
        %vm2928 = vcmask 1046528
        %v2929 = vrot.slane %v2909, 1
        %v2930 = vrot.slane %v2913, 1
        %v2931 = vsel %vm2928, %v2929, %v2930
        %v2933 = vld [vmem:[%s7] sm:$0xf]
        %v2934 = vld [vmem:[%s7 + $0x4] sm:$0xf]
        %v2935 = vld [vmem:[%s7 + $0x8] sm:$0xf]
        %v2936 = vld [vmem:[%s7 + $0xc] sm:$0xf]
        %v2937 = vld [vmem:[%s7 + $0x10] sm:$0xf]
        %v2938 = vld [vmem:[%s7 + $0x14] sm:$0xf]
        %v2939 = vld [vmem:[%s7 + $0x18] sm:$0xf]
        %v2940 = vld [vmem:[%s7 + $0x1c] sm:$0xf]
        %v2941 = vld [vmem:[%s7 + $0x20] sm:$0xf]
        %v2942 = vld [vmem:[%s7 + $0x24] sm:$0xf]
        %v2943 = vld [vmem:[%s7 + $0x28] sm:$0xf]
        %v2944 = vld [vmem:[%s7 + $0x2c] sm:$0xf]
        %v2945 = vld [vmem:[%s7 + $0x30] sm:$0xf]
        %v2946 = vld [vmem:[%s7 + $0x34] sm:$0xf]
        %v2947 = vld [vmem:[%s7 + $0x38] sm:$0xf]
        %v2948 = vld [vmem:[%s7 + $0x3c] sm:$0xf]
        %v2949 = vld [vmem:[%s7 + $0x40] sm:$0xf]
        %v2950 = vld [vmem:[%s7 + $0x44] sm:$0xf]
        %v2951 = vld [vmem:[%s7 + $0x48] sm:$0xf]
        %v2952 = vld [vmem:[%s7 + $0x4c] sm:$0xf]
        %v2953 = vld [vmem:[%s7 + $0x50] sm:$0xf]
        %v2954 = vld [vmem:[%s7 + $0x54] sm:$0xf]
        %v2955 = vld [vmem:[%s7 + $0x58] sm:$0xf]
        %v2956 = vld [vmem:[%s7 + $0x5c] sm:$0xf]
        %v2957 = vld [vmem:[%s7 + $0x60] sm:$0xf]
        %v2958 = vld [vmem:[%s7 + $0x64] sm:$0xf]
        %v2959 = vld [vmem:[%s7 + $0x68] sm:$0xf]
        %v2960 = vld [vmem:[%s7 + $0x6c] sm:$0xf]
        %v2961 = vld [vmem:[%s7 + $0x70] sm:$0xf]
        %v2962 = vld [vmem:[%s7 + $0x74] sm:$0xf]
        %v2963 = vld [vmem:[%s7 + $0x78] sm:$0xf]
        %v2964 = vld [vmem:[%s7 + $0x7c] sm:$0xf]
        %v2965 = vld [vmem:[%s7 + $0x80] sm:$0xf]
        %v2966 = vld [vmem:[%s7 + $0x84] sm:$0xf]
        %v2967 = vld [vmem:[%s7 + $0x88] sm:$0xf]
        %v2968 = vld [vmem:[%s7 + $0x8c] sm:$0xf]
        %v2969 = vld [vmem:[%s7 + $0x90] sm:$0xf]
        %v2970 = vld [vmem:[%s7 + $0x94] sm:$0xf]
        %v2971 = vld [vmem:[%s7 + $0x98] sm:$0xf]
        %v2972 = vld [vmem:[%s7 + $0x9c] sm:$0xf]
        %v2973 = vld [vmem:[%s7 + $0xa0] sm:$0xf]
        %v2974 = vld [vmem:[%s7 + $0xa4] sm:$0xf]
        %v2975 = vld [vmem:[%s7 + $0xa8] sm:$0xf]
        %v2976 = vld [vmem:[%s7 + $0xac] sm:$0xf]
        %v2977 = vld [vmem:[%s7 + $0xb0] sm:$0xf]
        %v2978 = vld [vmem:[%s7 + $0xb4] sm:$0xf]
        %v2979 = vld [vmem:[%s7 + $0xb8] sm:$0xf]
        %v2980 = vld [vmem:[%s7 + $0xbc] sm:$0xf]
        %v2983 = vunpack.c.l.b16 %v2895
        %v2984 = vunpack.c.l.b16 %v2896
        %v2985 = vpack.c.b16 %v2984, %v2983
        %v2988 = vunpack.c.l.b16 %v2897
        %v2989 = vpack.c.b16 %v2988, %v2988
        %v2991 = vshrl.u32 %v2985, 16
        %v2993 = vshll.u32 %v2985, 16
        %v2995 = vrot.slane %v2993, 1
        %v2996 = vor.u32 %v2991, %v2995
        %v2998 = vshll.u32 %v2989, 16
        %v3000 = vrot.slane %v2998, 1
        %v3001 = vsel %vm2914, %v2996, %v3000
        %v3003 = vrot.slane %v2985, 1
        %v3004 = vrot.slane %v2989, 1
        %v3005 = vsel %vm2928, %v3003, %v3004
        %s3007 = scalar_lea.vmem %s7, 192
        %v3008 = vld [vmem:[%s3007] sm:$0xf]
        %v3009 = vld [vmem:[%s3007 + $0x4] sm:$0xf]
        %v3010 = vld [vmem:[%s3007 + $0x8] sm:$0xf]
        %v3011 = vld [vmem:[%s3007 + $0xc] sm:$0xf]
        %v3012 = vld [vmem:[%s3007 + $0x10] sm:$0xf]
        %v3013 = vld [vmem:[%s3007 + $0x14] sm:$0xf]
        %v3014 = vld [vmem:[%s3007 + $0x18] sm:$0xf]
        %v3015 = vld [vmem:[%s3007 + $0x1c] sm:$0xf]
        %v3016 = vld [vmem:[%s3007 + $0x20] sm:$0xf]
        %v3017 = vld [vmem:[%s3007 + $0x24] sm:$0xf]
        %v3018 = vld [vmem:[%s3007 + $0x28] sm:$0xf]
        %v3019 = vld [vmem:[%s3007 + $0x2c] sm:$0xf]
        %v3020 = vld [vmem:[%s3007 + $0x30] sm:$0xf]
        %v3021 = vld [vmem:[%s3007 + $0x34] sm:$0xf]
        %v3022 = vld [vmem:[%s3007 + $0x38] sm:$0xf]
        %v3023 = vld [vmem:[%s3007 + $0x3c] sm:$0xf]
        %v3024 = vld [vmem:[%s3007 + $0x40] sm:$0xf]
        %v3025 = vld [vmem:[%s3007 + $0x44] sm:$0xf]
        %v3026 = vld [vmem:[%s3007 + $0x48] sm:$0xf]
        %v3027 = vld [vmem:[%s3007 + $0x4c] sm:$0xf]
        %v3028 = vld [vmem:[%s3007 + $0x50] sm:$0xf]
        %v3029 = vld [vmem:[%s3007 + $0x54] sm:$0xf]
        %v3030 = vld [vmem:[%s3007 + $0x58] sm:$0xf]
        %v3031 = vld [vmem:[%s3007 + $0x5c] sm:$0xf]
        %v3032 = vld [vmem:[%s3007 + $0x60] sm:$0xf]
        %v3033 = vld [vmem:[%s3007 + $0x64] sm:$0xf]
        %v3034 = vld [vmem:[%s3007 + $0x68] sm:$0xf]
        %v3035 = vld [vmem:[%s3007 + $0x6c] sm:$0xf]
        %v3036 = vld [vmem:[%s3007 + $0x70] sm:$0xf]
        %v3037 = vld [vmem:[%s3007 + $0x74] sm:$0xf]
        %v3038 = vld [vmem:[%s3007 + $0x78] sm:$0xf]
        %v3039 = vld [vmem:[%s3007 + $0x7c] sm:$0xf]
        %v3040 = vld [vmem:[%s3007 + $0x80] sm:$0xf]
        %v3041 = vld [vmem:[%s3007 + $0x84] sm:$0xf]
        %v3042 = vld [vmem:[%s3007 + $0x88] sm:$0xf]
        %v3043 = vld [vmem:[%s3007 + $0x8c] sm:$0xf]
        %v3044 = vld [vmem:[%s3007 + $0x90] sm:$0xf]
        %v3045 = vld [vmem:[%s3007 + $0x94] sm:$0xf]
        %v3046 = vld [vmem:[%s3007 + $0x98] sm:$0xf]
        %v3047 = vld [vmem:[%s3007 + $0x9c] sm:$0xf]
        %v3048 = vld [vmem:[%s3007 + $0xa0] sm:$0xf]
        %v3049 = vld [vmem:[%s3007 + $0xa4] sm:$0xf]
        %v3050 = vld [vmem:[%s3007 + $0xa8] sm:$0xf]
        %v3051 = vld [vmem:[%s3007 + $0xac] sm:$0xf]
        %v3052 = vld [vmem:[%s3007 + $0xb0] sm:$0xf]
        %v3053 = vld [vmem:[%s3007 + $0xb4] sm:$0xf]
        %v3054 = vld [vmem:[%s3007 + $0xb8] sm:$0xf]
        %v3055 = vld [vmem:[%s3007 + $0xbc] sm:$0xf]
        %v3104 = vunpack.c.l.b16 %v3008
        %v3105 = vunpack.c.l.b16 %v3009
        %v3106 = vunpack.c.l.b16 %v3010
        %v3107 = vunpack.c.l.b16 %v3011
        %v3108 = vunpack.c.l.b16 %v3012
        %v3109 = vunpack.c.l.b16 %v3013
        %v3110 = vunpack.c.l.b16 %v3014
        %v3111 = vunpack.c.l.b16 %v3015
        %v3112 = vunpack.c.l.b16 %v3016
        %v3113 = vunpack.c.l.b16 %v3017
        %v3114 = vunpack.c.l.b16 %v3018
        %v3115 = vunpack.c.l.b16 %v3019
        %v3116 = vunpack.c.l.b16 %v3020
        %v3117 = vunpack.c.l.b16 %v3021
        %v3118 = vunpack.c.l.b16 %v3022
        %v3119 = vunpack.c.l.b16 %v3023
        %v3120 = vunpack.c.l.b16 %v3024
        %v3121 = vunpack.c.l.b16 %v3025
        %v3122 = vunpack.c.l.b16 %v3026
        %v3123 = vunpack.c.l.b16 %v3027
        %v3124 = vunpack.c.l.b16 %v3028
        %v3125 = vunpack.c.l.b16 %v3029
        %v3126 = vunpack.c.l.b16 %v3030
        %v3127 = vunpack.c.l.b16 %v3031
        %v3128 = vunpack.c.l.b16 %v3032
        %v3129 = vunpack.c.l.b16 %v3033
        %v3130 = vunpack.c.l.b16 %v3034
        %v3131 = vunpack.c.l.b16 %v3035
        %v3132 = vunpack.c.l.b16 %v3036
        %v3133 = vunpack.c.l.b16 %v3037
        %v3134 = vunpack.c.l.b16 %v3038
        %v3135 = vunpack.c.l.b16 %v3039
        %v3136 = vunpack.c.l.b16 %v3040
        %v3137 = vunpack.c.l.b16 %v3041
        %v3138 = vunpack.c.l.b16 %v3042
        %v3139 = vunpack.c.l.b16 %v3043
        %v3140 = vunpack.c.l.b16 %v3044
        %v3141 = vunpack.c.l.b16 %v3045
        %v3142 = vunpack.c.l.b16 %v3046
        %v3143 = vunpack.c.l.b16 %v3047
        %v3144 = vunpack.c.l.b16 %v3048
        %v3145 = vunpack.c.l.b16 %v3049
        %v3146 = vunpack.c.l.b16 %v3050
        %v3147 = vunpack.c.l.b16 %v3051
        %v3148 = vunpack.c.l.b16 %v3052
        %v3149 = vunpack.c.l.b16 %v3053
        %v3150 = vunpack.c.l.b16 %v3054
        %v3151 = vunpack.c.l.b16 %v3055
        %v3152 = vpack.c.b16 %v3105, %v3104
        %v3153 = vpack.c.b16 %v3107, %v3106
        %v3154 = vpack.c.b16 %v3109, %v3108
        %v3155 = vpack.c.b16 %v3111, %v3110
        %v3156 = vpack.c.b16 %v3113, %v3112
        %v3157 = vpack.c.b16 %v3115, %v3114
        %v3158 = vpack.c.b16 %v3117, %v3116
        %v3159 = vpack.c.b16 %v3119, %v3118
        %v3160 = vpack.c.b16 %v3121, %v3120
        %v3161 = vpack.c.b16 %v3123, %v3122
        %v3162 = vpack.c.b16 %v3125, %v3124
        %v3163 = vpack.c.b16 %v3127, %v3126
        %v3164 = vpack.c.b16 %v3129, %v3128
        %v3165 = vpack.c.b16 %v3131, %v3130
        %v3166 = vpack.c.b16 %v3133, %v3132
        %v3167 = vpack.c.b16 %v3135, %v3134
        %v3168 = vpack.c.b16 %v3137, %v3136
        %v3169 = vpack.c.b16 %v3139, %v3138
        %v3170 = vpack.c.b16 %v3141, %v3140
        %v3171 = vpack.c.b16 %v3143, %v3142
        %v3172 = vpack.c.b16 %v3145, %v3144
        %v3173 = vpack.c.b16 %v3147, %v3146
        %v3174 = vpack.c.b16 %v3149, %v3148
        %v3175 = vpack.c.b16 %v3151, %v3150
        %3200 = vmatprep.subr.bf16.mxu0 0
        %3201 = vmatpush1.bf16.msra.mxu0 %v3159
        %3202 = vmatprep.subr.bf16.mxu0 0
        %3203 = vmatpush1.bf16.msra.mxu0 %v3158
        %3204 = vmatprep.subr.bf16.mxu0 0
        %3205 = vmatpush1.bf16.msra.mxu0 %v3157
        %3206 = vmatprep.subr.bf16.mxu0 0
        %3207 = vmatpush1.bf16.msra.mxu0 %v3156
        %3208 = vmatprep.subr.bf16.mxu0 0
        %3209 = vmatpush1.bf16.msra.mxu0 %v3155
        %3210 = vmatprep.subr.bf16.mxu0 0
        %3211 = vmatpush1.bf16.msra.mxu0 %v3154
        %3212 = vmatprep.subr.bf16.mxu0 0
        %3213 = vmatpush1.bf16.msra.mxu0 %v3153
        %3214 = vmatprep.subr.bf16.mxu0 0
        %3215 = vmatpush1.bf16.msra.mxu0 %v3152
        %3216 = vmatprep.subr.bf16.mxu0 0
        %3217 = vmatpush2.bf16.msra.mxu0 %v3167
        %3218 = vmatprep.subr.bf16.mxu0 0
        %3219 = vmatpush2.bf16.msra.mxu0 %v3166
        %3220 = vmatprep.subr.bf16.mxu0 0
        %3221 = vmatpush2.bf16.msra.mxu0 %v3165
        %3222 = vmatprep.subr.bf16.mxu0 0
        %3223 = vmatpush2.bf16.msra.mxu0 %v3164
        %3224 = vmatprep.subr.bf16.mxu0 0
        %3225 = vmatpush2.bf16.msra.mxu0 %v3163
        %3226 = vmatprep.subr.bf16.mxu0 0
        %3227 = vmatpush2.bf16.msra.mxu0 %v3162
        %3228 = vmatprep.subr.bf16.mxu0 0
        %3229 = vmatpush2.bf16.msra.mxu0 %v3161
        %3230 = vmatprep.subr.bf16.mxu0 0
        %3231 = vmatpush2.bf16.msra.mxu0 %v3160
        %3232 = vmatprep.mubr.bf16.mxu0 %v3001
        %3233 = vmatmul.mubr.bf16.gmra.mxu0 %v2985
        %v3234 = vpop.f32.mrf.mxu0
        %v3235 = vadd.f32 0.0, %v3234
        %v3236 = vpop.f32.mrf.mxu0
        %v3237 = vpop.f32.mrf.mxu0
        %v3238 = vadd.f32 0.0, %v3237
        %v3239 = vpop.f32.mrf.mxu0
        %3240 = vdwg.mxu0
        %3241 = vmatprep.subr.bf16.mxu0 0
        %3242 = vmatpush1.bf16.msra.mxu0 %v3175
        %3243 = vmatprep.subr.bf16.mxu0 0
        %3244 = vmatpush1.bf16.msra.mxu0 %v3174
        %3245 = vmatprep.subr.bf16.mxu0 0
        %3246 = vmatpush1.bf16.msra.mxu0 %v3173
        %3247 = vmatprep.subr.bf16.mxu0 0
        %3248 = vmatpush1.bf16.msra.mxu0 %v3172
        %3249 = vmatprep.subr.bf16.mxu0 0
        %3250 = vmatpush1.bf16.msra.mxu0 %v3171
        %3251 = vmatprep.subr.bf16.mxu0 0
        %3252 = vmatpush1.bf16.msra.mxu0 %v3170
        %3253 = vmatprep.subr.bf16.mxu0 0
        %3254 = vmatpush1.bf16.msra.mxu0 %v3169
        %3255 = vmatprep.subr.bf16.mxu0 0
        %3256 = vmatpush1.bf16.msra.mxu0 %v3168
        %3257 = vmatprep.subr.bf16.mxu0 0
        %3258 = vmatpush2.bf16.msra.mxu0 0
        %3259 = vmatprep.subr.bf16.mxu0 0
        %3260 = vmatpush2.bf16.msra.mxu0 0
        %3261 = vmatprep.subr.bf16.mxu0 0
        %3262 = vmatpush2.bf16.msra.mxu0 0
        %3263 = vmatprep.subr.bf16.mxu0 0
        %3264 = vmatpush2.bf16.msra.mxu0 0
        %3265 = vmatprep.subr.bf16.mxu0 0
        %3266 = vmatpush2.bf16.msra.mxu0 0
        %3267 = vmatprep.subr.bf16.mxu0 0
        %3268 = vmatpush2.bf16.msra.mxu0 0
        %3269 = vmatprep.subr.bf16.mxu0 0
        %3270 = vmatpush2.bf16.msra.mxu0 0
        %3271 = vmatprep.subr.bf16.mxu0 0
        %3272 = vmatpush2.bf16.msra.mxu0 0
        %3273 = vmatprep.mubr.bf16.mxu0 0
        %3274 = vmatmul.mubr.bf16.gmra.mxu0 %v3005
        %v3275 = vpop.f32.mrf.mxu0
        %v3276 = vadd.f32 %v3235, %v3275
        %v3277 = vpop.f32.mrf.mxu0
        %v3278 = vpop.f32.mrf.mxu0
        %v3279 = vadd.f32 %v3238, %v3278
        %v3280 = vpop.f32.mrf.mxu0
        %3281 = vdwg.mxu0
        %v3330 = vunpack.c.l.b16 %v2933
        %v3331 = vunpack.c.l.b16 %v2934
        %v3332 = vunpack.c.l.b16 %v2935
        %v3333 = vunpack.c.l.b16 %v2936
        %v3334 = vunpack.c.l.b16 %v2937
        %v3335 = vunpack.c.l.b16 %v2938
        %v3336 = vunpack.c.l.b16 %v2939
        %v3337 = vunpack.c.l.b16 %v2940
        %v3338 = vunpack.c.l.b16 %v2941
        %v3339 = vunpack.c.l.b16 %v2942
        %v3340 = vunpack.c.l.b16 %v2943
        %v3341 = vunpack.c.l.b16 %v2944
        %v3342 = vunpack.c.l.b16 %v2945
        %v3343 = vunpack.c.l.b16 %v2946
        %v3344 = vunpack.c.l.b16 %v2947
        %v3345 = vunpack.c.l.b16 %v2948
        %v3346 = vunpack.c.l.b16 %v2949
        %v3347 = vunpack.c.l.b16 %v2950
        %v3348 = vunpack.c.l.b16 %v2951
        %v3349 = vunpack.c.l.b16 %v2952
        %v3350 = vunpack.c.l.b16 %v2953
        %v3351 = vunpack.c.l.b16 %v2954
        %v3352 = vunpack.c.l.b16 %v2955
        %v3353 = vunpack.c.l.b16 %v2956
        %v3354 = vunpack.c.l.b16 %v2957
        %v3355 = vunpack.c.l.b16 %v2958
        %v3356 = vunpack.c.l.b16 %v2959
        %v3357 = vunpack.c.l.b16 %v2960
        %v3358 = vunpack.c.l.b16 %v2961
        %v3359 = vunpack.c.l.b16 %v2962
        %v3360 = vunpack.c.l.b16 %v2963
        %v3361 = vunpack.c.l.b16 %v2964
        %v3362 = vunpack.c.l.b16 %v2965
        %v3363 = vunpack.c.l.b16 %v2966
        %v3364 = vunpack.c.l.b16 %v2967
        %v3365 = vunpack.c.l.b16 %v2968
        %v3366 = vunpack.c.l.b16 %v2969
        %v3367 = vunpack.c.l.b16 %v2970
        %v3368 = vunpack.c.l.b16 %v2971
        %v3369 = vunpack.c.l.b16 %v2972
        %v3370 = vunpack.c.l.b16 %v2973
        %v3371 = vunpack.c.l.b16 %v2974
        %v3372 = vunpack.c.l.b16 %v2975
        %v3373 = vunpack.c.l.b16 %v2976
        %v3374 = vunpack.c.l.b16 %v2977
        %v3375 = vunpack.c.l.b16 %v2978
        %v3376 = vunpack.c.l.b16 %v2979
        %v3377 = vunpack.c.l.b16 %v2980
        %v3378 = vpack.c.b16 %v3331, %v3330
        %v3379 = vpack.c.b16 %v3333, %v3332
        %v3380 = vpack.c.b16 %v3335, %v3334
        %v3381 = vpack.c.b16 %v3337, %v3336
        %v3382 = vpack.c.b16 %v3339, %v3338
        %v3383 = vpack.c.b16 %v3341, %v3340
        %v3384 = vpack.c.b16 %v3343, %v3342
        %v3385 = vpack.c.b16 %v3345, %v3344
        %v3386 = vpack.c.b16 %v3347, %v3346
        %v3387 = vpack.c.b16 %v3349, %v3348
        %v3388 = vpack.c.b16 %v3351, %v3350
        %v3389 = vpack.c.b16 %v3353, %v3352
        %v3390 = vpack.c.b16 %v3355, %v3354
        %v3391 = vpack.c.b16 %v3357, %v3356
        %v3392 = vpack.c.b16 %v3359, %v3358
        %v3393 = vpack.c.b16 %v3361, %v3360
        %v3394 = vpack.c.b16 %v3363, %v3362
        %v3395 = vpack.c.b16 %v3365, %v3364
        %v3396 = vpack.c.b16 %v3367, %v3366
        %v3397 = vpack.c.b16 %v3369, %v3368
        %v3398 = vpack.c.b16 %v3371, %v3370
        %v3399 = vpack.c.b16 %v3373, %v3372
        %v3400 = vpack.c.b16 %v3375, %v3374
        %v3401 = vpack.c.b16 %v3377, %v3376
        %3426 = vmatprep.subr.bf16.mxu0 0
        %3427 = vmatpush1.bf16.msra.mxu0 %v3385
        %3428 = vmatprep.subr.bf16.mxu0 0
        %3429 = vmatpush1.bf16.msra.mxu0 %v3384
        %3430 = vmatprep.subr.bf16.mxu0 0
        %3431 = vmatpush1.bf16.msra.mxu0 %v3383
        %3432 = vmatprep.subr.bf16.mxu0 0
        %3433 = vmatpush1.bf16.msra.mxu0 %v3382
        %3434 = vmatprep.subr.bf16.mxu0 0
        %3435 = vmatpush1.bf16.msra.mxu0 %v3381
        %3436 = vmatprep.subr.bf16.mxu0 0
        %3437 = vmatpush1.bf16.msra.mxu0 %v3380
        %3438 = vmatprep.subr.bf16.mxu0 0
        %3439 = vmatpush1.bf16.msra.mxu0 %v3379
        %3440 = vmatprep.subr.bf16.mxu0 0
        %3441 = vmatpush1.bf16.msra.mxu0 %v3378
        %3442 = vmatprep.subr.bf16.mxu0 0
        %3443 = vmatpush2.bf16.msra.mxu0 %v3393
        %3444 = vmatprep.subr.bf16.mxu0 0
        %3445 = vmatpush2.bf16.msra.mxu0 %v3392
        %3446 = vmatprep.subr.bf16.mxu0 0
        %3447 = vmatpush2.bf16.msra.mxu0 %v3391
        %3448 = vmatprep.subr.bf16.mxu0 0
        %3449 = vmatpush2.bf16.msra.mxu0 %v3390
        %3450 = vmatprep.subr.bf16.mxu0 0
        %3451 = vmatpush2.bf16.msra.mxu0 %v3389
        %3452 = vmatprep.subr.bf16.mxu0 0
        %3453 = vmatpush2.bf16.msra.mxu0 %v3388
        %3454 = vmatprep.subr.bf16.mxu0 0
        %3455 = vmatpush2.bf16.msra.mxu0 %v3387
        %3456 = vmatprep.subr.bf16.mxu0 0
        %3457 = vmatpush2.bf16.msra.mxu0 %v3386
        %3458 = vmatprep.mubr.bf16.mxu0 %v2926
        %3459 = vmatmul.mubr.bf16.gmra.mxu0 %v2909
        %v3460 = vpop.f32.mrf.mxu0
        %v3461 = vadd.f32 %v3276, %v3460
        %v3462 = vpop.f32.mrf.mxu0
        %v3463 = vpop.f32.mrf.mxu0
        %v3464 = vadd.f32 %v3279, %v3463
        %v3465 = vpop.f32.mrf.mxu0
        %3466 = vdwg.mxu0
        %3467 = vmatprep.subr.bf16.mxu0 0
        %3468 = vmatpush1.bf16.msra.mxu0 %v3401
        %3469 = vmatprep.subr.bf16.mxu0 0
        %3470 = vmatpush1.bf16.msra.mxu0 %v3400
        %3471 = vmatprep.subr.bf16.mxu0 0
        %3472 = vmatpush1.bf16.msra.mxu0 %v3399
        %3473 = vmatprep.subr.bf16.mxu0 0
        %3474 = vmatpush1.bf16.msra.mxu0 %v3398
        %3475 = vmatprep.subr.bf16.mxu0 0
        %3476 = vmatpush1.bf16.msra.mxu0 %v3397
        %3477 = vmatprep.subr.bf16.mxu0 0
        %3478 = vmatpush1.bf16.msra.mxu0 %v3396
        %3479 = vmatprep.subr.bf16.mxu0 0
        %3480 = vmatpush1.bf16.msra.mxu0 %v3395
        %3481 = vmatprep.subr.bf16.mxu0 0
        %3482 = vmatpush1.bf16.msra.mxu0 %v3394
        %3483 = vmatprep.subr.bf16.mxu0 0
        %3484 = vmatpush2.bf16.msra.mxu0 0
        %3485 = vmatprep.subr.bf16.mxu0 0
        %3486 = vmatpush2.bf16.msra.mxu0 0
        %3487 = vmatprep.subr.bf16.mxu0 0
        %3488 = vmatpush2.bf16.msra.mxu0 0
        %3489 = vmatprep.subr.bf16.mxu0 0
        %3490 = vmatpush2.bf16.msra.mxu0 0
        %3491 = vmatprep.subr.bf16.mxu0 0
        %3492 = vmatpush2.bf16.msra.mxu0 0
        %3493 = vmatprep.subr.bf16.mxu0 0
        %3494 = vmatpush2.bf16.msra.mxu0 0
        %3495 = vmatprep.subr.bf16.mxu0 0
        %3496 = vmatpush2.bf16.msra.mxu0 0
        %3497 = vmatprep.subr.bf16.mxu0 0
        %3498 = vmatpush2.bf16.msra.mxu0 0
        %3499 = vmatprep.mubr.bf16.mxu0 0
        %3500 = vmatmul.mubr.bf16.gmra.mxu0 %v2931
        %v3501 = vpop.f32.mrf.mxu0
        %v3502 = vadd.f32 %v3461, %v3501
        %v3503 = vpop.f32.mrf.mxu0
        %v3504 = vpop.f32.mrf.mxu0
        %v3505 = vadd.f32 %v3464, %v3504
        %v3506 = vpop.f32.mrf.mxu0
        %3507 = vdwg.mxu0
        %v3510 = vunpack.c.l.b16 %v2902
        %v3511 = vunpack.c.l.b16 %v2903
        %v3512 = vpack.c.b16 %v3511, %v3510
        %v3515 = vunpack.c.l.b16 %v2904
        %v3516 = vpack.c.b16 %v3515, %v3515
        %v3518 = vshrl.u32 %v3512, 16
        %v3520 = vshll.u32 %v3512, 16
        %v3522 = vrot.slane %v3520, 1
        %v3523 = vor.u32 %v3518, %v3522
        %v3525 = vshll.u32 %v3516, 16
        %v3527 = vrot.slane %v3525, 1
        %v3528 = vsel %vm2914, %v3523, %v3527
        %v3530 = vrot.slane %v3512, 1
        %v3531 = vrot.slane %v3516, 1
        %v3532 = vsel %vm2928, %v3530, %v3531
        %s3534 = scalar_lea.vmem %s7, 384
        %v3535 = vld [vmem:[%s3534] sm:$0xf]
        %v3536 = vld [vmem:[%s3534 + $0x4] sm:$0xf]
        %v3537 = vld [vmem:[%s3534 + $0x8] sm:$0xf]
        %v3538 = vld [vmem:[%s3534 + $0xc] sm:$0xf]
        %v3539 = vld [vmem:[%s3534 + $0x10] sm:$0xf]
        %v3540 = vld [vmem:[%s3534 + $0x14] sm:$0xf]
        %v3541 = vld [vmem:[%s3534 + $0x18] sm:$0xf]
        %v3542 = vld [vmem:[%s3534 + $0x1c] sm:$0xf]
        %v3543 = vld [vmem:[%s3534 + $0x20] sm:$0xf]
        %v3544 = vld [vmem:[%s3534 + $0x24] sm:$0xf]
        %v3545 = vld [vmem:[%s3534 + $0x28] sm:$0xf]
        %v3546 = vld [vmem:[%s3534 + $0x2c] sm:$0xf]
        %v3547 = vld [vmem:[%s3534 + $0x30] sm:$0xf]
        %v3548 = vld [vmem:[%s3534 + $0x34] sm:$0xf]
        %v3549 = vld [vmem:[%s3534 + $0x38] sm:$0xf]
        %v3550 = vld [vmem:[%s3534 + $0x3c] sm:$0xf]
        %v3551 = vld [vmem:[%s3534 + $0x40] sm:$0xf]
        %v3552 = vld [vmem:[%s3534 + $0x44] sm:$0xf]
        %v3553 = vld [vmem:[%s3534 + $0x48] sm:$0xf]
        %v3554 = vld [vmem:[%s3534 + $0x4c] sm:$0xf]
        %v3555 = vld [vmem:[%s3534 + $0x50] sm:$0xf]
        %v3556 = vld [vmem:[%s3534 + $0x54] sm:$0xf]
        %v3557 = vld [vmem:[%s3534 + $0x58] sm:$0xf]
        %v3558 = vld [vmem:[%s3534 + $0x5c] sm:$0xf]
        %v3559 = vld [vmem:[%s3534 + $0x60] sm:$0xf]
        %v3560 = vld [vmem:[%s3534 + $0x64] sm:$0xf]
        %v3561 = vld [vmem:[%s3534 + $0x68] sm:$0xf]
        %v3562 = vld [vmem:[%s3534 + $0x6c] sm:$0xf]
        %v3563 = vld [vmem:[%s3534 + $0x70] sm:$0xf]
        %v3564 = vld [vmem:[%s3534 + $0x74] sm:$0xf]
        %v3565 = vld [vmem:[%s3534 + $0x78] sm:$0xf]
        %v3566 = vld [vmem:[%s3534 + $0x7c] sm:$0xf]
        %v3567 = vld [vmem:[%s3534 + $0x80] sm:$0xf]
        %v3568 = vld [vmem:[%s3534 + $0x84] sm:$0xf]
        %v3569 = vld [vmem:[%s3534 + $0x88] sm:$0xf]
        %v3570 = vld [vmem:[%s3534 + $0x8c] sm:$0xf]
        %v3571 = vld [vmem:[%s3534 + $0x90] sm:$0xf]
        %v3572 = vld [vmem:[%s3534 + $0x94] sm:$0xf]
        %v3573 = vld [vmem:[%s3534 + $0x98] sm:$0xf]
        %v3574 = vld [vmem:[%s3534 + $0x9c] sm:$0xf]
        %v3575 = vld [vmem:[%s3534 + $0xa0] sm:$0xf]
        %v3576 = vld [vmem:[%s3534 + $0xa4] sm:$0xf]
        %v3577 = vld [vmem:[%s3534 + $0xa8] sm:$0xf]
        %v3578 = vld [vmem:[%s3534 + $0xac] sm:$0xf]
        %v3579 = vld [vmem:[%s3534 + $0xb0] sm:$0xf]
        %v3580 = vld [vmem:[%s3534 + $0xb4] sm:$0xf]
        %v3581 = vld [vmem:[%s3534 + $0xb8] sm:$0xf]
        %v3582 = vld [vmem:[%s3534 + $0xbc] sm:$0xf]
        %v3631 = vunpack.c.l.b16 %v3535
        %v3632 = vunpack.c.l.b16 %v3536
        %v3633 = vunpack.c.l.b16 %v3537
        %v3634 = vunpack.c.l.b16 %v3538
        %v3635 = vunpack.c.l.b16 %v3539
        %v3636 = vunpack.c.l.b16 %v3540
        %v3637 = vunpack.c.l.b16 %v3541
        %v3638 = vunpack.c.l.b16 %v3542
        %v3639 = vunpack.c.l.b16 %v3543
        %v3640 = vunpack.c.l.b16 %v3544
        %v3641 = vunpack.c.l.b16 %v3545
        %v3642 = vunpack.c.l.b16 %v3546
        %v3643 = vunpack.c.l.b16 %v3547
        %v3644 = vunpack.c.l.b16 %v3548
        %v3645 = vunpack.c.l.b16 %v3549
        %v3646 = vunpack.c.l.b16 %v3550
        %v3647 = vunpack.c.l.b16 %v3551
        %v3648 = vunpack.c.l.b16 %v3552
        %v3649 = vunpack.c.l.b16 %v3553
        %v3650 = vunpack.c.l.b16 %v3554
        %v3651 = vunpack.c.l.b16 %v3555
        %v3652 = vunpack.c.l.b16 %v3556
        %v3653 = vunpack.c.l.b16 %v3557
        %v3654 = vunpack.c.l.b16 %v3558
        %v3655 = vunpack.c.l.b16 %v3559
        %v3656 = vunpack.c.l.b16 %v3560
        %v3657 = vunpack.c.l.b16 %v3561
        %v3658 = vunpack.c.l.b16 %v3562
        %v3659 = vunpack.c.l.b16 %v3563
        %v3660 = vunpack.c.l.b16 %v3564
        %v3661 = vunpack.c.l.b16 %v3565
        %v3662 = vunpack.c.l.b16 %v3566
        %v3663 = vunpack.c.l.b16 %v3567
        %v3664 = vunpack.c.l.b16 %v3568
        %v3665 = vunpack.c.l.b16 %v3569
        %v3666 = vunpack.c.l.b16 %v3570
        %v3667 = vunpack.c.l.b16 %v3571
        %v3668 = vunpack.c.l.b16 %v3572
        %v3669 = vunpack.c.l.b16 %v3573
        %v3670 = vunpack.c.l.b16 %v3574
        %v3671 = vunpack.c.l.b16 %v3575
        %v3672 = vunpack.c.l.b16 %v3576
        %v3673 = vunpack.c.l.b16 %v3577
        %v3674 = vunpack.c.l.b16 %v3578
        %v3675 = vunpack.c.l.b16 %v3579
        %v3676 = vunpack.c.l.b16 %v3580
        %v3677 = vunpack.c.l.b16 %v3581
        %v3678 = vunpack.c.l.b16 %v3582
        %v3679 = vpack.c.b16 %v3632, %v3631
        %v3680 = vpack.c.b16 %v3634, %v3633
        %v3681 = vpack.c.b16 %v3636, %v3635
        %v3682 = vpack.c.b16 %v3638, %v3637
        %v3683 = vpack.c.b16 %v3640, %v3639
        %v3684 = vpack.c.b16 %v3642, %v3641
        %v3685 = vpack.c.b16 %v3644, %v3643
        %v3686 = vpack.c.b16 %v3646, %v3645
        %v3687 = vpack.c.b16 %v3648, %v3647
        %v3688 = vpack.c.b16 %v3650, %v3649
        %v3689 = vpack.c.b16 %v3652, %v3651
        %v3690 = vpack.c.b16 %v3654, %v3653
        %v3691 = vpack.c.b16 %v3656, %v3655
        %v3692 = vpack.c.b16 %v3658, %v3657
        %v3693 = vpack.c.b16 %v3660, %v3659
        %v3694 = vpack.c.b16 %v3662, %v3661
        %v3695 = vpack.c.b16 %v3664, %v3663
        %v3696 = vpack.c.b16 %v3666, %v3665
        %v3697 = vpack.c.b16 %v3668, %v3667
        %v3698 = vpack.c.b16 %v3670, %v3669
        %v3699 = vpack.c.b16 %v3672, %v3671
        %v3700 = vpack.c.b16 %v3674, %v3673
        %v3701 = vpack.c.b16 %v3676, %v3675
        %v3702 = vpack.c.b16 %v3678, %v3677
        %3727 = vmatprep.subr.bf16.mxu0 0
        %3728 = vmatpush1.bf16.msra.mxu0 %v3686
        %3729 = vmatprep.subr.bf16.mxu0 0
        %3730 = vmatpush1.bf16.msra.mxu0 %v3685
        %3731 = vmatprep.subr.bf16.mxu0 0
        %3732 = vmatpush1.bf16.msra.mxu0 %v3684
        %3733 = vmatprep.subr.bf16.mxu0 0
        %3734 = vmatpush1.bf16.msra.mxu0 %v3683
        %3735 = vmatprep.subr.bf16.mxu0 0
        %3736 = vmatpush1.bf16.msra.mxu0 %v3682
        %3737 = vmatprep.subr.bf16.mxu0 0
        %3738 = vmatpush1.bf16.msra.mxu0 %v3681
        %3739 = vmatprep.subr.bf16.mxu0 0
        %3740 = vmatpush1.bf16.msra.mxu0 %v3680
        %3741 = vmatprep.subr.bf16.mxu0 0
        %3742 = vmatpush1.bf16.msra.mxu0 %v3679
        %3743 = vmatprep.subr.bf16.mxu0 0
        %3744 = vmatpush2.bf16.msra.mxu0 %v3694
        %3745 = vmatprep.subr.bf16.mxu0 0
        %3746 = vmatpush2.bf16.msra.mxu0 %v3693
        %3747 = vmatprep.subr.bf16.mxu0 0
        %3748 = vmatpush2.bf16.msra.mxu0 %v3692
        %3749 = vmatprep.subr.bf16.mxu0 0
        %3750 = vmatpush2.bf16.msra.mxu0 %v3691
        %3751 = vmatprep.subr.bf16.mxu0 0
        %3752 = vmatpush2.bf16.msra.mxu0 %v3690
        %3753 = vmatprep.subr.bf16.mxu0 0
        %3754 = vmatpush2.bf16.msra.mxu0 %v3689
        %3755 = vmatprep.subr.bf16.mxu0 0
        %3756 = vmatpush2.bf16.msra.mxu0 %v3688
        %3757 = vmatprep.subr.bf16.mxu0 0
        %3758 = vmatpush2.bf16.msra.mxu0 %v3687
        %3759 = vmatprep.mubr.bf16.mxu0 %v3528
        %3760 = vmatmul.mubr.bf16.gmra.mxu0 %v3512
        %v3761 = vpop.f32.mrf.mxu0
        %v3762 = vadd.f32 0.0, %v3761
        %v3763 = vpop.f32.mrf.mxu0
        %v3764 = vpop.f32.mrf.mxu0
        %v3765 = vadd.f32 0.0, %v3764
        %v3766 = vpop.f32.mrf.mxu0
        %3767 = vdwg.mxu0
        %3768 = vmatprep.subr.bf16.mxu0 0
        %3769 = vmatpush1.bf16.msra.mxu0 %v3702
        %3770 = vmatprep.subr.bf16.mxu0 0
        %3771 = vmatpush1.bf16.msra.mxu0 %v3701
        %3772 = vmatprep.subr.bf16.mxu0 0
        %3773 = vmatpush1.bf16.msra.mxu0 %v3700
        %3774 = vmatprep.subr.bf16.mxu0 0
        %3775 = vmatpush1.bf16.msra.mxu0 %v3699
        %3776 = vmatprep.subr.bf16.mxu0 0
        %3777 = vmatpush1.bf16.msra.mxu0 %v3698
        %3778 = vmatprep.subr.bf16.mxu0 0
        %3779 = vmatpush1.bf16.msra.mxu0 %v3697
        %3780 = vmatprep.subr.bf16.mxu0 0
        %3781 = vmatpush1.bf16.msra.mxu0 %v3696
        %3782 = vmatprep.subr.bf16.mxu0 0
        %3783 = vmatpush1.bf16.msra.mxu0 %v3695
        %3784 = vmatprep.subr.bf16.mxu0 0
        %3785 = vmatpush2.bf16.msra.mxu0 0
        %3786 = vmatprep.subr.bf16.mxu0 0
        %3787 = vmatpush2.bf16.msra.mxu0 0
        %3788 = vmatprep.subr.bf16.mxu0 0
        %3789 = vmatpush2.bf16.msra.mxu0 0
        %3790 = vmatprep.subr.bf16.mxu0 0
        %3791 = vmatpush2.bf16.msra.mxu0 0
        %3792 = vmatprep.subr.bf16.mxu0 0
        %3793 = vmatpush2.bf16.msra.mxu0 0
        %3794 = vmatprep.subr.bf16.mxu0 0
        %3795 = vmatpush2.bf16.msra.mxu0 0
        %3796 = vmatprep.subr.bf16.mxu0 0
        %3797 = vmatpush2.bf16.msra.mxu0 0
        %3798 = vmatprep.subr.bf16.mxu0 0
        %3799 = vmatpush2.bf16.msra.mxu0 0
        %3800 = vmatprep.mubr.bf16.mxu0 0
        %3801 = vmatmul.mubr.bf16.gmra.mxu0 %v3532
        %v3802 = vpop.f32.mrf.mxu0
        %v3803 = vadd.f32 %v3762, %v3802
        %v3804 = vpop.f32.mrf.mxu0
        %v3805 = vpop.f32.mrf.mxu0
        %v3806 = vadd.f32 %v3765, %v3805
        %v3807 = vpop.f32.mrf.mxu0
        %3808 = vdwg.mxu0
        %v3809 = vadd.f32 %v3502, %v3803
        %v3810 = vadd.f32 %v3505, %v3806
        %v3812 = vlaneseq
        %v3813 = vshrl.u32 %v3812, 7
        %v3814 = vsub.s32 0, %v3813
        %v3815 = vrot.slane %v2876, %v3814
        %v3817 = vmul.f32 %v3809, %v3815
        %v3818 = vmul.f32 %v3810, %v3815
        %v3820 = vlaneseq
        %v3821 = vshrl.u32 %v3820, 7
        %v3822 = vsub.s32 0, %v3821
        %v3823 = vrot.slane %v2877, %v3822
        %v3825 = vadd.f32 %v3817, %v3823
        %v3826 = vadd.f32 %v3818, %v3823
        %v3827 = vmax.f32 %v3825, 0.0
        %v3828 = vmax.f32 %v3826, 0.0
        %s3829 = sadd.s32 %s2884, 3
        %s3830 = smul.u32 %s3829, 3
        %s3831 = smul.addr %s3830, 4
        %s3832 = scalar_lea.vmem [#allocation3], %s3831
        %v3833 = vld [vmem:[%s3832] sm:$0xf]
        %v3834 = vld [vmem:[%s3832 + $0x4] sm:$0xf]
        %v3835 = vld [vmem:[%s3832 + $0x8] sm:$0x1]
        %3836 = vmatprep.subr.bf16.mxu0 0
        %3837 = vmatpush1.bf16.msra.mxu0 %v3159
        %3838 = vmatprep.subr.bf16.mxu0 0
        %3839 = vmatpush1.bf16.msra.mxu0 %v3158
        %3840 = vmatprep.subr.bf16.mxu0 0
        %3841 = vmatpush1.bf16.msra.mxu0 %v3157
        %3842 = vmatprep.subr.bf16.mxu0 0
        %3843 = vmatpush1.bf16.msra.mxu0 %v3156
        %3844 = vmatprep.subr.bf16.mxu0 0
        %3845 = vmatpush1.bf16.msra.mxu0 %v3155
        %3846 = vmatprep.subr.bf16.mxu0 0
        %3847 = vmatpush1.bf16.msra.mxu0 %v3154
        %3848 = vmatprep.subr.bf16.mxu0 0
        %3849 = vmatpush1.bf16.msra.mxu0 %v3153
        %3850 = vmatprep.subr.bf16.mxu0 0
        %3851 = vmatpush1.bf16.msra.mxu0 %v3152
        %3852 = vmatprep.subr.bf16.mxu0 0
        %3853 = vmatpush2.bf16.msra.mxu0 %v3167
        %3854 = vmatprep.subr.bf16.mxu0 0
        %3855 = vmatpush2.bf16.msra.mxu0 %v3166
        %3856 = vmatprep.subr.bf16.mxu0 0
        %3857 = vmatpush2.bf16.msra.mxu0 %v3165
        %3858 = vmatprep.subr.bf16.mxu0 0
        %3859 = vmatpush2.bf16.msra.mxu0 %v3164
        %3860 = vmatprep.subr.bf16.mxu0 0
        %3861 = vmatpush2.bf16.msra.mxu0 %v3163
        %3862 = vmatprep.subr.bf16.mxu0 0
        %3863 = vmatpush2.bf16.msra.mxu0 %v3162
        %3864 = vmatprep.subr.bf16.mxu0 0
        %3865 = vmatpush2.bf16.msra.mxu0 %v3161
        %3866 = vmatprep.subr.bf16.mxu0 0
        %3867 = vmatpush2.bf16.msra.mxu0 %v3160
        %3868 = vmatprep.mubr.bf16.mxu0 %v3528
        %3869 = vmatmul.mubr.bf16.gmra.mxu0 %v3512
        %v3870 = vpop.f32.mrf.mxu0
        %v3871 = vadd.f32 0.0, %v3870
        %v3872 = vpop.f32.mrf.mxu0
        %v3873 = vpop.f32.mrf.mxu0
        %v3874 = vadd.f32 0.0, %v3873
        %v3875 = vpop.f32.mrf.mxu0
        %3876 = vdwg.mxu0
        %3877 = vmatprep.subr.bf16.mxu0 0
        %3878 = vmatpush1.bf16.msra.mxu0 %v3175
        %3879 = vmatprep.subr.bf16.mxu0 0
        %3880 = vmatpush1.bf16.msra.mxu0 %v3174
        %3881 = vmatprep.subr.bf16.mxu0 0
        %3882 = vmatpush1.bf16.msra.mxu0 %v3173
        %3883 = vmatprep.subr.bf16.mxu0 0
        %3884 = vmatpush1.bf16.msra.mxu0 %v3172
        %3885 = vmatprep.subr.bf16.mxu0 0
        %3886 = vmatpush1.bf16.msra.mxu0 %v3171
        %3887 = vmatprep.subr.bf16.mxu0 0
        %3888 = vmatpush1.bf16.msra.mxu0 %v3170
        %3889 = vmatprep.subr.bf16.mxu0 0
        %3890 = vmatpush1.bf16.msra.mxu0 %v3169
        %3891 = vmatprep.subr.bf16.mxu0 0
        %3892 = vmatpush1.bf16.msra.mxu0 %v3168
        %3893 = vmatprep.subr.bf16.mxu0 0
        %3894 = vmatpush2.bf16.msra.mxu0 0
        %3895 = vmatprep.subr.bf16.mxu0 0
        %3896 = vmatpush2.bf16.msra.mxu0 0
        %3897 = vmatprep.subr.bf16.mxu0 0
        %3898 = vmatpush2.bf16.msra.mxu0 0
        %3899 = vmatprep.subr.bf16.mxu0 0
        %3900 = vmatpush2.bf16.msra.mxu0 0
        %3901 = vmatprep.subr.bf16.mxu0 0
        %3902 = vmatpush2.bf16.msra.mxu0 0
        %3903 = vmatprep.subr.bf16.mxu0 0
        %3904 = vmatpush2.bf16.msra.mxu0 0
        %3905 = vmatprep.subr.bf16.mxu0 0
        %3906 = vmatpush2.bf16.msra.mxu0 0
        %3907 = vmatprep.subr.bf16.mxu0 0
        %3908 = vmatpush2.bf16.msra.mxu0 0
        %3909 = vmatprep.mubr.bf16.mxu0 0
        %3910 = vmatmul.mubr.bf16.gmra.mxu0 %v3532
        %v3911 = vpop.f32.mrf.mxu0
        %v3912 = vadd.f32 %v3871, %v3911
        %v3913 = vpop.f32.mrf.mxu0
        %v3914 = vpop.f32.mrf.mxu0
        %v3915 = vadd.f32 %v3874, %v3914
        %v3916 = vpop.f32.mrf.mxu0
        %3917 = vdwg.mxu0
        %3918 = vmatprep.subr.bf16.mxu0 0
        %3919 = vmatpush1.bf16.msra.mxu0 %v3385
        %3920 = vmatprep.subr.bf16.mxu0 0
        %3921 = vmatpush1.bf16.msra.mxu0 %v3384
        %3922 = vmatprep.subr.bf16.mxu0 0
        %3923 = vmatpush1.bf16.msra.mxu0 %v3383
        %3924 = vmatprep.subr.bf16.mxu0 0
        %3925 = vmatpush1.bf16.msra.mxu0 %v3382
        %3926 = vmatprep.subr.bf16.mxu0 0
        %3927 = vmatpush1.bf16.msra.mxu0 %v3381
        %3928 = vmatprep.subr.bf16.mxu0 0
        %3929 = vmatpush1.bf16.msra.mxu0 %v3380
        %3930 = vmatprep.subr.bf16.mxu0 0
        %3931 = vmatpush1.bf16.msra.mxu0 %v3379
        %3932 = vmatprep.subr.bf16.mxu0 0
        %3933 = vmatpush1.bf16.msra.mxu0 %v3378
        %3934 = vmatprep.subr.bf16.mxu0 0
        %3935 = vmatpush2.bf16.msra.mxu0 %v3393
        %3936 = vmatprep.subr.bf16.mxu0 0
        %3937 = vmatpush2.bf16.msra.mxu0 %v3392
        %3938 = vmatprep.subr.bf16.mxu0 0
        %3939 = vmatpush2.bf16.msra.mxu0 %v3391
        %3940 = vmatprep.subr.bf16.mxu0 0
        %3941 = vmatpush2.bf16.msra.mxu0 %v3390
        %3942 = vmatprep.subr.bf16.mxu0 0
        %3943 = vmatpush2.bf16.msra.mxu0 %v3389
        %3944 = vmatprep.subr.bf16.mxu0 0
        %3945 = vmatpush2.bf16.msra.mxu0 %v3388
        %3946 = vmatprep.subr.bf16.mxu0 0
        %3947 = vmatpush2.bf16.msra.mxu0 %v3387
        %3948 = vmatprep.subr.bf16.mxu0 0
        %3949 = vmatpush2.bf16.msra.mxu0 %v3386
        %3950 = vmatprep.mubr.bf16.mxu0 %v3001
        %3951 = vmatmul.mubr.bf16.gmra.mxu0 %v2985
        %v3952 = vpop.f32.mrf.mxu0
        %v3953 = vadd.f32 %v3912, %v3952
        %v3954 = vpop.f32.mrf.mxu0
        %v3955 = vpop.f32.mrf.mxu0
        %v3956 = vadd.f32 %v3915, %v3955
        %v3957 = vpop.f32.mrf.mxu0
        %3958 = vdwg.mxu0
        %3959 = vmatprep.subr.bf16.mxu0 0
        %3960 = vmatpush1.bf16.msra.mxu0 %v3401
        %3961 = vmatprep.subr.bf16.mxu0 0
        %3962 = vmatpush1.bf16.msra.mxu0 %v3400
        %3963 = vmatprep.subr.bf16.mxu0 0
        %3964 = vmatpush1.bf16.msra.mxu0 %v3399
        %3965 = vmatprep.subr.bf16.mxu0 0
        %3966 = vmatpush1.bf16.msra.mxu0 %v3398
        %3967 = vmatprep.subr.bf16.mxu0 0
        %3968 = vmatpush1.bf16.msra.mxu0 %v3397
        %3969 = vmatprep.subr.bf16.mxu0 0
        %3970 = vmatpush1.bf16.msra.mxu0 %v3396
        %3971 = vmatprep.subr.bf16.mxu0 0
        %3972 = vmatpush1.bf16.msra.mxu0 %v3395
        %3973 = vmatprep.subr.bf16.mxu0 0
        %3974 = vmatpush1.bf16.msra.mxu0 %v3394
        %3975 = vmatprep.subr.bf16.mxu0 0
        %3976 = vmatpush2.bf16.msra.mxu0 0
        %3977 = vmatprep.subr.bf16.mxu0 0
        %3978 = vmatpush2.bf16.msra.mxu0 0
        %3979 = vmatprep.subr.bf16.mxu0 0
        %3980 = vmatpush2.bf16.msra.mxu0 0
        %3981 = vmatprep.subr.bf16.mxu0 0
        %3982 = vmatpush2.bf16.msra.mxu0 0
        %3983 = vmatprep.subr.bf16.mxu0 0
        %3984 = vmatpush2.bf16.msra.mxu0 0
        %3985 = vmatprep.subr.bf16.mxu0 0
        %3986 = vmatpush2.bf16.msra.mxu0 0
        %3987 = vmatprep.subr.bf16.mxu0 0
        %3988 = vmatpush2.bf16.msra.mxu0 0
        %3989 = vmatprep.subr.bf16.mxu0 0
        %3990 = vmatpush2.bf16.msra.mxu0 0
        %3991 = vmatprep.mubr.bf16.mxu0 0
        %3992 = vmatmul.mubr.bf16.gmra.mxu0 %v3005
        %v3993 = vpop.f32.mrf.mxu0
        %v3994 = vadd.f32 %v3953, %v3993
        %v3995 = vpop.f32.mrf.mxu0
        %v3996 = vpop.f32.mrf.mxu0
        %v3997 = vadd.f32 %v3956, %v3996
        %v3998 = vpop.f32.mrf.mxu0
        %3999 = vdwg.mxu0
        %v4002 = vunpack.c.l.b16 %v3833
        %v4003 = vunpack.c.l.b16 %v3834
        %v4004 = vpack.c.b16 %v4003, %v4002
        %v4007 = vunpack.c.l.b16 %v3835
        %v4008 = vpack.c.b16 %v4007, %v4007
        %v4010 = vshrl.u32 %v4004, 16
        %v4012 = vshll.u32 %v4004, 16
        %v4014 = vrot.slane %v4012, 1
        %v4015 = vor.u32 %v4010, %v4014
        %v4017 = vshll.u32 %v4008, 16
        %v4019 = vrot.slane %v4017, 1
        %v4020 = vsel %vm2914, %v4015, %v4019
        %v4022 = vrot.slane %v4004, 1
        %v4023 = vrot.slane %v4008, 1
        %v4024 = vsel %vm2928, %v4022, %v4023
        %4026 = vmatprep.subr.bf16.mxu0 0
        %4027 = vmatpush1.bf16.msra.mxu0 %v3686
        %4028 = vmatprep.subr.bf16.mxu0 0
        %4029 = vmatpush1.bf16.msra.mxu0 %v3685
        %4030 = vmatprep.subr.bf16.mxu0 0
        %4031 = vmatpush1.bf16.msra.mxu0 %v3684
        %4032 = vmatprep.subr.bf16.mxu0 0
        %4033 = vmatpush1.bf16.msra.mxu0 %v3683
        %4034 = vmatprep.subr.bf16.mxu0 0
        %4035 = vmatpush1.bf16.msra.mxu0 %v3682
        %4036 = vmatprep.subr.bf16.mxu0 0
        %4037 = vmatpush1.bf16.msra.mxu0 %v3681
        %4038 = vmatprep.subr.bf16.mxu0 0
        %4039 = vmatpush1.bf16.msra.mxu0 %v3680
        %4040 = vmatprep.subr.bf16.mxu0 0
        %4041 = vmatpush1.bf16.msra.mxu0 %v3679
        %4042 = vmatprep.subr.bf16.mxu0 0
        %4043 = vmatpush2.bf16.msra.mxu0 %v3694
        %4044 = vmatprep.subr.bf16.mxu0 0
        %4045 = vmatpush2.bf16.msra.mxu0 %v3693
        %4046 = vmatprep.subr.bf16.mxu0 0
        %4047 = vmatpush2.bf16.msra.mxu0 %v3692
        %4048 = vmatprep.subr.bf16.mxu0 0
        %4049 = vmatpush2.bf16.msra.mxu0 %v3691
        %4050 = vmatprep.subr.bf16.mxu0 0
        %4051 = vmatpush2.bf16.msra.mxu0 %v3690
        %4052 = vmatprep.subr.bf16.mxu0 0
        %4053 = vmatpush2.bf16.msra.mxu0 %v3689
        %4054 = vmatprep.subr.bf16.mxu0 0
        %4055 = vmatpush2.bf16.msra.mxu0 %v3688
        %4056 = vmatprep.subr.bf16.mxu0 0
        %4057 = vmatpush2.bf16.msra.mxu0 %v3687
        %4058 = vmatprep.mubr.bf16.mxu0 %v4020
        %4059 = vmatmul.mubr.bf16.gmra.mxu0 %v4004
        %v4060 = vpop.f32.mrf.mxu0
        %v4061 = vadd.f32 0.0, %v4060
        %v4062 = vpop.f32.mrf.mxu0
        %v4063 = vpop.f32.mrf.mxu0
        %v4064 = vadd.f32 0.0, %v4063
        %v4065 = vpop.f32.mrf.mxu0
        %4066 = vdwg.mxu0
        %4067 = vmatprep.subr.bf16.mxu0 0
        %4068 = vmatpush1.bf16.msra.mxu0 %v3702
        %4069 = vmatprep.subr.bf16.mxu0 0
        %4070 = vmatpush1.bf16.msra.mxu0 %v3701
        %4071 = vmatprep.subr.bf16.mxu0 0
        %4072 = vmatpush1.bf16.msra.mxu0 %v3700
        %4073 = vmatprep.subr.bf16.mxu0 0
        %4074 = vmatpush1.bf16.msra.mxu0 %v3699
        %4075 = vmatprep.subr.bf16.mxu0 0
        %4076 = vmatpush1.bf16.msra.mxu0 %v3698
        %4077 = vmatprep.subr.bf16.mxu0 0
        %4078 = vmatpush1.bf16.msra.mxu0 %v3697
        %4079 = vmatprep.subr.bf16.mxu0 0
        %4080 = vmatpush1.bf16.msra.mxu0 %v3696
        %4081 = vmatprep.subr.bf16.mxu0 0
        %4082 = vmatpush1.bf16.msra.mxu0 %v3695
        %4083 = vmatprep.subr.bf16.mxu0 0
        %4084 = vmatpush2.bf16.msra.mxu0 0
        %4085 = vmatprep.subr.bf16.mxu0 0
        %4086 = vmatpush2.bf16.msra.mxu0 0
        %4087 = vmatprep.subr.bf16.mxu0 0
        %4088 = vmatpush2.bf16.msra.mxu0 0
        %4089 = vmatprep.subr.bf16.mxu0 0
        %4090 = vmatpush2.bf16.msra.mxu0 0
        %4091 = vmatprep.subr.bf16.mxu0 0
        %4092 = vmatpush2.bf16.msra.mxu0 0
        %4093 = vmatprep.subr.bf16.mxu0 0
        %4094 = vmatpush2.bf16.msra.mxu0 0
        %4095 = vmatprep.subr.bf16.mxu0 0
        %4096 = vmatpush2.bf16.msra.mxu0 0
        %4097 = vmatprep.subr.bf16.mxu0 0
        %4098 = vmatpush2.bf16.msra.mxu0 0
        %4099 = vmatprep.mubr.bf16.mxu0 0
        %4100 = vmatmul.mubr.bf16.gmra.mxu0 %v4024
        %v4101 = vpop.f32.mrf.mxu0
        %v4102 = vadd.f32 %v4061, %v4101
        %v4103 = vpop.f32.mrf.mxu0
        %v4104 = vpop.f32.mrf.mxu0
        %v4105 = vadd.f32 %v4064, %v4104
        %v4106 = vpop.f32.mrf.mxu0
        %4107 = vdwg.mxu0
        %v4108 = vadd.f32 %v3994, %v4102
        %v4109 = vadd.f32 %v3997, %v4105
        %v4110 = vmul.f32 %v4108, %v3815
        %v4111 = vmul.f32 %v4109, %v3815
        %v4112 = vadd.f32 %v4110, %v3823
        %v4113 = vadd.f32 %v4111, %v3823
        %v4114 = vmax.f32 %v4112, 0.0
        %v4115 = vmax.f32 %v4113, 0.0
        %v4116 = vmax.f32 %v3827, %v4114
        %v4117 = vmax.f32 %v3828, %v4115
        %4118 = vst [vmem:[#allocation5] sm:$0xff] %v4116
        %4119 = vst [vmem:[#allocation5 + $0x8] sm:$0xff] %v4117
        %v4120 = vld [vmem:[#allocation5] ss:$2 sm:$0xff]
        %s4121 = scalar_lea.vmem [#allocation5], 1
        %v4122 = vld [vmem:[%s4121] ss:$2 sm:$0xff]
        %v4123 = vmax.f32 %v4120, %v4122
        %v4125 = vrot.slane %v4123, 7
        %vm4127 = vcmask 1040384
        %v4128 = vsel %vm4127, 0.0, %v4125
        %v4129 = vsel %vm4127, %v4125, 0.0
        %v4130 = vpack.c.bf16 %v4129, %v4128
        %s4131 = sadd.s32 %s2879, 1
        %v4133 = vunpack.c.l.b16 %v4130
        %v4134 = vunpack.c.h.b16 %v4130
        %v4135 = vpack.c.b16 %v4133, %v4133
        %v4136 = vpack.c.b16 %v4134, %v4134
        %s4139 = smul.u32 %s4131, 2
        %s4140 = smul.addr %s4139, 4
        %s4141 = scalar_lea.vmem [#allocation4], %s4140
        %4142 = vst [vmem:[%s4141] sm:$0xf] %v4135
        %4143 = vst [vmem:[%s4141 + $0x4] sm:$0x1] %v4136
      $region79: #{conv_model_forward.2} parent=59 // loop_footer
        %s2883 = sadd.s32 1, %s2879
      $region80: #{conv_model_forward.2} parent=59 // loop_footer_branch
        %2878 = sbr.rel target = $region76
      $region81: #{conv_model_forward.2} parent=59 // loop_exit
        _
      %s4144 = scalar_lea.vmem [#allocation4], 8
      %v4145 = vld [vmem:[%s4144] sm:$0xf]
      %v4146 = vld [vmem:[%s4144 + $0x4] sm:$0x1]
      %v4147 = vld [vmem:[%s4144 + $0x8] sm:$0xf]
      %v4148 = vld [vmem:[%s4144 + $0xc] sm:$0x1]
      %v4149 = vld [vmem:[%s4144 + $0x10] sm:$0xf]
      %v4150 = vld [vmem:[%s4144 + $0x14] sm:$0x1]
      %v4151 = vld [vmem:[%s4144 + $0x18] sm:$0xf]
      %v4152 = vld [vmem:[%s4144 + $0x1c] sm:$0x1]
      %vm4153 = vsmask.f32 3328
      %vm4154 = vsmask.f32 7440
      %vm4155 = vmor %vm4153, %vm4154
      %v4157 = vshrl.u32 %v4145, 16
      %v4159 = vrot.slane %v4157, 4
      %v4160 = vshll.u32 %v4145, 16
      %v4162 = vrot.slane %v4160, 5
      %v4163 = vor.u32 %v4159, %v4162
      %v4164 = vrot.slane %v4163, 4
      %v4166 = vshll.u32 %v4146, 16
      %v4168 = vrot.slane %v4166, 5
      %v4169 = vsel %vm4155, %v4164, %v4168
      %v4171 = vshrl.u32 %v4147, 16
      %v4173 = vrot.slane %v4171, 4
      %v4174 = vshll.u32 %v4147, 16
      %v4176 = vrot.slane %v4174, 5
      %v4177 = vor.u32 %v4173, %v4176
      %v4178 = vrot.slane %v4177, 4
      %v4180 = vshll.u32 %v4148, 16
      %v4182 = vrot.slane %v4180, 5
      %v4183 = vsel %vm4155, %v4178, %v4182
      %v4185 = vshrl.u32 %v4149, 16
      %v4187 = vrot.slane %v4185, 4
      %v4188 = vshll.u32 %v4149, 16
      %v4190 = vrot.slane %v4188, 5
      %v4191 = vor.u32 %v4187, %v4190
      %v4192 = vrot.slane %v4191, 4
      %v4194 = vshll.u32 %v4150, 16
      %v4196 = vrot.slane %v4194, 5
      %v4197 = vsel %vm4155, %v4192, %v4196
      %v4199 = vshrl.u32 %v4151, 16
      %v4201 = vrot.slane %v4199, 4
      %v4202 = vshll.u32 %v4151, 16
      %v4204 = vrot.slane %v4202, 5
      %v4205 = vor.u32 %v4201, %v4204
      %v4206 = vrot.slane %v4205, 4
      %v4208 = vshll.u32 %v4152, 16
      %v4210 = vrot.slane %v4208, 5
      %v4211 = vsel %vm4155, %v4206, %v4210
      %4216 = vst [vmem:[%s359] sm:$0xf] %v4169
      %4217 = vst [vmem:[%s359 + $0x4] sm:$0xf] %v4183
      %4218 = vst [vmem:[%s359 + $0x8] sm:$0xf] %v4197
      %4219 = vst [vmem:[%s359 + $0xc] sm:$0xf] %v4211
      %p4220 = scmp.lt.s32.totalorder %s21, 1
      %s4221 = scalar_select %p4220, %s21, 1
      %s4222 = smul.addr %s4221, 4
      %s4223 = smul.addr %s4222, 4
      %s4224 = scalar_lea.vmem %s10, %s4223
      // Predicated region
      $region82: #{conv_model_forward.2} parent=59 // pred_check
        %p4225 = pneg %p254
      $region83: #{conv_model_forward.2} parent=59 // pred_check_branch
        %4227 = sbr.rel (%p4225) target = $region85
      $region84: #{conv_model_forward.2} parent=59 // pred_region
        _
      $region85: #{conv_model_forward.2} parent=59 // pred_fallthru
        _
    $region60: #{conv_model_forward.2} parent=5 // pred_fallthru
      _
    %p4228 = scmp.le.s32.totalorder 2, %s16
    // Predicated region
    $region86: #{conv_model_forward.2} parent=5 // pred_check
      %p4229 = pneg %p4228
    $region87: #{conv_model_forward.2} parent=5 // pred_check_branch
      %4231 = sbr.rel (%p4229) target = $region89
    $region88: #{conv_model_forward.2} parent=5 // pred_region
      %s4232 = ssub.s32 %s16, 2
      // Predicated region
      $region90: #{conv_model_forward.2} parent=88 // pred_check
        %p4233 = pneg %p260
      $region91: #{conv_model_forward.2} parent=88 // pred_check_branch
        %4235 = sbr.rel (%p4233) target = $region93
      $region92: #{conv_model_forward.2} parent=88 // pred_region
        %p4236 = scmp.lt.s32.totalorder %s22, 1
        %s4237 = scalar_select %p4236, %s22, 1
        %s4238 = smul.addr %s4237, 4
        %s4239 = smul.addr %s4238, 4
        %s4240 = scalar_lea.vmem %s10, %s4239
      $region93: #{conv_model_forward.2} parent=88 // pred_fallthru
        _
    $region89: #{conv_model_forward.2} parent=5 // pred_fallthru
      _
  $region6: #{conv_model_forward.2} parent=0 // loop_footer
    %s20 = sadd.s32 1, %s16
  $region7: #{conv_model_forward.2} parent=0 // loop_footer_branch
    %15 = sbr.rel target = $region3
  $region8: #{conv_model_forward.2} parent=0 // loop_exit
    _

// kernel: conv_model_forward.3
$region0: #{conv_model_forward.3}
  #allocation0 [shape = 'u32[]', space=smem, size = 0x4, offset = 0x4, fixed_abs, tag = 'smem constant byte address 0x4 - core index']
  #allocation1 [shape = 'u32[144,128]{1,0:T(1,128)}', space=vmem, size = 0x12000, scoped, tag = 'internal scratch']
  %s0 = inlined_call_operand.vmem [shape: bf16[2,4096], index: 0, kind: input, shape index: {}]
  %s1 = inlined_call_operand.vmem [shape: bf16[4096,256], index: 1, kind: input, shape index: {}]
  %s2 = inlined_call_operand.vmem [shape: f32[1,256], index: 2, kind: input, shape index: {}]
  %s3 = inlined_call_operand.vmem [shape: bf16[256,12], index: 3, kind: input, shape index: {}]
  %s4 = inlined_call_operand.vmem [shape: f32[1,12], index: 4, kind: input, shape index: {}]
  %s5 = inlined_call_operand.hbm [shape: f32[2,12], index: 5, kind: output, shape index: {}]
  %s6 = sld [smem:[#allocation0]]
  $region30: #{conv_model_forward.3} parent=0
    _
  %s8 = ssub.s32 1, %s6
  %s9 = scalar_select 0, %s8, %s6
  $region1: #{conv_model_forward.3} parent=0
    #allocation2 [shape = 'u8[1024]{0}', space=vmem, size = 0x400, scoped, tag = 'output window, operand 0, single buffered']
    #allocation3 [shape = 's32[1]{0}', space=sflag, size = 0x4, scoped, tag = 'scoped memory for conv_model_forward.3']
    %10 = vsyncpa [#allocation3], 0
    // Predicated region
    $region2: #{conv_model_forward.3} parent=1 // pred_check
      _
    $region3: #{conv_model_forward.3} parent=1 // pred_check_branch
      %12 = sbr.rel (0) target = $region5
    $region4: #{conv_model_forward.3} parent=1 // pred_region
      _
    $region5: #{conv_model_forward.3} parent=1 // pred_fallthru
      _
    // Predicated region
    $region6: #{conv_model_forward.3} parent=1 // pred_check
      _
    $region7: #{conv_model_forward.3} parent=1 // pred_check_branch
      %14 = sbr.rel (0) target = $region9
    $region8: #{conv_model_forward.3} parent=1 // pred_region
      _
    $region9: #{conv_model_forward.3} parent=1 // pred_fallthru
      _
    // Predicated region
    $region10: #{conv_model_forward.3} parent=1 // pred_check
      _
    $region11: #{conv_model_forward.3} parent=1 // pred_check_branch
      %16 = sbr.rel (0) target = $region13
    $region12: #{conv_model_forward.3} parent=1 // pred_region
      _
    $region13: #{conv_model_forward.3} parent=1 // pred_fallthru
      _
    // Predicated region
    $region14: #{conv_model_forward.3} parent=1 // pred_check
      _
    $region15: #{conv_model_forward.3} parent=1 // pred_check_branch
      %18 = sbr.rel (0) target = $region17
    $region16: #{conv_model_forward.3} parent=1 // pred_region
      _
    $region17: #{conv_model_forward.3} parent=1 // pred_fallthru
      _
    // Predicated region
    $region18: #{conv_model_forward.3} parent=1 // pred_check
      _
    $region19: #{conv_model_forward.3} parent=1 // pred_check_branch
      %20 = sbr.rel (0) target = $region21
    $region20: #{conv_model_forward.3} parent=1 // pred_region
      _
    $region21: #{conv_model_forward.3} parent=1 // pred_fallthru
      _
    %v22 = vld [vmem:[%s0] sm:$0xff]
    %v23 = vld [vmem:[%s0 + $0x8] sm:$0xff]
    %v24 = vld [vmem:[%s0 + $0x10] sm:$0xff]
    %v25 = vld [vmem:[%s0 + $0x18] sm:$0xff]
    %v26 = vld [vmem:[%s1] sm:$0xff]
    %v27 = vld [vmem:[%s1 + $0x8] sm:$0xff]
    %v28 = vld [vmem:[%s1 + $0x10] sm:$0xff]
    %v29 = vld [vmem:[%s1 + $0x18] sm:$0xff]
    %v30 = vld [vmem:[%s1 + $0x20] sm:$0xff]
    %v31 = vld [vmem:[%s1 + $0x28] sm:$0xff]
    %v32 = vld [vmem:[%s1 + $0x30] sm:$0xff]
    %v33 = vld [vmem:[%s1 + $0x38] sm:$0xff]
    %v34 = vld [vmem:[%s1 + $0x40] sm:$0xff]
    %v35 = vld [vmem:[%s1 + $0x48] sm:$0xff]
    %v36 = vld [vmem:[%s1 + $0x50] sm:$0xff]
    %v37 = vld [vmem:[%s1 + $0x58] sm:$0xff]
    %v38 = vld [vmem:[%s1 + $0x60] sm:$0xff]
    %v39 = vld [vmem:[%s1 + $0x68] sm:$0xff]
    %v40 = vld [vmem:[%s1 + $0x70] sm:$0xff]
    %v41 = vld [vmem:[%s1 + $0x78] sm:$0xff]
    %v42 = vld [vmem:[%s1 + $0x80] sm:$0xff]
    %v43 = vld [vmem:[%s1 + $0x88] sm:$0xff]
    %v44 = vld [vmem:[%s1 + $0x90] sm:$0xff]
    %v45 = vld [vmem:[%s1 + $0x98] sm:$0xff]
    %v46 = vld [vmem:[%s1 + $0xa0] sm:$0xff]
    %v47 = vld [vmem:[%s1 + $0xa8] sm:$0xff]
    %v48 = vld [vmem:[%s1 + $0xb0] sm:$0xff]
    %v49 = vld [vmem:[%s1 + $0xb8] sm:$0xff]
    %v50 = vld [vmem:[%s1 + $0xc0] sm:$0xff]
    %v51 = vld [vmem:[%s1 + $0xc8] sm:$0xff]
    %v52 = vld [vmem:[%s1 + $0xd0] sm:$0xff]
    %v53 = vld [vmem:[%s1 + $0xd8] sm:$0xff]
    %v54 = vld [vmem:[%s1 + $0xe0] sm:$0xff]
    %v55 = vld [vmem:[%s1 + $0xe8] sm:$0xff]
    %v56 = vld [vmem:[%s1 + $0xf0] sm:$0xff]
    %v57 = vld [vmem:[%s1 + $0xf8] sm:$0xff]
    %v58 = vld [vmem:[%s1 + $0x100] sm:$0xff]
    %v59 = vld [vmem:[%s1 + $0x108] sm:$0xff]
    %v60 = vld [vmem:[%s1 + $0x110] sm:$0xff]
    %v61 = vld [vmem:[%s1 + $0x118] sm:$0xff]
    %v62 = vld [vmem:[%s1 + $0x120] sm:$0xff]
    %v63 = vld [vmem:[%s1 + $0x128] sm:$0xff]
    %v64 = vld [vmem:[%s1 + $0x130] sm:$0xff]
    %v65 = vld [vmem:[%s1 + $0x138] sm:$0xff]
    %v66 = vld [vmem:[%s1 + $0x140] sm:$0xff]
    %v67 = vld [vmem:[%s1 + $0x148] sm:$0xff]
    %v68 = vld [vmem:[%s1 + $0x150] sm:$0xff]
    %v69 = vld [vmem:[%s1 + $0x158] sm:$0xff]
    %v70 = vld [vmem:[%s1 + $0x160] sm:$0xff]
    %v71 = vld [vmem:[%s1 + $0x168] sm:$0xff]
    %v72 = vld [vmem:[%s1 + $0x170] sm:$0xff]
    %v73 = vld [vmem:[%s1 + $0x178] sm:$0xff]
    %v74 = vld [vmem:[%s1 + $0x180] sm:$0xff]
    %v75 = vld [vmem:[%s1 + $0x188] sm:$0xff]
    %v76 = vld [vmem:[%s1 + $0x190] sm:$0xff]
    %v77 = vld [vmem:[%s1 + $0x198] sm:$0xff]
    %v78 = vld [vmem:[%s1 + $0x1a0] sm:$0xff]
    %v79 = vld [vmem:[%s1 + $0x1a8] sm:$0xff]
    %v80 = vld [vmem:[%s1 + $0x1b0] sm:$0xff]
    %v81 = vld [vmem:[%s1 + $0x1b8] sm:$0xff]
    %v82 = vld [vmem:[%s1 + $0x1c0] sm:$0xff]
    %v83 = vld [vmem:[%s1 + $0x1c8] sm:$0xff]
    %v84 = vld [vmem:[%s1 + $0x1d0] sm:$0xff]
    %v85 = vld [vmem:[%s1 + $0x1d8] sm:$0xff]
    %v86 = vld [vmem:[%s1 + $0x1e0] sm:$0xff]
    %v87 = vld [vmem:[%s1 + $0x1e8] sm:$0xff]
    %v88 = vld [vmem:[%s1 + $0x1f0] sm:$0xff]
    %v89 = vld [vmem:[%s1 + $0x1f8] sm:$0xff]
    %v90 = vld [vmem:[%s1 + $0x200] sm:$0xff]
    %v91 = vld [vmem:[%s1 + $0x208] sm:$0xff]
    %v92 = vld [vmem:[%s1 + $0x210] sm:$0xff]
    %v93 = vld [vmem:[%s1 + $0x218] sm:$0xff]
    %v94 = vld [vmem:[%s1 + $0x220] sm:$0xff]
    %v95 = vld [vmem:[%s1 + $0x228] sm:$0xff]
    %v96 = vld [vmem:[%s1 + $0x230] sm:$0xff]
    %v97 = vld [vmem:[%s1 + $0x238] sm:$0xff]
    %v98 = vld [vmem:[%s1 + $0x240] sm:$0xff]
    %v99 = vld [vmem:[%s1 + $0x248] sm:$0xff]
    %v100 = vld [vmem:[%s1 + $0x250] sm:$0xff]
    %v101 = vld [vmem:[%s1 + $0x258] sm:$0xff]
    %v102 = vld [vmem:[%s1 + $0x260] sm:$0xff]
    %v103 = vld [vmem:[%s1 + $0x268] sm:$0xff]
    %v104 = vld [vmem:[%s1 + $0x270] sm:$0xff]
    %v105 = vld [vmem:[%s1 + $0x278] sm:$0xff]
    %v106 = vld [vmem:[%s1 + $0x280] sm:$0xff]
    %v107 = vld [vmem:[%s1 + $0x288] sm:$0xff]
    %v108 = vld [vmem:[%s1 + $0x290] sm:$0xff]
    %v109 = vld [vmem:[%s1 + $0x298] sm:$0xff]
    %v110 = vld [vmem:[%s1 + $0x2a0] sm:$0xff]
    %v111 = vld [vmem:[%s1 + $0x2a8] sm:$0xff]
    %v112 = vld [vmem:[%s1 + $0x2b0] sm:$0xff]
    %v113 = vld [vmem:[%s1 + $0x2b8] sm:$0xff]
    %v114 = vld [vmem:[%s1 + $0x2c0] sm:$0xff]
    %v115 = vld [vmem:[%s1 + $0x2c8] sm:$0xff]
    %v116 = vld [vmem:[%s1 + $0x2d0] sm:$0xff]
    %v117 = vld [vmem:[%s1 + $0x2d8] sm:$0xff]
    %v118 = vld [vmem:[%s1 + $0x2e0] sm:$0xff]
    %v119 = vld [vmem:[%s1 + $0x2e8] sm:$0xff]
    %v120 = vld [vmem:[%s1 + $0x2f0] sm:$0xff]
    %v121 = vld [vmem:[%s1 + $0x2f8] sm:$0xff]
    %v122 = vld [vmem:[%s1 + $0x300] sm:$0xff]
    %v123 = vld [vmem:[%s1 + $0x308] sm:$0xff]
    %v124 = vld [vmem:[%s1 + $0x310] sm:$0xff]
    %v125 = vld [vmem:[%s1 + $0x318] sm:$0xff]
    %v126 = vld [vmem:[%s1 + $0x320] sm:$0xff]
    %v127 = vld [vmem:[%s1 + $0x328] sm:$0xff]
    %v128 = vld [vmem:[%s1 + $0x330] sm:$0xff]
    %v129 = vld [vmem:[%s1 + $0x338] sm:$0xff]
    %v130 = vld [vmem:[%s1 + $0x340] sm:$0xff]
    %v131 = vld [vmem:[%s1 + $0x348] sm:$0xff]
    %v132 = vld [vmem:[%s1 + $0x350] sm:$0xff]
    %v133 = vld [vmem:[%s1 + $0x358] sm:$0xff]
    %v134 = vld [vmem:[%s1 + $0x360] sm:$0xff]
    %v135 = vld [vmem:[%s1 + $0x368] sm:$0xff]
    %v136 = vld [vmem:[%s1 + $0x370] sm:$0xff]
    %v137 = vld [vmem:[%s1 + $0x378] sm:$0xff]
    %v138 = vld [vmem:[%s1 + $0x380] sm:$0xff]
    %v139 = vld [vmem:[%s1 + $0x388] sm:$0xff]
    %v140 = vld [vmem:[%s1 + $0x390] sm:$0xff]
    %v141 = vld [vmem:[%s1 + $0x398] sm:$0xff]
    %v142 = vld [vmem:[%s1 + $0x3a0] sm:$0xff]
    %v143 = vld [vmem:[%s1 + $0x3a8] sm:$0xff]
    %v144 = vld [vmem:[%s1 + $0x3b0] sm:$0xff]
    %v145 = vld [vmem:[%s1 + $0x3b8] sm:$0xff]
    %v146 = vld [vmem:[%s1 + $0x3c0] sm:$0xff]
    %v147 = vld [vmem:[%s1 + $0x3c8] sm:$0xff]
    %v148 = vld [vmem:[%s1 + $0x3d0] sm:$0xff]
    %v149 = vld [vmem:[%s1 + $0x3d8] sm:$0xff]
    %v150 = vld [vmem:[%s1 + $0x3e0] sm:$0xff]
    %v151 = vld [vmem:[%s1 + $0x3e8] sm:$0xff]
    %v152 = vld [vmem:[%s1 + $0x3f0] sm:$0xff]
    %v153 = vld [vmem:[%s1 + $0x3f8] sm:$0xff]
    %v154 = vld [vmem:[%s1 + $0x400] sm:$0xff]
    %v155 = vld [vmem:[%s1 + $0x408] sm:$0xff]
    %v156 = vld [vmem:[%s1 + $0x410] sm:$0xff]
    %v157 = vld [vmem:[%s1 + $0x418] sm:$0xff]
    %v158 = vld [vmem:[%s1 + $0x420] sm:$0xff]
    %v159 = vld [vmem:[%s1 + $0x428] sm:$0xff]
    %v160 = vld [vmem:[%s1 + $0x430] sm:$0xff]
    %v161 = vld [vmem:[%s1 + $0x438] sm:$0xff]
    %v162 = vld [vmem:[%s1 + $0x440] sm:$0xff]
    %v163 = vld [vmem:[%s1 + $0x448] sm:$0xff]
    %v164 = vld [vmem:[%s1 + $0x450] sm:$0xff]
    %v165 = vld [vmem:[%s1 + $0x458] sm:$0xff]
    %v166 = vld [vmem:[%s1 + $0x460] sm:$0xff]
    %v167 = vld [vmem:[%s1 + $0x468] sm:$0xff]
    %v168 = vld [vmem:[%s1 + $0x470] sm:$0xff]
    %v169 = vld [vmem:[%s1 + $0x478] sm:$0xff]
    %v170 = vld [vmem:[%s1 + $0x480] sm:$0xff]
    %v171 = vld [vmem:[%s1 + $0x488] sm:$0xff]
    %v172 = vld [vmem:[%s1 + $0x490] sm:$0xff]
    %v173 = vld [vmem:[%s1 + $0x498] sm:$0xff]
    %v174 = vld [vmem:[%s1 + $0x4a0] sm:$0xff]
    %v175 = vld [vmem:[%s1 + $0x4a8] sm:$0xff]
    %v176 = vld [vmem:[%s1 + $0x4b0] sm:$0xff]
    %v177 = vld [vmem:[%s1 + $0x4b8] sm:$0xff]
    %v178 = vld [vmem:[%s1 + $0x4c0] sm:$0xff]
    %v179 = vld [vmem:[%s1 + $0x4c8] sm:$0xff]
    %v180 = vld [vmem:[%s1 + $0x4d0] sm:$0xff]
    %v181 = vld [vmem:[%s1 + $0x4d8] sm:$0xff]
    %v182 = vld [vmem:[%s1 + $0x4e0] sm:$0xff]
    %v183 = vld [vmem:[%s1 + $0x4e8] sm:$0xff]
    %v184 = vld [vmem:[%s1 + $0x4f0] sm:$0xff]
    %v185 = vld [vmem:[%s1 + $0x4f8] sm:$0xff]
    %v186 = vld [vmem:[%s1 + $0x500] sm:$0xff]
    %v187 = vld [vmem:[%s1 + $0x508] sm:$0xff]
    %v188 = vld [vmem:[%s1 + $0x510] sm:$0xff]
    %v189 = vld [vmem:[%s1 + $0x518] sm:$0xff]
    %v190 = vld [vmem:[%s1 + $0x520] sm:$0xff]
    %v191 = vld [vmem:[%s1 + $0x528] sm:$0xff]
    %v192 = vld [vmem:[%s1 + $0x530] sm:$0xff]
    %v193 = vld [vmem:[%s1 + $0x538] sm:$0xff]
    %v194 = vld [vmem:[%s1 + $0x540] sm:$0xff]
    %v195 = vld [vmem:[%s1 + $0x548] sm:$0xff]
    %v196 = vld [vmem:[%s1 + $0x550] sm:$0xff]
    %v197 = vld [vmem:[%s1 + $0x558] sm:$0xff]
    %v198 = vld [vmem:[%s1 + $0x560] sm:$0xff]
    %v199 = vld [vmem:[%s1 + $0x568] sm:$0xff]
    %v200 = vld [vmem:[%s1 + $0x570] sm:$0xff]
    %v201 = vld [vmem:[%s1 + $0x578] sm:$0xff]
    %v202 = vld [vmem:[%s1 + $0x580] sm:$0xff]
    %v203 = vld [vmem:[%s1 + $0x588] sm:$0xff]
    %v204 = vld [vmem:[%s1 + $0x590] sm:$0xff]
    %v205 = vld [vmem:[%s1 + $0x598] sm:$0xff]
    %v206 = vld [vmem:[%s1 + $0x5a0] sm:$0xff]
    %v207 = vld [vmem:[%s1 + $0x5a8] sm:$0xff]
    %v208 = vld [vmem:[%s1 + $0x5b0] sm:$0xff]
    %v209 = vld [vmem:[%s1 + $0x5b8] sm:$0xff]
    %v210 = vld [vmem:[%s1 + $0x5c0] sm:$0xff]
    %v211 = vld [vmem:[%s1 + $0x5c8] sm:$0xff]
    %v212 = vld [vmem:[%s1 + $0x5d0] sm:$0xff]
    %v213 = vld [vmem:[%s1 + $0x5d8] sm:$0xff]
    %v214 = vld [vmem:[%s1 + $0x5e0] sm:$0xff]
    %v215 = vld [vmem:[%s1 + $0x5e8] sm:$0xff]
    %v216 = vld [vmem:[%s1 + $0x5f0] sm:$0xff]
    %v217 = vld [vmem:[%s1 + $0x5f8] sm:$0xff]
    %v218 = vld [vmem:[%s1 + $0x600] sm:$0xff]
    %v219 = vld [vmem:[%s1 + $0x608] sm:$0xff]
    %v220 = vld [vmem:[%s1 + $0x610] sm:$0xff]
    %v221 = vld [vmem:[%s1 + $0x618] sm:$0xff]
    %v222 = vld [vmem:[%s1 + $0x620] sm:$0xff]
    %v223 = vld [vmem:[%s1 + $0x628] sm:$0xff]
    %v224 = vld [vmem:[%s1 + $0x630] sm:$0xff]
    %v225 = vld [vmem:[%s1 + $0x638] sm:$0xff]
    %v226 = vld [vmem:[%s1 + $0x640] sm:$0xff]
    %v227 = vld [vmem:[%s1 + $0x648] sm:$0xff]
    %v228 = vld [vmem:[%s1 + $0x650] sm:$0xff]
    %v229 = vld [vmem:[%s1 + $0x658] sm:$0xff]
    %v230 = vld [vmem:[%s1 + $0x660] sm:$0xff]
    %v231 = vld [vmem:[%s1 + $0x668] sm:$0xff]
    %v232 = vld [vmem:[%s1 + $0x670] sm:$0xff]
    %v233 = vld [vmem:[%s1 + $0x678] sm:$0xff]
    %v234 = vld [vmem:[%s1 + $0x680] sm:$0xff]
    %v235 = vld [vmem:[%s1 + $0x688] sm:$0xff]
    %v236 = vld [vmem:[%s1 + $0x690] sm:$0xff]
    %v237 = vld [vmem:[%s1 + $0x698] sm:$0xff]
    %v238 = vld [vmem:[%s1 + $0x6a0] sm:$0xff]
    %v239 = vld [vmem:[%s1 + $0x6a8] sm:$0xff]
    %v240 = vld [vmem:[%s1 + $0x6b0] sm:$0xff]
    %v241 = vld [vmem:[%s1 + $0x6b8] sm:$0xff]
    %v242 = vld [vmem:[%s1 + $0x6c0] sm:$0xff]
    %v243 = vld [vmem:[%s1 + $0x6c8] sm:$0xff]
    %v244 = vld [vmem:[%s1 + $0x6d0] sm:$0xff]
    %v245 = vld [vmem:[%s1 + $0x6d8] sm:$0xff]
    %v246 = vld [vmem:[%s1 + $0x6e0] sm:$0xff]
    %v247 = vld [vmem:[%s1 + $0x6e8] sm:$0xff]
    %v248 = vld [vmem:[%s1 + $0x6f0] sm:$0xff]
    %v249 = vld [vmem:[%s1 + $0x6f8] sm:$0xff]
    %v250 = vld [vmem:[%s1 + $0x700] sm:$0xff]
    %v251 = vld [vmem:[%s1 + $0x708] sm:$0xff]
    %v252 = vld [vmem:[%s1 + $0x710] sm:$0xff]
    %v253 = vld [vmem:[%s1 + $0x718] sm:$0xff]
    %v254 = vld [vmem:[%s1 + $0x720] sm:$0xff]
    %v255 = vld [vmem:[%s1 + $0x728] sm:$0xff]
    %v256 = vld [vmem:[%s1 + $0x730] sm:$0xff]
    %v257 = vld [vmem:[%s1 + $0x738] sm:$0xff]
    %v258 = vld [vmem:[%s1 + $0x740] sm:$0xff]
    %v259 = vld [vmem:[%s1 + $0x748] sm:$0xff]
    %v260 = vld [vmem:[%s1 + $0x750] sm:$0xff]
    %v261 = vld [vmem:[%s1 + $0x758] sm:$0xff]
    %v262 = vld [vmem:[%s1 + $0x760] sm:$0xff]
    %v263 = vld [vmem:[%s1 + $0x768] sm:$0xff]
    %v264 = vld [vmem:[%s1 + $0x770] sm:$0xff]
    %v265 = vld [vmem:[%s1 + $0x778] sm:$0xff]
    %v266 = vld [vmem:[%s1 + $0x780] sm:$0xff]
    %v267 = vld [vmem:[%s1 + $0x788] sm:$0xff]
    %v268 = vld [vmem:[%s1 + $0x790] sm:$0xff]
    %v269 = vld [vmem:[%s1 + $0x798] sm:$0xff]
    %v270 = vld [vmem:[%s1 + $0x7a0] sm:$0xff]
    %v271 = vld [vmem:[%s1 + $0x7a8] sm:$0xff]
    %v272 = vld [vmem:[%s1 + $0x7b0] sm:$0xff]
    %v273 = vld [vmem:[%s1 + $0x7b8] sm:$0xff]
    %v274 = vld [vmem:[%s1 + $0x7c0] sm:$0xff]
    %v275 = vld [vmem:[%s1 + $0x7c8] sm:$0xff]
    %v276 = vld [vmem:[%s1 + $0x7d0] sm:$0xff]
    %v277 = vld [vmem:[%s1 + $0x7d8] sm:$0xff]
    %v278 = vld [vmem:[%s1 + $0x7e0] sm:$0xff]
    %v279 = vld [vmem:[%s1 + $0x7e8] sm:$0xff]
    %v280 = vld [vmem:[%s1 + $0x7f0] sm:$0xff]
    %v281 = vld [vmem:[%s1 + $0x7f8] sm:$0xff]
    %v282 = vld [vmem:[%s1 + $0x800] sm:$0xff]
    %v283 = vld [vmem:[%s1 + $0x808] sm:$0xff]
    %v284 = vld [vmem:[%s1 + $0x810] sm:$0xff]
    %v285 = vld [vmem:[%s1 + $0x818] sm:$0xff]
    %v286 = vld [vmem:[%s1 + $0x820] sm:$0xff]
    %v287 = vld [vmem:[%s1 + $0x828] sm:$0xff]
    %v288 = vld [vmem:[%s1 + $0x830] sm:$0xff]
    %v289 = vld [vmem:[%s1 + $0x838] sm:$0xff]
    %v290 = vld [vmem:[%s1 + $0x840] sm:$0xff]
    %v291 = vld [vmem:[%s1 + $0x848] sm:$0xff]
    %v292 = vld [vmem:[%s1 + $0x850] sm:$0xff]
    %v293 = vld [vmem:[%s1 + $0x858] sm:$0xff]
    %v294 = vld [vmem:[%s1 + $0x860] sm:$0xff]
    %v295 = vld [vmem:[%s1 + $0x868] sm:$0xff]
    %v296 = vld [vmem:[%s1 + $0x870] sm:$0xff]
    %v297 = vld [vmem:[%s1 + $0x878] sm:$0xff]
    %v298 = vld [vmem:[%s1 + $0x880] sm:$0xff]
    %v299 = vld [vmem:[%s1 + $0x888] sm:$0xff]
    %v300 = vld [vmem:[%s1 + $0x890] sm:$0xff]
    %v301 = vld [vmem:[%s1 + $0x898] sm:$0xff]
    %v302 = vld [vmem:[%s1 + $0x8a0] sm:$0xff]
    %v303 = vld [vmem:[%s1 + $0x8a8] sm:$0xff]
    %v304 = vld [vmem:[%s1 + $0x8b0] sm:$0xff]
    %v305 = vld [vmem:[%s1 + $0x8b8] sm:$0xff]
    %v306 = vld [vmem:[%s1 + $0x8c0] sm:$0xff]
    %v307 = vld [vmem:[%s1 + $0x8c8] sm:$0xff]
    %v308 = vld [vmem:[%s1 + $0x8d0] sm:$0xff]
    %v309 = vld [vmem:[%s1 + $0x8d8] sm:$0xff]
    %v310 = vld [vmem:[%s1 + $0x8e0] sm:$0xff]
    %v311 = vld [vmem:[%s1 + $0x8e8] sm:$0xff]
    %v312 = vld [vmem:[%s1 + $0x8f0] sm:$0xff]
    %v313 = vld [vmem:[%s1 + $0x8f8] sm:$0xff]
    %v314 = vld [vmem:[%s1 + $0x900] sm:$0xff]
    %v315 = vld [vmem:[%s1 + $0x908] sm:$0xff]
    %v316 = vld [vmem:[%s1 + $0x910] sm:$0xff]
    %v317 = vld [vmem:[%s1 + $0x918] sm:$0xff]
    %v318 = vld [vmem:[%s1 + $0x920] sm:$0xff]
    %v319 = vld [vmem:[%s1 + $0x928] sm:$0xff]
    %v320 = vld [vmem:[%s1 + $0x930] sm:$0xff]
    %v321 = vld [vmem:[%s1 + $0x938] sm:$0xff]
    %v322 = vld [vmem:[%s1 + $0x940] sm:$0xff]
    %v323 = vld [vmem:[%s1 + $0x948] sm:$0xff]
    %v324 = vld [vmem:[%s1 + $0x950] sm:$0xff]
    %v325 = vld [vmem:[%s1 + $0x958] sm:$0xff]
    %v326 = vld [vmem:[%s1 + $0x960] sm:$0xff]
    %v327 = vld [vmem:[%s1 + $0x968] sm:$0xff]
    %v328 = vld [vmem:[%s1 + $0x970] sm:$0xff]
    %v329 = vld [vmem:[%s1 + $0x978] sm:$0xff]
    %v330 = vld [vmem:[%s1 + $0x980] sm:$0xff]
    %v331 = vld [vmem:[%s1 + $0x988] sm:$0xff]
    %v332 = vld [vmem:[%s1 + $0x990] sm:$0xff]
    %v333 = vld [vmem:[%s1 + $0x998] sm:$0xff]
    %v334 = vld [vmem:[%s1 + $0x9a0] sm:$0xff]
    %v335 = vld [vmem:[%s1 + $0x9a8] sm:$0xff]
    %v336 = vld [vmem:[%s1 + $0x9b0] sm:$0xff]
    %v337 = vld [vmem:[%s1 + $0x9b8] sm:$0xff]
    %v338 = vld [vmem:[%s1 + $0x9c0] sm:$0xff]
    %v339 = vld [vmem:[%s1 + $0x9c8] sm:$0xff]
    %v340 = vld [vmem:[%s1 + $0x9d0] sm:$0xff]
    %v341 = vld [vmem:[%s1 + $0x9d8] sm:$0xff]
    %v342 = vld [vmem:[%s1 + $0x9e0] sm:$0xff]
    %v343 = vld [vmem:[%s1 + $0x9e8] sm:$0xff]
    %v344 = vld [vmem:[%s1 + $0x9f0] sm:$0xff]
    %v345 = vld [vmem:[%s1 + $0x9f8] sm:$0xff]
    %v346 = vld [vmem:[%s1 + $0xa00] sm:$0xff]
    %v347 = vld [vmem:[%s1 + $0xa08] sm:$0xff]
    %v348 = vld [vmem:[%s1 + $0xa10] sm:$0xff]
    %v349 = vld [vmem:[%s1 + $0xa18] sm:$0xff]
    %v350 = vld [vmem:[%s1 + $0xa20] sm:$0xff]
    %v351 = vld [vmem:[%s1 + $0xa28] sm:$0xff]
    %v352 = vld [vmem:[%s1 + $0xa30] sm:$0xff]
    %v353 = vld [vmem:[%s1 + $0xa38] sm:$0xff]
    %v354 = vld [vmem:[%s1 + $0xa40] sm:$0xff]
    %v355 = vld [vmem:[%s1 + $0xa48] sm:$0xff]
    %v356 = vld [vmem:[%s1 + $0xa50] sm:$0xff]
    %v357 = vld [vmem:[%s1 + $0xa58] sm:$0xff]
    %v358 = vld [vmem:[%s1 + $0xa60] sm:$0xff]
    %v359 = vld [vmem:[%s1 + $0xa68] sm:$0xff]
    %v360 = vld [vmem:[%s1 + $0xa70] sm:$0xff]
    %v361 = vld [vmem:[%s1 + $0xa78] sm:$0xff]
    %v362 = vld [vmem:[%s1 + $0xa80] sm:$0xff]
    %v363 = vld [vmem:[%s1 + $0xa88] sm:$0xff]
    %v364 = vld [vmem:[%s1 + $0xa90] sm:$0xff]
    %v365 = vld [vmem:[%s1 + $0xa98] sm:$0xff]
    %v366 = vld [vmem:[%s1 + $0xaa0] sm:$0xff]
    %v367 = vld [vmem:[%s1 + $0xaa8] sm:$0xff]
    %v368 = vld [vmem:[%s1 + $0xab0] sm:$0xff]
    %v369 = vld [vmem:[%s1 + $0xab8] sm:$0xff]
    %v370 = vld [vmem:[%s1 + $0xac0] sm:$0xff]
    %v371 = vld [vmem:[%s1 + $0xac8] sm:$0xff]
    %v372 = vld [vmem:[%s1 + $0xad0] sm:$0xff]
    %v373 = vld [vmem:[%s1 + $0xad8] sm:$0xff]
    %v374 = vld [vmem:[%s1 + $0xae0] sm:$0xff]
    %v375 = vld [vmem:[%s1 + $0xae8] sm:$0xff]
    %v376 = vld [vmem:[%s1 + $0xaf0] sm:$0xff]
    %v377 = vld [vmem:[%s1 + $0xaf8] sm:$0xff]
    %v378 = vld [vmem:[%s1 + $0xb00] sm:$0xff]
    %v379 = vld [vmem:[%s1 + $0xb08] sm:$0xff]
    %v380 = vld [vmem:[%s1 + $0xb10] sm:$0xff]
    %v381 = vld [vmem:[%s1 + $0xb18] sm:$0xff]
    %v382 = vld [vmem:[%s1 + $0xb20] sm:$0xff]
    %v383 = vld [vmem:[%s1 + $0xb28] sm:$0xff]
    %v384 = vld [vmem:[%s1 + $0xb30] sm:$0xff]
    %v385 = vld [vmem:[%s1 + $0xb38] sm:$0xff]
    %v386 = vld [vmem:[%s1 + $0xb40] sm:$0xff]
    %v387 = vld [vmem:[%s1 + $0xb48] sm:$0xff]
    %v388 = vld [vmem:[%s1 + $0xb50] sm:$0xff]
    %v389 = vld [vmem:[%s1 + $0xb58] sm:$0xff]
    %v390 = vld [vmem:[%s1 + $0xb60] sm:$0xff]
    %v391 = vld [vmem:[%s1 + $0xb68] sm:$0xff]
    %v392 = vld [vmem:[%s1 + $0xb70] sm:$0xff]
    %v393 = vld [vmem:[%s1 + $0xb78] sm:$0xff]
    %v394 = vld [vmem:[%s1 + $0xb80] sm:$0xff]
    %v395 = vld [vmem:[%s1 + $0xb88] sm:$0xff]
    %v396 = vld [vmem:[%s1 + $0xb90] sm:$0xff]
    %v397 = vld [vmem:[%s1 + $0xb98] sm:$0xff]
    %v398 = vld [vmem:[%s1 + $0xba0] sm:$0xff]
    %v399 = vld [vmem:[%s1 + $0xba8] sm:$0xff]
    %v400 = vld [vmem:[%s1 + $0xbb0] sm:$0xff]
    %v401 = vld [vmem:[%s1 + $0xbb8] sm:$0xff]
    %v402 = vld [vmem:[%s1 + $0xbc0] sm:$0xff]
    %v403 = vld [vmem:[%s1 + $0xbc8] sm:$0xff]
    %v404 = vld [vmem:[%s1 + $0xbd0] sm:$0xff]
    %v405 = vld [vmem:[%s1 + $0xbd8] sm:$0xff]
    %v406 = vld [vmem:[%s1 + $0xbe0] sm:$0xff]
    %v407 = vld [vmem:[%s1 + $0xbe8] sm:$0xff]
    %v408 = vld [vmem:[%s1 + $0xbf0] sm:$0xff]
    %v409 = vld [vmem:[%s1 + $0xbf8] sm:$0xff]
    %v410 = vld [vmem:[%s1 + $0xc00] sm:$0xff]
    %v411 = vld [vmem:[%s1 + $0xc08] sm:$0xff]
    %v412 = vld [vmem:[%s1 + $0xc10] sm:$0xff]
    %v413 = vld [vmem:[%s1 + $0xc18] sm:$0xff]
    %v414 = vld [vmem:[%s1 + $0xc20] sm:$0xff]
    %v415 = vld [vmem:[%s1 + $0xc28] sm:$0xff]
    %v416 = vld [vmem:[%s1 + $0xc30] sm:$0xff]
    %v417 = vld [vmem:[%s1 + $0xc38] sm:$0xff]
    %v418 = vld [vmem:[%s1 + $0xc40] sm:$0xff]
    %v419 = vld [vmem:[%s1 + $0xc48] sm:$0xff]
    %v420 = vld [vmem:[%s1 + $0xc50] sm:$0xff]
    %v421 = vld [vmem:[%s1 + $0xc58] sm:$0xff]
    %v422 = vld [vmem:[%s1 + $0xc60] sm:$0xff]
    %v423 = vld [vmem:[%s1 + $0xc68] sm:$0xff]
    %v424 = vld [vmem:[%s1 + $0xc70] sm:$0xff]
    %v425 = vld [vmem:[%s1 + $0xc78] sm:$0xff]
    %v426 = vld [vmem:[%s1 + $0xc80] sm:$0xff]
    %v427 = vld [vmem:[%s1 + $0xc88] sm:$0xff]
    %v428 = vld [vmem:[%s1 + $0xc90] sm:$0xff]
    %v429 = vld [vmem:[%s1 + $0xc98] sm:$0xff]
    %v430 = vld [vmem:[%s1 + $0xca0] sm:$0xff]
    %v431 = vld [vmem:[%s1 + $0xca8] sm:$0xff]
    %v432 = vld [vmem:[%s1 + $0xcb0] sm:$0xff]
    %v433 = vld [vmem:[%s1 + $0xcb8] sm:$0xff]
    %v434 = vld [vmem:[%s1 + $0xcc0] sm:$0xff]
    %v435 = vld [vmem:[%s1 + $0xcc8] sm:$0xff]
    %v436 = vld [vmem:[%s1 + $0xcd0] sm:$0xff]
    %v437 = vld [vmem:[%s1 + $0xcd8] sm:$0xff]
    %v438 = vld [vmem:[%s1 + $0xce0] sm:$0xff]
    %v439 = vld [vmem:[%s1 + $0xce8] sm:$0xff]
    %v440 = vld [vmem:[%s1 + $0xcf0] sm:$0xff]
    %v441 = vld [vmem:[%s1 + $0xcf8] sm:$0xff]
    %v442 = vld [vmem:[%s1 + $0xd00] sm:$0xff]
    %v443 = vld [vmem:[%s1 + $0xd08] sm:$0xff]
    %v444 = vld [vmem:[%s1 + $0xd10] sm:$0xff]
    %v445 = vld [vmem:[%s1 + $0xd18] sm:$0xff]
    %v446 = vld [vmem:[%s1 + $0xd20] sm:$0xff]
    %v447 = vld [vmem:[%s1 + $0xd28] sm:$0xff]
    %v448 = vld [vmem:[%s1 + $0xd30] sm:$0xff]
    %v449 = vld [vmem:[%s1 + $0xd38] sm:$0xff]
    %v450 = vld [vmem:[%s1 + $0xd40] sm:$0xff]
    %v451 = vld [vmem:[%s1 + $0xd48] sm:$0xff]
    %v452 = vld [vmem:[%s1 + $0xd50] sm:$0xff]
    %v453 = vld [vmem:[%s1 + $0xd58] sm:$0xff]
    %v454 = vld [vmem:[%s1 + $0xd60] sm:$0xff]
    %v455 = vld [vmem:[%s1 + $0xd68] sm:$0xff]
    %v456 = vld [vmem:[%s1 + $0xd70] sm:$0xff]
    %v457 = vld [vmem:[%s1 + $0xd78] sm:$0xff]
    %v458 = vld [vmem:[%s1 + $0xd80] sm:$0xff]
    %v459 = vld [vmem:[%s1 + $0xd88] sm:$0xff]
    %v460 = vld [vmem:[%s1 + $0xd90] sm:$0xff]
    %v461 = vld [vmem:[%s1 + $0xd98] sm:$0xff]
    %v462 = vld [vmem:[%s1 + $0xda0] sm:$0xff]
    %v463 = vld [vmem:[%s1 + $0xda8] sm:$0xff]
    %v464 = vld [vmem:[%s1 + $0xdb0] sm:$0xff]
    %v465 = vld [vmem:[%s1 + $0xdb8] sm:$0xff]
    %v466 = vld [vmem:[%s1 + $0xdc0] sm:$0xff]
    %v467 = vld [vmem:[%s1 + $0xdc8] sm:$0xff]
    %v468 = vld [vmem:[%s1 + $0xdd0] sm:$0xff]
    %v469 = vld [vmem:[%s1 + $0xdd8] sm:$0xff]
    %v470 = vld [vmem:[%s1 + $0xde0] sm:$0xff]
    %v471 = vld [vmem:[%s1 + $0xde8] sm:$0xff]
    %v472 = vld [vmem:[%s1 + $0xdf0] sm:$0xff]
    %v473 = vld [vmem:[%s1 + $0xdf8] sm:$0xff]
    %v474 = vld [vmem:[%s1 + $0xe00] sm:$0xff]
    %v475 = vld [vmem:[%s1 + $0xe08] sm:$0xff]
    %v476 = vld [vmem:[%s1 + $0xe10] sm:$0xff]
    %v477 = vld [vmem:[%s1 + $0xe18] sm:$0xff]
    %v478 = vld [vmem:[%s1 + $0xe20] sm:$0xff]
    %v479 = vld [vmem:[%s1 + $0xe28] sm:$0xff]
    %v480 = vld [vmem:[%s1 + $0xe30] sm:$0xff]
    %v481 = vld [vmem:[%s1 + $0xe38] sm:$0xff]
    %v482 = vld [vmem:[%s1 + $0xe40] sm:$0xff]
    %v483 = vld [vmem:[%s1 + $0xe48] sm:$0xff]
    %v484 = vld [vmem:[%s1 + $0xe50] sm:$0xff]
    %v485 = vld [vmem:[%s1 + $0xe58] sm:$0xff]
    %v486 = vld [vmem:[%s1 + $0xe60] sm:$0xff]
    %v487 = vld [vmem:[%s1 + $0xe68] sm:$0xff]
    %v488 = vld [vmem:[%s1 + $0xe70] sm:$0xff]
    %v489 = vld [vmem:[%s1 + $0xe78] sm:$0xff]
    %v490 = vld [vmem:[%s1 + $0xe80] sm:$0xff]
    %v491 = vld [vmem:[%s1 + $0xe88] sm:$0xff]
    %v492 = vld [vmem:[%s1 + $0xe90] sm:$0xff]
    %v493 = vld [vmem:[%s1 + $0xe98] sm:$0xff]
    %v494 = vld [vmem:[%s1 + $0xea0] sm:$0xff]
    %v495 = vld [vmem:[%s1 + $0xea8] sm:$0xff]
    %v496 = vld [vmem:[%s1 + $0xeb0] sm:$0xff]
    %v497 = vld [vmem:[%s1 + $0xeb8] sm:$0xff]
    %v498 = vld [vmem:[%s1 + $0xec0] sm:$0xff]
    %v499 = vld [vmem:[%s1 + $0xec8] sm:$0xff]
    %v500 = vld [vmem:[%s1 + $0xed0] sm:$0xff]
    %v501 = vld [vmem:[%s1 + $0xed8] sm:$0xff]
    %v502 = vld [vmem:[%s1 + $0xee0] sm:$0xff]
    %v503 = vld [vmem:[%s1 + $0xee8] sm:$0xff]
    %v504 = vld [vmem:[%s1 + $0xef0] sm:$0xff]
    %v505 = vld [vmem:[%s1 + $0xef8] sm:$0xff]
    %v506 = vld [vmem:[%s1 + $0xf00] sm:$0xff]
    %v507 = vld [vmem:[%s1 + $0xf08] sm:$0xff]
    %v508 = vld [vmem:[%s1 + $0xf10] sm:$0xff]
    %v509 = vld [vmem:[%s1 + $0xf18] sm:$0xff]
    %v510 = vld [vmem:[%s1 + $0xf20] sm:$0xff]
    %v511 = vld [vmem:[%s1 + $0xf28] sm:$0xff]
    %v512 = vld [vmem:[%s1 + $0xf30] sm:$0xff]
    %v513 = vld [vmem:[%s1 + $0xf38] sm:$0xff]
    %v514 = vld [vmem:[%s1 + $0xf40] sm:$0xff]
    %v515 = vld [vmem:[%s1 + $0xf48] sm:$0xff]
    %v516 = vld [vmem:[%s1 + $0xf50] sm:$0xff]
    %v517 = vld [vmem:[%s1 + $0xf58] sm:$0xff]
    %v518 = vld [vmem:[%s1 + $0xf60] sm:$0xff]
    %v519 = vld [vmem:[%s1 + $0xf68] sm:$0xff]
    %v520 = vld [vmem:[%s1 + $0xf70] sm:$0xff]
    %v521 = vld [vmem:[%s1 + $0xf78] sm:$0xff]
    %v522 = vld [vmem:[%s1 + $0xf80] sm:$0xff]
    %v523 = vld [vmem:[%s1 + $0xf88] sm:$0xff]
    %v524 = vld [vmem:[%s1 + $0xf90] sm:$0xff]
    %v525 = vld [vmem:[%s1 + $0xf98] sm:$0xff]
    %v526 = vld [vmem:[%s1 + $0xfa0] sm:$0xff]
    %v527 = vld [vmem:[%s1 + $0xfa8] sm:$0xff]
    %v528 = vld [vmem:[%s1 + $0xfb0] sm:$0xff]
    %v529 = vld [vmem:[%s1 + $0xfb8] sm:$0xff]
    %v530 = vld [vmem:[%s1 + $0xfc0] sm:$0xff]
    %v531 = vld [vmem:[%s1 + $0xfc8] sm:$0xff]
    %v532 = vld [vmem:[%s1 + $0xfd0] sm:$0xff]
    %v533 = vld [vmem:[%s1 + $0xfd8] sm:$0xff]
    %v534 = vld [vmem:[%s1 + $0xfe0] sm:$0xff]
    %v535 = vld [vmem:[%s1 + $0xfe8] sm:$0xff]
    %v536 = vld [vmem:[%s1 + $0xff0] sm:$0xff]
    %v537 = vld [vmem:[%s1 + $0xff8] sm:$0xff]
    %v538 = vld [vmem:[%s2] sm:$0x3]
    %v540 = vlaneseq
    %v541 = vshrl.u32 %v540, 7
    %v542 = vsub.s32 0, %v541
    %v543 = vrot.slane %v538, %v542
    %v544 = vlaneseq
    %v545 = vshrl.u32 %v544, 7
    %v546 = vsub.s32 1, %v545
    %v547 = vrot.slane %v538, %v546
    %v554 = vcombine.high %v22, %v22
    %v556 = vunpack.c.l.s4 1966171168
    %v557 = vunpack.c.0.s8 %v556
    %v558 = vlaneseq
    %v559 = vshrl.u32 %v558, 7
    %v560 = vsub.s32 %v557, %v559
    %v561 = vrot.slane %v22, %v560
    %v563 = vunpack.c.l.s4 1966171168
    %v564 = vunpack.c.0.s8 %v563
    %v565 = vlaneseq
    %v566 = vshrl.u32 %v565, 7
    %v567 = vsub.s32 %v564, %v566
    %v568 = vrot.slane %v554, %v567
    %v569 = vcombine.high %v561, %v561
    %v570 = vcombine.high %v568, %v568
    %v572 = vunpack.c.l.s4 1966171168
    %v573 = vunpack.c.0.s8 %v572
    %v574 = vlaneseq
    %v575 = vshrl.u32 %v574, 7
    %v576 = vsub.s32 %v573, %v575
    %v577 = vrot.slane %v561, %v576
    %v579 = vunpack.c.l.s4 1966171168
    %v580 = vunpack.c.0.s8 %v579
    %v581 = vlaneseq
    %v582 = vshrl.u32 %v581, 7
    %v583 = vsub.s32 %v580, %v582
    %v584 = vrot.slane %v568, %v583
    %v586 = vunpack.c.l.s4 1966171168
    %v587 = vunpack.c.0.s8 %v586
    %v588 = vlaneseq
    %v589 = vshrl.u32 %v588, 7
    %v590 = vsub.s32 %v587, %v589
    %v591 = vrot.slane %v569, %v590
    %v593 = vunpack.c.l.s4 1966171168
    %v594 = vunpack.c.0.s8 %v593
    %v595 = vlaneseq
    %v596 = vshrl.u32 %v595, 7
    %v597 = vsub.s32 %v594, %v596
    %v598 = vrot.slane %v570, %v597
    %v599 = vcombine.high %v577, %v577
    %v600 = vcombine.high %v584, %v584
    %v601 = vcombine.high %v591, %v591
    %v602 = vcombine.high %v598, %v598
    %v603 = vcombine.high %v23, %v23
    %v605 = vunpack.c.l.s4 1966171168
    %v606 = vunpack.c.0.s8 %v605
    %v607 = vlaneseq
    %v608 = vshrl.u32 %v607, 7
    %v609 = vsub.s32 %v606, %v608
    %v610 = vrot.slane %v23, %v609
    %v612 = vunpack.c.l.s4 1966171168
    %v613 = vunpack.c.0.s8 %v612
    %v614 = vlaneseq
    %v615 = vshrl.u32 %v614, 7
    %v616 = vsub.s32 %v613, %v615
    %v617 = vrot.slane %v603, %v616
    %v618 = vcombine.high %v610, %v610
    %v619 = vcombine.high %v617, %v617
    %v621 = vunpack.c.l.s4 1966171168
    %v622 = vunpack.c.0.s8 %v621
    %v623 = vlaneseq
    %v624 = vshrl.u32 %v623, 7
    %v625 = vsub.s32 %v622, %v624
    %v626 = vrot.slane %v610, %v625
    %v628 = vunpack.c.l.s4 1966171168
    %v629 = vunpack.c.0.s8 %v628
    %v630 = vlaneseq
    %v631 = vshrl.u32 %v630, 7
    %v632 = vsub.s32 %v629, %v631
    %v633 = vrot.slane %v617, %v632
    %v635 = vunpack.c.l.s4 1966171168
    %v636 = vunpack.c.0.s8 %v635
    %v637 = vlaneseq
    %v638 = vshrl.u32 %v637, 7
    %v639 = vsub.s32 %v636, %v638
    %v640 = vrot.slane %v618, %v639
    %v642 = vunpack.c.l.s4 1966171168
    %v643 = vunpack.c.0.s8 %v642
    %v644 = vlaneseq
    %v645 = vshrl.u32 %v644, 7
    %v646 = vsub.s32 %v643, %v645
    %v647 = vrot.slane %v619, %v646
    %v648 = vcombine.high %v626, %v626
    %v649 = vcombine.high %v633, %v633
    %v650 = vcombine.high %v640, %v640
    %v651 = vcombine.high %v647, %v647
    %v652 = vcombine.high %v24, %v24
    %v654 = vunpack.c.l.s4 1966171168
    %v655 = vunpack.c.0.s8 %v654
    %v656 = vlaneseq
    %v657 = vshrl.u32 %v656, 7
    %v658 = vsub.s32 %v655, %v657
    %v659 = vrot.slane %v24, %v658
    %v661 = vunpack.c.l.s4 1966171168
    %v662 = vunpack.c.0.s8 %v661
    %v663 = vlaneseq
    %v664 = vshrl.u32 %v663, 7
    %v665 = vsub.s32 %v662, %v664
    %v666 = vrot.slane %v652, %v665
    %v667 = vcombine.high %v659, %v659
    %v668 = vcombine.high %v666, %v666
    %v670 = vunpack.c.l.s4 1966171168
    %v671 = vunpack.c.0.s8 %v670
    %v672 = vlaneseq
    %v673 = vshrl.u32 %v672, 7
    %v674 = vsub.s32 %v671, %v673
    %v675 = vrot.slane %v659, %v674
    %v677 = vunpack.c.l.s4 1966171168
    %v678 = vunpack.c.0.s8 %v677
    %v679 = vlaneseq
    %v680 = vshrl.u32 %v679, 7
    %v681 = vsub.s32 %v678, %v680
    %v682 = vrot.slane %v666, %v681
    %v684 = vunpack.c.l.s4 1966171168
    %v685 = vunpack.c.0.s8 %v684
    %v686 = vlaneseq
    %v687 = vshrl.u32 %v686, 7
    %v688 = vsub.s32 %v685, %v687
    %v689 = vrot.slane %v667, %v688
    %v691 = vunpack.c.l.s4 1966171168
    %v692 = vunpack.c.0.s8 %v691
    %v693 = vlaneseq
    %v694 = vshrl.u32 %v693, 7
    %v695 = vsub.s32 %v692, %v694
    %v696 = vrot.slane %v668, %v695
    %v697 = vcombine.high %v675, %v675
    %v698 = vcombine.high %v682, %v682
    %v699 = vcombine.high %v689, %v689
    %v700 = vcombine.high %v696, %v696
    %v701 = vcombine.high %v25, %v25
    %v703 = vunpack.c.l.s4 1966171168
    %v704 = vunpack.c.0.s8 %v703
    %v705 = vlaneseq
    %v706 = vshrl.u32 %v705, 7
    %v707 = vsub.s32 %v704, %v706
    %v708 = vrot.slane %v25, %v707
    %v710 = vunpack.c.l.s4 1966171168
    %v711 = vunpack.c.0.s8 %v710
    %v712 = vlaneseq
    %v713 = vshrl.u32 %v712, 7
    %v714 = vsub.s32 %v711, %v713
    %v715 = vrot.slane %v701, %v714
    %v716 = vcombine.high %v708, %v708
    %v717 = vcombine.high %v715, %v715
    %v719 = vunpack.c.l.s4 1966171168
    %v720 = vunpack.c.0.s8 %v719
    %v721 = vlaneseq
    %v722 = vshrl.u32 %v721, 7
    %v723 = vsub.s32 %v720, %v722
    %v724 = vrot.slane %v708, %v723
    %v726 = vunpack.c.l.s4 1966171168
    %v727 = vunpack.c.0.s8 %v726
    %v728 = vlaneseq
    %v729 = vshrl.u32 %v728, 7
    %v730 = vsub.s32 %v727, %v729
    %v731 = vrot.slane %v715, %v730
    %v733 = vunpack.c.l.s4 1966171168
    %v734 = vunpack.c.0.s8 %v733
    %v735 = vlaneseq
    %v736 = vshrl.u32 %v735, 7
    %v737 = vsub.s32 %v734, %v736
    %v738 = vrot.slane %v716, %v737
    %v740 = vunpack.c.l.s4 1966171168
    %v741 = vunpack.c.0.s8 %v740
    %v742 = vlaneseq
    %v743 = vshrl.u32 %v742, 7
    %v744 = vsub.s32 %v741, %v743
    %v745 = vrot.slane %v717, %v744
    %v746 = vcombine.high %v724, %v724
    %v747 = vcombine.high %v731, %v731
    %v748 = vcombine.high %v738, %v738
    %v749 = vcombine.high %v745, %v745
    %v1294 = vunpack.c.l.b16 %v26
    %v1295 = vunpack.c.h.b16 %v26
    %v1296 = vunpack.c.l.b16 %v27
    %v1297 = vunpack.c.h.b16 %v27
    %v1298 = vunpack.c.l.b16 %v28
    %v1299 = vunpack.c.h.b16 %v28
    %v1300 = vunpack.c.l.b16 %v29
    %v1301 = vunpack.c.h.b16 %v29
    %v1302 = vunpack.c.l.b16 %v30
    %v1303 = vunpack.c.h.b16 %v30
    %v1304 = vunpack.c.l.b16 %v31
    %v1305 = vunpack.c.h.b16 %v31
    %v1306 = vunpack.c.l.b16 %v32
    %v1307 = vunpack.c.h.b16 %v32
    %v1308 = vunpack.c.l.b16 %v33
    %v1309 = vunpack.c.h.b16 %v33
    %v1310 = vunpack.c.l.b16 %v34
    %v1311 = vunpack.c.h.b16 %v34
    %v1312 = vunpack.c.l.b16 %v35
    %v1313 = vunpack.c.h.b16 %v35
    %v1314 = vunpack.c.l.b16 %v36
    %v1315 = vunpack.c.h.b16 %v36
    %v1316 = vunpack.c.l.b16 %v37
    %v1317 = vunpack.c.h.b16 %v37
    %v1318 = vunpack.c.l.b16 %v38
    %v1319 = vunpack.c.h.b16 %v38
    %v1320 = vunpack.c.l.b16 %v39
    %v1321 = vunpack.c.h.b16 %v39
    %v1322 = vunpack.c.l.b16 %v40
    %v1323 = vunpack.c.h.b16 %v40
    %v1324 = vunpack.c.l.b16 %v41
    %v1325 = vunpack.c.h.b16 %v41
    %v1326 = vunpack.c.l.b16 %v42
    %v1327 = vunpack.c.h.b16 %v42
    %v1328 = vunpack.c.l.b16 %v43
    %v1329 = vunpack.c.h.b16 %v43
    %v1330 = vunpack.c.l.b16 %v44
    %v1331 = vunpack.c.h.b16 %v44
    %v1332 = vunpack.c.l.b16 %v45
    %v1333 = vunpack.c.h.b16 %v45
    %v1334 = vunpack.c.l.b16 %v46
    %v1335 = vunpack.c.h.b16 %v46
    %v1336 = vunpack.c.l.b16 %v47
    %v1337 = vunpack.c.h.b16 %v47
    %v1338 = vunpack.c.l.b16 %v48
    %v1339 = vunpack.c.h.b16 %v48
    %v1340 = vunpack.c.l.b16 %v49
    %v1341 = vunpack.c.h.b16 %v49
    %v1342 = vunpack.c.l.b16 %v50
    %v1343 = vunpack.c.h.b16 %v50
    %v1344 = vunpack.c.l.b16 %v51
    %v1345 = vunpack.c.h.b16 %v51
    %v1346 = vunpack.c.l.b16 %v52
    %v1347 = vunpack.c.h.b16 %v52
    %v1348 = vunpack.c.l.b16 %v53
    %v1349 = vunpack.c.h.b16 %v53
    %v1350 = vunpack.c.l.b16 %v54
    %v1351 = vunpack.c.h.b16 %v54
    %v1352 = vunpack.c.l.b16 %v55
    %v1353 = vunpack.c.h.b16 %v55
    %v1354 = vunpack.c.l.b16 %v56
    %v1355 = vunpack.c.h.b16 %v56
    %v1356 = vunpack.c.l.b16 %v57
    %v1357 = vunpack.c.h.b16 %v57
    %v1358 = vunpack.c.l.b16 %v58
    %v1359 = vunpack.c.h.b16 %v58
    %v1360 = vunpack.c.l.b16 %v59
    %v1361 = vunpack.c.h.b16 %v59
    %v1362 = vunpack.c.l.b16 %v60
    %v1363 = vunpack.c.h.b16 %v60
    %v1364 = vunpack.c.l.b16 %v61
    %v1365 = vunpack.c.h.b16 %v61
    %v1366 = vunpack.c.l.b16 %v62
    %v1367 = vunpack.c.h.b16 %v62
    %v1368 = vunpack.c.l.b16 %v63
    %v1369 = vunpack.c.h.b16 %v63
    %v1370 = vunpack.c.l.b16 %v64
    %v1371 = vunpack.c.h.b16 %v64
    %v1372 = vunpack.c.l.b16 %v65
    %v1373 = vunpack.c.h.b16 %v65
    %v1374 = vunpack.c.l.b16 %v66
    %v1375 = vunpack.c.h.b16 %v66
    %v1376 = vunpack.c.l.b16 %v67
    %v1377 = vunpack.c.h.b16 %v67
    %v1378 = vunpack.c.l.b16 %v68
    %v1379 = vunpack.c.h.b16 %v68
    %v1380 = vunpack.c.l.b16 %v69
    %v1381 = vunpack.c.h.b16 %v69
    %v1382 = vunpack.c.l.b16 %v70
    %v1383 = vunpack.c.h.b16 %v70
    %v1384 = vunpack.c.l.b16 %v71
    %v1385 = vunpack.c.h.b16 %v71
    %v1386 = vunpack.c.l.b16 %v72
    %v1387 = vunpack.c.h.b16 %v72
    %v1388 = vunpack.c.l.b16 %v73
    %v1389 = vunpack.c.h.b16 %v73
    %v1390 = vunpack.c.l.b16 %v74
    %v1391 = vunpack.c.h.b16 %v74
    %v1392 = vunpack.c.l.b16 %v75
    %v1393 = vunpack.c.h.b16 %v75
    %v1394 = vunpack.c.l.b16 %v76
    %v1395 = vunpack.c.h.b16 %v76
    %v1396 = vunpack.c.l.b16 %v77
    %v1397 = vunpack.c.h.b16 %v77
    %v1398 = vunpack.c.l.b16 %v78
    %v1399 = vunpack.c.h.b16 %v78
    %v1400 = vunpack.c.l.b16 %v79
    %v1401 = vunpack.c.h.b16 %v79
    %v1402 = vunpack.c.l.b16 %v80
    %v1403 = vunpack.c.h.b16 %v80
    %v1404 = vunpack.c.l.b16 %v81
    %v1405 = vunpack.c.h.b16 %v81
    %v1406 = vunpack.c.l.b16 %v82
    %v1407 = vunpack.c.h.b16 %v82
    %v1408 = vunpack.c.l.b16 %v83
    %v1409 = vunpack.c.h.b16 %v83
    %v1410 = vunpack.c.l.b16 %v84
    %v1411 = vunpack.c.h.b16 %v84
    %v1412 = vunpack.c.l.b16 %v85
    %v1413 = vunpack.c.h.b16 %v85
    %v1414 = vunpack.c.l.b16 %v86
    %v1415 = vunpack.c.h.b16 %v86
    %v1416 = vunpack.c.l.b16 %v87
    %v1417 = vunpack.c.h.b16 %v87
    %v1418 = vunpack.c.l.b16 %v88
    %v1419 = vunpack.c.h.b16 %v88
    %v1420 = vunpack.c.l.b16 %v89
    %v1421 = vunpack.c.h.b16 %v89
    %v1422 = vunpack.c.l.b16 %v90
    %v1423 = vunpack.c.h.b16 %v90
    %v1424 = vunpack.c.l.b16 %v91
    %v1425 = vunpack.c.h.b16 %v91
    %v1426 = vunpack.c.l.b16 %v92
    %v1427 = vunpack.c.h.b16 %v92
    %v1428 = vunpack.c.l.b16 %v93
    %v1429 = vunpack.c.h.b16 %v93
    %v1430 = vunpack.c.l.b16 %v94
    %v1431 = vunpack.c.h.b16 %v94
    %v1432 = vunpack.c.l.b16 %v95
    %v1433 = vunpack.c.h.b16 %v95
    %v1434 = vunpack.c.l.b16 %v96
    %v1435 = vunpack.c.h.b16 %v96
    %v1436 = vunpack.c.l.b16 %v97
    %v1437 = vunpack.c.h.b16 %v97
    %v1438 = vunpack.c.l.b16 %v98
    %v1439 = vunpack.c.h.b16 %v98
    %v1440 = vunpack.c.l.b16 %v99
    %v1441 = vunpack.c.h.b16 %v99
    %v1442 = vunpack.c.l.b16 %v100
    %v1443 = vunpack.c.h.b16 %v100
    %v1444 = vunpack.c.l.b16 %v101
    %v1445 = vunpack.c.h.b16 %v101
    %v1446 = vunpack.c.l.b16 %v102
    %v1447 = vunpack.c.h.b16 %v102
    %v1448 = vunpack.c.l.b16 %v103
    %v1449 = vunpack.c.h.b16 %v103
    %v1450 = vunpack.c.l.b16 %v104
    %v1451 = vunpack.c.h.b16 %v104
    %v1452 = vunpack.c.l.b16 %v105
    %v1453 = vunpack.c.h.b16 %v105
    %v1454 = vunpack.c.l.b16 %v106
    %v1455 = vunpack.c.h.b16 %v106
    %v1456 = vunpack.c.l.b16 %v107
    %v1457 = vunpack.c.h.b16 %v107
    %v1458 = vunpack.c.l.b16 %v108
    %v1459 = vunpack.c.h.b16 %v108
    %v1460 = vunpack.c.l.b16 %v109
    %v1461 = vunpack.c.h.b16 %v109
    %v1462 = vunpack.c.l.b16 %v110
    %v1463 = vunpack.c.h.b16 %v110
    %v1464 = vunpack.c.l.b16 %v111
    %v1465 = vunpack.c.h.b16 %v111
    %v1466 = vunpack.c.l.b16 %v112
    %v1467 = vunpack.c.h.b16 %v112
    %v1468 = vunpack.c.l.b16 %v113
    %v1469 = vunpack.c.h.b16 %v113
    %v1470 = vunpack.c.l.b16 %v114
    %v1471 = vunpack.c.h.b16 %v114
    %v1472 = vunpack.c.l.b16 %v115
    %v1473 = vunpack.c.h.b16 %v115
    %v1474 = vunpack.c.l.b16 %v116
    %v1475 = vunpack.c.h.b16 %v116
    %v1476 = vunpack.c.l.b16 %v117
    %v1477 = vunpack.c.h.b16 %v117
    %v1478 = vunpack.c.l.b16 %v118
    %v1479 = vunpack.c.h.b16 %v118
    %v1480 = vunpack.c.l.b16 %v119
    %v1481 = vunpack.c.h.b16 %v119
    %v1482 = vunpack.c.l.b16 %v120
    %v1483 = vunpack.c.h.b16 %v120
    %v1484 = vunpack.c.l.b16 %v121
    %v1485 = vunpack.c.h.b16 %v121
    %v1486 = vunpack.c.l.b16 %v122
    %v1487 = vunpack.c.h.b16 %v122
    %v1488 = vunpack.c.l.b16 %v123
    %v1489 = vunpack.c.h.b16 %v123
    %v1490 = vunpack.c.l.b16 %v124
    %v1491 = vunpack.c.h.b16 %v124
    %v1492 = vunpack.c.l.b16 %v125
    %v1493 = vunpack.c.h.b16 %v125
    %v1494 = vunpack.c.l.b16 %v126
    %v1495 = vunpack.c.h.b16 %v126
    %v1496 = vunpack.c.l.b16 %v127
    %v1497 = vunpack.c.h.b16 %v127
    %v1498 = vunpack.c.l.b16 %v128
    %v1499 = vunpack.c.h.b16 %v128
    %v1500 = vunpack.c.l.b16 %v129
    %v1501 = vunpack.c.h.b16 %v129
    %v1502 = vunpack.c.l.b16 %v130
    %v1503 = vunpack.c.h.b16 %v130
    %v1504 = vunpack.c.l.b16 %v131
    %v1505 = vunpack.c.h.b16 %v131
    %v1506 = vunpack.c.l.b16 %v132
    %v1507 = vunpack.c.h.b16 %v132
    %v1508 = vunpack.c.l.b16 %v133
    %v1509 = vunpack.c.h.b16 %v133
    %v1510 = vunpack.c.l.b16 %v134
    %v1511 = vunpack.c.h.b16 %v134
    %v1512 = vunpack.c.l.b16 %v135
    %v1513 = vunpack.c.h.b16 %v135
    %v1514 = vunpack.c.l.b16 %v136
    %v1515 = vunpack.c.h.b16 %v136
    %v1516 = vunpack.c.l.b16 %v137
    %v1517 = vunpack.c.h.b16 %v137
    %v1518 = vunpack.c.l.b16 %v138
    %v1519 = vunpack.c.h.b16 %v138
    %v1520 = vunpack.c.l.b16 %v139
    %v1521 = vunpack.c.h.b16 %v139
    %v1522 = vunpack.c.l.b16 %v140
    %v1523 = vunpack.c.h.b16 %v140
    %v1524 = vunpack.c.l.b16 %v141
    %v1525 = vunpack.c.h.b16 %v141
    %v1526 = vunpack.c.l.b16 %v142
    %v1527 = vunpack.c.h.b16 %v142
    %v1528 = vunpack.c.l.b16 %v143
    %v1529 = vunpack.c.h.b16 %v143
    %v1530 = vunpack.c.l.b16 %v144
    %v1531 = vunpack.c.h.b16 %v144
    %v1532 = vunpack.c.l.b16 %v145
    %v1533 = vunpack.c.h.b16 %v145
    %v1534 = vunpack.c.l.b16 %v146
    %v1535 = vunpack.c.h.b16 %v146
    %v1536 = vunpack.c.l.b16 %v147
    %v1537 = vunpack.c.h.b16 %v147
    %v1538 = vunpack.c.l.b16 %v148
    %v1539 = vunpack.c.h.b16 %v148
    %v1540 = vunpack.c.l.b16 %v149
    %v1541 = vunpack.c.h.b16 %v149
    %v1542 = vunpack.c.l.b16 %v150
    %v1543 = vunpack.c.h.b16 %v150
    %v1544 = vunpack.c.l.b16 %v151
    %v1545 = vunpack.c.h.b16 %v151
    %v1546 = vunpack.c.l.b16 %v152
    %v1547 = vunpack.c.h.b16 %v152
    %v1548 = vunpack.c.l.b16 %v153
    %v1549 = vunpack.c.h.b16 %v153
    %v1550 = vunpack.c.l.b16 %v154
    %v1551 = vunpack.c.h.b16 %v154
    %v1552 = vunpack.c.l.b16 %v155
    %v1553 = vunpack.c.h.b16 %v155
    %v1554 = vunpack.c.l.b16 %v156
    %v1555 = vunpack.c.h.b16 %v156
    %v1556 = vunpack.c.l.b16 %v157
    %v1557 = vunpack.c.h.b16 %v157
    %v1558 = vunpack.c.l.b16 %v158
    %v1559 = vunpack.c.h.b16 %v158
    %v1560 = vunpack.c.l.b16 %v159
    %v1561 = vunpack.c.h.b16 %v159
    %v1562 = vunpack.c.l.b16 %v160
    %v1563 = vunpack.c.h.b16 %v160
    %v1564 = vunpack.c.l.b16 %v161
    %v1565 = vunpack.c.h.b16 %v161
    %v1566 = vunpack.c.l.b16 %v162
    %v1567 = vunpack.c.h.b16 %v162
    %v1568 = vunpack.c.l.b16 %v163
    %v1569 = vunpack.c.h.b16 %v163
    %v1570 = vunpack.c.l.b16 %v164
    %v1571 = vunpack.c.h.b16 %v164
    %v1572 = vunpack.c.l.b16 %v165
    %v1573 = vunpack.c.h.b16 %v165
    %v1574 = vunpack.c.l.b16 %v166
    %v1575 = vunpack.c.h.b16 %v166
    %v1576 = vunpack.c.l.b16 %v167
    %v1577 = vunpack.c.h.b16 %v167
    %v1578 = vunpack.c.l.b16 %v168
    %v1579 = vunpack.c.h.b16 %v168
    %v1580 = vunpack.c.l.b16 %v169
    %v1581 = vunpack.c.h.b16 %v169
    %v1582 = vunpack.c.l.b16 %v170
    %v1583 = vunpack.c.h.b16 %v170
    %v1584 = vunpack.c.l.b16 %v171
    %v1585 = vunpack.c.h.b16 %v171
    %v1586 = vunpack.c.l.b16 %v172
    %v1587 = vunpack.c.h.b16 %v172
    %v1588 = vunpack.c.l.b16 %v173
    %v1589 = vunpack.c.h.b16 %v173
    %v1590 = vunpack.c.l.b16 %v174
    %v1591 = vunpack.c.h.b16 %v174
    %v1592 = vunpack.c.l.b16 %v175
    %v1593 = vunpack.c.h.b16 %v175
    %v1594 = vunpack.c.l.b16 %v176
    %v1595 = vunpack.c.h.b16 %v176
    %v1596 = vunpack.c.l.b16 %v177
    %v1597 = vunpack.c.h.b16 %v177
    %v1598 = vunpack.c.l.b16 %v178
    %v1599 = vunpack.c.h.b16 %v178
    %v1600 = vunpack.c.l.b16 %v179
    %v1601 = vunpack.c.h.b16 %v179
    %v1602 = vunpack.c.l.b16 %v180
    %v1603 = vunpack.c.h.b16 %v180
    %v1604 = vunpack.c.l.b16 %v181
    %v1605 = vunpack.c.h.b16 %v181
    %v1606 = vunpack.c.l.b16 %v182
    %v1607 = vunpack.c.h.b16 %v182
    %v1608 = vunpack.c.l.b16 %v183
    %v1609 = vunpack.c.h.b16 %v183
    %v1610 = vunpack.c.l.b16 %v184
    %v1611 = vunpack.c.h.b16 %v184
    %v1612 = vunpack.c.l.b16 %v185
    %v1613 = vunpack.c.h.b16 %v185
    %v1614 = vunpack.c.l.b16 %v186
    %v1615 = vunpack.c.h.b16 %v186
    %v1616 = vunpack.c.l.b16 %v187
    %v1617 = vunpack.c.h.b16 %v187
    %v1618 = vunpack.c.l.b16 %v188
    %v1619 = vunpack.c.h.b16 %v188
    %v1620 = vunpack.c.l.b16 %v189
    %v1621 = vunpack.c.h.b16 %v189
    %v1622 = vunpack.c.l.b16 %v190
    %v1623 = vunpack.c.h.b16 %v190
    %v1624 = vunpack.c.l.b16 %v191
    %v1625 = vunpack.c.h.b16 %v191
    %v1626 = vunpack.c.l.b16 %v192
    %v1627 = vunpack.c.h.b16 %v192
    %v1628 = vunpack.c.l.b16 %v193
    %v1629 = vunpack.c.h.b16 %v193
    %v1630 = vunpack.c.l.b16 %v194
    %v1631 = vunpack.c.h.b16 %v194
    %v1632 = vunpack.c.l.b16 %v195
    %v1633 = vunpack.c.h.b16 %v195
    %v1634 = vunpack.c.l.b16 %v196
    %v1635 = vunpack.c.h.b16 %v196
    %v1636 = vunpack.c.l.b16 %v197
    %v1637 = vunpack.c.h.b16 %v197
    %v1638 = vunpack.c.l.b16 %v198
    %v1639 = vunpack.c.h.b16 %v198
    %v1640 = vunpack.c.l.b16 %v199
    %v1641 = vunpack.c.h.b16 %v199
    %v1642 = vunpack.c.l.b16 %v200
    %v1643 = vunpack.c.h.b16 %v200
    %v1644 = vunpack.c.l.b16 %v201
    %v1645 = vunpack.c.h.b16 %v201
    %v1646 = vunpack.c.l.b16 %v202
    %v1647 = vunpack.c.h.b16 %v202
    %v1648 = vunpack.c.l.b16 %v203
    %v1649 = vunpack.c.h.b16 %v203
    %v1650 = vunpack.c.l.b16 %v204
    %v1651 = vunpack.c.h.b16 %v204
    %v1652 = vunpack.c.l.b16 %v205
    %v1653 = vunpack.c.h.b16 %v205
    %v1654 = vunpack.c.l.b16 %v206
    %v1655 = vunpack.c.h.b16 %v206
    %v1656 = vunpack.c.l.b16 %v207
    %v1657 = vunpack.c.h.b16 %v207
    %v1658 = vunpack.c.l.b16 %v208
    %v1659 = vunpack.c.h.b16 %v208
    %v1660 = vunpack.c.l.b16 %v209
    %v1661 = vunpack.c.h.b16 %v209
    %v1662 = vunpack.c.l.b16 %v210
    %v1663 = vunpack.c.h.b16 %v210
    %v1664 = vunpack.c.l.b16 %v211
    %v1665 = vunpack.c.h.b16 %v211
    %v1666 = vunpack.c.l.b16 %v212
    %v1667 = vunpack.c.h.b16 %v212
    %v1668 = vunpack.c.l.b16 %v213
    %v1669 = vunpack.c.h.b16 %v213
    %v1670 = vunpack.c.l.b16 %v214
    %v1671 = vunpack.c.h.b16 %v214
    %v1672 = vunpack.c.l.b16 %v215
    %v1673 = vunpack.c.h.b16 %v215
    %v1674 = vunpack.c.l.b16 %v216
    %v1675 = vunpack.c.h.b16 %v216
    %v1676 = vunpack.c.l.b16 %v217
    %v1677 = vunpack.c.h.b16 %v217
    %v1678 = vunpack.c.l.b16 %v218
    %v1679 = vunpack.c.h.b16 %v218
    %v1680 = vunpack.c.l.b16 %v219
    %v1681 = vunpack.c.h.b16 %v219
    %v1682 = vunpack.c.l.b16 %v220
    %v1683 = vunpack.c.h.b16 %v220
    %v1684 = vunpack.c.l.b16 %v221
    %v1685 = vunpack.c.h.b16 %v221
    %v1686 = vunpack.c.l.b16 %v222
    %v1687 = vunpack.c.h.b16 %v222
    %v1688 = vunpack.c.l.b16 %v223
    %v1689 = vunpack.c.h.b16 %v223
    %v1690 = vunpack.c.l.b16 %v224
    %v1691 = vunpack.c.h.b16 %v224
    %v1692 = vunpack.c.l.b16 %v225
    %v1693 = vunpack.c.h.b16 %v225
    %v1694 = vunpack.c.l.b16 %v226
    %v1695 = vunpack.c.h.b16 %v226
    %v1696 = vunpack.c.l.b16 %v227
    %v1697 = vunpack.c.h.b16 %v227
    %v1698 = vunpack.c.l.b16 %v228
    %v1699 = vunpack.c.h.b16 %v228
    %v1700 = vunpack.c.l.b16 %v229
    %v1701 = vunpack.c.h.b16 %v229
    %v1702 = vunpack.c.l.b16 %v230
    %v1703 = vunpack.c.h.b16 %v230
    %v1704 = vunpack.c.l.b16 %v231
    %v1705 = vunpack.c.h.b16 %v231
    %v1706 = vunpack.c.l.b16 %v232
    %v1707 = vunpack.c.h.b16 %v232
    %v1708 = vunpack.c.l.b16 %v233
    %v1709 = vunpack.c.h.b16 %v233
    %v1710 = vunpack.c.l.b16 %v234
    %v1711 = vunpack.c.h.b16 %v234
    %v1712 = vunpack.c.l.b16 %v235
    %v1713 = vunpack.c.h.b16 %v235
    %v1714 = vunpack.c.l.b16 %v236
    %v1715 = vunpack.c.h.b16 %v236
    %v1716 = vunpack.c.l.b16 %v237
    %v1717 = vunpack.c.h.b16 %v237
    %v1718 = vunpack.c.l.b16 %v238
    %v1719 = vunpack.c.h.b16 %v238
    %v1720 = vunpack.c.l.b16 %v239
    %v1721 = vunpack.c.h.b16 %v239
    %v1722 = vunpack.c.l.b16 %v240
    %v1723 = vunpack.c.h.b16 %v240
    %v1724 = vunpack.c.l.b16 %v241
    %v1725 = vunpack.c.h.b16 %v241
    %v1726 = vunpack.c.l.b16 %v242
    %v1727 = vunpack.c.h.b16 %v242
    %v1728 = vunpack.c.l.b16 %v243
    %v1729 = vunpack.c.h.b16 %v243
    %v1730 = vunpack.c.l.b16 %v244
    %v1731 = vunpack.c.h.b16 %v244
    %v1732 = vunpack.c.l.b16 %v245
    %v1733 = vunpack.c.h.b16 %v245
    %v1734 = vunpack.c.l.b16 %v246
    %v1735 = vunpack.c.h.b16 %v246
    %v1736 = vunpack.c.l.b16 %v247
    %v1737 = vunpack.c.h.b16 %v247
    %v1738 = vunpack.c.l.b16 %v248
    %v1739 = vunpack.c.h.b16 %v248
    %v1740 = vunpack.c.l.b16 %v249
    %v1741 = vunpack.c.h.b16 %v249
    %v1742 = vunpack.c.l.b16 %v250
    %v1743 = vunpack.c.h.b16 %v250
    %v1744 = vunpack.c.l.b16 %v251
    %v1745 = vunpack.c.h.b16 %v251
    %v1746 = vunpack.c.l.b16 %v252
    %v1747 = vunpack.c.h.b16 %v252
    %v1748 = vunpack.c.l.b16 %v253
    %v1749 = vunpack.c.h.b16 %v253
    %v1750 = vunpack.c.l.b16 %v254
    %v1751 = vunpack.c.h.b16 %v254
    %v1752 = vunpack.c.l.b16 %v255
    %v1753 = vunpack.c.h.b16 %v255
    %v1754 = vunpack.c.l.b16 %v256
    %v1755 = vunpack.c.h.b16 %v256
    %v1756 = vunpack.c.l.b16 %v257
    %v1757 = vunpack.c.h.b16 %v257
    %v1758 = vunpack.c.l.b16 %v258
    %v1759 = vunpack.c.h.b16 %v258
    %v1760 = vunpack.c.l.b16 %v259
    %v1761 = vunpack.c.h.b16 %v259
    %v1762 = vunpack.c.l.b16 %v260
    %v1763 = vunpack.c.h.b16 %v260
    %v1764 = vunpack.c.l.b16 %v261
    %v1765 = vunpack.c.h.b16 %v261
    %v1766 = vunpack.c.l.b16 %v262
    %v1767 = vunpack.c.h.b16 %v262
    %v1768 = vunpack.c.l.b16 %v263
    %v1769 = vunpack.c.h.b16 %v263
    %v1770 = vunpack.c.l.b16 %v264
    %v1771 = vunpack.c.h.b16 %v264
    %v1772 = vunpack.c.l.b16 %v265
    %v1773 = vunpack.c.h.b16 %v265
    %v1774 = vunpack.c.l.b16 %v266
    %v1775 = vunpack.c.h.b16 %v266
    %v1776 = vunpack.c.l.b16 %v267
    %v1777 = vunpack.c.h.b16 %v267
    %v1778 = vunpack.c.l.b16 %v268
    %v1779 = vunpack.c.h.b16 %v268
    %v1780 = vunpack.c.l.b16 %v269
    %v1781 = vunpack.c.h.b16 %v269
    %v1782 = vunpack.c.l.b16 %v270
    %v1783 = vunpack.c.h.b16 %v270
    %v1784 = vunpack.c.l.b16 %v271
    %v1785 = vunpack.c.h.b16 %v271
    %v1786 = vunpack.c.l.b16 %v272
    %v1787 = vunpack.c.h.b16 %v272
    %v1788 = vunpack.c.l.b16 %v273
    %v1789 = vunpack.c.h.b16 %v273
    %v1790 = vunpack.c.l.b16 %v274
    %v1791 = vunpack.c.h.b16 %v274
    %v1792 = vunpack.c.l.b16 %v275
    %v1793 = vunpack.c.h.b16 %v275
    %v1794 = vunpack.c.l.b16 %v276
    %v1795 = vunpack.c.h.b16 %v276
    %v1796 = vunpack.c.l.b16 %v277
    %v1797 = vunpack.c.h.b16 %v277
    %v1798 = vunpack.c.l.b16 %v278
    %v1799 = vunpack.c.h.b16 %v278
    %v1800 = vunpack.c.l.b16 %v279
    %v1801 = vunpack.c.h.b16 %v279
    %v1802 = vunpack.c.l.b16 %v280
    %v1803 = vunpack.c.h.b16 %v280
    %v1804 = vunpack.c.l.b16 %v281
    %v1805 = vunpack.c.h.b16 %v281
    %v1806 = vunpack.c.l.b16 %v282
    %v1807 = vunpack.c.h.b16 %v282
    %v1808 = vunpack.c.l.b16 %v283
    %v1809 = vunpack.c.h.b16 %v283
    %v1810 = vunpack.c.l.b16 %v284
    %v1811 = vunpack.c.h.b16 %v284
    %v1812 = vunpack.c.l.b16 %v285
    %v1813 = vunpack.c.h.b16 %v285
    %v1814 = vunpack.c.l.b16 %v286
    %v1815 = vunpack.c.h.b16 %v286
    %v1816 = vunpack.c.l.b16 %v287
    %v1817 = vunpack.c.h.b16 %v287
    %v1818 = vunpack.c.l.b16 %v288
    %v1819 = vunpack.c.h.b16 %v288
    %v1820 = vunpack.c.l.b16 %v289
    %v1821 = vunpack.c.h.b16 %v289
    %v1822 = vunpack.c.l.b16 %v290
    %v1823 = vunpack.c.h.b16 %v290
    %v1824 = vunpack.c.l.b16 %v291
    %v1825 = vunpack.c.h.b16 %v291
    %v1826 = vunpack.c.l.b16 %v292
    %v1827 = vunpack.c.h.b16 %v292
    %v1828 = vunpack.c.l.b16 %v293
    %v1829 = vunpack.c.h.b16 %v293
    %v1830 = vunpack.c.l.b16 %v294
    %v1831 = vunpack.c.h.b16 %v294
    %v1832 = vunpack.c.l.b16 %v295
    %v1833 = vunpack.c.h.b16 %v295
    %v1834 = vunpack.c.l.b16 %v296
    %v1835 = vunpack.c.h.b16 %v296
    %v1836 = vunpack.c.l.b16 %v297
    %v1837 = vunpack.c.h.b16 %v297
    %v1838 = vunpack.c.l.b16 %v298
    %v1839 = vunpack.c.h.b16 %v298
    %v1840 = vunpack.c.l.b16 %v299
    %v1841 = vunpack.c.h.b16 %v299
    %v1842 = vunpack.c.l.b16 %v300
    %v1843 = vunpack.c.h.b16 %v300
    %v1844 = vunpack.c.l.b16 %v301
    %v1845 = vunpack.c.h.b16 %v301
    %v1846 = vunpack.c.l.b16 %v302
    %v1847 = vunpack.c.h.b16 %v302
    %v1848 = vunpack.c.l.b16 %v303
    %v1849 = vunpack.c.h.b16 %v303
    %v1850 = vunpack.c.l.b16 %v304
    %v1851 = vunpack.c.h.b16 %v304
    %v1852 = vunpack.c.l.b16 %v305
    %v1853 = vunpack.c.h.b16 %v305
    %v1854 = vunpack.c.l.b16 %v306
    %v1855 = vunpack.c.h.b16 %v306
    %v1856 = vunpack.c.l.b16 %v307
    %v1857 = vunpack.c.h.b16 %v307
    %v1858 = vunpack.c.l.b16 %v308
    %v1859 = vunpack.c.h.b16 %v308
    %v1860 = vunpack.c.l.b16 %v309
    %v1861 = vunpack.c.h.b16 %v309
    %v1862 = vunpack.c.l.b16 %v310
    %v1863 = vunpack.c.h.b16 %v310
    %v1864 = vunpack.c.l.b16 %v311
    %v1865 = vunpack.c.h.b16 %v311
    %v1866 = vunpack.c.l.b16 %v312
    %v1867 = vunpack.c.h.b16 %v312
    %v1868 = vunpack.c.l.b16 %v313
    %v1869 = vunpack.c.h.b16 %v313
    %v1870 = vunpack.c.l.b16 %v314
    %v1871 = vunpack.c.h.b16 %v314
    %v1872 = vunpack.c.l.b16 %v315
    %v1873 = vunpack.c.h.b16 %v315
    %v1874 = vunpack.c.l.b16 %v316
    %v1875 = vunpack.c.h.b16 %v316
    %v1876 = vunpack.c.l.b16 %v317
    %v1877 = vunpack.c.h.b16 %v317
    %v1878 = vunpack.c.l.b16 %v318
    %v1879 = vunpack.c.h.b16 %v318
    %v1880 = vunpack.c.l.b16 %v319
    %v1881 = vunpack.c.h.b16 %v319
    %v1882 = vunpack.c.l.b16 %v320
    %v1883 = vunpack.c.h.b16 %v320
    %v1884 = vunpack.c.l.b16 %v321
    %v1885 = vunpack.c.h.b16 %v321
    %v1886 = vunpack.c.l.b16 %v322
    %v1887 = vunpack.c.h.b16 %v322
    %v1888 = vunpack.c.l.b16 %v323
    %v1889 = vunpack.c.h.b16 %v323
    %v1890 = vunpack.c.l.b16 %v324
    %v1891 = vunpack.c.h.b16 %v324
    %v1892 = vunpack.c.l.b16 %v325
    %v1893 = vunpack.c.h.b16 %v325
    %v1894 = vunpack.c.l.b16 %v326
    %v1895 = vunpack.c.h.b16 %v326
    %v1896 = vunpack.c.l.b16 %v327
    %v1897 = vunpack.c.h.b16 %v327
    %v1898 = vunpack.c.l.b16 %v328
    %v1899 = vunpack.c.h.b16 %v328
    %v1900 = vunpack.c.l.b16 %v329
    %v1901 = vunpack.c.h.b16 %v329
    %v1902 = vunpack.c.l.b16 %v330
    %v1903 = vunpack.c.h.b16 %v330
    %v1904 = vunpack.c.l.b16 %v331
    %v1905 = vunpack.c.h.b16 %v331
    %v1906 = vunpack.c.l.b16 %v332
    %v1907 = vunpack.c.h.b16 %v332
    %v1908 = vunpack.c.l.b16 %v333
    %v1909 = vunpack.c.h.b16 %v333
    %v1910 = vunpack.c.l.b16 %v334
    %v1911 = vunpack.c.h.b16 %v334
    %v1912 = vunpack.c.l.b16 %v335
    %v1913 = vunpack.c.h.b16 %v335
    %v1914 = vunpack.c.l.b16 %v336
    %v1915 = vunpack.c.h.b16 %v336
    %v1916 = vunpack.c.l.b16 %v337
    %v1917 = vunpack.c.h.b16 %v337
    %v1918 = vunpack.c.l.b16 %v338
    %v1919 = vunpack.c.h.b16 %v338
    %v1920 = vunpack.c.l.b16 %v339
    %v1921 = vunpack.c.h.b16 %v339
    %v1922 = vunpack.c.l.b16 %v340
    %v1923 = vunpack.c.h.b16 %v340
    %v1924 = vunpack.c.l.b16 %v341
    %v1925 = vunpack.c.h.b16 %v341
    %v1926 = vunpack.c.l.b16 %v342
    %v1927 = vunpack.c.h.b16 %v342
    %v1928 = vunpack.c.l.b16 %v343
    %v1929 = vunpack.c.h.b16 %v343
    %v1930 = vunpack.c.l.b16 %v344
    %v1931 = vunpack.c.h.b16 %v344
    %v1932 = vunpack.c.l.b16 %v345
    %v1933 = vunpack.c.h.b16 %v345
    %v1934 = vunpack.c.l.b16 %v346
    %v1935 = vunpack.c.h.b16 %v346
    %v1936 = vunpack.c.l.b16 %v347
    %v1937 = vunpack.c.h.b16 %v347
    %v1938 = vunpack.c.l.b16 %v348
    %v1939 = vunpack.c.h.b16 %v348
    %v1940 = vunpack.c.l.b16 %v349
    %v1941 = vunpack.c.h.b16 %v349
    %v1942 = vunpack.c.l.b16 %v350
    %v1943 = vunpack.c.h.b16 %v350
    %v1944 = vunpack.c.l.b16 %v351
    %v1945 = vunpack.c.h.b16 %v351
    %v1946 = vunpack.c.l.b16 %v352
    %v1947 = vunpack.c.h.b16 %v352
    %v1948 = vunpack.c.l.b16 %v353
    %v1949 = vunpack.c.h.b16 %v353
    %v1950 = vunpack.c.l.b16 %v354
    %v1951 = vunpack.c.h.b16 %v354
    %v1952 = vunpack.c.l.b16 %v355
    %v1953 = vunpack.c.h.b16 %v355
    %v1954 = vunpack.c.l.b16 %v356
    %v1955 = vunpack.c.h.b16 %v356
    %v1956 = vunpack.c.l.b16 %v357
    %v1957 = vunpack.c.h.b16 %v357
    %v1958 = vunpack.c.l.b16 %v358
    %v1959 = vunpack.c.h.b16 %v358
    %v1960 = vunpack.c.l.b16 %v359
    %v1961 = vunpack.c.h.b16 %v359
    %v1962 = vunpack.c.l.b16 %v360
    %v1963 = vunpack.c.h.b16 %v360
    %v1964 = vunpack.c.l.b16 %v361
    %v1965 = vunpack.c.h.b16 %v361
    %v1966 = vunpack.c.l.b16 %v362
    %v1967 = vunpack.c.h.b16 %v362
    %v1968 = vunpack.c.l.b16 %v363
    %v1969 = vunpack.c.h.b16 %v363
    %v1970 = vunpack.c.l.b16 %v364
    %v1971 = vunpack.c.h.b16 %v364
    %v1972 = vunpack.c.l.b16 %v365
    %v1973 = vunpack.c.h.b16 %v365
    %v1974 = vunpack.c.l.b16 %v366
    %v1975 = vunpack.c.h.b16 %v366
    %v1976 = vunpack.c.l.b16 %v367
    %v1977 = vunpack.c.h.b16 %v367
    %v1978 = vunpack.c.l.b16 %v368
    %v1979 = vunpack.c.h.b16 %v368
    %v1980 = vunpack.c.l.b16 %v369
    %v1981 = vunpack.c.h.b16 %v369
    %v1982 = vunpack.c.l.b16 %v370
    %v1983 = vunpack.c.h.b16 %v370
    %v1984 = vunpack.c.l.b16 %v371
    %v1985 = vunpack.c.h.b16 %v371
    %v1986 = vunpack.c.l.b16 %v372
    %v1987 = vunpack.c.h.b16 %v372
    %v1988 = vunpack.c.l.b16 %v373
    %v1989 = vunpack.c.h.b16 %v373
    %v1990 = vunpack.c.l.b16 %v374
    %v1991 = vunpack.c.h.b16 %v374
    %v1992 = vunpack.c.l.b16 %v375
    %v1993 = vunpack.c.h.b16 %v375
    %v1994 = vunpack.c.l.b16 %v376
    %v1995 = vunpack.c.h.b16 %v376
    %v1996 = vunpack.c.l.b16 %v377
    %v1997 = vunpack.c.h.b16 %v377
    %v1998 = vunpack.c.l.b16 %v378
    %v1999 = vunpack.c.h.b16 %v378
    %v2000 = vunpack.c.l.b16 %v379
    %v2001 = vunpack.c.h.b16 %v379
    %v2002 = vunpack.c.l.b16 %v380
    %v2003 = vunpack.c.h.b16 %v380
    %v2004 = vunpack.c.l.b16 %v381
    %v2005 = vunpack.c.h.b16 %v381
    %v2006 = vunpack.c.l.b16 %v382
    %v2007 = vunpack.c.h.b16 %v382
    %v2008 = vunpack.c.l.b16 %v383
    %v2009 = vunpack.c.h.b16 %v383
    %v2010 = vunpack.c.l.b16 %v384
    %v2011 = vunpack.c.h.b16 %v384
    %v2012 = vunpack.c.l.b16 %v385
    %v2013 = vunpack.c.h.b16 %v385
    %v2014 = vunpack.c.l.b16 %v386
    %v2015 = vunpack.c.h.b16 %v386
    %v2016 = vunpack.c.l.b16 %v387
    %v2017 = vunpack.c.h.b16 %v387
    %v2018 = vunpack.c.l.b16 %v388
    %v2019 = vunpack.c.h.b16 %v388
    %v2020 = vunpack.c.l.b16 %v389
    %v2021 = vunpack.c.h.b16 %v389
    %v2022 = vunpack.c.l.b16 %v390
    %v2023 = vunpack.c.h.b16 %v390
    %v2024 = vunpack.c.l.b16 %v391
    %v2025 = vunpack.c.h.b16 %v391
    %v2026 = vunpack.c.l.b16 %v392
    %v2027 = vunpack.c.h.b16 %v392
    %v2028 = vunpack.c.l.b16 %v393
    %v2029 = vunpack.c.h.b16 %v393
    %v2030 = vunpack.c.l.b16 %v394
    %v2031 = vunpack.c.h.b16 %v394
    %v2032 = vunpack.c.l.b16 %v395
    %v2033 = vunpack.c.h.b16 %v395
    %v2034 = vunpack.c.l.b16 %v396
    %v2035 = vunpack.c.h.b16 %v396
    %v2036 = vunpack.c.l.b16 %v397
    %v2037 = vunpack.c.h.b16 %v397
    %v2038 = vunpack.c.l.b16 %v398
    %v2039 = vunpack.c.h.b16 %v398
    %v2040 = vunpack.c.l.b16 %v399
    %v2041 = vunpack.c.h.b16 %v399
    %v2042 = vunpack.c.l.b16 %v400
    %v2043 = vunpack.c.h.b16 %v400
    %v2044 = vunpack.c.l.b16 %v401
    %v2045 = vunpack.c.h.b16 %v401
    %v2046 = vunpack.c.l.b16 %v402
    %v2047 = vunpack.c.h.b16 %v402
    %v2048 = vunpack.c.l.b16 %v403
    %v2049 = vunpack.c.h.b16 %v403
    %v2050 = vunpack.c.l.b16 %v404
    %v2051 = vunpack.c.h.b16 %v404
    %v2052 = vunpack.c.l.b16 %v405
    %v2053 = vunpack.c.h.b16 %v405
    %v2054 = vunpack.c.l.b16 %v406
    %v2055 = vunpack.c.h.b16 %v406
    %v2056 = vunpack.c.l.b16 %v407
    %v2057 = vunpack.c.h.b16 %v407
    %v2058 = vunpack.c.l.b16 %v408
    %v2059 = vunpack.c.h.b16 %v408
    %v2060 = vunpack.c.l.b16 %v409
    %v2061 = vunpack.c.h.b16 %v409
    %v2062 = vunpack.c.l.b16 %v410
    %v2063 = vunpack.c.h.b16 %v410
    %v2064 = vunpack.c.l.b16 %v411
    %v2065 = vunpack.c.h.b16 %v411
    %v2066 = vunpack.c.l.b16 %v412
    %v2067 = vunpack.c.h.b16 %v412
    %v2068 = vunpack.c.l.b16 %v413
    %v2069 = vunpack.c.h.b16 %v413
    %v2070 = vunpack.c.l.b16 %v414
    %v2071 = vunpack.c.h.b16 %v414
    %v2072 = vunpack.c.l.b16 %v415
    %v2073 = vunpack.c.h.b16 %v415
    %v2074 = vunpack.c.l.b16 %v416
    %v2075 = vunpack.c.h.b16 %v416
    %v2076 = vunpack.c.l.b16 %v417
    %v2077 = vunpack.c.h.b16 %v417
    %v2078 = vunpack.c.l.b16 %v418
    %v2079 = vunpack.c.h.b16 %v418
    %v2080 = vunpack.c.l.b16 %v419
    %v2081 = vunpack.c.h.b16 %v419
    %v2082 = vunpack.c.l.b16 %v420
    %v2083 = vunpack.c.h.b16 %v420
    %v2084 = vunpack.c.l.b16 %v421
    %v2085 = vunpack.c.h.b16 %v421
    %v2086 = vunpack.c.l.b16 %v422
    %v2087 = vunpack.c.h.b16 %v422
    %v2088 = vunpack.c.l.b16 %v423
    %v2089 = vunpack.c.h.b16 %v423
    %v2090 = vunpack.c.l.b16 %v424
    %v2091 = vunpack.c.h.b16 %v424
    %v2092 = vunpack.c.l.b16 %v425
    %v2093 = vunpack.c.h.b16 %v425
    %v2094 = vunpack.c.l.b16 %v426
    %v2095 = vunpack.c.h.b16 %v426
    %v2096 = vunpack.c.l.b16 %v427
    %v2097 = vunpack.c.h.b16 %v427
    %v2098 = vunpack.c.l.b16 %v428
    %v2099 = vunpack.c.h.b16 %v428
    %v2100 = vunpack.c.l.b16 %v429
    %v2101 = vunpack.c.h.b16 %v429
    %v2102 = vunpack.c.l.b16 %v430
    %v2103 = vunpack.c.h.b16 %v430
    %v2104 = vunpack.c.l.b16 %v431
    %v2105 = vunpack.c.h.b16 %v431
    %v2106 = vunpack.c.l.b16 %v432
    %v2107 = vunpack.c.h.b16 %v432
    %v2108 = vunpack.c.l.b16 %v433
    %v2109 = vunpack.c.h.b16 %v433
    %v2110 = vunpack.c.l.b16 %v434
    %v2111 = vunpack.c.h.b16 %v434
    %v2112 = vunpack.c.l.b16 %v435
    %v2113 = vunpack.c.h.b16 %v435
    %v2114 = vunpack.c.l.b16 %v436
    %v2115 = vunpack.c.h.b16 %v436
    %v2116 = vunpack.c.l.b16 %v437
    %v2117 = vunpack.c.h.b16 %v437
    %v2118 = vunpack.c.l.b16 %v438
    %v2119 = vunpack.c.h.b16 %v438
    %v2120 = vunpack.c.l.b16 %v439
    %v2121 = vunpack.c.h.b16 %v439
    %v2122 = vunpack.c.l.b16 %v440
    %v2123 = vunpack.c.h.b16 %v440
    %v2124 = vunpack.c.l.b16 %v441
    %v2125 = vunpack.c.h.b16 %v441
    %v2126 = vunpack.c.l.b16 %v442
    %v2127 = vunpack.c.h.b16 %v442
    %v2128 = vunpack.c.l.b16 %v443
    %v2129 = vunpack.c.h.b16 %v443
    %v2130 = vunpack.c.l.b16 %v444
    %v2131 = vunpack.c.h.b16 %v444
    %v2132 = vunpack.c.l.b16 %v445
    %v2133 = vunpack.c.h.b16 %v445
    %v2134 = vunpack.c.l.b16 %v446
    %v2135 = vunpack.c.h.b16 %v446
    %v2136 = vunpack.c.l.b16 %v447
    %v2137 = vunpack.c.h.b16 %v447
    %v2138 = vunpack.c.l.b16 %v448
    %v2139 = vunpack.c.h.b16 %v448
    %v2140 = vunpack.c.l.b16 %v449
    %v2141 = vunpack.c.h.b16 %v449
    %v2142 = vunpack.c.l.b16 %v450
    %v2143 = vunpack.c.h.b16 %v450
    %v2144 = vunpack.c.l.b16 %v451
    %v2145 = vunpack.c.h.b16 %v451
    %v2146 = vunpack.c.l.b16 %v452
    %v2147 = vunpack.c.h.b16 %v452
    %v2148 = vunpack.c.l.b16 %v453
    %v2149 = vunpack.c.h.b16 %v453
    %v2150 = vunpack.c.l.b16 %v454
    %v2151 = vunpack.c.h.b16 %v454
    %v2152 = vunpack.c.l.b16 %v455
    %v2153 = vunpack.c.h.b16 %v455
    %v2154 = vunpack.c.l.b16 %v456
    %v2155 = vunpack.c.h.b16 %v456
    %v2156 = vunpack.c.l.b16 %v457
    %v2157 = vunpack.c.h.b16 %v457
    %v2158 = vunpack.c.l.b16 %v458
    %v2159 = vunpack.c.h.b16 %v458
    %v2160 = vunpack.c.l.b16 %v459
    %v2161 = vunpack.c.h.b16 %v459
    %v2162 = vunpack.c.l.b16 %v460
    %v2163 = vunpack.c.h.b16 %v460
    %v2164 = vunpack.c.l.b16 %v461
    %v2165 = vunpack.c.h.b16 %v461
    %v2166 = vunpack.c.l.b16 %v462
    %v2167 = vunpack.c.h.b16 %v462
    %v2168 = vunpack.c.l.b16 %v463
    %v2169 = vunpack.c.h.b16 %v463
    %v2170 = vunpack.c.l.b16 %v464
    %v2171 = vunpack.c.h.b16 %v464
    %v2172 = vunpack.c.l.b16 %v465
    %v2173 = vunpack.c.h.b16 %v465
    %v2174 = vunpack.c.l.b16 %v466
    %v2175 = vunpack.c.h.b16 %v466
    %v2176 = vunpack.c.l.b16 %v467
    %v2177 = vunpack.c.h.b16 %v467
    %v2178 = vunpack.c.l.b16 %v468
    %v2179 = vunpack.c.h.b16 %v468
    %v2180 = vunpack.c.l.b16 %v469
    %v2181 = vunpack.c.h.b16 %v469
    %v2182 = vunpack.c.l.b16 %v470
    %v2183 = vunpack.c.h.b16 %v470
    %v2184 = vunpack.c.l.b16 %v471
    %v2185 = vunpack.c.h.b16 %v471
    %v2186 = vunpack.c.l.b16 %v472
    %v2187 = vunpack.c.h.b16 %v472
    %v2188 = vunpack.c.l.b16 %v473
    %v2189 = vunpack.c.h.b16 %v473
    %v2190 = vunpack.c.l.b16 %v474
    %v2191 = vunpack.c.h.b16 %v474
    %v2192 = vunpack.c.l.b16 %v475
    %v2193 = vunpack.c.h.b16 %v475
    %v2194 = vunpack.c.l.b16 %v476
    %v2195 = vunpack.c.h.b16 %v476
    %v2196 = vunpack.c.l.b16 %v477
    %v2197 = vunpack.c.h.b16 %v477
    %v2198 = vunpack.c.l.b16 %v478
    %v2199 = vunpack.c.h.b16 %v478
    %v2200 = vunpack.c.l.b16 %v479
    %v2201 = vunpack.c.h.b16 %v479
    %v2202 = vunpack.c.l.b16 %v480
    %v2203 = vunpack.c.h.b16 %v480
    %v2204 = vunpack.c.l.b16 %v481
    %v2205 = vunpack.c.h.b16 %v481
    %v2206 = vunpack.c.l.b16 %v482
    %v2207 = vunpack.c.h.b16 %v482
    %v2208 = vunpack.c.l.b16 %v483
    %v2209 = vunpack.c.h.b16 %v483
    %v2210 = vunpack.c.l.b16 %v484
    %v2211 = vunpack.c.h.b16 %v484
    %v2212 = vunpack.c.l.b16 %v485
    %v2213 = vunpack.c.h.b16 %v485
    %v2214 = vunpack.c.l.b16 %v486
    %v2215 = vunpack.c.h.b16 %v486
    %v2216 = vunpack.c.l.b16 %v487
    %v2217 = vunpack.c.h.b16 %v487
    %v2218 = vunpack.c.l.b16 %v488
    %v2219 = vunpack.c.h.b16 %v488
    %v2220 = vunpack.c.l.b16 %v489
    %v2221 = vunpack.c.h.b16 %v489
    %v2222 = vunpack.c.l.b16 %v490
    %v2223 = vunpack.c.h.b16 %v490
    %v2224 = vunpack.c.l.b16 %v491
    %v2225 = vunpack.c.h.b16 %v491
    %v2226 = vunpack.c.l.b16 %v492
    %v2227 = vunpack.c.h.b16 %v492
    %v2228 = vunpack.c.l.b16 %v493
    %v2229 = vunpack.c.h.b16 %v493
    %v2230 = vunpack.c.l.b16 %v494
    %v2231 = vunpack.c.h.b16 %v494
    %v2232 = vunpack.c.l.b16 %v495
    %v2233 = vunpack.c.h.b16 %v495
    %v2234 = vunpack.c.l.b16 %v496
    %v2235 = vunpack.c.h.b16 %v496
    %v2236 = vunpack.c.l.b16 %v497
    %v2237 = vunpack.c.h.b16 %v497
    %v2238 = vunpack.c.l.b16 %v498
    %v2239 = vunpack.c.h.b16 %v498
    %v2240 = vunpack.c.l.b16 %v499
    %v2241 = vunpack.c.h.b16 %v499
    %v2242 = vunpack.c.l.b16 %v500
    %v2243 = vunpack.c.h.b16 %v500
    %v2244 = vunpack.c.l.b16 %v501
    %v2245 = vunpack.c.h.b16 %v501
    %v2246 = vunpack.c.l.b16 %v502
    %v2247 = vunpack.c.h.b16 %v502
    %v2248 = vunpack.c.l.b16 %v503
    %v2249 = vunpack.c.h.b16 %v503
    %v2250 = vunpack.c.l.b16 %v504
    %v2251 = vunpack.c.h.b16 %v504
    %v2252 = vunpack.c.l.b16 %v505
    %v2253 = vunpack.c.h.b16 %v505
    %v2254 = vunpack.c.l.b16 %v506
    %v2255 = vunpack.c.h.b16 %v506
    %v2256 = vunpack.c.l.b16 %v507
    %v2257 = vunpack.c.h.b16 %v507
    %v2258 = vunpack.c.l.b16 %v508
    %v2259 = vunpack.c.h.b16 %v508
    %v2260 = vunpack.c.l.b16 %v509
    %v2261 = vunpack.c.h.b16 %v509
    %v2262 = vunpack.c.l.b16 %v510
    %v2263 = vunpack.c.h.b16 %v510
    %v2264 = vunpack.c.l.b16 %v511
    %v2265 = vunpack.c.h.b16 %v511
    %v2266 = vunpack.c.l.b16 %v512
    %v2267 = vunpack.c.h.b16 %v512
    %v2268 = vunpack.c.l.b16 %v513
    %v2269 = vunpack.c.h.b16 %v513
    %v2270 = vunpack.c.l.b16 %v514
    %v2271 = vunpack.c.h.b16 %v514
    %v2272 = vunpack.c.l.b16 %v515
    %v2273 = vunpack.c.h.b16 %v515
    %v2274 = vunpack.c.l.b16 %v516
    %v2275 = vunpack.c.h.b16 %v516
    %v2276 = vunpack.c.l.b16 %v517
    %v2277 = vunpack.c.h.b16 %v517
    %v2278 = vunpack.c.l.b16 %v518
    %v2279 = vunpack.c.h.b16 %v518
    %v2280 = vunpack.c.l.b16 %v519
    %v2281 = vunpack.c.h.b16 %v519
    %v2282 = vunpack.c.l.b16 %v520
    %v2283 = vunpack.c.h.b16 %v520
    %v2284 = vunpack.c.l.b16 %v521
    %v2285 = vunpack.c.h.b16 %v521
    %v2286 = vunpack.c.l.b16 %v522
    %v2287 = vunpack.c.h.b16 %v522
    %v2288 = vunpack.c.l.b16 %v523
    %v2289 = vunpack.c.h.b16 %v523
    %v2290 = vunpack.c.l.b16 %v524
    %v2291 = vunpack.c.h.b16 %v524
    %v2292 = vunpack.c.l.b16 %v525
    %v2293 = vunpack.c.h.b16 %v525
    %v2294 = vunpack.c.l.b16 %v526
    %v2295 = vunpack.c.h.b16 %v526
    %v2296 = vunpack.c.l.b16 %v527
    %v2297 = vunpack.c.h.b16 %v527
    %v2298 = vunpack.c.l.b16 %v528
    %v2299 = vunpack.c.h.b16 %v528
    %v2300 = vunpack.c.l.b16 %v529
    %v2301 = vunpack.c.h.b16 %v529
    %v2302 = vunpack.c.l.b16 %v530
    %v2303 = vunpack.c.h.b16 %v530
    %v2304 = vunpack.c.l.b16 %v531
    %v2305 = vunpack.c.h.b16 %v531
    %v2306 = vunpack.c.l.b16 %v532
    %v2307 = vunpack.c.h.b16 %v532
    %v2308 = vunpack.c.l.b16 %v533
    %v2309 = vunpack.c.h.b16 %v533
    %v2310 = vunpack.c.l.b16 %v534
    %v2311 = vunpack.c.h.b16 %v534
    %v2312 = vunpack.c.l.b16 %v535
    %v2313 = vunpack.c.h.b16 %v535
    %v2314 = vunpack.c.l.b16 %v536
    %v2315 = vunpack.c.h.b16 %v536
    %v2316 = vunpack.c.l.b16 %v537
    %v2317 = vunpack.c.h.b16 %v537
    %v2318 = vpack.c.b16 %v1296, %v1294
    %v2319 = vpack.c.b16 %v1297, %v1295
    %v2320 = vpack.c.b16 %v1300, %v1298
    %v2321 = vpack.c.b16 %v1301, %v1299
    %v2322 = vpack.c.b16 %v1304, %v1302
    %v2323 = vpack.c.b16 %v1305, %v1303
    %v2324 = vpack.c.b16 %v1308, %v1306
    %v2325 = vpack.c.b16 %v1309, %v1307
    %v2326 = vpack.c.b16 %v1312, %v1310
    %v2327 = vpack.c.b16 %v1313, %v1311
    %v2328 = vpack.c.b16 %v1316, %v1314
    %v2329 = vpack.c.b16 %v1317, %v1315
    %v2330 = vpack.c.b16 %v1320, %v1318
    %v2331 = vpack.c.b16 %v1321, %v1319
    %v2332 = vpack.c.b16 %v1324, %v1322
    %v2333 = vpack.c.b16 %v1325, %v1323
    %v2334 = vpack.c.b16 %v1328, %v1326
    %v2335 = vpack.c.b16 %v1329, %v1327
    %v2336 = vpack.c.b16 %v1332, %v1330
    %v2337 = vpack.c.b16 %v1333, %v1331
    %v2338 = vpack.c.b16 %v1336, %v1334
    %v2339 = vpack.c.b16 %v1337, %v1335
    %v2340 = vpack.c.b16 %v1340, %v1338
    %v2341 = vpack.c.b16 %v1341, %v1339
    %v2342 = vpack.c.b16 %v1344, %v1342
    %v2343 = vpack.c.b16 %v1345, %v1343
    %v2344 = vpack.c.b16 %v1348, %v1346
    %v2345 = vpack.c.b16 %v1349, %v1347
    %v2346 = vpack.c.b16 %v1352, %v1350
    %v2347 = vpack.c.b16 %v1353, %v1351
    %v2348 = vpack.c.b16 %v1356, %v1354
    %v2349 = vpack.c.b16 %v1357, %v1355
    %v2350 = vpack.c.b16 %v1360, %v1358
    %v2351 = vpack.c.b16 %v1361, %v1359
    %v2352 = vpack.c.b16 %v1364, %v1362
    %v2353 = vpack.c.b16 %v1365, %v1363
    %v2354 = vpack.c.b16 %v1368, %v1366
    %v2355 = vpack.c.b16 %v1369, %v1367
    %v2356 = vpack.c.b16 %v1372, %v1370
    %v2357 = vpack.c.b16 %v1373, %v1371
    %v2358 = vpack.c.b16 %v1376, %v1374
    %v2359 = vpack.c.b16 %v1377, %v1375
    %v2360 = vpack.c.b16 %v1380, %v1378
    %v2361 = vpack.c.b16 %v1381, %v1379
    %v2362 = vpack.c.b16 %v1384, %v1382
    %v2363 = vpack.c.b16 %v1385, %v1383
    %v2364 = vpack.c.b16 %v1388, %v1386
    %v2365 = vpack.c.b16 %v1389, %v1387
    %v2366 = vpack.c.b16 %v1392, %v1390
    %v2367 = vpack.c.b16 %v1393, %v1391
    %v2368 = vpack.c.b16 %v1396, %v1394
    %v2369 = vpack.c.b16 %v1397, %v1395
    %v2370 = vpack.c.b16 %v1400, %v1398
    %v2371 = vpack.c.b16 %v1401, %v1399
    %v2372 = vpack.c.b16 %v1404, %v1402
    %v2373 = vpack.c.b16 %v1405, %v1403
    %v2374 = vpack.c.b16 %v1408, %v1406
    %v2375 = vpack.c.b16 %v1409, %v1407
    %v2376 = vpack.c.b16 %v1412, %v1410
    %v2377 = vpack.c.b16 %v1413, %v1411
    %v2378 = vpack.c.b16 %v1416, %v1414
    %v2379 = vpack.c.b16 %v1417, %v1415
    %v2380 = vpack.c.b16 %v1420, %v1418
    %v2381 = vpack.c.b16 %v1421, %v1419
    %v2382 = vpack.c.b16 %v1424, %v1422
    %v2383 = vpack.c.b16 %v1425, %v1423
    %v2384 = vpack.c.b16 %v1428, %v1426
    %v2385 = vpack.c.b16 %v1429, %v1427
    %v2386 = vpack.c.b16 %v1432, %v1430
    %v2387 = vpack.c.b16 %v1433, %v1431
    %v2388 = vpack.c.b16 %v1436, %v1434
    %v2389 = vpack.c.b16 %v1437, %v1435
    %v2390 = vpack.c.b16 %v1440, %v1438
    %v2391 = vpack.c.b16 %v1441, %v1439
    %v2392 = vpack.c.b16 %v1444, %v1442
    %v2393 = vpack.c.b16 %v1445, %v1443
    %v2394 = vpack.c.b16 %v1448, %v1446
    %v2395 = vpack.c.b16 %v1449, %v1447
    %v2396 = vpack.c.b16 %v1452, %v1450
    %v2397 = vpack.c.b16 %v1453, %v1451
    %v2398 = vpack.c.b16 %v1456, %v1454
    %v2399 = vpack.c.b16 %v1457, %v1455
    %v2400 = vpack.c.b16 %v1460, %v1458
    %v2401 = vpack.c.b16 %v1461, %v1459
    %v2402 = vpack.c.b16 %v1464, %v1462
    %v2403 = vpack.c.b16 %v1465, %v1463
    %v2404 = vpack.c.b16 %v1468, %v1466
    %v2405 = vpack.c.b16 %v1469, %v1467
    %v2406 = vpack.c.b16 %v1472, %v1470
    %v2407 = vpack.c.b16 %v1473, %v1471
    %v2408 = vpack.c.b16 %v1476, %v1474
    %v2409 = vpack.c.b16 %v1477, %v1475
    %v2410 = vpack.c.b16 %v1480, %v1478
    %v2411 = vpack.c.b16 %v1481, %v1479
    %v2412 = vpack.c.b16 %v1484, %v1482
    %v2413 = vpack.c.b16 %v1485, %v1483
    %v2414 = vpack.c.b16 %v1488, %v1486
    %v2415 = vpack.c.b16 %v1489, %v1487
    %v2416 = vpack.c.b16 %v1492, %v1490
    %v2417 = vpack.c.b16 %v1493, %v1491
    %v2418 = vpack.c.b16 %v1496, %v1494
    %v2419 = vpack.c.b16 %v1497, %v1495
    %v2420 = vpack.c.b16 %v1500, %v1498
    %v2421 = vpack.c.b16 %v1501, %v1499
    %v2422 = vpack.c.b16 %v1504, %v1502
    %v2423 = vpack.c.b16 %v1505, %v1503
    %v2424 = vpack.c.b16 %v1508, %v1506
    %v2425 = vpack.c.b16 %v1509, %v1507
    %v2426 = vpack.c.b16 %v1512, %v1510
    %v2427 = vpack.c.b16 %v1513, %v1511
    %v2428 = vpack.c.b16 %v1516, %v1514
    %v2429 = vpack.c.b16 %v1517, %v1515
    %v2430 = vpack.c.b16 %v1520, %v1518
    %v2431 = vpack.c.b16 %v1521, %v1519
    %v2432 = vpack.c.b16 %v1524, %v1522
    %v2433 = vpack.c.b16 %v1525, %v1523
    %v2434 = vpack.c.b16 %v1528, %v1526
    %v2435 = vpack.c.b16 %v1529, %v1527
    %v2436 = vpack.c.b16 %v1532, %v1530
    %v2437 = vpack.c.b16 %v1533, %v1531
    %v2438 = vpack.c.b16 %v1536, %v1534
    %v2439 = vpack.c.b16 %v1537, %v1535
    %v2440 = vpack.c.b16 %v1540, %v1538
    %v2441 = vpack.c.b16 %v1541, %v1539
    %v2442 = vpack.c.b16 %v1544, %v1542
    %v2443 = vpack.c.b16 %v1545, %v1543
    %v2444 = vpack.c.b16 %v1548, %v1546
    %v2445 = vpack.c.b16 %v1549, %v1547
    %v2446 = vpack.c.b16 %v1552, %v1550
    %v2447 = vpack.c.b16 %v1553, %v1551
    %v2448 = vpack.c.b16 %v1556, %v1554
    %v2449 = vpack.c.b16 %v1557, %v1555
    %v2450 = vpack.c.b16 %v1560, %v1558
    %v2451 = vpack.c.b16 %v1561, %v1559
    %v2452 = vpack.c.b16 %v1564, %v1562
    %v2453 = vpack.c.b16 %v1565, %v1563
    %v2454 = vpack.c.b16 %v1568, %v1566
    %v2455 = vpack.c.b16 %v1569, %v1567
    %v2456 = vpack.c.b16 %v1572, %v1570
    %v2457 = vpack.c.b16 %v1573, %v1571
    %v2458 = vpack.c.b16 %v1576, %v1574
    %v2459 = vpack.c.b16 %v1577, %v1575
    %v2460 = vpack.c.b16 %v1580, %v1578
    %v2461 = vpack.c.b16 %v1581, %v1579
    %v2462 = vpack.c.b16 %v1584, %v1582
    %v2463 = vpack.c.b16 %v1585, %v1583
    %v2464 = vpack.c.b16 %v1588, %v1586
    %v2465 = vpack.c.b16 %v1589, %v1587
    %v2466 = vpack.c.b16 %v1592, %v1590
    %v2467 = vpack.c.b16 %v1593, %v1591
    %v2468 = vpack.c.b16 %v1596, %v1594
    %v2469 = vpack.c.b16 %v1597, %v1595
    %v2470 = vpack.c.b16 %v1600, %v1598
    %v2471 = vpack.c.b16 %v1601, %v1599
    %v2472 = vpack.c.b16 %v1604, %v1602
    %v2473 = vpack.c.b16 %v1605, %v1603
    %v2474 = vpack.c.b16 %v1608, %v1606
    %v2475 = vpack.c.b16 %v1609, %v1607
    %v2476 = vpack.c.b16 %v1612, %v1610
    %v2477 = vpack.c.b16 %v1613, %v1611
    %v2478 = vpack.c.b16 %v1616, %v1614
    %v2479 = vpack.c.b16 %v1617, %v1615
    %v2480 = vpack.c.b16 %v1620, %v1618
    %v2481 = vpack.c.b16 %v1621, %v1619
    %v2482 = vpack.c.b16 %v1624, %v1622
    %v2483 = vpack.c.b16 %v1625, %v1623
    %v2484 = vpack.c.b16 %v1628, %v1626
    %v2485 = vpack.c.b16 %v1629, %v1627
    %v2486 = vpack.c.b16 %v1632, %v1630
    %v2487 = vpack.c.b16 %v1633, %v1631
    %v2488 = vpack.c.b16 %v1636, %v1634
    %v2489 = vpack.c.b16 %v1637, %v1635
    %v2490 = vpack.c.b16 %v1640, %v1638
    %v2491 = vpack.c.b16 %v1641, %v1639
    %v2492 = vpack.c.b16 %v1644, %v1642
    %v2493 = vpack.c.b16 %v1645, %v1643
    %v2494 = vpack.c.b16 %v1648, %v1646
    %v2495 = vpack.c.b16 %v1649, %v1647
    %v2496 = vpack.c.b16 %v1652, %v1650
    %v2497 = vpack.c.b16 %v1653, %v1651
    %v2498 = vpack.c.b16 %v1656, %v1654
    %v2499 = vpack.c.b16 %v1657, %v1655
    %v2500 = vpack.c.b16 %v1660, %v1658
    %v2501 = vpack.c.b16 %v1661, %v1659
    %v2502 = vpack.c.b16 %v1664, %v1662
    %v2503 = vpack.c.b16 %v1665, %v1663
    %v2504 = vpack.c.b16 %v1668, %v1666
    %v2505 = vpack.c.b16 %v1669, %v1667
    %v2506 = vpack.c.b16 %v1672, %v1670
    %v2507 = vpack.c.b16 %v1673, %v1671
    %v2508 = vpack.c.b16 %v1676, %v1674
    %v2509 = vpack.c.b16 %v1677, %v1675
    %v2510 = vpack.c.b16 %v1680, %v1678
    %v2511 = vpack.c.b16 %v1681, %v1679
    %v2512 = vpack.c.b16 %v1684, %v1682
    %v2513 = vpack.c.b16 %v1685, %v1683
    %v2514 = vpack.c.b16 %v1688, %v1686
    %v2515 = vpack.c.b16 %v1689, %v1687
    %v2516 = vpack.c.b16 %v1692, %v1690
    %v2517 = vpack.c.b16 %v1693, %v1691
    %v2518 = vpack.c.b16 %v1696, %v1694
    %v2519 = vpack.c.b16 %v1697, %v1695
    %v2520 = vpack.c.b16 %v1700, %v1698
    %v2521 = vpack.c.b16 %v1701, %v1699
    %v2522 = vpack.c.b16 %v1704, %v1702
    %v2523 = vpack.c.b16 %v1705, %v1703
    %v2524 = vpack.c.b16 %v1708, %v1706
    %v2525 = vpack.c.b16 %v1709, %v1707
    %v2526 = vpack.c.b16 %v1712, %v1710
    %v2527 = vpack.c.b16 %v1713, %v1711
    %v2528 = vpack.c.b16 %v1716, %v1714
    %v2529 = vpack.c.b16 %v1717, %v1715
    %v2530 = vpack.c.b16 %v1720, %v1718
    %v2531 = vpack.c.b16 %v1721, %v1719
    %v2532 = vpack.c.b16 %v1724, %v1722
    %v2533 = vpack.c.b16 %v1725, %v1723
    %v2534 = vpack.c.b16 %v1728, %v1726
    %v2535 = vpack.c.b16 %v1729, %v1727
    %v2536 = vpack.c.b16 %v1732, %v1730
    %v2537 = vpack.c.b16 %v1733, %v1731
    %v2538 = vpack.c.b16 %v1736, %v1734
    %v2539 = vpack.c.b16 %v1737, %v1735
    %v2540 = vpack.c.b16 %v1740, %v1738
    %v2541 = vpack.c.b16 %v1741, %v1739
    %v2542 = vpack.c.b16 %v1744, %v1742
    %v2543 = vpack.c.b16 %v1745, %v1743
    %v2544 = vpack.c.b16 %v1748, %v1746
    %v2545 = vpack.c.b16 %v1749, %v1747
    %v2546 = vpack.c.b16 %v1752, %v1750
    %v2547 = vpack.c.b16 %v1753, %v1751
    %v2548 = vpack.c.b16 %v1756, %v1754
    %v2549 = vpack.c.b16 %v1757, %v1755
    %v2550 = vpack.c.b16 %v1760, %v1758
    %v2551 = vpack.c.b16 %v1761, %v1759
    %v2552 = vpack.c.b16 %v1764, %v1762
    %v2553 = vpack.c.b16 %v1765, %v1763
    %v2554 = vpack.c.b16 %v1768, %v1766
    %v2555 = vpack.c.b16 %v1769, %v1767
    %v2556 = vpack.c.b16 %v1772, %v1770
    %v2557 = vpack.c.b16 %v1773, %v1771
    %v2558 = vpack.c.b16 %v1776, %v1774
    %v2559 = vpack.c.b16 %v1777, %v1775
    %v2560 = vpack.c.b16 %v1780, %v1778
    %v2561 = vpack.c.b16 %v1781, %v1779
    %v2562 = vpack.c.b16 %v1784, %v1782
    %v2563 = vpack.c.b16 %v1785, %v1783
    %v2564 = vpack.c.b16 %v1788, %v1786
    %v2565 = vpack.c.b16 %v1789, %v1787
    %v2566 = vpack.c.b16 %v1792, %v1790
    %v2567 = vpack.c.b16 %v1793, %v1791
    %v2568 = vpack.c.b16 %v1796, %v1794
    %v2569 = vpack.c.b16 %v1797, %v1795
    %v2570 = vpack.c.b16 %v1800, %v1798
    %v2571 = vpack.c.b16 %v1801, %v1799
    %v2572 = vpack.c.b16 %v1804, %v1802
    %v2573 = vpack.c.b16 %v1805, %v1803
    %v2574 = vpack.c.b16 %v1808, %v1806
    %v2575 = vpack.c.b16 %v1809, %v1807
    %v2576 = vpack.c.b16 %v1812, %v1810
    %v2577 = vpack.c.b16 %v1813, %v1811
    %v2578 = vpack.c.b16 %v1816, %v1814
    %v2579 = vpack.c.b16 %v1817, %v1815
    %v2580 = vpack.c.b16 %v1820, %v1818
    %v2581 = vpack.c.b16 %v1821, %v1819
    %v2582 = vpack.c.b16 %v1824, %v1822
    %v2583 = vpack.c.b16 %v1825, %v1823
    %v2584 = vpack.c.b16 %v1828, %v1826
    %v2585 = vpack.c.b16 %v1829, %v1827
    %v2586 = vpack.c.b16 %v1832, %v1830
    %v2587 = vpack.c.b16 %v1833, %v1831
    %v2588 = vpack.c.b16 %v1836, %v1834
    %v2589 = vpack.c.b16 %v1837, %v1835
    %v2590 = vpack.c.b16 %v1840, %v1838
    %v2591 = vpack.c.b16 %v1841, %v1839
    %v2592 = vpack.c.b16 %v1844, %v1842
    %v2593 = vpack.c.b16 %v1845, %v1843
    %v2594 = vpack.c.b16 %v1848, %v1846
    %v2595 = vpack.c.b16 %v1849, %v1847
    %v2596 = vpack.c.b16 %v1852, %v1850
    %v2597 = vpack.c.b16 %v1853, %v1851
    %v2598 = vpack.c.b16 %v1856, %v1854
    %v2599 = vpack.c.b16 %v1857, %v1855
    %v2600 = vpack.c.b16 %v1860, %v1858
    %v2601 = vpack.c.b16 %v1861, %v1859
    %v2602 = vpack.c.b16 %v1864, %v1862
    %v2603 = vpack.c.b16 %v1865, %v1863
    %v2604 = vpack.c.b16 %v1868, %v1866
    %v2605 = vpack.c.b16 %v1869, %v1867
    %v2606 = vpack.c.b16 %v1872, %v1870
    %v2607 = vpack.c.b16 %v1873, %v1871
    %v2608 = vpack.c.b16 %v1876, %v1874
    %v2609 = vpack.c.b16 %v1877, %v1875
    %v2610 = vpack.c.b16 %v1880, %v1878
    %v2611 = vpack.c.b16 %v1881, %v1879
    %v2612 = vpack.c.b16 %v1884, %v1882
    %v2613 = vpack.c.b16 %v1885, %v1883
    %v2614 = vpack.c.b16 %v1888, %v1886
    %v2615 = vpack.c.b16 %v1889, %v1887
    %v2616 = vpack.c.b16 %v1892, %v1890
    %v2617 = vpack.c.b16 %v1893, %v1891
    %v2618 = vpack.c.b16 %v1896, %v1894
    %v2619 = vpack.c.b16 %v1897, %v1895
    %v2620 = vpack.c.b16 %v1900, %v1898
    %v2621 = vpack.c.b16 %v1901, %v1899
    %v2622 = vpack.c.b16 %v1904, %v1902
    %v2623 = vpack.c.b16 %v1905, %v1903
    %v2624 = vpack.c.b16 %v1908, %v1906
    %v2625 = vpack.c.b16 %v1909, %v1907
    %v2626 = vpack.c.b16 %v1912, %v1910
    %v2627 = vpack.c.b16 %v1913, %v1911
    %v2628 = vpack.c.b16 %v1916, %v1914
    %v2629 = vpack.c.b16 %v1917, %v1915
    %v2630 = vpack.c.b16 %v1920, %v1918
    %v2631 = vpack.c.b16 %v1921, %v1919
    %v2632 = vpack.c.b16 %v1924, %v1922
    %v2633 = vpack.c.b16 %v1925, %v1923
    %v2634 = vpack.c.b16 %v1928, %v1926
    %v2635 = vpack.c.b16 %v1929, %v1927
    %v2636 = vpack.c.b16 %v1932, %v1930
    %v2637 = vpack.c.b16 %v1933, %v1931
    %v2638 = vpack.c.b16 %v1936, %v1934
    %v2639 = vpack.c.b16 %v1937, %v1935
    %v2640 = vpack.c.b16 %v1940, %v1938
    %v2641 = vpack.c.b16 %v1941, %v1939
    %v2642 = vpack.c.b16 %v1944, %v1942
    %v2643 = vpack.c.b16 %v1945, %v1943
    %v2644 = vpack.c.b16 %v1948, %v1946
    %v2645 = vpack.c.b16 %v1949, %v1947
    %v2646 = vpack.c.b16 %v1952, %v1950
    %v2647 = vpack.c.b16 %v1953, %v1951
    %v2648 = vpack.c.b16 %v1956, %v1954
    %v2649 = vpack.c.b16 %v1957, %v1955
    %v2650 = vpack.c.b16 %v1960, %v1958
    %v2651 = vpack.c.b16 %v1961, %v1959
    %v2652 = vpack.c.b16 %v1964, %v1962
    %v2653 = vpack.c.b16 %v1965, %v1963
    %v2654 = vpack.c.b16 %v1968, %v1966
    %v2655 = vpack.c.b16 %v1969, %v1967
    %v2656 = vpack.c.b16 %v1972, %v1970
    %v2657 = vpack.c.b16 %v1973, %v1971
    %v2658 = vpack.c.b16 %v1976, %v1974
    %v2659 = vpack.c.b16 %v1977, %v1975
    %v2660 = vpack.c.b16 %v1980, %v1978
    %v2661 = vpack.c.b16 %v1981, %v1979
    %v2662 = vpack.c.b16 %v1984, %v1982
    %v2663 = vpack.c.b16 %v1985, %v1983
    %v2664 = vpack.c.b16 %v1988, %v1986
    %v2665 = vpack.c.b16 %v1989, %v1987
    %v2666 = vpack.c.b16 %v1992, %v1990
    %v2667 = vpack.c.b16 %v1993, %v1991
    %v2668 = vpack.c.b16 %v1996, %v1994
    %v2669 = vpack.c.b16 %v1997, %v1995
    %v2670 = vpack.c.b16 %v2000, %v1998
    %v2671 = vpack.c.b16 %v2001, %v1999
    %v2672 = vpack.c.b16 %v2004, %v2002
    %v2673 = vpack.c.b16 %v2005, %v2003
    %v2674 = vpack.c.b16 %v2008, %v2006
    %v2675 = vpack.c.b16 %v2009, %v2007
    %v2676 = vpack.c.b16 %v2012, %v2010
    %v2677 = vpack.c.b16 %v2013, %v2011
    %v2678 = vpack.c.b16 %v2016, %v2014
    %v2679 = vpack.c.b16 %v2017, %v2015
    %v2680 = vpack.c.b16 %v2020, %v2018
    %v2681 = vpack.c.b16 %v2021, %v2019
    %v2682 = vpack.c.b16 %v2024, %v2022
    %v2683 = vpack.c.b16 %v2025, %v2023
    %v2684 = vpack.c.b16 %v2028, %v2026
    %v2685 = vpack.c.b16 %v2029, %v2027
    %v2686 = vpack.c.b16 %v2032, %v2030
    %v2687 = vpack.c.b16 %v2033, %v2031
    %v2688 = vpack.c.b16 %v2036, %v2034
    %v2689 = vpack.c.b16 %v2037, %v2035
    %v2690 = vpack.c.b16 %v2040, %v2038
    %v2691 = vpack.c.b16 %v2041, %v2039
    %v2692 = vpack.c.b16 %v2044, %v2042
    %v2693 = vpack.c.b16 %v2045, %v2043
    %v2694 = vpack.c.b16 %v2048, %v2046
    %v2695 = vpack.c.b16 %v2049, %v2047
    %v2696 = vpack.c.b16 %v2052, %v2050
    %v2697 = vpack.c.b16 %v2053, %v2051
    %v2698 = vpack.c.b16 %v2056, %v2054
    %v2699 = vpack.c.b16 %v2057, %v2055
    %v2700 = vpack.c.b16 %v2060, %v2058
    %v2701 = vpack.c.b16 %v2061, %v2059
    %v2702 = vpack.c.b16 %v2064, %v2062
    %v2703 = vpack.c.b16 %v2065, %v2063
    %v2704 = vpack.c.b16 %v2068, %v2066
    %v2705 = vpack.c.b16 %v2069, %v2067
    %v2706 = vpack.c.b16 %v2072, %v2070
    %v2707 = vpack.c.b16 %v2073, %v2071
    %v2708 = vpack.c.b16 %v2076, %v2074
    %v2709 = vpack.c.b16 %v2077, %v2075
    %v2710 = vpack.c.b16 %v2080, %v2078
    %v2711 = vpack.c.b16 %v2081, %v2079
    %v2712 = vpack.c.b16 %v2084, %v2082
    %v2713 = vpack.c.b16 %v2085, %v2083
    %v2714 = vpack.c.b16 %v2088, %v2086
    %v2715 = vpack.c.b16 %v2089, %v2087
    %v2716 = vpack.c.b16 %v2092, %v2090
    %v2717 = vpack.c.b16 %v2093, %v2091
    %v2718 = vpack.c.b16 %v2096, %v2094
    %v2719 = vpack.c.b16 %v2097, %v2095
    %v2720 = vpack.c.b16 %v2100, %v2098
    %v2721 = vpack.c.b16 %v2101, %v2099
    %v2722 = vpack.c.b16 %v2104, %v2102
    %v2723 = vpack.c.b16 %v2105, %v2103
    %v2724 = vpack.c.b16 %v2108, %v2106
    %v2725 = vpack.c.b16 %v2109, %v2107
    %v2726 = vpack.c.b16 %v2112, %v2110
    %v2727 = vpack.c.b16 %v2113, %v2111
    %v2728 = vpack.c.b16 %v2116, %v2114
    %v2729 = vpack.c.b16 %v2117, %v2115
    %v2730 = vpack.c.b16 %v2120, %v2118
    %v2731 = vpack.c.b16 %v2121, %v2119
    %v2732 = vpack.c.b16 %v2124, %v2122
    %v2733 = vpack.c.b16 %v2125, %v2123
    %v2734 = vpack.c.b16 %v2128, %v2126
    %v2735 = vpack.c.b16 %v2129, %v2127
    %v2736 = vpack.c.b16 %v2132, %v2130
    %v2737 = vpack.c.b16 %v2133, %v2131
    %v2738 = vpack.c.b16 %v2136, %v2134
    %v2739 = vpack.c.b16 %v2137, %v2135
    %v2740 = vpack.c.b16 %v2140, %v2138
    %v2741 = vpack.c.b16 %v2141, %v2139
    %v2742 = vpack.c.b16 %v2144, %v2142
    %v2743 = vpack.c.b16 %v2145, %v2143
    %v2744 = vpack.c.b16 %v2148, %v2146
    %v2745 = vpack.c.b16 %v2149, %v2147
    %v2746 = vpack.c.b16 %v2152, %v2150
    %v2747 = vpack.c.b16 %v2153, %v2151
    %v2748 = vpack.c.b16 %v2156, %v2154
    %v2749 = vpack.c.b16 %v2157, %v2155
    %v2750 = vpack.c.b16 %v2160, %v2158
    %v2751 = vpack.c.b16 %v2161, %v2159
    %v2752 = vpack.c.b16 %v2164, %v2162
    %v2753 = vpack.c.b16 %v2165, %v2163
    %v2754 = vpack.c.b16 %v2168, %v2166
    %v2755 = vpack.c.b16 %v2169, %v2167
    %v2756 = vpack.c.b16 %v2172, %v2170
    %v2757 = vpack.c.b16 %v2173, %v2171
    %v2758 = vpack.c.b16 %v2176, %v2174
    %v2759 = vpack.c.b16 %v2177, %v2175
    %v2760 = vpack.c.b16 %v2180, %v2178
    %v2761 = vpack.c.b16 %v2181, %v2179
    %v2762 = vpack.c.b16 %v2184, %v2182
    %v2763 = vpack.c.b16 %v2185, %v2183
    %v2764 = vpack.c.b16 %v2188, %v2186
    %v2765 = vpack.c.b16 %v2189, %v2187
    %v2766 = vpack.c.b16 %v2192, %v2190
    %v2767 = vpack.c.b16 %v2193, %v2191
    %v2768 = vpack.c.b16 %v2196, %v2194
    %v2769 = vpack.c.b16 %v2197, %v2195
    %v2770 = vpack.c.b16 %v2200, %v2198
    %v2771 = vpack.c.b16 %v2201, %v2199
    %v2772 = vpack.c.b16 %v2204, %v2202
    %v2773 = vpack.c.b16 %v2205, %v2203
    %v2774 = vpack.c.b16 %v2208, %v2206
    %v2775 = vpack.c.b16 %v2209, %v2207
    %v2776 = vpack.c.b16 %v2212, %v2210
    %v2777 = vpack.c.b16 %v2213, %v2211
    %v2778 = vpack.c.b16 %v2216, %v2214
    %v2779 = vpack.c.b16 %v2217, %v2215
    %v2780 = vpack.c.b16 %v2220, %v2218
    %v2781 = vpack.c.b16 %v2221, %v2219
    %v2782 = vpack.c.b16 %v2224, %v2222
    %v2783 = vpack.c.b16 %v2225, %v2223
    %v2784 = vpack.c.b16 %v2228, %v2226
    %v2785 = vpack.c.b16 %v2229, %v2227
    %v2786 = vpack.c.b16 %v2232, %v2230
    %v2787 = vpack.c.b16 %v2233, %v2231
    %v2788 = vpack.c.b16 %v2236, %v2234
    %v2789 = vpack.c.b16 %v2237, %v2235
    %v2790 = vpack.c.b16 %v2240, %v2238
    %v2791 = vpack.c.b16 %v2241, %v2239
    %v2792 = vpack.c.b16 %v2244, %v2242
    %v2793 = vpack.c.b16 %v2245, %v2243
    %v2794 = vpack.c.b16 %v2248, %v2246
    %v2795 = vpack.c.b16 %v2249, %v2247
    %v2796 = vpack.c.b16 %v2252, %v2250
    %v2797 = vpack.c.b16 %v2253, %v2251
    %v2798 = vpack.c.b16 %v2256, %v2254
    %v2799 = vpack.c.b16 %v2257, %v2255
    %v2800 = vpack.c.b16 %v2260, %v2258
    %v2801 = vpack.c.b16 %v2261, %v2259
    %v2802 = vpack.c.b16 %v2264, %v2262
    %v2803 = vpack.c.b16 %v2265, %v2263
    %v2804 = vpack.c.b16 %v2268, %v2266
    %v2805 = vpack.c.b16 %v2269, %v2267
    %v2806 = vpack.c.b16 %v2272, %v2270
    %v2807 = vpack.c.b16 %v2273, %v2271
    %v2808 = vpack.c.b16 %v2276, %v2274
    %v2809 = vpack.c.b16 %v2277, %v2275
    %v2810 = vpack.c.b16 %v2280, %v2278
    %v2811 = vpack.c.b16 %v2281, %v2279
    %v2812 = vpack.c.b16 %v2284, %v2282
    %v2813 = vpack.c.b16 %v2285, %v2283
    %v2814 = vpack.c.b16 %v2288, %v2286
    %v2815 = vpack.c.b16 %v2289, %v2287
    %v2816 = vpack.c.b16 %v2292, %v2290
    %v2817 = vpack.c.b16 %v2293, %v2291
    %v2818 = vpack.c.b16 %v2296, %v2294
    %v2819 = vpack.c.b16 %v2297, %v2295
    %v2820 = vpack.c.b16 %v2300, %v2298
    %v2821 = vpack.c.b16 %v2301, %v2299
    %v2822 = vpack.c.b16 %v2304, %v2302
    %v2823 = vpack.c.b16 %v2305, %v2303
    %v2824 = vpack.c.b16 %v2308, %v2306
    %v2825 = vpack.c.b16 %v2309, %v2307
    %v2826 = vpack.c.b16 %v2312, %v2310
    %v2827 = vpack.c.b16 %v2313, %v2311
    %v2828 = vpack.c.b16 %v2316, %v2314
    %v2829 = vpack.c.b16 %v2317, %v2315
    %3342 = vmatprep.subr.bf16.mxu0 %v2333
    %3343 = vmatpush1.bf16.msra.mxu0 %v2332
    %3344 = vmatprep.subr.bf16.mxu0 %v2331
    %3345 = vmatpush1.bf16.msra.mxu0 %v2330
    %3346 = vmatprep.subr.bf16.mxu0 %v2329
    %3347 = vmatpush1.bf16.msra.mxu0 %v2328
    %3348 = vmatprep.subr.bf16.mxu0 %v2327
    %3349 = vmatpush1.bf16.msra.mxu0 %v2326
    %3350 = vmatprep.subr.bf16.mxu0 %v2325
    %3351 = vmatpush1.bf16.msra.mxu0 %v2324
    %3352 = vmatprep.subr.bf16.mxu0 %v2323
    %3353 = vmatpush1.bf16.msra.mxu0 %v2322
    %3354 = vmatprep.subr.bf16.mxu0 %v2321
    %3355 = vmatpush1.bf16.msra.mxu0 %v2320
    %3356 = vmatprep.subr.bf16.mxu0 %v2319
    %3357 = vmatpush1.bf16.msra.mxu0 %v2318
    %3358 = vmatprep.subr.bf16.mxu0 %v2349
    %3359 = vmatpush2.bf16.msra.mxu0 %v2348
    %3360 = vmatprep.subr.bf16.mxu0 %v2347
    %3361 = vmatpush2.bf16.msra.mxu0 %v2346
    %3362 = vmatprep.subr.bf16.mxu0 %v2345
    %3363 = vmatpush2.bf16.msra.mxu0 %v2344
    %3364 = vmatprep.subr.bf16.mxu0 %v2343
    %3365 = vmatpush2.bf16.msra.mxu0 %v2342
    %3366 = vmatprep.subr.bf16.mxu0 %v2341
    %3367 = vmatpush2.bf16.msra.mxu0 %v2340
    %3368 = vmatprep.subr.bf16.mxu0 %v2339
    %3369 = vmatpush2.bf16.msra.mxu0 %v2338
    %3370 = vmatprep.subr.bf16.mxu0 %v2337
    %3371 = vmatpush2.bf16.msra.mxu0 %v2336
    %3372 = vmatprep.subr.bf16.mxu0 %v2335
    %3373 = vmatpush2.bf16.msra.mxu0 %v2334
    %3374 = vmatprep.mubr.bf16.mxu0 %v591
    %3375 = vmatmul.mubr.bf16.gmra.mxu0 %v577
    %v3376 = vpop.f32.mrf.mxu0
    %v3377 = vadd.f32 %v543, %v3376
    %v3378 = vpop.f32.mrf.mxu0
    %v3379 = vadd.f32 %v547, %v3378
    %v3380 = vpop.f32.mrf.mxu0
    %v3381 = vpop.f32.mrf.mxu0
    %3382 = vdwg.mxu0
    %3383 = vmatprep.subr.bf16.mxu0 %v2365
    %3384 = vmatpush1.bf16.msra.mxu0 %v2364
    %3385 = vmatprep.subr.bf16.mxu0 %v2363
    %3386 = vmatpush1.bf16.msra.mxu0 %v2362
    %3387 = vmatprep.subr.bf16.mxu0 %v2361
    %3388 = vmatpush1.bf16.msra.mxu0 %v2360
    %3389 = vmatprep.subr.bf16.mxu0 %v2359
    %3390 = vmatpush1.bf16.msra.mxu0 %v2358
    %3391 = vmatprep.subr.bf16.mxu0 %v2357
    %3392 = vmatpush1.bf16.msra.mxu0 %v2356
    %3393 = vmatprep.subr.bf16.mxu0 %v2355
    %3394 = vmatpush1.bf16.msra.mxu0 %v2354
    %3395 = vmatprep.subr.bf16.mxu0 %v2353
    %3396 = vmatpush1.bf16.msra.mxu0 %v2352
    %3397 = vmatprep.subr.bf16.mxu0 %v2351
    %3398 = vmatpush1.bf16.msra.mxu0 %v2350
    %3399 = vmatprep.subr.bf16.mxu0 %v2381
    %3400 = vmatpush2.bf16.msra.mxu0 %v2380
    %3401 = vmatprep.subr.bf16.mxu0 %v2379
    %3402 = vmatpush2.bf16.msra.mxu0 %v2378
    %3403 = vmatprep.subr.bf16.mxu0 %v2377
    %3404 = vmatpush2.bf16.msra.mxu0 %v2376
    %3405 = vmatprep.subr.bf16.mxu0 %v2375
    %3406 = vmatpush2.bf16.msra.mxu0 %v2374
    %3407 = vmatprep.subr.bf16.mxu0 %v2373
    %3408 = vmatpush2.bf16.msra.mxu0 %v2372
    %3409 = vmatprep.subr.bf16.mxu0 %v2371
    %3410 = vmatpush2.bf16.msra.mxu0 %v2370
    %3411 = vmatprep.subr.bf16.mxu0 %v2369
    %3412 = vmatpush2.bf16.msra.mxu0 %v2368
    %3413 = vmatprep.subr.bf16.mxu0 %v2367
    %3414 = vmatpush2.bf16.msra.mxu0 %v2366
    %3415 = vmatprep.mubr.bf16.mxu0 %v601
    %3416 = vmatmul.mubr.bf16.gmra.mxu0 %v599
    %v3417 = vpop.f32.mrf.mxu0
    %v3418 = vadd.f32 %v3377, %v3417
    %v3419 = vpop.f32.mrf.mxu0
    %v3420 = vadd.f32 %v3379, %v3419
    %v3421 = vpop.f32.mrf.mxu0
    %v3422 = vpop.f32.mrf.mxu0
    %3423 = vdwg.mxu0
    %3424 = vmatprep.subr.bf16.mxu0 %v2397
    %3425 = vmatpush1.bf16.msra.mxu0 %v2396
    %3426 = vmatprep.subr.bf16.mxu0 %v2395
    %3427 = vmatpush1.bf16.msra.mxu0 %v2394
    %3428 = vmatprep.subr.bf16.mxu0 %v2393
    %3429 = vmatpush1.bf16.msra.mxu0 %v2392
    %3430 = vmatprep.subr.bf16.mxu0 %v2391
    %3431 = vmatpush1.bf16.msra.mxu0 %v2390
    %3432 = vmatprep.subr.bf16.mxu0 %v2389
    %3433 = vmatpush1.bf16.msra.mxu0 %v2388
    %3434 = vmatprep.subr.bf16.mxu0 %v2387
    %3435 = vmatpush1.bf16.msra.mxu0 %v2386
    %3436 = vmatprep.subr.bf16.mxu0 %v2385
    %3437 = vmatpush1.bf16.msra.mxu0 %v2384
    %3438 = vmatprep.subr.bf16.mxu0 %v2383
    %3439 = vmatpush1.bf16.msra.mxu0 %v2382
    %3440 = vmatprep.subr.bf16.mxu0 %v2413
    %3441 = vmatpush2.bf16.msra.mxu0 %v2412
    %3442 = vmatprep.subr.bf16.mxu0 %v2411
    %3443 = vmatpush2.bf16.msra.mxu0 %v2410
    %3444 = vmatprep.subr.bf16.mxu0 %v2409
    %3445 = vmatpush2.bf16.msra.mxu0 %v2408
    %3446 = vmatprep.subr.bf16.mxu0 %v2407
    %3447 = vmatpush2.bf16.msra.mxu0 %v2406
    %3448 = vmatprep.subr.bf16.mxu0 %v2405
    %3449 = vmatpush2.bf16.msra.mxu0 %v2404
    %3450 = vmatprep.subr.bf16.mxu0 %v2403
    %3451 = vmatpush2.bf16.msra.mxu0 %v2402
    %3452 = vmatprep.subr.bf16.mxu0 %v2401
    %3453 = vmatpush2.bf16.msra.mxu0 %v2400
    %3454 = vmatprep.subr.bf16.mxu0 %v2399
    %3455 = vmatpush2.bf16.msra.mxu0 %v2398
    %3456 = vmatprep.mubr.bf16.mxu0 %v598
    %3457 = vmatmul.mubr.bf16.gmra.mxu0 %v584
    %v3458 = vpop.f32.mrf.mxu0
    %v3459 = vadd.f32 %v3418, %v3458
    %v3460 = vpop.f32.mrf.mxu0
    %v3461 = vadd.f32 %v3420, %v3460
    %v3462 = vpop.f32.mrf.mxu0
    %v3463 = vpop.f32.mrf.mxu0
    %3464 = vdwg.mxu0
    %3465 = vmatprep.subr.bf16.mxu0 %v2429
    %3466 = vmatpush1.bf16.msra.mxu0 %v2428
    %3467 = vmatprep.subr.bf16.mxu0 %v2427
    %3468 = vmatpush1.bf16.msra.mxu0 %v2426
    %3469 = vmatprep.subr.bf16.mxu0 %v2425
    %3470 = vmatpush1.bf16.msra.mxu0 %v2424
    %3471 = vmatprep.subr.bf16.mxu0 %v2423
    %3472 = vmatpush1.bf16.msra.mxu0 %v2422
    %3473 = vmatprep.subr.bf16.mxu0 %v2421
    %3474 = vmatpush1.bf16.msra.mxu0 %v2420
    %3475 = vmatprep.subr.bf16.mxu0 %v2419
    %3476 = vmatpush1.bf16.msra.mxu0 %v2418
    %3477 = vmatprep.subr.bf16.mxu0 %v2417
    %3478 = vmatpush1.bf16.msra.mxu0 %v2416
    %3479 = vmatprep.subr.bf16.mxu0 %v2415
    %3480 = vmatpush1.bf16.msra.mxu0 %v2414
    %3481 = vmatprep.subr.bf16.mxu0 %v2445
    %3482 = vmatpush2.bf16.msra.mxu0 %v2444
    %3483 = vmatprep.subr.bf16.mxu0 %v2443
    %3484 = vmatpush2.bf16.msra.mxu0 %v2442
    %3485 = vmatprep.subr.bf16.mxu0 %v2441
    %3486 = vmatpush2.bf16.msra.mxu0 %v2440
    %3487 = vmatprep.subr.bf16.mxu0 %v2439
    %3488 = vmatpush2.bf16.msra.mxu0 %v2438
    %3489 = vmatprep.subr.bf16.mxu0 %v2437
    %3490 = vmatpush2.bf16.msra.mxu0 %v2436
    %3491 = vmatprep.subr.bf16.mxu0 %v2435
    %3492 = vmatpush2.bf16.msra.mxu0 %v2434
    %3493 = vmatprep.subr.bf16.mxu0 %v2433
    %3494 = vmatpush2.bf16.msra.mxu0 %v2432
    %3495 = vmatprep.subr.bf16.mxu0 %v2431
    %3496 = vmatpush2.bf16.msra.mxu0 %v2430
    %3497 = vmatprep.mubr.bf16.mxu0 %v602
    %3498 = vmatmul.mubr.bf16.gmra.mxu0 %v600
    %v3499 = vpop.f32.mrf.mxu0
    %v3500 = vadd.f32 %v3459, %v3499
    %v3501 = vpop.f32.mrf.mxu0
    %v3502 = vadd.f32 %v3461, %v3501
    %v3503 = vpop.f32.mrf.mxu0
    %v3504 = vpop.f32.mrf.mxu0
    %3505 = vdwg.mxu0
    %3506 = vmatprep.subr.bf16.mxu0 %v2461
    %3507 = vmatpush1.bf16.msra.mxu0 %v2460
    %3508 = vmatprep.subr.bf16.mxu0 %v2459
    %3509 = vmatpush1.bf16.msra.mxu0 %v2458
    %3510 = vmatprep.subr.bf16.mxu0 %v2457
    %3511 = vmatpush1.bf16.msra.mxu0 %v2456
    %3512 = vmatprep.subr.bf16.mxu0 %v2455
    %3513 = vmatpush1.bf16.msra.mxu0 %v2454
    %3514 = vmatprep.subr.bf16.mxu0 %v2453
    %3515 = vmatpush1.bf16.msra.mxu0 %v2452
    %3516 = vmatprep.subr.bf16.mxu0 %v2451
    %3517 = vmatpush1.bf16.msra.mxu0 %v2450
    %3518 = vmatprep.subr.bf16.mxu0 %v2449
    %3519 = vmatpush1.bf16.msra.mxu0 %v2448
    %3520 = vmatprep.subr.bf16.mxu0 %v2447
    %3521 = vmatpush1.bf16.msra.mxu0 %v2446
    %3522 = vmatprep.subr.bf16.mxu0 %v2477
    %3523 = vmatpush2.bf16.msra.mxu0 %v2476
    %3524 = vmatprep.subr.bf16.mxu0 %v2475
    %3525 = vmatpush2.bf16.msra.mxu0 %v2474
    %3526 = vmatprep.subr.bf16.mxu0 %v2473
    %3527 = vmatpush2.bf16.msra.mxu0 %v2472
    %3528 = vmatprep.subr.bf16.mxu0 %v2471
    %3529 = vmatpush2.bf16.msra.mxu0 %v2470
    %3530 = vmatprep.subr.bf16.mxu0 %v2469
    %3531 = vmatpush2.bf16.msra.mxu0 %v2468
    %3532 = vmatprep.subr.bf16.mxu0 %v2467
    %3533 = vmatpush2.bf16.msra.mxu0 %v2466
    %3534 = vmatprep.subr.bf16.mxu0 %v2465
    %3535 = vmatpush2.bf16.msra.mxu0 %v2464
    %3536 = vmatprep.subr.bf16.mxu0 %v2463
    %3537 = vmatpush2.bf16.msra.mxu0 %v2462
    %3538 = vmatprep.mubr.bf16.mxu0 %v640
    %3539 = vmatmul.mubr.bf16.gmra.mxu0 %v626
    %v3540 = vpop.f32.mrf.mxu0
    %v3541 = vadd.f32 %v3500, %v3540
    %v3542 = vpop.f32.mrf.mxu0
    %v3543 = vadd.f32 %v3502, %v3542
    %v3544 = vpop.f32.mrf.mxu0
    %v3545 = vpop.f32.mrf.mxu0
    %3546 = vdwg.mxu0
    %3547 = vmatprep.subr.bf16.mxu0 %v2493
    %3548 = vmatpush1.bf16.msra.mxu0 %v2492
    %3549 = vmatprep.subr.bf16.mxu0 %v2491
    %3550 = vmatpush1.bf16.msra.mxu0 %v2490
    %3551 = vmatprep.subr.bf16.mxu0 %v2489
    %3552 = vmatpush1.bf16.msra.mxu0 %v2488
    %3553 = vmatprep.subr.bf16.mxu0 %v2487
    %3554 = vmatpush1.bf16.msra.mxu0 %v2486
    %3555 = vmatprep.subr.bf16.mxu0 %v2485
    %3556 = vmatpush1.bf16.msra.mxu0 %v2484
    %3557 = vmatprep.subr.bf16.mxu0 %v2483
    %3558 = vmatpush1.bf16.msra.mxu0 %v2482
    %3559 = vmatprep.subr.bf16.mxu0 %v2481
    %3560 = vmatpush1.bf16.msra.mxu0 %v2480
    %3561 = vmatprep.subr.bf16.mxu0 %v2479
    %3562 = vmatpush1.bf16.msra.mxu0 %v2478
    %3563 = vmatprep.subr.bf16.mxu0 %v2509
    %3564 = vmatpush2.bf16.msra.mxu0 %v2508
    %3565 = vmatprep.subr.bf16.mxu0 %v2507
    %3566 = vmatpush2.bf16.msra.mxu0 %v2506
    %3567 = vmatprep.subr.bf16.mxu0 %v2505
    %3568 = vmatpush2.bf16.msra.mxu0 %v2504
    %3569 = vmatprep.subr.bf16.mxu0 %v2503
    %3570 = vmatpush2.bf16.msra.mxu0 %v2502
    %3571 = vmatprep.subr.bf16.mxu0 %v2501
    %3572 = vmatpush2.bf16.msra.mxu0 %v2500
    %3573 = vmatprep.subr.bf16.mxu0 %v2499
    %3574 = vmatpush2.bf16.msra.mxu0 %v2498
    %3575 = vmatprep.subr.bf16.mxu0 %v2497
    %3576 = vmatpush2.bf16.msra.mxu0 %v2496
    %3577 = vmatprep.subr.bf16.mxu0 %v2495
    %3578 = vmatpush2.bf16.msra.mxu0 %v2494
    %3579 = vmatprep.mubr.bf16.mxu0 %v650
    %3580 = vmatmul.mubr.bf16.gmra.mxu0 %v648
    %v3581 = vpop.f32.mrf.mxu0
    %v3582 = vadd.f32 %v3541, %v3581
    %v3583 = vpop.f32.mrf.mxu0
    %v3584 = vadd.f32 %v3543, %v3583
    %v3585 = vpop.f32.mrf.mxu0
    %v3586 = vpop.f32.mrf.mxu0
    %3587 = vdwg.mxu0
    %3588 = vmatprep.subr.bf16.mxu0 %v2525
    %3589 = vmatpush1.bf16.msra.mxu0 %v2524
    %3590 = vmatprep.subr.bf16.mxu0 %v2523
    %3591 = vmatpush1.bf16.msra.mxu0 %v2522
    %3592 = vmatprep.subr.bf16.mxu0 %v2521
    %3593 = vmatpush1.bf16.msra.mxu0 %v2520
    %3594 = vmatprep.subr.bf16.mxu0 %v2519
    %3595 = vmatpush1.bf16.msra.mxu0 %v2518
    %3596 = vmatprep.subr.bf16.mxu0 %v2517
    %3597 = vmatpush1.bf16.msra.mxu0 %v2516
    %3598 = vmatprep.subr.bf16.mxu0 %v2515
    %3599 = vmatpush1.bf16.msra.mxu0 %v2514
    %3600 = vmatprep.subr.bf16.mxu0 %v2513
    %3601 = vmatpush1.bf16.msra.mxu0 %v2512
    %3602 = vmatprep.subr.bf16.mxu0 %v2511
    %3603 = vmatpush1.bf16.msra.mxu0 %v2510
    %3604 = vmatprep.subr.bf16.mxu0 %v2541
    %3605 = vmatpush2.bf16.msra.mxu0 %v2540
    %3606 = vmatprep.subr.bf16.mxu0 %v2539
    %3607 = vmatpush2.bf16.msra.mxu0 %v2538
    %3608 = vmatprep.subr.bf16.mxu0 %v2537
    %3609 = vmatpush2.bf16.msra.mxu0 %v2536
    %3610 = vmatprep.subr.bf16.mxu0 %v2535
    %3611 = vmatpush2.bf16.msra.mxu0 %v2534
    %3612 = vmatprep.subr.bf16.mxu0 %v2533
    %3613 = vmatpush2.bf16.msra.mxu0 %v2532
    %3614 = vmatprep.subr.bf16.mxu0 %v2531
    %3615 = vmatpush2.bf16.msra.mxu0 %v2530
    %3616 = vmatprep.subr.bf16.mxu0 %v2529
    %3617 = vmatpush2.bf16.msra.mxu0 %v2528
    %3618 = vmatprep.subr.bf16.mxu0 %v2527
    %3619 = vmatpush2.bf16.msra.mxu0 %v2526
    %3620 = vmatprep.mubr.bf16.mxu0 %v647
    %3621 = vmatmul.mubr.bf16.gmra.mxu0 %v633
    %v3622 = vpop.f32.mrf.mxu0
    %v3623 = vadd.f32 %v3582, %v3622
    %v3624 = vpop.f32.mrf.mxu0
    %v3625 = vadd.f32 %v3584, %v3624
    %v3626 = vpop.f32.mrf.mxu0
    %v3627 = vpop.f32.mrf.mxu0
    %3628 = vdwg.mxu0
    %3629 = vmatprep.subr.bf16.mxu0 %v2557
    %3630 = vmatpush1.bf16.msra.mxu0 %v2556
    %3631 = vmatprep.subr.bf16.mxu0 %v2555
    %3632 = vmatpush1.bf16.msra.mxu0 %v2554
    %3633 = vmatprep.subr.bf16.mxu0 %v2553
    %3634 = vmatpush1.bf16.msra.mxu0 %v2552
    %3635 = vmatprep.subr.bf16.mxu0 %v2551
    %3636 = vmatpush1.bf16.msra.mxu0 %v2550
    %3637 = vmatprep.subr.bf16.mxu0 %v2549
    %3638 = vmatpush1.bf16.msra.mxu0 %v2548
    %3639 = vmatprep.subr.bf16.mxu0 %v2547
    %3640 = vmatpush1.bf16.msra.mxu0 %v2546
    %3641 = vmatprep.subr.bf16.mxu0 %v2545
    %3642 = vmatpush1.bf16.msra.mxu0 %v2544
    %3643 = vmatprep.subr.bf16.mxu0 %v2543
    %3644 = vmatpush1.bf16.msra.mxu0 %v2542
    %3645 = vmatprep.subr.bf16.mxu0 %v2573
    %3646 = vmatpush2.bf16.msra.mxu0 %v2572
    %3647 = vmatprep.subr.bf16.mxu0 %v2571
    %3648 = vmatpush2.bf16.msra.mxu0 %v2570
    %3649 = vmatprep.subr.bf16.mxu0 %v2569
    %3650 = vmatpush2.bf16.msra.mxu0 %v2568
    %3651 = vmatprep.subr.bf16.mxu0 %v2567
    %3652 = vmatpush2.bf16.msra.mxu0 %v2566
    %3653 = vmatprep.subr.bf16.mxu0 %v2565
    %3654 = vmatpush2.bf16.msra.mxu0 %v2564
    %3655 = vmatprep.subr.bf16.mxu0 %v2563
    %3656 = vmatpush2.bf16.msra.mxu0 %v2562
    %3657 = vmatprep.subr.bf16.mxu0 %v2561
    %3658 = vmatpush2.bf16.msra.mxu0 %v2560
    %3659 = vmatprep.subr.bf16.mxu0 %v2559
    %3660 = vmatpush2.bf16.msra.mxu0 %v2558
    %3661 = vmatprep.mubr.bf16.mxu0 %v651
    %3662 = vmatmul.mubr.bf16.gmra.mxu0 %v649
    %v3663 = vpop.f32.mrf.mxu0
    %v3664 = vadd.f32 %v3623, %v3663
    %v3665 = vpop.f32.mrf.mxu0
    %v3666 = vadd.f32 %v3625, %v3665
    %v3667 = vpop.f32.mrf.mxu0
    %v3668 = vpop.f32.mrf.mxu0
    %3669 = vdwg.mxu0
    %3670 = vmatprep.subr.bf16.mxu0 %v2589
    %3671 = vmatpush1.bf16.msra.mxu0 %v2588
    %3672 = vmatprep.subr.bf16.mxu0 %v2587
    %3673 = vmatpush1.bf16.msra.mxu0 %v2586
    %3674 = vmatprep.subr.bf16.mxu0 %v2585
    %3675 = vmatpush1.bf16.msra.mxu0 %v2584
    %3676 = vmatprep.subr.bf16.mxu0 %v2583
    %3677 = vmatpush1.bf16.msra.mxu0 %v2582
    %3678 = vmatprep.subr.bf16.mxu0 %v2581
    %3679 = vmatpush1.bf16.msra.mxu0 %v2580
    %3680 = vmatprep.subr.bf16.mxu0 %v2579
    %3681 = vmatpush1.bf16.msra.mxu0 %v2578
    %3682 = vmatprep.subr.bf16.mxu0 %v2577
    %3683 = vmatpush1.bf16.msra.mxu0 %v2576
    %3684 = vmatprep.subr.bf16.mxu0 %v2575
    %3685 = vmatpush1.bf16.msra.mxu0 %v2574
    %3686 = vmatprep.subr.bf16.mxu0 %v2605
    %3687 = vmatpush2.bf16.msra.mxu0 %v2604
    %3688 = vmatprep.subr.bf16.mxu0 %v2603
    %3689 = vmatpush2.bf16.msra.mxu0 %v2602
    %3690 = vmatprep.subr.bf16.mxu0 %v2601
    %3691 = vmatpush2.bf16.msra.mxu0 %v2600
    %3692 = vmatprep.subr.bf16.mxu0 %v2599
    %3693 = vmatpush2.bf16.msra.mxu0 %v2598
    %3694 = vmatprep.subr.bf16.mxu0 %v2597
    %3695 = vmatpush2.bf16.msra.mxu0 %v2596
    %3696 = vmatprep.subr.bf16.mxu0 %v2595
    %3697 = vmatpush2.bf16.msra.mxu0 %v2594
    %3698 = vmatprep.subr.bf16.mxu0 %v2593
    %3699 = vmatpush2.bf16.msra.mxu0 %v2592
    %3700 = vmatprep.subr.bf16.mxu0 %v2591
    %3701 = vmatpush2.bf16.msra.mxu0 %v2590
    %3702 = vmatprep.mubr.bf16.mxu0 %v689
    %3703 = vmatmul.mubr.bf16.gmra.mxu0 %v675
    %v3704 = vpop.f32.mrf.mxu0
    %v3705 = vadd.f32 %v3664, %v3704
    %v3706 = vpop.f32.mrf.mxu0
    %v3707 = vadd.f32 %v3666, %v3706
    %v3708 = vpop.f32.mrf.mxu0
    %v3709 = vpop.f32.mrf.mxu0
    %3710 = vdwg.mxu0
    %3711 = vmatprep.subr.bf16.mxu0 %v2621
    %3712 = vmatpush1.bf16.msra.mxu0 %v2620
    %3713 = vmatprep.subr.bf16.mxu0 %v2619
    %3714 = vmatpush1.bf16.msra.mxu0 %v2618
    %3715 = vmatprep.subr.bf16.mxu0 %v2617
    %3716 = vmatpush1.bf16.msra.mxu0 %v2616
    %3717 = vmatprep.subr.bf16.mxu0 %v2615
    %3718 = vmatpush1.bf16.msra.mxu0 %v2614
    %3719 = vmatprep.subr.bf16.mxu0 %v2613
    %3720 = vmatpush1.bf16.msra.mxu0 %v2612
    %3721 = vmatprep.subr.bf16.mxu0 %v2611
    %3722 = vmatpush1.bf16.msra.mxu0 %v2610
    %3723 = vmatprep.subr.bf16.mxu0 %v2609
    %3724 = vmatpush1.bf16.msra.mxu0 %v2608
    %3725 = vmatprep.subr.bf16.mxu0 %v2607
    %3726 = vmatpush1.bf16.msra.mxu0 %v2606
    %3727 = vmatprep.subr.bf16.mxu0 %v2637
    %3728 = vmatpush2.bf16.msra.mxu0 %v2636
    %3729 = vmatprep.subr.bf16.mxu0 %v2635
    %3730 = vmatpush2.bf16.msra.mxu0 %v2634
    %3731 = vmatprep.subr.bf16.mxu0 %v2633
    %3732 = vmatpush2.bf16.msra.mxu0 %v2632
    %3733 = vmatprep.subr.bf16.mxu0 %v2631
    %3734 = vmatpush2.bf16.msra.mxu0 %v2630
    %3735 = vmatprep.subr.bf16.mxu0 %v2629
    %3736 = vmatpush2.bf16.msra.mxu0 %v2628
    %3737 = vmatprep.subr.bf16.mxu0 %v2627
    %3738 = vmatpush2.bf16.msra.mxu0 %v2626
    %3739 = vmatprep.subr.bf16.mxu0 %v2625
    %3740 = vmatpush2.bf16.msra.mxu0 %v2624
    %3741 = vmatprep.subr.bf16.mxu0 %v2623
    %3742 = vmatpush2.bf16.msra.mxu0 %v2622
    %3743 = vmatprep.mubr.bf16.mxu0 %v699
    %3744 = vmatmul.mubr.bf16.gmra.mxu0 %v697
    %v3745 = vpop.f32.mrf.mxu0
    %v3746 = vadd.f32 %v3705, %v3745
    %v3747 = vpop.f32.mrf.mxu0
    %v3748 = vadd.f32 %v3707, %v3747
    %v3749 = vpop.f32.mrf.mxu0
    %v3750 = vpop.f32.mrf.mxu0
    %3751 = vdwg.mxu0
    %3752 = vmatprep.subr.bf16.mxu0 %v2653
    %3753 = vmatpush1.bf16.msra.mxu0 %v2652
    %3754 = vmatprep.subr.bf16.mxu0 %v2651
    %3755 = vmatpush1.bf16.msra.mxu0 %v2650
    %3756 = vmatprep.subr.bf16.mxu0 %v2649
    %3757 = vmatpush1.bf16.msra.mxu0 %v2648
    %3758 = vmatprep.subr.bf16.mxu0 %v2647
    %3759 = vmatpush1.bf16.msra.mxu0 %v2646
    %3760 = vmatprep.subr.bf16.mxu0 %v2645
    %3761 = vmatpush1.bf16.msra.mxu0 %v2644
    %3762 = vmatprep.subr.bf16.mxu0 %v2643
    %3763 = vmatpush1.bf16.msra.mxu0 %v2642
    %3764 = vmatprep.subr.bf16.mxu0 %v2641
    %3765 = vmatpush1.bf16.msra.mxu0 %v2640
    %3766 = vmatprep.subr.bf16.mxu0 %v2639
    %3767 = vmatpush1.bf16.msra.mxu0 %v2638
    %3768 = vmatprep.subr.bf16.mxu0 %v2669
    %3769 = vmatpush2.bf16.msra.mxu0 %v2668
    %3770 = vmatprep.subr.bf16.mxu0 %v2667
    %3771 = vmatpush2.bf16.msra.mxu0 %v2666
    %3772 = vmatprep.subr.bf16.mxu0 %v2665
    %3773 = vmatpush2.bf16.msra.mxu0 %v2664
    %3774 = vmatprep.subr.bf16.mxu0 %v2663
    %3775 = vmatpush2.bf16.msra.mxu0 %v2662
    %3776 = vmatprep.subr.bf16.mxu0 %v2661
    %3777 = vmatpush2.bf16.msra.mxu0 %v2660
    %3778 = vmatprep.subr.bf16.mxu0 %v2659
    %3779 = vmatpush2.bf16.msra.mxu0 %v2658
    %3780 = vmatprep.subr.bf16.mxu0 %v2657
    %3781 = vmatpush2.bf16.msra.mxu0 %v2656
    %3782 = vmatprep.subr.bf16.mxu0 %v2655
    %3783 = vmatpush2.bf16.msra.mxu0 %v2654
    %3784 = vmatprep.mubr.bf16.mxu0 %v696
    %3785 = vmatmul.mubr.bf16.gmra.mxu0 %v682
    %v3786 = vpop.f32.mrf.mxu0
    %v3787 = vadd.f32 %v3746, %v3786
    %v3788 = vpop.f32.mrf.mxu0
    %v3789 = vadd.f32 %v3748, %v3788
    %v3790 = vpop.f32.mrf.mxu0
    %v3791 = vpop.f32.mrf.mxu0
    %3792 = vdwg.mxu0
    %3793 = vmatprep.subr.bf16.mxu0 %v2685
    %3794 = vmatpush1.bf16.msra.mxu0 %v2684
    %3795 = vmatprep.subr.bf16.mxu0 %v2683
    %3796 = vmatpush1.bf16.msra.mxu0 %v2682
    %3797 = vmatprep.subr.bf16.mxu0 %v2681
    %3798 = vmatpush1.bf16.msra.mxu0 %v2680
    %3799 = vmatprep.subr.bf16.mxu0 %v2679
    %3800 = vmatpush1.bf16.msra.mxu0 %v2678
    %3801 = vmatprep.subr.bf16.mxu0 %v2677
    %3802 = vmatpush1.bf16.msra.mxu0 %v2676
    %3803 = vmatprep.subr.bf16.mxu0 %v2675
    %3804 = vmatpush1.bf16.msra.mxu0 %v2674
    %3805 = vmatprep.subr.bf16.mxu0 %v2673
    %3806 = vmatpush1.bf16.msra.mxu0 %v2672
    %3807 = vmatprep.subr.bf16.mxu0 %v2671
    %3808 = vmatpush1.bf16.msra.mxu0 %v2670
    %3809 = vmatprep.subr.bf16.mxu0 %v2701
    %3810 = vmatpush2.bf16.msra.mxu0 %v2700
    %3811 = vmatprep.subr.bf16.mxu0 %v2699
    %3812 = vmatpush2.bf16.msra.mxu0 %v2698
    %3813 = vmatprep.subr.bf16.mxu0 %v2697
    %3814 = vmatpush2.bf16.msra.mxu0 %v2696
    %3815 = vmatprep.subr.bf16.mxu0 %v2695
    %3816 = vmatpush2.bf16.msra.mxu0 %v2694
    %3817 = vmatprep.subr.bf16.mxu0 %v2693
    %3818 = vmatpush2.bf16.msra.mxu0 %v2692
    %3819 = vmatprep.subr.bf16.mxu0 %v2691
    %3820 = vmatpush2.bf16.msra.mxu0 %v2690
    %3821 = vmatprep.subr.bf16.mxu0 %v2689
    %3822 = vmatpush2.bf16.msra.mxu0 %v2688
    %3823 = vmatprep.subr.bf16.mxu0 %v2687
    %3824 = vmatpush2.bf16.msra.mxu0 %v2686
    %3825 = vmatprep.mubr.bf16.mxu0 %v700
    %3826 = vmatmul.mubr.bf16.gmra.mxu0 %v698
    %v3827 = vpop.f32.mrf.mxu0
    %v3828 = vadd.f32 %v3787, %v3827
    %v3829 = vpop.f32.mrf.mxu0
    %v3830 = vadd.f32 %v3789, %v3829
    %v3831 = vpop.f32.mrf.mxu0
    %v3832 = vpop.f32.mrf.mxu0
    %3833 = vdwg.mxu0
    %3834 = vmatprep.subr.bf16.mxu0 %v2717
    %3835 = vmatpush1.bf16.msra.mxu0 %v2716
    %3836 = vmatprep.subr.bf16.mxu0 %v2715
    %3837 = vmatpush1.bf16.msra.mxu0 %v2714
    %3838 = vmatprep.subr.bf16.mxu0 %v2713
    %3839 = vmatpush1.bf16.msra.mxu0 %v2712
    %3840 = vmatprep.subr.bf16.mxu0 %v2711
    %3841 = vmatpush1.bf16.msra.mxu0 %v2710
    %3842 = vmatprep.subr.bf16.mxu0 %v2709
    %3843 = vmatpush1.bf16.msra.mxu0 %v2708
    %3844 = vmatprep.subr.bf16.mxu0 %v2707
    %3845 = vmatpush1.bf16.msra.mxu0 %v2706
    %3846 = vmatprep.subr.bf16.mxu0 %v2705
    %3847 = vmatpush1.bf16.msra.mxu0 %v2704
    %3848 = vmatprep.subr.bf16.mxu0 %v2703
    %3849 = vmatpush1.bf16.msra.mxu0 %v2702
    %3850 = vmatprep.subr.bf16.mxu0 %v2733
    %3851 = vmatpush2.bf16.msra.mxu0 %v2732
    %3852 = vmatprep.subr.bf16.mxu0 %v2731
    %3853 = vmatpush2.bf16.msra.mxu0 %v2730
    %3854 = vmatprep.subr.bf16.mxu0 %v2729
    %3855 = vmatpush2.bf16.msra.mxu0 %v2728
    %3856 = vmatprep.subr.bf16.mxu0 %v2727
    %3857 = vmatpush2.bf16.msra.mxu0 %v2726
    %3858 = vmatprep.subr.bf16.mxu0 %v2725
    %3859 = vmatpush2.bf16.msra.mxu0 %v2724
    %3860 = vmatprep.subr.bf16.mxu0 %v2723
    %3861 = vmatpush2.bf16.msra.mxu0 %v2722
    %3862 = vmatprep.subr.bf16.mxu0 %v2721
    %3863 = vmatpush2.bf16.msra.mxu0 %v2720
    %3864 = vmatprep.subr.bf16.mxu0 %v2719
    %3865 = vmatpush2.bf16.msra.mxu0 %v2718
    %3866 = vmatprep.mubr.bf16.mxu0 %v738
    %3867 = vmatmul.mubr.bf16.gmra.mxu0 %v724
    %v3868 = vpop.f32.mrf.mxu0
    %v3869 = vadd.f32 %v3828, %v3868
    %v3870 = vpop.f32.mrf.mxu0
    %v3871 = vadd.f32 %v3830, %v3870
    %v3872 = vpop.f32.mrf.mxu0
    %v3873 = vpop.f32.mrf.mxu0
    %3874 = vdwg.mxu0
    %3875 = vmatprep.subr.bf16.mxu0 %v2749
    %3876 = vmatpush1.bf16.msra.mxu0 %v2748
    %3877 = vmatprep.subr.bf16.mxu0 %v2747
    %3878 = vmatpush1.bf16.msra.mxu0 %v2746
    %3879 = vmatprep.subr.bf16.mxu0 %v2745
    %3880 = vmatpush1.bf16.msra.mxu0 %v2744
    %3881 = vmatprep.subr.bf16.mxu0 %v2743
    %3882 = vmatpush1.bf16.msra.mxu0 %v2742
    %3883 = vmatprep.subr.bf16.mxu0 %v2741
    %3884 = vmatpush1.bf16.msra.mxu0 %v2740
    %3885 = vmatprep.subr.bf16.mxu0 %v2739
    %3886 = vmatpush1.bf16.msra.mxu0 %v2738
    %3887 = vmatprep.subr.bf16.mxu0 %v2737
    %3888 = vmatpush1.bf16.msra.mxu0 %v2736
    %3889 = vmatprep.subr.bf16.mxu0 %v2735
    %3890 = vmatpush1.bf16.msra.mxu0 %v2734
    %3891 = vmatprep.subr.bf16.mxu0 %v2765
    %3892 = vmatpush2.bf16.msra.mxu0 %v2764
    %3893 = vmatprep.subr.bf16.mxu0 %v2763
    %3894 = vmatpush2.bf16.msra.mxu0 %v2762
    %3895 = vmatprep.subr.bf16.mxu0 %v2761
    %3896 = vmatpush2.bf16.msra.mxu0 %v2760
    %3897 = vmatprep.subr.bf16.mxu0 %v2759
    %3898 = vmatpush2.bf16.msra.mxu0 %v2758
    %3899 = vmatprep.subr.bf16.mxu0 %v2757
    %3900 = vmatpush2.bf16.msra.mxu0 %v2756
    %3901 = vmatprep.subr.bf16.mxu0 %v2755
    %3902 = vmatpush2.bf16.msra.mxu0 %v2754
    %3903 = vmatprep.subr.bf16.mxu0 %v2753
    %3904 = vmatpush2.bf16.msra.mxu0 %v2752
    %3905 = vmatprep.subr.bf16.mxu0 %v2751
    %3906 = vmatpush2.bf16.msra.mxu0 %v2750
    %3907 = vmatprep.mubr.bf16.mxu0 %v748
    %3908 = vmatmul.mubr.bf16.gmra.mxu0 %v746
    %v3909 = vpop.f32.mrf.mxu0
    %v3910 = vadd.f32 %v3869, %v3909
    %v3911 = vpop.f32.mrf.mxu0
    %v3912 = vadd.f32 %v3871, %v3911
    %v3913 = vpop.f32.mrf.mxu0
    %v3914 = vpop.f32.mrf.mxu0
    %3915 = vdwg.mxu0
    %3916 = vmatprep.subr.bf16.mxu0 %v2781
    %3917 = vmatpush1.bf16.msra.mxu0 %v2780
    %3918 = vmatprep.subr.bf16.mxu0 %v2779
    %3919 = vmatpush1.bf16.msra.mxu0 %v2778
    %3920 = vmatprep.subr.bf16.mxu0 %v2777
    %3921 = vmatpush1.bf16.msra.mxu0 %v2776
    %3922 = vmatprep.subr.bf16.mxu0 %v2775
    %3923 = vmatpush1.bf16.msra.mxu0 %v2774
    %3924 = vmatprep.subr.bf16.mxu0 %v2773
    %3925 = vmatpush1.bf16.msra.mxu0 %v2772
    %3926 = vmatprep.subr.bf16.mxu0 %v2771
    %3927 = vmatpush1.bf16.msra.mxu0 %v2770
    %3928 = vmatprep.subr.bf16.mxu0 %v2769
    %3929 = vmatpush1.bf16.msra.mxu0 %v2768
    %3930 = vmatprep.subr.bf16.mxu0 %v2767
    %3931 = vmatpush1.bf16.msra.mxu0 %v2766
    %3932 = vmatprep.subr.bf16.mxu0 %v2797
    %3933 = vmatpush2.bf16.msra.mxu0 %v2796
    %3934 = vmatprep.subr.bf16.mxu0 %v2795
    %3935 = vmatpush2.bf16.msra.mxu0 %v2794
    %3936 = vmatprep.subr.bf16.mxu0 %v2793
    %3937 = vmatpush2.bf16.msra.mxu0 %v2792
    %3938 = vmatprep.subr.bf16.mxu0 %v2791
    %3939 = vmatpush2.bf16.msra.mxu0 %v2790
    %3940 = vmatprep.subr.bf16.mxu0 %v2789
    %3941 = vmatpush2.bf16.msra.mxu0 %v2788
    %3942 = vmatprep.subr.bf16.mxu0 %v2787
    %3943 = vmatpush2.bf16.msra.mxu0 %v2786
    %3944 = vmatprep.subr.bf16.mxu0 %v2785
    %3945 = vmatpush2.bf16.msra.mxu0 %v2784
    %3946 = vmatprep.subr.bf16.mxu0 %v2783
    %3947 = vmatpush2.bf16.msra.mxu0 %v2782
    %3948 = vmatprep.mubr.bf16.mxu0 %v745
    %3949 = vmatmul.mubr.bf16.gmra.mxu0 %v731
    %v3950 = vpop.f32.mrf.mxu0
    %v3951 = vadd.f32 %v3910, %v3950
    %v3952 = vpop.f32.mrf.mxu0
    %v3953 = vadd.f32 %v3912, %v3952
    %v3954 = vpop.f32.mrf.mxu0
    %v3955 = vpop.f32.mrf.mxu0
    %3956 = vdwg.mxu0
    %3957 = vmatprep.subr.bf16.mxu0 %v2813
    %3958 = vmatpush1.bf16.msra.mxu0 %v2812
    %3959 = vmatprep.subr.bf16.mxu0 %v2811
    %3960 = vmatpush1.bf16.msra.mxu0 %v2810
    %3961 = vmatprep.subr.bf16.mxu0 %v2809
    %3962 = vmatpush1.bf16.msra.mxu0 %v2808
    %3963 = vmatprep.subr.bf16.mxu0 %v2807
    %3964 = vmatpush1.bf16.msra.mxu0 %v2806
    %3965 = vmatprep.subr.bf16.mxu0 %v2805
    %3966 = vmatpush1.bf16.msra.mxu0 %v2804
    %3967 = vmatprep.subr.bf16.mxu0 %v2803
    %3968 = vmatpush1.bf16.msra.mxu0 %v2802
    %3969 = vmatprep.subr.bf16.mxu0 %v2801
    %3970 = vmatpush1.bf16.msra.mxu0 %v2800
    %3971 = vmatprep.subr.bf16.mxu0 %v2799
    %3972 = vmatpush1.bf16.msra.mxu0 %v2798
    %3973 = vmatprep.subr.bf16.mxu0 %v2829
    %3974 = vmatpush2.bf16.msra.mxu0 %v2828
    %3975 = vmatprep.subr.bf16.mxu0 %v2827
    %3976 = vmatpush2.bf16.msra.mxu0 %v2826
    %3977 = vmatprep.subr.bf16.mxu0 %v2825
    %3978 = vmatpush2.bf16.msra.mxu0 %v2824
    %3979 = vmatprep.subr.bf16.mxu0 %v2823
    %3980 = vmatpush2.bf16.msra.mxu0 %v2822
    %3981 = vmatprep.subr.bf16.mxu0 %v2821
    %3982 = vmatpush2.bf16.msra.mxu0 %v2820
    %3983 = vmatprep.subr.bf16.mxu0 %v2819
    %3984 = vmatpush2.bf16.msra.mxu0 %v2818
    %3985 = vmatprep.subr.bf16.mxu0 %v2817
    %3986 = vmatpush2.bf16.msra.mxu0 %v2816
    %3987 = vmatprep.subr.bf16.mxu0 %v2815
    %3988 = vmatpush2.bf16.msra.mxu0 %v2814
    %3989 = vmatprep.mubr.bf16.mxu0 %v749
    %3990 = vmatmul.mubr.bf16.gmra.mxu0 %v747
    %v3991 = vpop.f32.mrf.mxu0
    %v3992 = vadd.f32 %v3951, %v3991
    %v3993 = vpop.f32.mrf.mxu0
    %v3994 = vadd.f32 %v3953, %v3993
    %v3995 = vpop.f32.mrf.mxu0
    %v3996 = vpop.f32.mrf.mxu0
    %3997 = vdwg.mxu0
    %v3998 = vmax.f32 %v3992, 0.0
    %v3999 = vmax.f32 %v3994, 0.0
    %v4000 = vpack.c.bf16 %v3998, %v3998
    %v4001 = vpack.c.bf16 %v3999, %v3999
    %v4002 = vld [vmem:[%s3] sm:$0xf]
    %v4003 = vld [vmem:[%s3 + $0x4] sm:$0xf]
    %v4004 = vld [vmem:[%s3 + $0x8] sm:$0xf]
    %v4005 = vld [vmem:[%s3 + $0xc] sm:$0xf]
    %v4006 = vld [vmem:[%s3 + $0x10] sm:$0xf]
    %v4007 = vld [vmem:[%s3 + $0x14] sm:$0xf]
    %v4008 = vld [vmem:[%s3 + $0x18] sm:$0xf]
    %v4009 = vld [vmem:[%s3 + $0x1c] sm:$0xf]
    %v4010 = vld [vmem:[%s3 + $0x20] sm:$0xf]
    %v4011 = vld [vmem:[%s3 + $0x24] sm:$0xf]
    %v4012 = vld [vmem:[%s3 + $0x28] sm:$0xf]
    %v4013 = vld [vmem:[%s3 + $0x2c] sm:$0xf]
    %v4014 = vld [vmem:[%s3 + $0x30] sm:$0xf]
    %v4015 = vld [vmem:[%s3 + $0x34] sm:$0xf]
    %v4016 = vld [vmem:[%s3 + $0x38] sm:$0xf]
    %v4017 = vld [vmem:[%s3 + $0x3c] sm:$0xf]
    %v4018 = vld [vmem:[%s3 + $0x40] sm:$0xf]
    %v4019 = vld [vmem:[%s3 + $0x44] sm:$0xf]
    %v4020 = vld [vmem:[%s3 + $0x48] sm:$0xf]
    %v4021 = vld [vmem:[%s3 + $0x4c] sm:$0xf]
    %v4022 = vld [vmem:[%s3 + $0x50] sm:$0xf]
    %v4023 = vld [vmem:[%s3 + $0x54] sm:$0xf]
    %v4024 = vld [vmem:[%s3 + $0x58] sm:$0xf]
    %v4025 = vld [vmem:[%s3 + $0x5c] sm:$0xf]
    %v4026 = vld [vmem:[%s3 + $0x60] sm:$0xf]
    %v4027 = vld [vmem:[%s3 + $0x64] sm:$0xf]
    %v4028 = vld [vmem:[%s3 + $0x68] sm:$0xf]
    %v4029 = vld [vmem:[%s3 + $0x6c] sm:$0xf]
    %v4030 = vld [vmem:[%s3 + $0x70] sm:$0xf]
    %v4031 = vld [vmem:[%s3 + $0x74] sm:$0xf]
    %v4032 = vld [vmem:[%s3 + $0x78] sm:$0xf]
    %v4033 = vld [vmem:[%s3 + $0x7c] sm:$0xf]
    %v4034 = vld [vmem:[%s4] sm:$0x1]
    %v4036 = vlaneseq
    %v4037 = vshrl.u32 %v4036, 7
    %v4038 = vsub.s32 0, %v4037
    %v4039 = vrot.slane %v4034, %v4038
    %v4073 = vunpack.c.l.b16 %v4002
    %v4074 = vunpack.c.l.b16 %v4003
    %v4075 = vunpack.c.l.b16 %v4004
    %v4076 = vunpack.c.l.b16 %v4005
    %v4077 = vunpack.c.l.b16 %v4006
    %v4078 = vunpack.c.l.b16 %v4007
    %v4079 = vunpack.c.l.b16 %v4008
    %v4080 = vunpack.c.l.b16 %v4009
    %v4081 = vunpack.c.l.b16 %v4010
    %v4082 = vunpack.c.l.b16 %v4011
    %v4083 = vunpack.c.l.b16 %v4012
    %v4084 = vunpack.c.l.b16 %v4013
    %v4085 = vunpack.c.l.b16 %v4014
    %v4086 = vunpack.c.l.b16 %v4015
    %v4087 = vunpack.c.l.b16 %v4016
    %v4088 = vunpack.c.l.b16 %v4017
    %v4089 = vunpack.c.l.b16 %v4018
    %v4090 = vunpack.c.l.b16 %v4019
    %v4091 = vunpack.c.l.b16 %v4020
    %v4092 = vunpack.c.l.b16 %v4021
    %v4093 = vunpack.c.l.b16 %v4022
    %v4094 = vunpack.c.l.b16 %v4023
    %v4095 = vunpack.c.l.b16 %v4024
    %v4096 = vunpack.c.l.b16 %v4025
    %v4097 = vunpack.c.l.b16 %v4026
    %v4098 = vunpack.c.l.b16 %v4027
    %v4099 = vunpack.c.l.b16 %v4028
    %v4100 = vunpack.c.l.b16 %v4029
    %v4101 = vunpack.c.l.b16 %v4030
    %v4102 = vunpack.c.l.b16 %v4031
    %v4103 = vunpack.c.l.b16 %v4032
    %v4104 = vunpack.c.l.b16 %v4033
    %v4105 = vpack.c.b16 %v4074, %v4073
    %v4106 = vpack.c.b16 %v4076, %v4075
    %v4107 = vpack.c.b16 %v4078, %v4077
    %v4108 = vpack.c.b16 %v4080, %v4079
    %v4109 = vpack.c.b16 %v4082, %v4081
    %v4110 = vpack.c.b16 %v4084, %v4083
    %v4111 = vpack.c.b16 %v4086, %v4085
    %v4112 = vpack.c.b16 %v4088, %v4087
    %v4113 = vpack.c.b16 %v4090, %v4089
    %v4114 = vpack.c.b16 %v4092, %v4091
    %v4115 = vpack.c.b16 %v4094, %v4093
    %v4116 = vpack.c.b16 %v4096, %v4095
    %v4117 = vpack.c.b16 %v4098, %v4097
    %v4118 = vpack.c.b16 %v4100, %v4099
    %v4119 = vpack.c.b16 %v4102, %v4101
    %v4120 = vpack.c.b16 %v4104, %v4103
    %4137 = vmatprep.subr.bf16.mxu0 0
    %4138 = vmatpush1.bf16.msra.mxu0 %v4112
    %4139 = vmatprep.subr.bf16.mxu0 0
    %4140 = vmatpush1.bf16.msra.mxu0 %v4111
    %4141 = vmatprep.subr.bf16.mxu0 0
    %4142 = vmatpush1.bf16.msra.mxu0 %v4110
    %4143 = vmatprep.subr.bf16.mxu0 0
    %4144 = vmatpush1.bf16.msra.mxu0 %v4109
    %4145 = vmatprep.subr.bf16.mxu0 0
    %4146 = vmatpush1.bf16.msra.mxu0 %v4108
    %4147 = vmatprep.subr.bf16.mxu0 0
    %4148 = vmatpush1.bf16.msra.mxu0 %v4107
    %4149 = vmatprep.subr.bf16.mxu0 0
    %4150 = vmatpush1.bf16.msra.mxu0 %v4106
    %4151 = vmatprep.subr.bf16.mxu0 0
    %4152 = vmatpush1.bf16.msra.mxu0 %v4105
    %4153 = vmatprep.subr.bf16.mxu0 0
    %4154 = vmatpush2.bf16.msra.mxu0 %v4120
    %4155 = vmatprep.subr.bf16.mxu0 0
    %4156 = vmatpush2.bf16.msra.mxu0 %v4119
    %4157 = vmatprep.subr.bf16.mxu0 0
    %4158 = vmatpush2.bf16.msra.mxu0 %v4118
    %4159 = vmatprep.subr.bf16.mxu0 0
    %4160 = vmatpush2.bf16.msra.mxu0 %v4117
    %4161 = vmatprep.subr.bf16.mxu0 0
    %4162 = vmatpush2.bf16.msra.mxu0 %v4116
    %4163 = vmatprep.subr.bf16.mxu0 0
    %4164 = vmatpush2.bf16.msra.mxu0 %v4115
    %4165 = vmatprep.subr.bf16.mxu0 0
    %4166 = vmatpush2.bf16.msra.mxu0 %v4114
    %4167 = vmatprep.subr.bf16.mxu0 0
    %4168 = vmatpush2.bf16.msra.mxu0 %v4113
    %4169 = vmatprep.mubr.bf16.mxu0 %v4001
    %4170 = vmatmul.mubr.bf16.gmra.mxu0 %v4000
    %v4171 = vpop.f32.mrf.mxu0
    %v4172 = vadd.f32 %v4039, %v4171
    %v4173 = vpop.f32.mrf.mxu0
    %v4174 = vpop.f32.mrf.mxu0
    %v4175 = vpop.f32.mrf.mxu0
    %4176 = vdwg.mxu0
    %vm4177 = vcmask 91136
    %4178 = vst.msk [vmem:[#allocation2] sm:$0x3] %vm4177, %v4172
    // Predicated region
    $region22: #{conv_model_forward.3} parent=1 // pred_check
      _
    $region23: #{conv_model_forward.3} parent=1 // pred_check_branch
      %4180 = sbr.rel (0) target = $region25
    $region24: #{conv_model_forward.3} parent=1 // pred_region
      %s4182 = ssub.s32 32, 32
      %4183 = vsyncadd [#allocation3], %s4182
      %s4185 = sshll.u32 [#allocation2], 4
      %s4186 = int_to_ptr.vmem [resolvable:$true] %s4185
      %4188 = dma.vmem_to_hbm [thread:$0]  %s4186, 32, %s5, [#allocation3]
    $region25: #{conv_model_forward.3} parent=1 // pred_fallthru
      _
    // Predicated region
    $region26: #{conv_model_forward.3} parent=1 // pred_check
      _
    $region27: #{conv_model_forward.3} parent=1 // pred_check_branch
      %4190 = sbr.rel (0) target = $region29
    $region28: #{conv_model_forward.3} parent=1 // pred_region
      %4191 = dma.done [#allocation3], 32
    $region29: #{conv_model_forward.3} parent=1 // pred_fallthru
      _
    %4192 = vsyncpa [#allocation3], 1

</llo_original>
